<compile_context>
chip_gen: v7x
topology: tpu7x:2x2x1
jax: 0.10.0
libtpu: 0.0.40
codegen_flags: <defaults>
</compile_context>

<pallas_src>
import collections
import functools

import numpy as np
import jax
import jax.numpy as jnp
from jax.experimental import pallas as pl
from jax.experimental.pallas import tpu as pltpu

Genotype = collections.namedtuple("Genotype", "normal normal_concat reduce reduce_concat")

GENOTYPE = Genotype(
    normal=[("sep_conv_3x3", 0), ("skip_connect", 1),
            ("max_pool_3x3", 0), ("avg_pool_3x3", 1),
            ("sep_conv_3x3", 1), ("skip_connect", 2),
            ("sep_conv_3x3", 2), ("max_pool_3x3", 3)],
    normal_concat=[2, 3, 4, 5],
    reduce=[],
    reduce_concat=[],
)

BN_EPS = 1e-5
_NEG_BIG = float(-3.0e38)

# 3x3 tap offsets, kh-major (matches the (C, 9) depthwise-weight layout).
_TAPS = tuple((a, b) for a in (-1, 0, 1) for b in (-1, 0, 1))


# --------------------------------------------------------------------------
# Host-side constants: boundary-validity masks + avg-pool reciprocal divisor.
# (Static given N, H, W -- computed once, passed in as tiny inputs.)
# --------------------------------------------------------------------------
@functools.lru_cache(maxsize=None)
def _pool_constants(N, H, W):
    M = N * H * W
    idx = np.arange(M)
    w = idx % W
    h = (idx // W) % H
    masks = []
    for (a, b) in _TAPS:
        hv = (h + a >= 0) & (h + a < H)
        wv = (w + b >= 0) & (w + b < W)
        masks.append((hv & wv).astype(np.float32))
    mask9 = np.stack(masks, axis=0)                                  # (9, M)
    inv_cnt = (1.0 / mask9.sum(axis=0)).reshape(1, M).astype(np.float32)
    return jnp.asarray(mask9), jnp.asarray(inv_cnt)


# --------------------------------------------------------------------------
# In-kernel helpers (operate on values; layout is (C, M) with M = N*H*W)
# --------------------------------------------------------------------------
def _shifted(x, a, b, W, M):
    """result[c, m] = x[c, m + a*W + b]  (lane roll on the XLU; caller masks)."""
    s = a * W + b
    if s == 0:
        return x
    return pltpu.roll(x, shift=(-s) % M, axis=1)


def _dwconv3x3(x, dw, mask9, W, M):
    """Depthwise 3x3, stride 1, zero padding.  x: (C, M), dw: (C, 9)."""
    acc = None
    for k, (a, b) in enumerate(_TAPS):
        z = _shifted(x, a, b, W, M)
        if (a, b) != (0, 0):
            z = z * mask9[k:k + 1, :]            # zero out the padded halo
        t = z * dw[:, k:k + 1]                   # per-channel weight (sublane bcast)
        acc = t if acc is None else acc + t
    return acc


def _max_pool3x3(x, mask9, W, M):
    """3x3 max pool, stride 1, padding 1 (padding never wins the max)."""
    acc = None
    for k, (a, b) in enumerate(_TAPS):
        z = _shifted(x, a, b, W, M)
        if (a, b) != (0, 0):
            z = jnp.where(mask9[k:k + 1, :] > 0.5, z, _NEG_BIG)
        acc = z if acc is None else jnp.maximum(acc, z)
    return acc


def _avg_pool3x3(x, mask9, inv_cnt, W, M):
    """3x3 avg pool, stride 1, padding 1, count_include_pad=False."""
    acc = None
    for k, (a, b) in enumerate(_TAPS):
        z = _shifted(x, a, b, W, M)
        if (a, b) != (0, 0):
            z = z * mask9[k:k + 1, :]
        acc = z if acc is None else acc + z
    return acc * inv_cnt


def _pw_conv_bn(x, wt, scale, bias):
    """1x1 conv + folded BN.  x: (Cin, M), wt: (Cout, Cin), scale/bias: (Cout, 1)."""
    z = jnp.dot(wt, x, preferred_element_type=jnp.float32)
    return z * scale + bias


def _relu_conv_bn(x, wt, scale, bias):
    return _pw_conv_bn(jnp.maximum(x, 0.0), wt, scale, bias)


def _sep_conv3x3(x, dw1, pw1, sc1, bi1, dw2, pw2, sc2, bi2, mask9, W, M):
    """SepConv: (ReLU, DW3x3, PW1x1, BN) x 2, stride 1."""
    y = jnp.maximum(x, 0.0)
    y = _dwconv3x3(y, dw1, mask9, W, M)
    y = _pw_conv_bn(y, pw1, sc1, bi1)
    y = jnp.maximum(y, 0.0)
    y = _dwconv3x3(y, dw2, mask9, W, M)
    y = _pw_conv_bn(y, pw2, sc2, bi2)
    return y


# --------------------------------------------------------------------------
# Fused cell kernel: preprocess0/1 + all edge ops + node adds + concat.
# --------------------------------------------------------------------------
def _cell_kernel(mask_ref, invcnt_ref, s0_ref, s1_ref,
                 w0_ref, sc0_ref, bi0_ref,
                 w1_ref, sc1_ref, bi1_ref,
                 dwa_ref, pwa_ref, sca_ref, bia_ref,
                 dwb_ref, pwb_ref, scb_ref, bib_ref,
                 o_ref, *, W, C, op_names, indices, concat):
    M = o_ref.shape[1]
    mask9 = mask_ref[...]
    inv_cnt = invcnt_ref[...]

    # preprocess0 / preprocess1 : ReLU -> 1x1 conv -> folded BN
    s0 = _relu_conv_bn(s0_ref[...], w0_ref[...], sc0_ref[...], bi0_ref[...])
    s1 = _relu_conv_bn(s1_ref[...], w1_ref[...], sc1_ref[...], bi1_ref[...])

    states = [s0, s1]
    sep_idx = 0
    for i in range(len(op_names) // 2):
        hs = []
        for j in (2 * i, 2 * i + 1):
            x = states[indices[j]]
            name = op_names[j]
            if name == "sep_conv_3x3":
                k = sep_idx
                sep_idx += 1
                h = _sep_conv3x3(x,
                                 dwa_ref[k], pwa_ref[k], sca_ref[k], bia_ref[k],
                                 dwb_ref[k], pwb_ref[k], scb_ref[k], bib_ref[k],
                                 mask9, W, M)
            elif name == "skip_connect":
                h = x                                     # Identity (stride 1)
            elif name == "max_pool_3x3":
                h = _max_pool3x3(x, mask9, W, M)
            elif name == "avg_pool_3x3":
                h = _avg_pool3x3(x, mask9, inv_cnt, W, M)
            else:
                raise NotImplementedError(name)
            hs.append(h)
        # eval mode / drop_prob == 0 -> no drop_path; add fused in-kernel
        states.append(hs[0] + hs[1])

    # torch.cat(dim=1)  ==  stack along the channel (sublane) axis
    for t, si in enumerate(concat):
        o_ref[t * C:(t + 1) * C, :] = states[si]


# --------------------------------------------------------------------------
# Deterministic parameter init (folded BN: mean=0, var=1, eps=1e-5)
# --------------------------------------------------------------------------
def _fold_bn(gamma, beta):
    scale = (gamma / jnp.sqrt(1.0 + BN_EPS)).reshape(-1, 1).astype(jnp.float32)
    bias = beta.reshape(-1, 1).astype(jnp.float32)
    return scale, bias


def _init_relu_conv_bn(key, cin, cout):
    kw, kg, kb = jax.random.split(key, 3)
    wt = (jax.random.normal(kw, (cout, cin), jnp.float32) / np.sqrt(cin)).astype(jnp.float32)
    gamma = 1.0 + 0.1 * jax.random.normal(kg, (cout,), jnp.float32)
    beta = 0.1 * jax.random.normal(kb, (cout,), jnp.float32)
    scale, bias = _fold_bn(gamma, beta)
    return wt, scale, bias


def _init_sep_conv(key, C):
    ks = jax.random.split(key, 8)
    dw1 = (jax.random.normal(ks[0], (C, 9), jnp.float32) / 3.0).astype(jnp.float32)
    pw1 = (jax.random.normal(ks[1], (C, C), jnp.float32) / np.sqrt(C)).astype(jnp.float32)
    s1, b1 = _fold_bn(1.0 + 0.1 * jax.random.normal(ks[2], (C,), jnp.float32),
                      0.1 * jax.random.normal(ks[3], (C,), jnp.float32))
    dw2 = (jax.random.normal(ks[4], (C, 9), jnp.float32) / 3.0).astype(jnp.float32)
    pw2 = (jax.random.normal(ks[5], (C, C), jnp.float32) / np.sqrt(C)).astype(jnp.float32)
    s2, b2 = _fold_bn(1.0 + 0.1 * jax.random.normal(ks[6], (C,), jnp.float32),
                      0.1 * jax.random.normal(ks[7], (C,), jnp.float32))
    return (dw1, pw1, s1, b1, dw2, pw2, s2, b2)


# --------------------------------------------------------------------------
# Cell (mirrors the PyTorch module, eval mode) -- one fused Pallas kernel
# --------------------------------------------------------------------------
class PallasCell:
    def __init__(self, key, genotype, C_prev_prev, C_prev, C,
                 reduction=False, reduction_prev=False):
        # TODO(synk): FactorizedReduce / stride-2 reduction ops and training-time
        # drop_path are not implemented; this synthetic config uses the normal cell.
        assert not reduction and not reduction_prev

        op_names, indices = zip(*genotype.normal)
        concat = genotype.normal_concat
        assert len(op_names) == len(indices)
        self._op_names = tuple(op_names)
        self._indices = tuple(int(i) for i in indices)
        self._concat = tuple(int(i) for i in concat)
        self._steps = len(op_names) // 2
        self.multiplier = len(concat)
        self.C = C

        keys = jax.random.split(key, 2 + len(op_names))
        self.pre0 = _init_relu_conv_bn(keys[0], C_prev_prev, C)  # ReLUConvBN(C_pp, C, 1,1,0)
        self.pre1 = _init_relu_conv_bn(keys[1], C_prev, C)       # ReLUConvBN(C_p,  C, 1,1,0)

        sep_params = []
        for j, (name, index) in enumerate(zip(op_names, indices)):
            stride = 2 if reduction and index < 2 else 1
            assert stride == 1
            if name == "sep_conv_3x3":
                sep_params.append(_init_sep_conv(keys[2 + j], C))
            elif name not in ("skip_connect", "max_pool_3x3", "avg_pool_3x3"):
                raise NotImplementedError(name)

        if not sep_params:  # keep stacked shapes non-degenerate (unused dummy)
            sep_params = [_init_sep_conv(keys[-1], C)]
        stacked = [jnp.stack([p[i] for p in sep_params]) for i in range(8)]
        (self.dwa, self.pwa, self.sca, self.bia,
         self.dwb, self.pwb, self.scb, self.bib) = stacked

    def __call__(self, s0, s1, drop_prob=0.0):
        # inputs follow the PyTorch convention: NCHW
        N, _, H, W = s0.shape
        M = N * H * W
        C = self.C

        # layout: NCHW -> (C, N*H*W): channels on sublanes, spatial lane-dense.
        s0f = jnp.transpose(s0, (1, 0, 2, 3)).reshape(s0.shape[1], M).astype(jnp.float32)
        s1f = jnp.transpose(s1, (1, 0, 2, 3)).reshape(s1.shape[1], M).astype(jnp.float32)

        mask9, inv_cnt = _pool_constants(N, H, W)

        kernel = functools.partial(
            _cell_kernel, W=W, C=C,
            op_names=self._op_names, indices=self._indices, concat=self._concat)

        out_flat = pl.pallas_call(
            kernel,
            out_shape=jax.ShapeDtypeStruct((self.multiplier * C, M), jnp.float32),
            in_specs=[pl.BlockSpec(memory_space=pltpu.MemorySpace.VMEM)] * 18,
            out_specs=pl.BlockSpec(memory_space=pltpu.MemorySpace.VMEM),
            compiler_params=pltpu.CompilerParams(vmem_limit_bytes=32 * 1024 * 1024),
        )(mask9, inv_cnt, s0f, s1f,
          *self.pre0, *self.pre1,
          self.dwa, self.pwa, self.sca, self.bia,
          self.dwb, self.pwb, self.scb, self.bib)

        # (mult*C, N*H*W) -> NCHW  (matches torch.cat(dim=1))
        out = out_flat.reshape(self.multiplier * C, N, H, W).transpose(1, 0, 2, 3)
        return out


# --------------------------------------------------------------------------
# Demo
# --------------------------------------------------------------------------
if __name__ == "__main__":
    N, C_pp, C_p, C, H, W = 2, 16, 16, 16, 16, 16

    key = jax.random.PRNGKey(0)
    k0, k1, kparams = jax.random.split(key, 3)
    s0 = jax.random.normal(k0, (N, C_pp, H, W), jnp.float32)   # NCHW, like torch
    s1 = jax.random.normal(k1, (N, C_p, H, W), jnp.float32)

    cell = PallasCell(kparams, GENOTYPE, C_pp, C_p, C,
                      reduction=False, reduction_prev=False)

    fwd = jax.jit(functools.partial(cell.__call__, drop_prob=0.0))
    out = fwd(s0, s1)
    jax.block_until_ready(out)

    expected = (N, cell.multiplier * C, H, W)
    assert out.shape == expected, (out.shape, expected)
    assert bool(jnp.all(jnp.isfinite(out)))
    print("KERNEL_OK")
</pallas_src>

<mosaic_0001>
module attributes {stable_mosaic.version = 11 : i64} {
  func.func @_cell_kernel(%arg0: memref<9x512xf32, #tpu.memory_space<vmem>>, %arg1: memref<1x512xf32, #tpu.memory_space<vmem>>, %arg2: memref<16x512xf32, #tpu.memory_space<vmem>>, %arg3: memref<16x512xf32, #tpu.memory_space<vmem>>, %arg4: memref<16x16xf32, #tpu.memory_space<vmem>>, %arg5: memref<16x1xf32, #tpu.memory_space<vmem>>, %arg6: memref<16x1xf32, #tpu.memory_space<vmem>>, %arg7: memref<16x16xf32, #tpu.memory_space<vmem>>, %arg8: memref<16x1xf32, #tpu.memory_space<vmem>>, %arg9: memref<16x1xf32, #tpu.memory_space<vmem>>, %arg10: memref<3x16x9xf32, #tpu.memory_space<vmem>>, %arg11: memref<3x16x16xf32, #tpu.memory_space<vmem>>, %arg12: memref<3x16x1xf32, #tpu.memory_space<vmem>>, %arg13: memref<3x16x1xf32, #tpu.memory_space<vmem>>, %arg14: memref<3x16x9xf32, #tpu.memory_space<vmem>>, %arg15: memref<3x16x16xf32, #tpu.memory_space<vmem>>, %arg16: memref<3x16x1xf32, #tpu.memory_space<vmem>>, %arg17: memref<3x16x1xf32, #tpu.memory_space<vmem>>, %arg18: memref<64x512xf32, #tpu.memory_space<vmem>>) attributes {dimension_semantics = [], scalar_prefetch = 0 : i64, scratch_operands = 0 : i64, tpu.core_type = #tpu.core_type<tc>} {
    %c0 = arith.constant 0 : index
    %c0_0 = arith.constant 0 : index
    %0 = vector.load %arg0[%c0, %c0_0] : memref<9x512xf32, #tpu.memory_space<vmem>>, vector<9x512xf32>
    %c0_1 = arith.constant 0 : index
    %c0_2 = arith.constant 0 : index
    %1 = vector.load %arg1[%c0_1, %c0_2] : memref<1x512xf32, #tpu.memory_space<vmem>>, vector<1x512xf32>
    %c0_3 = arith.constant 0 : index
    %c0_4 = arith.constant 0 : index
    %2 = vector.load %arg2[%c0_3, %c0_4] : memref<16x512xf32, #tpu.memory_space<vmem>>, vector<16x512xf32>
    %c0_5 = arith.constant 0 : index
    %c0_6 = arith.constant 0 : index
    %3 = vector.load %arg4[%c0_5, %c0_6] : memref<16x16xf32, #tpu.memory_space<vmem>>, vector<16x16xf32>
    %c0_7 = arith.constant 0 : index
    %c0_8 = arith.constant 0 : index
    %4 = vector.load %arg5[%c0_7, %c0_8] : memref<16x1xf32, #tpu.memory_space<vmem>>, vector<16x1xf32>
    %c0_9 = arith.constant 0 : index
    %c0_10 = arith.constant 0 : index
    %5 = vector.load %arg6[%c0_9, %c0_10] : memref<16x1xf32, #tpu.memory_space<vmem>>, vector<16x1xf32>
    %cst = arith.constant 0.000000e+00 : f32
    %6 = vector.broadcast %cst : f32 to vector<16x512xf32>
    %7 = arith.maximumf %2, %6 : vector<16x512xf32>
    %cst_11 = arith.constant dense<0.000000e+00> : vector<16x512xf32>
    %8 = tpu.matmul %3, %7, %cst_11 {dimension_numbers = #tpu.dot_dimension_numbers<[1], [0], [0], [1], [0, 0, 1, 1], [], []>} : vector<16x16xf32>, vector<16x512xf32>, vector<16x512xf32> -> vector<16x512xf32>
    %9 = vector.broadcast %4 : vector<16x1xf32> to vector<16x512xf32>
    %10 = arith.mulf %8, %9 : vector<16x512xf32>
    %11 = vector.broadcast %5 : vector<16x1xf32> to vector<16x512xf32>
    %12 = arith.addf %10, %11 : vector<16x512xf32>
    %c0_12 = arith.constant 0 : index
    %c0_13 = arith.constant 0 : index
    %13 = vector.load %arg3[%c0_12, %c0_13] : memref<16x512xf32, #tpu.memory_space<vmem>>, vector<16x512xf32>
    %c0_14 = arith.constant 0 : index
    %c0_15 = arith.constant 0 : index
    %14 = vector.load %arg7[%c0_14, %c0_15] : memref<16x16xf32, #tpu.memory_space<vmem>>, vector<16x16xf32>
    %c0_16 = arith.constant 0 : index
    %c0_17 = arith.constant 0 : index
    %15 = vector.load %arg8[%c0_16, %c0_17] : memref<16x1xf32, #tpu.memory_space<vmem>>, vector<16x1xf32>
    %c0_18 = arith.constant 0 : index
    %c0_19 = arith.constant 0 : index
    %16 = vector.load %arg9[%c0_18, %c0_19] : memref<16x1xf32, #tpu.memory_space<vmem>>, vector<16x1xf32>
    %cst_20 = arith.constant 0.000000e+00 : f32
    %17 = vector.broadcast %cst_20 : f32 to vector<16x512xf32>
    %18 = arith.maximumf %13, %17 : vector<16x512xf32>
    %cst_21 = arith.constant dense<0.000000e+00> : vector<16x512xf32>
    %19 = tpu.matmul %14, %18, %cst_21 {dimension_numbers = #tpu.dot_dimension_numbers<[1], [0], [0], [1], [0, 0, 1, 1], [], []>} : vector<16x16xf32>, vector<16x512xf32>, vector<16x512xf32> -> vector<16x512xf32>
    %20 = vector.broadcast %15 : vector<16x1xf32> to vector<16x512xf32>
    %21 = arith.mulf %19, %20 : vector<16x512xf32>
    %22 = vector.broadcast %16 : vector<16x1xf32> to vector<16x512xf32>
    %23 = arith.addf %21, %22 : vector<16x512xf32>
    %c0_22 = arith.constant 0 : index
    %c0_23 = arith.constant 0 : index
    %c0_24 = arith.constant 0 : index
    %24 = vector.load %arg10[%c0_22, %c0_23, %c0_24] : memref<3x16x9xf32, #tpu.memory_space<vmem>>, vector<1x16x9xf32>
    %25 = vector.shape_cast %24 : vector<1x16x9xf32> to vector<16x9xf32>
    %c0_25 = arith.constant 0 : index
    %c0_26 = arith.constant 0 : index
    %c0_27 = arith.constant 0 : index
    %26 = vector.load %arg11[%c0_25, %c0_26, %c0_27] : memref<3x16x16xf32, #tpu.memory_space<vmem>>, vector<1x16x16xf32>
    %27 = vector.shape_cast %26 : vector<1x16x16xf32> to vector<16x16xf32>
    %c0_28 = arith.constant 0 : index
    %c0_29 = arith.constant 0 : index
    %c0_30 = arith.constant 0 : index
    %28 = vector.load %arg12[%c0_28, %c0_29, %c0_30] : memref<3x16x1xf32, #tpu.memory_space<vmem>>, vector<1x16x1xf32>
    %29 = vector.shape_cast %28 : vector<1x16x1xf32> to vector<16x1xf32>
    %c0_31 = arith.constant 0 : index
    %c0_32 = arith.constant 0 : index
    %c0_33 = arith.constant 0 : index
    %30 = vector.load %arg13[%c0_31, %c0_32, %c0_33] : memref<3x16x1xf32, #tpu.memory_space<vmem>>, vector<1x16x1xf32>
    %31 = vector.shape_cast %30 : vector<1x16x1xf32> to vector<16x1xf32>
    %c0_34 = arith.constant 0 : index
    %c0_35 = arith.constant 0 : index
    %c0_36 = arith.constant 0 : index
    %32 = vector.load %arg14[%c0_34, %c0_35, %c0_36] : memref<3x16x9xf32, #tpu.memory_space<vmem>>, vector<1x16x9xf32>
    %33 = vector.shape_cast %32 : vector<1x16x9xf32> to vector<16x9xf32>
    %c0_37 = arith.constant 0 : index
    %c0_38 = arith.constant 0 : index
    %c0_39 = arith.constant 0 : index
    %34 = vector.load %arg15[%c0_37, %c0_38, %c0_39] : memref<3x16x16xf32, #tpu.memory_space<vmem>>, vector<1x16x16xf32>
    %35 = vector.shape_cast %34 : vector<1x16x16xf32> to vector<16x16xf32>
    %c0_40 = arith.constant 0 : index
    %c0_41 = arith.constant 0 : index
    %c0_42 = arith.constant 0 : index
    %36 = vector.load %arg16[%c0_40, %c0_41, %c0_42] : memref<3x16x1xf32, #tpu.memory_space<vmem>>, vector<1x16x1xf32>
    %37 = vector.shape_cast %36 : vector<1x16x1xf32> to vector<16x1xf32>
    %c0_43 = arith.constant 0 : index
    %c0_44 = arith.constant 0 : index
    %c0_45 = arith.constant 0 : index
    %38 = vector.load %arg17[%c0_43, %c0_44, %c0_45] : memref<3x16x1xf32, #tpu.memory_space<vmem>>, vector<1x16x1xf32>
    %39 = vector.shape_cast %38 : vector<1x16x1xf32> to vector<16x1xf32>
    %cst_46 = arith.constant 0.000000e+00 : f32
    %40 = vector.broadcast %cst_46 : f32 to vector<16x512xf32>
    %41 = arith.maximumf %12, %40 : vector<16x512xf32>
    %c17_i32 = arith.constant 17 : i32
    %42 = tpu.dynamic_rotate %41 by %c17_i32 dim 1 : vector<16x512xf32>, i32 -> vector<16x512xf32>
    %43 = vector.extract_strided_slice %0 {offsets = [0, 0], sizes = [1, 512], strides = [1, 1]} : vector<9x512xf32> to vector<1x512xf32>
    %44 = vector.broadcast %43 : vector<1x512xf32> to vector<16x512xf32>
    %45 = arith.mulf %42, %44 : vector<16x512xf32>
    %46 = vector.extract_strided_slice %25 {offsets = [0, 0], sizes = [16, 1], strides = [1, 1]} : vector<16x9xf32> to vector<16x1xf32>
    %47 = vector.broadcast %46 : vector<16x1xf32> to vector<16x512xf32>
    %48 = arith.mulf %45, %47 : vector<16x512xf32>
    %c16_i32 = arith.constant 16 : i32
    %49 = tpu.dynamic_rotate %41 by %c16_i32 dim 1 : vector<16x512xf32>, i32 -> vector<16x512xf32>
    %50 = vector.extract_strided_slice %0 {offsets = [1, 0], sizes = [1, 512], strides = [1, 1]} : vector<9x512xf32> to vector<1x512xf32>
    %51 = vector.broadcast %50 : vector<1x512xf32> to vector<16x512xf32>
    %52 = arith.mulf %49, %51 : vector<16x512xf32>
    %53 = vector.extract_strided_slice %25 {offsets = [0, 1], sizes = [16, 1], strides = [1, 1]} : vector<16x9xf32> to vector<16x1xf32>
    %54 = vector.broadcast %53 : vector<16x1xf32> to vector<16x512xf32>
    %55 = arith.mulf %52, %54 : vector<16x512xf32>
    %56 = arith.addf %48, %55 : vector<16x512xf32>
    %c15_i32 = arith.constant 15 : i32
    %57 = tpu.dynamic_rotate %41 by %c15_i32 dim 1 : vector<16x512xf32>, i32 -> vector<16x512xf32>
    %58 = vector.extract_strided_slice %0 {offsets = [2, 0], sizes = [1, 512], strides = [1, 1]} : vector<9x512xf32> to vector<1x512xf32>
    %59 = vector.broadcast %58 : vector<1x512xf32> to vector<16x512xf32>
    %60 = arith.mulf %57, %59 : vector<16x512xf32>
    %61 = vector.extract_strided_slice %25 {offsets = [0, 2], sizes = [16, 1], strides = [1, 1]} : vector<16x9xf32> to vector<16x1xf32>
    %62 = vector.broadcast %61 : vector<16x1xf32> to vector<16x512xf32>
    %63 = arith.mulf %60, %62 : vector<16x512xf32>
    %64 = arith.addf %56, %63 : vector<16x512xf32>
    %c1_i32 = arith.constant 1 : i32
    %65 = tpu.dynamic_rotate %41 by %c1_i32 dim 1 : vector<16x512xf32>, i32 -> vector<16x512xf32>
    %66 = vector.extract_strided_slice %0 {offsets = [3, 0], sizes = [1, 512], strides = [1, 1]} : vector<9x512xf32> to vector<1x512xf32>
    %67 = vector.broadcast %66 : vector<1x512xf32> to vector<16x512xf32>
    %68 = arith.mulf %65, %67 : vector<16x512xf32>
    %69 = vector.extract_strided_slice %25 {offsets = [0, 3], sizes = [16, 1], strides = [1, 1]} : vector<16x9xf32> to vector<16x1xf32>
    %70 = vector.broadcast %69 : vector<16x1xf32> to vector<16x512xf32>
    %71 = arith.mulf %68, %70 : vector<16x512xf32>
    %72 = arith.addf %64, %71 : vector<16x512xf32>
    %73 = vector.extract_strided_slice %25 {offsets = [0, 4], sizes = [16, 1], strides = [1, 1]} : vector<16x9xf32> to vector<16x1xf32>
    %74 = vector.broadcast %73 : vector<16x1xf32> to vector<16x512xf32>
    %75 = arith.mulf %41, %74 : vector<16x512xf32>
    %76 = arith.addf %72, %75 : vector<16x512xf32>
    %c511_i32 = arith.constant 511 : i32
    %77 = tpu.dynamic_rotate %41 by %c511_i32 dim 1 : vector<16x512xf32>, i32 -> vector<16x512xf32>
    %78 = vector.extract_strided_slice %0 {offsets = [5, 0], sizes = [1, 512], strides = [1, 1]} : vector<9x512xf32> to vector<1x512xf32>
    %79 = vector.broadcast %78 : vector<1x512xf32> to vector<16x512xf32>
    %80 = arith.mulf %77, %79 : vector<16x512xf32>
    %81 = vector.extract_strided_slice %25 {offsets = [0, 5], sizes = [16, 1], strides = [1, 1]} : vector<16x9xf32> to vector<16x1xf32>
    %82 = vector.broadcast %81 : vector<16x1xf32> to vector<16x512xf32>
    %83 = arith.mulf %80, %82 : vector<16x512xf32>
    %84 = arith.addf %76, %83 : vector<16x512xf32>
    %c497_i32 = arith.constant 497 : i32
    %85 = tpu.dynamic_rotate %41 by %c497_i32 dim 1 : vector<16x512xf32>, i32 -> vector<16x512xf32>
    %86 = vector.extract_strided_slice %0 {offsets = [6, 0], sizes = [1, 512], strides = [1, 1]} : vector<9x512xf32> to vector<1x512xf32>
    %87 = vector.broadcast %86 : vector<1x512xf32> to vector<16x512xf32>
    %88 = arith.mulf %85, %87 : vector<16x512xf32>
    %89 = vector.extract_strided_slice %25 {offsets = [0, 6], sizes = [16, 1], strides = [1, 1]} : vector<16x9xf32> to vector<16x1xf32>
    %90 = vector.broadcast %89 : vector<16x1xf32> to vector<16x512xf32>
    %91 = arith.mulf %88, %90 : vector<16x512xf32>
    %92 = arith.addf %84, %91 : vector<16x512xf32>
    %c496_i32 = arith.constant 496 : i32
    %93 = tpu.dynamic_rotate %41 by %c496_i32 dim 1 : vector<16x512xf32>, i32 -> vector<16x512xf32>
    %94 = vector.extract_strided_slice %0 {offsets = [7, 0], sizes = [1, 512], strides = [1, 1]} : vector<9x512xf32> to vector<1x512xf32>
    %95 = vector.broadcast %94 : vector<1x512xf32> to vector<16x512xf32>
    %96 = arith.mulf %93, %95 : vector<16x512xf32>
    %97 = vector.extract_strided_slice %25 {offsets = [0, 7], sizes = [16, 1], strides = [1, 1]} : vector<16x9xf32> to vector<16x1xf32>
    %98 = vector.broadcast %97 : vector<16x1xf32> to vector<16x512xf32>
    %99 = arith.mulf %96, %98 : vector<16x512xf32>
    %100 = arith.addf %92, %99 : vector<16x512xf32>
    %c495_i32 = arith.constant 495 : i32
    %101 = tpu.dynamic_rotate %41 by %c495_i32 dim 1 : vector<16x512xf32>, i32 -> vector<16x512xf32>
    %102 = vector.extract_strided_slice %0 {offsets = [8, 0], sizes = [1, 512], strides = [1, 1]} : vector<9x512xf32> to vector<1x512xf32>
    %103 = vector.broadcast %102 : vector<1x512xf32> to vector<16x512xf32>
    %104 = arith.mulf %101, %103 : vector<16x512xf32>
    %105 = vector.extract_strided_slice %25 {offsets = [0, 8], sizes = [16, 1], strides = [1, 1]} : vector<16x9xf32> to vector<16x1xf32>
    %106 = vector.broadcast %105 : vector<16x1xf32> to vector<16x512xf32>
    %107 = arith.mulf %104, %106 : vector<16x512xf32>
    %108 = arith.addf %100, %107 : vector<16x512xf32>
    %cst_47 = arith.constant dense<0.000000e+00> : vector<16x512xf32>
    %109 = tpu.matmul %27, %108, %cst_47 {dimension_numbers = #tpu.dot_dimension_numbers<[1], [0], [0], [1], [0, 0, 1, 1], [], []>} : vector<16x16xf32>, vector<16x512xf32>, vector<16x512xf32> -> vector<16x512xf32>
    %110 = vector.broadcast %29 : vector<16x1xf32> to vector<16x512xf32>
    %111 = arith.mulf %109, %110 : vector<16x512xf32>
    %112 = vector.broadcast %31 : vector<16x1xf32> to vector<16x512xf32>
    %113 = arith.addf %111, %112 : vector<16x512xf32>
    %cst_48 = arith.constant 0.000000e+00 : f32
    %114 = vector.broadcast %cst_48 : f32 to vector<16x512xf32>
    %115 = arith.maximumf %113, %114 : vector<16x512xf32>
    %c17_i32_49 = arith.constant 17 : i32
    %116 = tpu.dynamic_rotate %115 by %c17_i32_49 dim 1 : vector<16x512xf32>, i32 -> vector<16x512xf32>
    %117 = vector.extract_strided_slice %0 {offsets = [0, 0], sizes = [1, 512], strides = [1, 1]} : vector<9x512xf32> to vector<1x512xf32>
    %118 = vector.broadcast %117 : vector<1x512xf32> to vector<16x512xf32>
    %119 = arith.mulf %116, %118 : vector<16x512xf32>
    %120 = vector.extract_strided_slice %33 {offsets = [0, 0], sizes = [16, 1], strides = [1, 1]} : vector<16x9xf32> to vector<16x1xf32>
    %121 = vector.broadcast %120 : vector<16x1xf32> to vector<16x512xf32>
    %122 = arith.mulf %119, %121 : vector<16x512xf32>
    %c16_i32_50 = arith.constant 16 : i32
    %123 = tpu.dynamic_rotate %115 by %c16_i32_50 dim 1 : vector<16x512xf32>, i32 -> vector<16x512xf32>
    %124 = vector.extract_strided_slice %0 {offsets = [1, 0], sizes = [1, 512], strides = [1, 1]} : vector<9x512xf32> to vector<1x512xf32>
    %125 = vector.broadcast %124 : vector<1x512xf32> to vector<16x512xf32>
    %126 = arith.mulf %123, %125 : vector<16x512xf32>
    %127 = vector.extract_strided_slice %33 {offsets = [0, 1], sizes = [16, 1], strides = [1, 1]} : vector<16x9xf32> to vector<16x1xf32>
    %128 = vector.broadcast %127 : vector<16x1xf32> to vector<16x512xf32>
    %129 = arith.mulf %126, %128 : vector<16x512xf32>
    %130 = arith.addf %122, %129 : vector<16x512xf32>
    %c15_i32_51 = arith.constant 15 : i32
    %131 = tpu.dynamic_rotate %115 by %c15_i32_51 dim 1 : vector<16x512xf32>, i32 -> vector<16x512xf32>
    %132 = vector.extract_strided_slice %0 {offsets = [2, 0], sizes = [1, 512], strides = [1, 1]} : vector<9x512xf32> to vector<1x512xf32>
    %133 = vector.broadcast %132 : vector<1x512xf32> to vector<16x512xf32>
    %134 = arith.mulf %131, %133 : vector<16x512xf32>
    %135 = vector.extract_strided_slice %33 {offsets = [0, 2], sizes = [16, 1], strides = [1, 1]} : vector<16x9xf32> to vector<16x1xf32>
    %136 = vector.broadcast %135 : vector<16x1xf32> to vector<16x512xf32>
    %137 = arith.mulf %134, %136 : vector<16x512xf32>
    %138 = arith.addf %130, %137 : vector<16x512xf32>
    %c1_i32_52 = arith.constant 1 : i32
    %139 = tpu.dynamic_rotate %115 by %c1_i32_52 dim 1 : vector<16x512xf32>, i32 -> vector<16x512xf32>
    %140 = vector.extract_strided_slice %0 {offsets = [3, 0], sizes = [1, 512], strides = [1, 1]} : vector<9x512xf32> to vector<1x512xf32>
    %141 = vector.broadcast %140 : vector<1x512xf32> to vector<16x512xf32>
    %142 = arith.mulf %139, %141 : vector<16x512xf32>
    %143 = vector.extract_strided_slice %33 {offsets = [0, 3], sizes = [16, 1], strides = [1, 1]} : vector<16x9xf32> to vector<16x1xf32>
    %144 = vector.broadcast %143 : vector<16x1xf32> to vector<16x512xf32>
    %145 = arith.mulf %142, %144 : vector<16x512xf32>
    %146 = arith.addf %138, %145 : vector<16x512xf32>
    %147 = vector.extract_strided_slice %33 {offsets = [0, 4], sizes = [16, 1], strides = [1, 1]} : vector<16x9xf32> to vector<16x1xf32>
    %148 = vector.broadcast %147 : vector<16x1xf32> to vector<16x512xf32>
    %149 = arith.mulf %115, %148 : vector<16x512xf32>
    %150 = arith.addf %146, %149 : vector<16x512xf32>
    %c511_i32_53 = arith.constant 511 : i32
    %151 = tpu.dynamic_rotate %115 by %c511_i32_53 dim 1 : vector<16x512xf32>, i32 -> vector<16x512xf32>
    %152 = vector.extract_strided_slice %0 {offsets = [5, 0], sizes = [1, 512], strides = [1, 1]} : vector<9x512xf32> to vector<1x512xf32>
    %153 = vector.broadcast %152 : vector<1x512xf32> to vector<16x512xf32>
    %154 = arith.mulf %151, %153 : vector<16x512xf32>
    %155 = vector.extract_strided_slice %33 {offsets = [0, 5], sizes = [16, 1], strides = [1, 1]} : vector<16x9xf32> to vector<16x1xf32>
    %156 = vector.broadcast %155 : vector<16x1xf32> to vector<16x512xf32>
    %157 = arith.mulf %154, %156 : vector<16x512xf32>
    %158 = arith.addf %150, %157 : vector<16x512xf32>
    %c497_i32_54 = arith.constant 497 : i32
    %159 = tpu.dynamic_rotate %115 by %c497_i32_54 dim 1 : vector<16x512xf32>, i32 -> vector<16x512xf32>
    %160 = vector.extract_strided_slice %0 {offsets = [6, 0], sizes = [1, 512], strides = [1, 1]} : vector<9x512xf32> to vector<1x512xf32>
    %161 = vector.broadcast %160 : vector<1x512xf32> to vector<16x512xf32>
    %162 = arith.mulf %159, %161 : vector<16x512xf32>
    %163 = vector.extract_strided_slice %33 {offsets = [0, 6], sizes = [16, 1], strides = [1, 1]} : vector<16x9xf32> to vector<16x1xf32>
    %164 = vector.broadcast %163 : vector<16x1xf32> to vector<16x512xf32>
    %165 = arith.mulf %162, %164 : vector<16x512xf32>
    %166 = arith.addf %158, %165 : vector<16x512xf32>
    %c496_i32_55 = arith.constant 496 : i32
    %167 = tpu.dynamic_rotate %115 by %c496_i32_55 dim 1 : vector<16x512xf32>, i32 -> vector<16x512xf32>
    %168 = vector.extract_strided_slice %0 {offsets = [7, 0], sizes = [1, 512], strides = [1, 1]} : vector<9x512xf32> to vector<1x512xf32>
    %169 = vector.broadcast %168 : vector<1x512xf32> to vector<16x512xf32>
    %170 = arith.mulf %167, %169 : vector<16x512xf32>
    %171 = vector.extract_strided_slice %33 {offsets = [0, 7], sizes = [16, 1], strides = [1, 1]} : vector<16x9xf32> to vector<16x1xf32>
    %172 = vector.broadcast %171 : vector<16x1xf32> to vector<16x512xf32>
    %173 = arith.mulf %170, %172 : vector<16x512xf32>
    %174 = arith.addf %166, %173 : vector<16x512xf32>
    %c495_i32_56 = arith.constant 495 : i32
    %175 = tpu.dynamic_rotate %115 by %c495_i32_56 dim 1 : vector<16x512xf32>, i32 -> vector<16x512xf32>
    %176 = vector.extract_strided_slice %0 {offsets = [8, 0], sizes = [1, 512], strides = [1, 1]} : vector<9x512xf32> to vector<1x512xf32>
    %177 = vector.broadcast %176 : vector<1x512xf32> to vector<16x512xf32>
    %178 = arith.mulf %175, %177 : vector<16x512xf32>
    %179 = vector.extract_strided_slice %33 {offsets = [0, 8], sizes = [16, 1], strides = [1, 1]} : vector<16x9xf32> to vector<16x1xf32>
    %180 = vector.broadcast %179 : vector<16x1xf32> to vector<16x512xf32>
    %181 = arith.mulf %178, %180 : vector<16x512xf32>
    %182 = arith.addf %174, %181 : vector<16x512xf32>
    %cst_57 = arith.constant dense<0.000000e+00> : vector<16x512xf32>
    %183 = tpu.matmul %35, %182, %cst_57 {dimension_numbers = #tpu.dot_dimension_numbers<[1], [0], [0], [1], [0, 0, 1, 1], [], []>} : vector<16x16xf32>, vector<16x512xf32>, vector<16x512xf32> -> vector<16x512xf32>
    %184 = vector.broadcast %37 : vector<16x1xf32> to vector<16x512xf32>
    %185 = arith.mulf %183, %184 : vector<16x512xf32>
    %186 = vector.broadcast %39 : vector<16x1xf32> to vector<16x512xf32>
    %187 = arith.addf %185, %186 : vector<16x512xf32>
    %188 = arith.addf %187, %23 : vector<16x512xf32>
    %c17_i32_58 = arith.constant 17 : i32
    %189 = tpu.dynamic_rotate %12 by %c17_i32_58 dim 1 : vector<16x512xf32>, i32 -> vector<16x512xf32>
    %190 = vector.extract_strided_slice %0 {offsets = [0, 0], sizes = [1, 512], strides = [1, 1]} : vector<9x512xf32> to vector<1x512xf32>
    %cst_59 = arith.constant 5.000000e-01 : f32
    %191 = vector.broadcast %cst_59 : f32 to vector<1x512xf32>
    %192 = arith.cmpf ogt, %190, %191 : vector<1x512xf32>
    %cst_60 = arith.constant -3.000000e+38 : f32
    %193 = vector.shape_cast %192 : vector<1x512xi1> to vector<1x512xi1>
    %194 = vector.broadcast %193 : vector<1x512xi1> to vector<16x512xi1>
    %195 = vector.broadcast %cst_60 : f32 to vector<16x512xf32>
    %196 = arith.select %194, %189, %195 : vector<16x512xi1>, vector<16x512xf32>
    %c16_i32_61 = arith.constant 16 : i32
    %197 = tpu.dynamic_rotate %12 by %c16_i32_61 dim 1 : vector<16x512xf32>, i32 -> vector<16x512xf32>
    %198 = vector.extract_strided_slice %0 {offsets = [1, 0], sizes = [1, 512], strides = [1, 1]} : vector<9x512xf32> to vector<1x512xf32>
    %cst_62 = arith.constant 5.000000e-01 : f32
    %199 = vector.broadcast %cst_62 : f32 to vector<1x512xf32>
    %200 = arith.cmpf ogt, %198, %199 : vector<1x512xf32>
    %cst_63 = arith.constant -3.000000e+38 : f32
    %201 = vector.shape_cast %200 : vector<1x512xi1> to vector<1x512xi1>
    %202 = vector.broadcast %201 : vector<1x512xi1> to vector<16x512xi1>
    %203 = vector.broadcast %cst_63 : f32 to vector<16x512xf32>
    %204 = arith.select %202, %197, %203 : vector<16x512xi1>, vector<16x512xf32>
    %205 = arith.maximumf %196, %204 : vector<16x512xf32>
    %c15_i32_64 = arith.constant 15 : i32
    %206 = tpu.dynamic_rotate %12 by %c15_i32_64 dim 1 : vector<16x512xf32>, i32 -> vector<16x512xf32>
    %207 = vector.extract_strided_slice %0 {offsets = [2, 0], sizes = [1, 512], strides = [1, 1]} : vector<9x512xf32> to vector<1x512xf32>
    %cst_65 = arith.constant 5.000000e-01 : f32
    %208 = vector.broadcast %cst_65 : f32 to vector<1x512xf32>
    %209 = arith.cmpf ogt, %207, %208 : vector<1x512xf32>
    %cst_66 = arith.constant -3.000000e+38 : f32
    %210 = vector.shape_cast %209 : vector<1x512xi1> to vector<1x512xi1>
    %211 = vector.broadcast %210 : vector<1x512xi1> to vector<16x512xi1>
    %212 = vector.broadcast %cst_66 : f32 to vector<16x512xf32>
    %213 = arith.select %211, %206, %212 : vector<16x512xi1>, vector<16x512xf32>
    %214 = arith.maximumf %205, %213 : vector<16x512xf32>
    %c1_i32_67 = arith.constant 1 : i32
    %215 = tpu.dynamic_rotate %12 by %c1_i32_67 dim 1 : vector<16x512xf32>, i32 -> vector<16x512xf32>
    %216 = vector.extract_strided_slice %0 {offsets = [3, 0], sizes = [1, 512], strides = [1, 1]} : vector<9x512xf32> to vector<1x512xf32>
    %cst_68 = arith.constant 5.000000e-01 : f32
    %217 = vector.broadcast %cst_68 : f32 to vector<1x512xf32>
    %218 = arith.cmpf ogt, %216, %217 : vector<1x512xf32>
    %cst_69 = arith.constant -3.000000e+38 : f32
    %219 = vector.shape_cast %218 : vector<1x512xi1> to vector<1x512xi1>
    %220 = vector.broadcast %219 : vector<1x512xi1> to vector<16x512xi1>
    %221 = vector.broadcast %cst_69 : f32 to vector<16x512xf32>
    %222 = arith.select %220, %215, %221 : vector<16x512xi1>, vector<16x512xf32>
    %223 = arith.maximumf %214, %222 : vector<16x512xf32>
    %224 = arith.maximumf %223, %12 : vector<16x512xf32>
    %c511_i32_70 = arith.constant 511 : i32
    %225 = tpu.dynamic_rotate %12 by %c511_i32_70 dim 1 : vector<16x512xf32>, i32 -> vector<16x512xf32>
    %226 = vector.extract_strided_slice %0 {offsets = [5, 0], sizes = [1, 512], strides = [1, 1]} : vector<9x512xf32> to vector<1x512xf32>
    %cst_71 = arith.constant 5.000000e-01 : f32
    %227 = vector.broadcast %cst_71 : f32 to vector<1x512xf32>
    %228 = arith.cmpf ogt, %226, %227 : vector<1x512xf32>
    %cst_72 = arith.constant -3.000000e+38 : f32
    %229 = vector.shape_cast %228 : vector<1x512xi1> to vector<1x512xi1>
    %230 = vector.broadcast %229 : vector<1x512xi1> to vector<16x512xi1>
    %231 = vector.broadcast %cst_72 : f32 to vector<16x512xf32>
    %232 = arith.select %230, %225, %231 : vector<16x512xi1>, vector<16x512xf32>
    %233 = arith.maximumf %224, %232 : vector<16x512xf32>
    %c497_i32_73 = arith.constant 497 : i32
    %234 = tpu.dynamic_rotate %12 by %c497_i32_73 dim 1 : vector<16x512xf32>, i32 -> vector<16x512xf32>
    %235 = vector.extract_strided_slice %0 {offsets = [6, 0], sizes = [1, 512], strides = [1, 1]} : vector<9x512xf32> to vector<1x512xf32>
    %cst_74 = arith.constant 5.000000e-01 : f32
    %236 = vector.broadcast %cst_74 : f32 to vector<1x512xf32>
    %237 = arith.cmpf ogt, %235, %236 : vector<1x512xf32>
    %cst_75 = arith.constant -3.000000e+38 : f32
    %238 = vector.shape_cast %237 : vector<1x512xi1> to vector<1x512xi1>
    %239 = vector.broadcast %238 : vector<1x512xi1> to vector<16x512xi1>
    %240 = vector.broadcast %cst_75 : f32 to vector<16x512xf32>
    %241 = arith.select %239, %234, %240 : vector<16x512xi1>, vector<16x512xf32>
    %242 = arith.maximumf %233, %241 : vector<16x512xf32>
    %c496_i32_76 = arith.constant 496 : i32
    %243 = tpu.dynamic_rotate %12 by %c496_i32_76 dim 1 : vector<16x512xf32>, i32 -> vector<16x512xf32>
    %244 = vector.extract_strided_slice %0 {offsets = [7, 0], sizes = [1, 512], strides = [1, 1]} : vector<9x512xf32> to vector<1x512xf32>
    %cst_77 = arith.constant 5.000000e-01 : f32
    %245 = vector.broadcast %cst_77 : f32 to vector<1x512xf32>
    %246 = arith.cmpf ogt, %244, %245 : vector<1x512xf32>
    %cst_78 = arith.constant -3.000000e+38 : f32
    %247 = vector.shape_cast %246 : vector<1x512xi1> to vector<1x512xi1>
    %248 = vector.broadcast %247 : vector<1x512xi1> to vector<16x512xi1>
    %249 = vector.broadcast %cst_78 : f32 to vector<16x512xf32>
    %250 = arith.select %248, %243, %249 : vector<16x512xi1>, vector<16x512xf32>
    %251 = arith.maximumf %242, %250 : vector<16x512xf32>
    %c495_i32_79 = arith.constant 495 : i32
    %252 = tpu.dynamic_rotate %12 by %c495_i32_79 dim 1 : vector<16x512xf32>, i32 -> vector<16x512xf32>
    %253 = vector.extract_strided_slice %0 {offsets = [8, 0], sizes = [1, 512], strides = [1, 1]} : vector<9x512xf32> to vector<1x512xf32>
    %cst_80 = arith.constant 5.000000e-01 : f32
    %254 = vector.broadcast %cst_80 : f32 to vector<1x512xf32>
    %255 = arith.cmpf ogt, %253, %254 : vector<1x512xf32>
    %cst_81 = arith.constant -3.000000e+38 : f32
    %256 = vector.shape_cast %255 : vector<1x512xi1> to vector<1x512xi1>
    %257 = vector.broadcast %256 : vector<1x512xi1> to vector<16x512xi1>
    %258 = vector.broadcast %cst_81 : f32 to vector<16x512xf32>
    %259 = arith.select %257, %252, %258 : vector<16x512xi1>, vector<16x512xf32>
    %260 = arith.maximumf %251, %259 : vector<16x512xf32>
    %c17_i32_82 = arith.constant 17 : i32
    %261 = tpu.dynamic_rotate %23 by %c17_i32_82 dim 1 : vector<16x512xf32>, i32 -> vector<16x512xf32>
    %262 = vector.extract_strided_slice %0 {offsets = [0, 0], sizes = [1, 512], strides = [1, 1]} : vector<9x512xf32> to vector<1x512xf32>
    %263 = vector.broadcast %262 : vector<1x512xf32> to vector<16x512xf32>
    %264 = arith.mulf %261, %263 : vector<16x512xf32>
    %c16_i32_83 = arith.constant 16 : i32
    %265 = tpu.dynamic_rotate %23 by %c16_i32_83 dim 1 : vector<16x512xf32>, i32 -> vector<16x512xf32>
    %266 = vector.extract_strided_slice %0 {offsets = [1, 0], sizes = [1, 512], strides = [1, 1]} : vector<9x512xf32> to vector<1x512xf32>
    %267 = vector.broadcast %266 : vector<1x512xf32> to vector<16x512xf32>
    %268 = arith.mulf %265, %267 : vector<16x512xf32>
    %269 = arith.addf %264, %268 : vector<16x512xf32>
    %c15_i32_84 = arith.constant 15 : i32
    %270 = tpu.dynamic_rotate %23 by %c15_i32_84 dim 1 : vector<16x512xf32>, i32 -> vector<16x512xf32>
    %271 = vector.extract_strided_slice %0 {offsets = [2, 0], sizes = [1, 512], strides = [1, 1]} : vector<9x512xf32> to vector<1x512xf32>
    %272 = vector.broadcast %271 : vector<1x512xf32> to vector<16x512xf32>
    %273 = arith.mulf %270, %272 : vector<16x512xf32>
    %274 = arith.addf %269, %273 : vector<16x512xf32>
    %c1_i32_85 = arith.constant 1 : i32
    %275 = tpu.dynamic_rotate %23 by %c1_i32_85 dim 1 : vector<16x512xf32>, i32 -> vector<16x512xf32>
    %276 = vector.extract_strided_slice %0 {offsets = [3, 0], sizes = [1, 512], strides = [1, 1]} : vector<9x512xf32> to vector<1x512xf32>
    %277 = vector.broadcast %276 : vector<1x512xf32> to vector<16x512xf32>
    %278 = arith.mulf %275, %277 : vector<16x512xf32>
    %279 = arith.addf %274, %278 : vector<16x512xf32>
    %280 = arith.addf %279, %23 : vector<16x512xf32>
    %c511_i32_86 = arith.constant 511 : i32
    %281 = tpu.dynamic_rotate %23 by %c511_i32_86 dim 1 : vector<16x512xf32>, i32 -> vector<16x512xf32>
    %282 = vector.extract_strided_slice %0 {offsets = [5, 0], sizes = [1, 512], strides = [1, 1]} : vector<9x512xf32> to vector<1x512xf32>
    %283 = vector.broadcast %282 : vector<1x512xf32> to vector<16x512xf32>
    %284 = arith.mulf %281, %283 : vector<16x512xf32>
    %285 = arith.addf %280, %284 : vector<16x512xf32>
    %c497_i32_87 = arith.constant 497 : i32
    %286 = tpu.dynamic_rotate %23 by %c497_i32_87 dim 1 : vector<16x512xf32>, i32 -> vector<16x512xf32>
    %287 = vector.extract_strided_slice %0 {offsets = [6, 0], sizes = [1, 512], strides = [1, 1]} : vector<9x512xf32> to vector<1x512xf32>
    %288 = vector.broadcast %287 : vector<1x512xf32> to vector<16x512xf32>
    %289 = arith.mulf %286, %288 : vector<16x512xf32>
    %290 = arith.addf %285, %289 : vector<16x512xf32>
    %c496_i32_88 = arith.constant 496 : i32
    %291 = tpu.dynamic_rotate %23 by %c496_i32_88 dim 1 : vector<16x512xf32>, i32 -> vector<16x512xf32>
    %292 = vector.extract_strided_slice %0 {offsets = [7, 0], sizes = [1, 512], strides = [1, 1]} : vector<9x512xf32> to vector<1x512xf32>
    %293 = vector.broadcast %292 : vector<1x512xf32> to vector<16x512xf32>
    %294 = arith.mulf %291, %293 : vector<16x512xf32>
    %295 = arith.addf %290, %294 : vector<16x512xf32>
    %c495_i32_89 = arith.constant 495 : i32
    %296 = tpu.dynamic_rotate %23 by %c495_i32_89 dim 1 : vector<16x512xf32>, i32 -> vector<16x512xf32>
    %297 = vector.extract_strided_slice %0 {offsets = [8, 0], sizes = [1, 512], strides = [1, 1]} : vector<9x512xf32> to vector<1x512xf32>
    %298 = vector.broadcast %297 : vector<1x512xf32> to vector<16x512xf32>
    %299 = arith.mulf %296, %298 : vector<16x512xf32>
    %300 = arith.addf %295, %299 : vector<16x512xf32>
    %301 = vector.broadcast %1 : vector<1x512xf32> to vector<16x512xf32>
    %302 = arith.mulf %300, %301 : vector<16x512xf32>
    %303 = arith.addf %260, %302 : vector<16x512xf32>
    %c1 = arith.constant 1 : index
    %c0_90 = arith.constant 0 : index
    %c0_91 = arith.constant 0 : index
    %304 = vector.load %arg10[%c1, %c0_90, %c0_91] : memref<3x16x9xf32, #tpu.memory_space<vmem>>, vector<1x16x9xf32>
    %305 = vector.shape_cast %304 : vector<1x16x9xf32> to vector<16x9xf32>
    %c1_92 = arith.constant 1 : index
    %c0_93 = arith.constant 0 : index
    %c0_94 = arith.constant 0 : index
    %306 = vector.load %arg11[%c1_92, %c0_93, %c0_94] : memref<3x16x16xf32, #tpu.memory_space<vmem>>, vector<1x16x16xf32>
    %307 = vector.shape_cast %306 : vector<1x16x16xf32> to vector<16x16xf32>
    %c1_95 = arith.constant 1 : index
    %c0_96 = arith.constant 0 : index
    %c0_97 = arith.constant 0 : index
    %308 = vector.load %arg12[%c1_95, %c0_96, %c0_97] : memref<3x16x1xf32, #tpu.memory_space<vmem>>, vector<1x16x1xf32>
    %309 = vector.shape_cast %308 : vector<1x16x1xf32> to vector<16x1xf32>
    %c1_98 = arith.constant 1 : index
    %c0_99 = arith.constant 0 : index
    %c0_100 = arith.constant 0 : index
    %310 = vector.load %arg13[%c1_98, %c0_99, %c0_100] : memref<3x16x1xf32, #tpu.memory_space<vmem>>, vector<1x16x1xf32>
    %311 = vector.shape_cast %310 : vector<1x16x1xf32> to vector<16x1xf32>
    %c1_101 = arith.constant 1 : index
    %c0_102 = arith.constant 0 : index
    %c0_103 = arith.constant 0 : index
    %312 = vector.load %arg14[%c1_101, %c0_102, %c0_103] : memref<3x16x9xf32, #tpu.memory_space<vmem>>, vector<1x16x9xf32>
    %313 = vector.shape_cast %312 : vector<1x16x9xf32> to vector<16x9xf32>
    %c1_104 = arith.constant 1 : index
    %c0_105 = arith.constant 0 : index
    %c0_106 = arith.constant 0 : index
    %314 = vector.load %arg15[%c1_104, %c0_105, %c0_106] : memref<3x16x16xf32, #tpu.memory_space<vmem>>, vector<1x16x16xf32>
    %315 = vector.shape_cast %314 : vector<1x16x16xf32> to vector<16x16xf32>
    %c1_107 = arith.constant 1 : index
    %c0_108 = arith.constant 0 : index
    %c0_109 = arith.constant 0 : index
    %316 = vector.load %arg16[%c1_107, %c0_108, %c0_109] : memref<3x16x1xf32, #tpu.memory_space<vmem>>, vector<1x16x1xf32>
    %317 = vector.shape_cast %316 : vector<1x16x1xf32> to vector<16x1xf32>
    %c1_110 = arith.constant 1 : index
    %c0_111 = arith.constant 0 : index
    %c0_112 = arith.constant 0 : index
    %318 = vector.load %arg17[%c1_110, %c0_111, %c0_112] : memref<3x16x1xf32, #tpu.memory_space<vmem>>, vector<1x16x1xf32>
    %319 = vector.shape_cast %318 : vector<1x16x1xf32> to vector<16x1xf32>
    %cst_113 = arith.constant 0.000000e+00 : f32
    %320 = vector.broadcast %cst_113 : f32 to vector<16x512xf32>
    %321 = arith.maximumf %23, %320 : vector<16x512xf32>
    %c17_i32_114 = arith.constant 17 : i32
    %322 = tpu.dynamic_rotate %321 by %c17_i32_114 dim 1 : vector<16x512xf32>, i32 -> vector<16x512xf32>
    %323 = vector.extract_strided_slice %0 {offsets = [0, 0], sizes = [1, 512], strides = [1, 1]} : vector<9x512xf32> to vector<1x512xf32>
    %324 = vector.broadcast %323 : vector<1x512xf32> to vector<16x512xf32>
    %325 = arith.mulf %322, %324 : vector<16x512xf32>
    %326 = vector.extract_strided_slice %305 {offsets = [0, 0], sizes = [16, 1], strides = [1, 1]} : vector<16x9xf32> to vector<16x1xf32>
    %327 = vector.broadcast %326 : vector<16x1xf32> to vector<16x512xf32>
    %328 = arith.mulf %325, %327 : vector<16x512xf32>
    %c16_i32_115 = arith.constant 16 : i32
    %329 = tpu.dynamic_rotate %321 by %c16_i32_115 dim 1 : vector<16x512xf32>, i32 -> vector<16x512xf32>
    %330 = vector.extract_strided_slice %0 {offsets = [1, 0], sizes = [1, 512], strides = [1, 1]} : vector<9x512xf32> to vector<1x512xf32>
    %331 = vector.broadcast %330 : vector<1x512xf32> to vector<16x512xf32>
    %332 = arith.mulf %329, %331 : vector<16x512xf32>
    %333 = vector.extract_strided_slice %305 {offsets = [0, 1], sizes = [16, 1], strides = [1, 1]} : vector<16x9xf32> to vector<16x1xf32>
    %334 = vector.broadcast %333 : vector<16x1xf32> to vector<16x512xf32>
    %335 = arith.mulf %332, %334 : vector<16x512xf32>
    %336 = arith.addf %328, %335 : vector<16x512xf32>
    %c15_i32_116 = arith.constant 15 : i32
    %337 = tpu.dynamic_rotate %321 by %c15_i32_116 dim 1 : vector<16x512xf32>, i32 -> vector<16x512xf32>
    %338 = vector.extract_strided_slice %0 {offsets = [2, 0], sizes = [1, 512], strides = [1, 1]} : vector<9x512xf32> to vector<1x512xf32>
    %339 = vector.broadcast %338 : vector<1x512xf32> to vector<16x512xf32>
    %340 = arith.mulf %337, %339 : vector<16x512xf32>
    %341 = vector.extract_strided_slice %305 {offsets = [0, 2], sizes = [16, 1], strides = [1, 1]} : vector<16x9xf32> to vector<16x1xf32>
    %342 = vector.broadcast %341 : vector<16x1xf32> to vector<16x512xf32>
    %343 = arith.mulf %340, %342 : vector<16x512xf32>
    %344 = arith.addf %336, %343 : vector<16x512xf32>
    %c1_i32_117 = arith.constant 1 : i32
    %345 = tpu.dynamic_rotate %321 by %c1_i32_117 dim 1 : vector<16x512xf32>, i32 -> vector<16x512xf32>
    %346 = vector.extract_strided_slice %0 {offsets = [3, 0], sizes = [1, 512], strides = [1, 1]} : vector<9x512xf32> to vector<1x512xf32>
    %347 = vector.broadcast %346 : vector<1x512xf32> to vector<16x512xf32>
    %348 = arith.mulf %345, %347 : vector<16x512xf32>
    %349 = vector.extract_strided_slice %305 {offsets = [0, 3], sizes = [16, 1], strides = [1, 1]} : vector<16x9xf32> to vector<16x1xf32>
    %350 = vector.broadcast %349 : vector<16x1xf32> to vector<16x512xf32>
    %351 = arith.mulf %348, %350 : vector<16x512xf32>
    %352 = arith.addf %344, %351 : vector<16x512xf32>
    %353 = vector.extract_strided_slice %305 {offsets = [0, 4], sizes = [16, 1], strides = [1, 1]} : vector<16x9xf32> to vector<16x1xf32>
    %354 = vector.broadcast %353 : vector<16x1xf32> to vector<16x512xf32>
    %355 = arith.mulf %321, %354 : vector<16x512xf32>
    %356 = arith.addf %352, %355 : vector<16x512xf32>
    %c511_i32_118 = arith.constant 511 : i32
    %357 = tpu.dynamic_rotate %321 by %c511_i32_118 dim 1 : vector<16x512xf32>, i32 -> vector<16x512xf32>
    %358 = vector.extract_strided_slice %0 {offsets = [5, 0], sizes = [1, 512], strides = [1, 1]} : vector<9x512xf32> to vector<1x512xf32>
    %359 = vector.broadcast %358 : vector<1x512xf32> to vector<16x512xf32>
    %360 = arith.mulf %357, %359 : vector<16x512xf32>
    %361 = vector.extract_strided_slice %305 {offsets = [0, 5], sizes = [16, 1], strides = [1, 1]} : vector<16x9xf32> to vector<16x1xf32>
    %362 = vector.broadcast %361 : vector<16x1xf32> to vector<16x512xf32>
    %363 = arith.mulf %360, %362 : vector<16x512xf32>
    %364 = arith.addf %356, %363 : vector<16x512xf32>
    %c497_i32_119 = arith.constant 497 : i32
    %365 = tpu.dynamic_rotate %321 by %c497_i32_119 dim 1 : vector<16x512xf32>, i32 -> vector<16x512xf32>
    %366 = vector.extract_strided_slice %0 {offsets = [6, 0], sizes = [1, 512], strides = [1, 1]} : vector<9x512xf32> to vector<1x512xf32>
    %367 = vector.broadcast %366 : vector<1x512xf32> to vector<16x512xf32>
    %368 = arith.mulf %365, %367 : vector<16x512xf32>
    %369 = vector.extract_strided_slice %305 {offsets = [0, 6], sizes = [16, 1], strides = [1, 1]} : vector<16x9xf32> to vector<16x1xf32>
    %370 = vector.broadcast %369 : vector<16x1xf32> to vector<16x512xf32>
    %371 = arith.mulf %368, %370 : vector<16x512xf32>
    %372 = arith.addf %364, %371 : vector<16x512xf32>
    %c496_i32_120 = arith.constant 496 : i32
    %373 = tpu.dynamic_rotate %321 by %c496_i32_120 dim 1 : vector<16x512xf32>, i32 -> vector<16x512xf32>
    %374 = vector.extract_strided_slice %0 {offsets = [7, 0], sizes = [1, 512], strides = [1, 1]} : vector<9x512xf32> to vector<1x512xf32>
    %375 = vector.broadcast %374 : vector<1x512xf32> to vector<16x512xf32>
    %376 = arith.mulf %373, %375 : vector<16x512xf32>
    %377 = vector.extract_strided_slice %305 {offsets = [0, 7], sizes = [16, 1], strides = [1, 1]} : vector<16x9xf32> to vector<16x1xf32>
    %378 = vector.broadcast %377 : vector<16x1xf32> to vector<16x512xf32>
    %379 = arith.mulf %376, %378 : vector<16x512xf32>
    %380 = arith.addf %372, %379 : vector<16x512xf32>
    %c495_i32_121 = arith.constant 495 : i32
    %381 = tpu.dynamic_rotate %321 by %c495_i32_121 dim 1 : vector<16x512xf32>, i32 -> vector<16x512xf32>
    %382 = vector.extract_strided_slice %0 {offsets = [8, 0], sizes = [1, 512], strides = [1, 1]} : vector<9x512xf32> to vector<1x512xf32>
    %383 = vector.broadcast %382 : vector<1x512xf32> to vector<16x512xf32>
    %384 = arith.mulf %381, %383 : vector<16x512xf32>
    %385 = vector.extract_strided_slice %305 {offsets = [0, 8], sizes = [16, 1], strides = [1, 1]} : vector<16x9xf32> to vector<16x1xf32>
    %386 = vector.broadcast %385 : vector<16x1xf32> to vector<16x512xf32>
    %387 = arith.mulf %384, %386 : vector<16x512xf32>
    %388 = arith.addf %380, %387 : vector<16x512xf32>
    %cst_122 = arith.constant dense<0.000000e+00> : vector<16x512xf32>
    %389 = tpu.matmul %307, %388, %cst_122 {dimension_numbers = #tpu.dot_dimension_numbers<[1], [0], [0], [1], [0, 0, 1, 1], [], []>} : vector<16x16xf32>, vector<16x512xf32>, vector<16x512xf32> -> vector<16x512xf32>
    %390 = vector.broadcast %309 : vector<16x1xf32> to vector<16x512xf32>
    %391 = arith.mulf %389, %390 : vector<16x512xf32>
    %392 = vector.broadcast %311 : vector<16x1xf32> to vector<16x512xf32>
    %393 = arith.addf %391, %392 : vector<16x512xf32>
    %cst_123 = arith.constant 0.000000e+00 : f32
    %394 = vector.broadcast %cst_123 : f32 to vector<16x512xf32>
    %395 = arith.maximumf %393, %394 : vector<16x512xf32>
    %c17_i32_124 = arith.constant 17 : i32
    %396 = tpu.dynamic_rotate %395 by %c17_i32_124 dim 1 : vector<16x512xf32>, i32 -> vector<16x512xf32>
    %397 = vector.extract_strided_slice %0 {offsets = [0, 0], sizes = [1, 512], strides = [1, 1]} : vector<9x512xf32> to vector<1x512xf32>
    %398 = vector.broadcast %397 : vector<1x512xf32> to vector<16x512xf32>
    %399 = arith.mulf %396, %398 : vector<16x512xf32>
    %400 = vector.extract_strided_slice %313 {offsets = [0, 0], sizes = [16, 1], strides = [1, 1]} : vector<16x9xf32> to vector<16x1xf32>
    %401 = vector.broadcast %400 : vector<16x1xf32> to vector<16x512xf32>
    %402 = arith.mulf %399, %401 : vector<16x512xf32>
    %c16_i32_125 = arith.constant 16 : i32
    %403 = tpu.dynamic_rotate %395 by %c16_i32_125 dim 1 : vector<16x512xf32>, i32 -> vector<16x512xf32>
    %404 = vector.extract_strided_slice %0 {offsets = [1, 0], sizes = [1, 512], strides = [1, 1]} : vector<9x512xf32> to vector<1x512xf32>
    %405 = vector.broadcast %404 : vector<1x512xf32> to vector<16x512xf32>
    %406 = arith.mulf %403, %405 : vector<16x512xf32>
    %407 = vector.extract_strided_slice %313 {offsets = [0, 1], sizes = [16, 1], strides = [1, 1]} : vector<16x9xf32> to vector<16x1xf32>
    %408 = vector.broadcast %407 : vector<16x1xf32> to vector<16x512xf32>
    %409 = arith.mulf %406, %408 : vector<16x512xf32>
    %410 = arith.addf %402, %409 : vector<16x512xf32>
    %c15_i32_126 = arith.constant 15 : i32
    %411 = tpu.dynamic_rotate %395 by %c15_i32_126 dim 1 : vector<16x512xf32>, i32 -> vector<16x512xf32>
    %412 = vector.extract_strided_slice %0 {offsets = [2, 0], sizes = [1, 512], strides = [1, 1]} : vector<9x512xf32> to vector<1x512xf32>
    %413 = vector.broadcast %412 : vector<1x512xf32> to vector<16x512xf32>
    %414 = arith.mulf %411, %413 : vector<16x512xf32>
    %415 = vector.extract_strided_slice %313 {offsets = [0, 2], sizes = [16, 1], strides = [1, 1]} : vector<16x9xf32> to vector<16x1xf32>
    %416 = vector.broadcast %415 : vector<16x1xf32> to vector<16x512xf32>
    %417 = arith.mulf %414, %416 : vector<16x512xf32>
    %418 = arith.addf %410, %417 : vector<16x512xf32>
    %c1_i32_127 = arith.constant 1 : i32
    %419 = tpu.dynamic_rotate %395 by %c1_i32_127 dim 1 : vector<16x512xf32>, i32 -> vector<16x512xf32>
    %420 = vector.extract_strided_slice %0 {offsets = [3, 0], sizes = [1, 512], strides = [1, 1]} : vector<9x512xf32> to vector<1x512xf32>
    %421 = vector.broadcast %420 : vector<1x512xf32> to vector<16x512xf32>
    %422 = arith.mulf %419, %421 : vector<16x512xf32>
    %423 = vector.extract_strided_slice %313 {offsets = [0, 3], sizes = [16, 1], strides = [1, 1]} : vector<16x9xf32> to vector<16x1xf32>
    %424 = vector.broadcast %423 : vector<16x1xf32> to vector<16x512xf32>
    %425 = arith.mulf %422, %424 : vector<16x512xf32>
    %426 = arith.addf %418, %425 : vector<16x512xf32>
    %427 = vector.extract_strided_slice %313 {offsets = [0, 4], sizes = [16, 1], strides = [1, 1]} : vector<16x9xf32> to vector<16x1xf32>
    %428 = vector.broadcast %427 : vector<16x1xf32> to vector<16x512xf32>
    %429 = arith.mulf %395, %428 : vector<16x512xf32>
    %430 = arith.addf %426, %429 : vector<16x512xf32>
    %c511_i32_128 = arith.constant 511 : i32
    %431 = tpu.dynamic_rotate %395 by %c511_i32_128 dim 1 : vector<16x512xf32>, i32 -> vector<16x512xf32>
    %432 = vector.extract_strided_slice %0 {offsets = [5, 0], sizes = [1, 512], strides = [1, 1]} : vector<9x512xf32> to vector<1x512xf32>
    %433 = vector.broadcast %432 : vector<1x512xf32> to vector<16x512xf32>
    %434 = arith.mulf %431, %433 : vector<16x512xf32>
    %435 = vector.extract_strided_slice %313 {offsets = [0, 5], sizes = [16, 1], strides = [1, 1]} : vector<16x9xf32> to vector<16x1xf32>
    %436 = vector.broadcast %435 : vector<16x1xf32> to vector<16x512xf32>
    %437 = arith.mulf %434, %436 : vector<16x512xf32>
    %438 = arith.addf %430, %437 : vector<16x512xf32>
    %c497_i32_129 = arith.constant 497 : i32
    %439 = tpu.dynamic_rotate %395 by %c497_i32_129 dim 1 : vector<16x512xf32>, i32 -> vector<16x512xf32>
    %440 = vector.extract_strided_slice %0 {offsets = [6, 0], sizes = [1, 512], strides = [1, 1]} : vector<9x512xf32> to vector<1x512xf32>
    %441 = vector.broadcast %440 : vector<1x512xf32> to vector<16x512xf32>
    %442 = arith.mulf %439, %441 : vector<16x512xf32>
    %443 = vector.extract_strided_slice %313 {offsets = [0, 6], sizes = [16, 1], strides = [1, 1]} : vector<16x9xf32> to vector<16x1xf32>
    %444 = vector.broadcast %443 : vector<16x1xf32> to vector<16x512xf32>
    %445 = arith.mulf %442, %444 : vector<16x512xf32>
    %446 = arith.addf %438, %445 : vector<16x512xf32>
    %c496_i32_130 = arith.constant 496 : i32
    %447 = tpu.dynamic_rotate %395 by %c496_i32_130 dim 1 : vector<16x512xf32>, i32 -> vector<16x512xf32>
    %448 = vector.extract_strided_slice %0 {offsets = [7, 0], sizes = [1, 512], strides = [1, 1]} : vector<9x512xf32> to vector<1x512xf32>
    %449 = vector.broadcast %448 : vector<1x512xf32> to vector<16x512xf32>
    %450 = arith.mulf %447, %449 : vector<16x512xf32>
    %451 = vector.extract_strided_slice %313 {offsets = [0, 7], sizes = [16, 1], strides = [1, 1]} : vector<16x9xf32> to vector<16x1xf32>
    %452 = vector.broadcast %451 : vector<16x1xf32> to vector<16x512xf32>
    %453 = arith.mulf %450, %452 : vector<16x512xf32>
    %454 = arith.addf %446, %453 : vector<16x512xf32>
    %c495_i32_131 = arith.constant 495 : i32
    %455 = tpu.dynamic_rotate %395 by %c495_i32_131 dim 1 : vector<16x512xf32>, i32 -> vector<16x512xf32>
    %456 = vector.extract_strided_slice %0 {offsets = [8, 0], sizes = [1, 512], strides = [1, 1]} : vector<9x512xf32> to vector<1x512xf32>
    %457 = vector.broadcast %456 : vector<1x512xf32> to vector<16x512xf32>
    %458 = arith.mulf %455, %457 : vector<16x512xf32>
    %459 = vector.extract_strided_slice %313 {offsets = [0, 8], sizes = [16, 1], strides = [1, 1]} : vector<16x9xf32> to vector<16x1xf32>
    %460 = vector.broadcast %459 : vector<16x1xf32> to vector<16x512xf32>
    %461 = arith.mulf %458, %460 : vector<16x512xf32>
    %462 = arith.addf %454, %461 : vector<16x512xf32>
    %cst_132 = arith.constant dense<0.000000e+00> : vector<16x512xf32>
    %463 = tpu.matmul %315, %462, %cst_132 {dimension_numbers = #tpu.dot_dimension_numbers<[1], [0], [0], [1], [0, 0, 1, 1], [], []>} : vector<16x16xf32>, vector<16x512xf32>, vector<16x512xf32> -> vector<16x512xf32>
    %464 = vector.broadcast %317 : vector<16x1xf32> to vector<16x512xf32>
    %465 = arith.mulf %463, %464 : vector<16x512xf32>
    %466 = vector.broadcast %319 : vector<16x1xf32> to vector<16x512xf32>
    %467 = arith.addf %465, %466 : vector<16x512xf32>
    %468 = arith.addf %467, %188 : vector<16x512xf32>
    %c2 = arith.constant 2 : index
    %c0_133 = arith.constant 0 : index
    %c0_134 = arith.constant 0 : index
    %469 = vector.load %arg10[%c2, %c0_133, %c0_134] : memref<3x16x9xf32, #tpu.memory_space<vmem>>, vector<1x16x9xf32>
    %470 = vector.shape_cast %469 : vector<1x16x9xf32> to vector<16x9xf32>
    %c2_135 = arith.constant 2 : index
    %c0_136 = arith.constant 0 : index
    %c0_137 = arith.constant 0 : index
    %471 = vector.load %arg11[%c2_135, %c0_136, %c0_137] : memref<3x16x16xf32, #tpu.memory_space<vmem>>, vector<1x16x16xf32>
    %472 = vector.shape_cast %471 : vector<1x16x16xf32> to vector<16x16xf32>
    %c2_138 = arith.constant 2 : index
    %c0_139 = arith.constant 0 : index
    %c0_140 = arith.constant 0 : index
    %473 = vector.load %arg12[%c2_138, %c0_139, %c0_140] : memref<3x16x1xf32, #tpu.memory_space<vmem>>, vector<1x16x1xf32>
    %474 = vector.shape_cast %473 : vector<1x16x1xf32> to vector<16x1xf32>
    %c2_141 = arith.constant 2 : index
    %c0_142 = arith.constant 0 : index
    %c0_143 = arith.constant 0 : index
    %475 = vector.load %arg13[%c2_141, %c0_142, %c0_143] : memref<3x16x1xf32, #tpu.memory_space<vmem>>, vector<1x16x1xf32>
    %476 = vector.shape_cast %475 : vector<1x16x1xf32> to vector<16x1xf32>
    %c2_144 = arith.constant 2 : index
    %c0_145 = arith.constant 0 : index
    %c0_146 = arith.constant 0 : index
    %477 = vector.load %arg14[%c2_144, %c0_145, %c0_146] : memref<3x16x9xf32, #tpu.memory_space<vmem>>, vector<1x16x9xf32>
    %478 = vector.shape_cast %477 : vector<1x16x9xf32> to vector<16x9xf32>
    %c2_147 = arith.constant 2 : index
    %c0_148 = arith.constant 0 : index
    %c0_149 = arith.constant 0 : index
    %479 = vector.load %arg15[%c2_147, %c0_148, %c0_149] : memref<3x16x16xf32, #tpu.memory_space<vmem>>, vector<1x16x16xf32>
    %480 = vector.shape_cast %479 : vector<1x16x16xf32> to vector<16x16xf32>
    %c2_150 = arith.constant 2 : index
    %c0_151 = arith.constant 0 : index
    %c0_152 = arith.constant 0 : index
    %481 = vector.load %arg16[%c2_150, %c0_151, %c0_152] : memref<3x16x1xf32, #tpu.memory_space<vmem>>, vector<1x16x1xf32>
    %482 = vector.shape_cast %481 : vector<1x16x1xf32> to vector<16x1xf32>
    %c2_153 = arith.constant 2 : index
    %c0_154 = arith.constant 0 : index
    %c0_155 = arith.constant 0 : index
    %483 = vector.load %arg17[%c2_153, %c0_154, %c0_155] : memref<3x16x1xf32, #tpu.memory_space<vmem>>, vector<1x16x1xf32>
    %484 = vector.shape_cast %483 : vector<1x16x1xf32> to vector<16x1xf32>
    %cst_156 = arith.constant 0.000000e+00 : f32
    %485 = vector.broadcast %cst_156 : f32 to vector<16x512xf32>
    %486 = arith.maximumf %188, %485 : vector<16x512xf32>
    %c17_i32_157 = arith.constant 17 : i32
    %487 = tpu.dynamic_rotate %486 by %c17_i32_157 dim 1 : vector<16x512xf32>, i32 -> vector<16x512xf32>
    %488 = vector.extract_strided_slice %0 {offsets = [0, 0], sizes = [1, 512], strides = [1, 1]} : vector<9x512xf32> to vector<1x512xf32>
    %489 = vector.broadcast %488 : vector<1x512xf32> to vector<16x512xf32>
    %490 = arith.mulf %487, %489 : vector<16x512xf32>
    %491 = vector.extract_strided_slice %470 {offsets = [0, 0], sizes = [16, 1], strides = [1, 1]} : vector<16x9xf32> to vector<16x1xf32>
    %492 = vector.broadcast %491 : vector<16x1xf32> to vector<16x512xf32>
    %493 = arith.mulf %490, %492 : vector<16x512xf32>
    %c16_i32_158 = arith.constant 16 : i32
    %494 = tpu.dynamic_rotate %486 by %c16_i32_158 dim 1 : vector<16x512xf32>, i32 -> vector<16x512xf32>
    %495 = vector.extract_strided_slice %0 {offsets = [1, 0], sizes = [1, 512], strides = [1, 1]} : vector<9x512xf32> to vector<1x512xf32>
    %496 = vector.broadcast %495 : vector<1x512xf32> to vector<16x512xf32>
    %497 = arith.mulf %494, %496 : vector<16x512xf32>
    %498 = vector.extract_strided_slice %470 {offsets = [0, 1], sizes = [16, 1], strides = [1, 1]} : vector<16x9xf32> to vector<16x1xf32>
    %499 = vector.broadcast %498 : vector<16x1xf32> to vector<16x512xf32>
    %500 = arith.mulf %497, %499 : vector<16x512xf32>
    %501 = arith.addf %493, %500 : vector<16x512xf32>
    %c15_i32_159 = arith.constant 15 : i32
    %502 = tpu.dynamic_rotate %486 by %c15_i32_159 dim 1 : vector<16x512xf32>, i32 -> vector<16x512xf32>
    %503 = vector.extract_strided_slice %0 {offsets = [2, 0], sizes = [1, 512], strides = [1, 1]} : vector<9x512xf32> to vector<1x512xf32>
    %504 = vector.broadcast %503 : vector<1x512xf32> to vector<16x512xf32>
    %505 = arith.mulf %502, %504 : vector<16x512xf32>
    %506 = vector.extract_strided_slice %470 {offsets = [0, 2], sizes = [16, 1], strides = [1, 1]} : vector<16x9xf32> to vector<16x1xf32>
    %507 = vector.broadcast %506 : vector<16x1xf32> to vector<16x512xf32>
    %508 = arith.mulf %505, %507 : vector<16x512xf32>
    %509 = arith.addf %501, %508 : vector<16x512xf32>
    %c1_i32_160 = arith.constant 1 : i32
    %510 = tpu.dynamic_rotate %486 by %c1_i32_160 dim 1 : vector<16x512xf32>, i32 -> vector<16x512xf32>
    %511 = vector.extract_strided_slice %0 {offsets = [3, 0], sizes = [1, 512], strides = [1, 1]} : vector<9x512xf32> to vector<1x512xf32>
    %512 = vector.broadcast %511 : vector<1x512xf32> to vector<16x512xf32>
    %513 = arith.mulf %510, %512 : vector<16x512xf32>
    %514 = vector.extract_strided_slice %470 {offsets = [0, 3], sizes = [16, 1], strides = [1, 1]} : vector<16x9xf32> to vector<16x1xf32>
    %515 = vector.broadcast %514 : vector<16x1xf32> to vector<16x512xf32>
    %516 = arith.mulf %513, %515 : vector<16x512xf32>
    %517 = arith.addf %509, %516 : vector<16x512xf32>
    %518 = vector.extract_strided_slice %470 {offsets = [0, 4], sizes = [16, 1], strides = [1, 1]} : vector<16x9xf32> to vector<16x1xf32>
    %519 = vector.broadcast %518 : vector<16x1xf32> to vector<16x512xf32>
    %520 = arith.mulf %486, %519 : vector<16x512xf32>
    %521 = arith.addf %517, %520 : vector<16x512xf32>
    %c511_i32_161 = arith.constant 511 : i32
    %522 = tpu.dynamic_rotate %486 by %c511_i32_161 dim 1 : vector<16x512xf32>, i32 -> vector<16x512xf32>
    %523 = vector.extract_strided_slice %0 {offsets = [5, 0], sizes = [1, 512], strides = [1, 1]} : vector<9x512xf32> to vector<1x512xf32>
    %524 = vector.broadcast %523 : vector<1x512xf32> to vector<16x512xf32>
    %525 = arith.mulf %522, %524 : vector<16x512xf32>
    %526 = vector.extract_strided_slice %470 {offsets = [0, 5], sizes = [16, 1], strides = [1, 1]} : vector<16x9xf32> to vector<16x1xf32>
    %527 = vector.broadcast %526 : vector<16x1xf32> to vector<16x512xf32>
    %528 = arith.mulf %525, %527 : vector<16x512xf32>
    %529 = arith.addf %521, %528 : vector<16x512xf32>
    %c497_i32_162 = arith.constant 497 : i32
    %530 = tpu.dynamic_rotate %486 by %c497_i32_162 dim 1 : vector<16x512xf32>, i32 -> vector<16x512xf32>
    %531 = vector.extract_strided_slice %0 {offsets = [6, 0], sizes = [1, 512], strides = [1, 1]} : vector<9x512xf32> to vector<1x512xf32>
    %532 = vector.broadcast %531 : vector<1x512xf32> to vector<16x512xf32>
    %533 = arith.mulf %530, %532 : vector<16x512xf32>
    %534 = vector.extract_strided_slice %470 {offsets = [0, 6], sizes = [16, 1], strides = [1, 1]} : vector<16x9xf32> to vector<16x1xf32>
    %535 = vector.broadcast %534 : vector<16x1xf32> to vector<16x512xf32>
    %536 = arith.mulf %533, %535 : vector<16x512xf32>
    %537 = arith.addf %529, %536 : vector<16x512xf32>
    %c496_i32_163 = arith.constant 496 : i32
    %538 = tpu.dynamic_rotate %486 by %c496_i32_163 dim 1 : vector<16x512xf32>, i32 -> vector<16x512xf32>
    %539 = vector.extract_strided_slice %0 {offsets = [7, 0], sizes = [1, 512], strides = [1, 1]} : vector<9x512xf32> to vector<1x512xf32>
    %540 = vector.broadcast %539 : vector<1x512xf32> to vector<16x512xf32>
    %541 = arith.mulf %538, %540 : vector<16x512xf32>
    %542 = vector.extract_strided_slice %470 {offsets = [0, 7], sizes = [16, 1], strides = [1, 1]} : vector<16x9xf32> to vector<16x1xf32>
    %543 = vector.broadcast %542 : vector<16x1xf32> to vector<16x512xf32>
    %544 = arith.mulf %541, %543 : vector<16x512xf32>
    %545 = arith.addf %537, %544 : vector<16x512xf32>
    %c495_i32_164 = arith.constant 495 : i32
    %546 = tpu.dynamic_rotate %486 by %c495_i32_164 dim 1 : vector<16x512xf32>, i32 -> vector<16x512xf32>
    %547 = vector.extract_strided_slice %0 {offsets = [8, 0], sizes = [1, 512], strides = [1, 1]} : vector<9x512xf32> to vector<1x512xf32>
    %548 = vector.broadcast %547 : vector<1x512xf32> to vector<16x512xf32>
    %549 = arith.mulf %546, %548 : vector<16x512xf32>
    %550 = vector.extract_strided_slice %470 {offsets = [0, 8], sizes = [16, 1], strides = [1, 1]} : vector<16x9xf32> to vector<16x1xf32>
    %551 = vector.broadcast %550 : vector<16x1xf32> to vector<16x512xf32>
    %552 = arith.mulf %549, %551 : vector<16x512xf32>
    %553 = arith.addf %545, %552 : vector<16x512xf32>
    %cst_165 = arith.constant dense<0.000000e+00> : vector<16x512xf32>
    %554 = tpu.matmul %472, %553, %cst_165 {dimension_numbers = #tpu.dot_dimension_numbers<[1], [0], [0], [1], [0, 0, 1, 1], [], []>} : vector<16x16xf32>, vector<16x512xf32>, vector<16x512xf32> -> vector<16x512xf32>
    %555 = vector.broadcast %474 : vector<16x1xf32> to vector<16x512xf32>
    %556 = arith.mulf %554, %555 : vector<16x512xf32>
    %557 = vector.broadcast %476 : vector<16x1xf32> to vector<16x512xf32>
    %558 = arith.addf %556, %557 : vector<16x512xf32>
    %cst_166 = arith.constant 0.000000e+00 : f32
    %559 = vector.broadcast %cst_166 : f32 to vector<16x512xf32>
    %560 = arith.maximumf %558, %559 : vector<16x512xf32>
    %c17_i32_167 = arith.constant 17 : i32
    %561 = tpu.dynamic_rotate %560 by %c17_i32_167 dim 1 : vector<16x512xf32>, i32 -> vector<16x512xf32>
    %562 = vector.extract_strided_slice %0 {offsets = [0, 0], sizes = [1, 512], strides = [1, 1]} : vector<9x512xf32> to vector<1x512xf32>
    %563 = vector.broadcast %562 : vector<1x512xf32> to vector<16x512xf32>
    %564 = arith.mulf %561, %563 : vector<16x512xf32>
    %565 = vector.extract_strided_slice %478 {offsets = [0, 0], sizes = [16, 1], strides = [1, 1]} : vector<16x9xf32> to vector<16x1xf32>
    %566 = vector.broadcast %565 : vector<16x1xf32> to vector<16x512xf32>
    %567 = arith.mulf %564, %566 : vector<16x512xf32>
    %c16_i32_168 = arith.constant 16 : i32
    %568 = tpu.dynamic_rotate %560 by %c16_i32_168 dim 1 : vector<16x512xf32>, i32 -> vector<16x512xf32>
    %569 = vector.extract_strided_slice %0 {offsets = [1, 0], sizes = [1, 512], strides = [1, 1]} : vector<9x512xf32> to vector<1x512xf32>
    %570 = vector.broadcast %569 : vector<1x512xf32> to vector<16x512xf32>
    %571 = arith.mulf %568, %570 : vector<16x512xf32>
    %572 = vector.extract_strided_slice %478 {offsets = [0, 1], sizes = [16, 1], strides = [1, 1]} : vector<16x9xf32> to vector<16x1xf32>
    %573 = vector.broadcast %572 : vector<16x1xf32> to vector<16x512xf32>
    %574 = arith.mulf %571, %573 : vector<16x512xf32>
    %575 = arith.addf %567, %574 : vector<16x512xf32>
    %c15_i32_169 = arith.constant 15 : i32
    %576 = tpu.dynamic_rotate %560 by %c15_i32_169 dim 1 : vector<16x512xf32>, i32 -> vector<16x512xf32>
    %577 = vector.extract_strided_slice %0 {offsets = [2, 0], sizes = [1, 512], strides = [1, 1]} : vector<9x512xf32> to vector<1x512xf32>
    %578 = vector.broadcast %577 : vector<1x512xf32> to vector<16x512xf32>
    %579 = arith.mulf %576, %578 : vector<16x512xf32>
    %580 = vector.extract_strided_slice %478 {offsets = [0, 2], sizes = [16, 1], strides = [1, 1]} : vector<16x9xf32> to vector<16x1xf32>
    %581 = vector.broadcast %580 : vector<16x1xf32> to vector<16x512xf32>
    %582 = arith.mulf %579, %581 : vector<16x512xf32>
    %583 = arith.addf %575, %582 : vector<16x512xf32>
    %c1_i32_170 = arith.constant 1 : i32
    %584 = tpu.dynamic_rotate %560 by %c1_i32_170 dim 1 : vector<16x512xf32>, i32 -> vector<16x512xf32>
    %585 = vector.extract_strided_slice %0 {offsets = [3, 0], sizes = [1, 512], strides = [1, 1]} : vector<9x512xf32> to vector<1x512xf32>
    %586 = vector.broadcast %585 : vector<1x512xf32> to vector<16x512xf32>
    %587 = arith.mulf %584, %586 : vector<16x512xf32>
    %588 = vector.extract_strided_slice %478 {offsets = [0, 3], sizes = [16, 1], strides = [1, 1]} : vector<16x9xf32> to vector<16x1xf32>
    %589 = vector.broadcast %588 : vector<16x1xf32> to vector<16x512xf32>
    %590 = arith.mulf %587, %589 : vector<16x512xf32>
    %591 = arith.addf %583, %590 : vector<16x512xf32>
    %592 = vector.extract_strided_slice %478 {offsets = [0, 4], sizes = [16, 1], strides = [1, 1]} : vector<16x9xf32> to vector<16x1xf32>
    %593 = vector.broadcast %592 : vector<16x1xf32> to vector<16x512xf32>
    %594 = arith.mulf %560, %593 : vector<16x512xf32>
    %595 = arith.addf %591, %594 : vector<16x512xf32>
    %c511_i32_171 = arith.constant 511 : i32
    %596 = tpu.dynamic_rotate %560 by %c511_i32_171 dim 1 : vector<16x512xf32>, i32 -> vector<16x512xf32>
    %597 = vector.extract_strided_slice %0 {offsets = [5, 0], sizes = [1, 512], strides = [1, 1]} : vector<9x512xf32> to vector<1x512xf32>
    %598 = vector.broadcast %597 : vector<1x512xf32> to vector<16x512xf32>
    %599 = arith.mulf %596, %598 : vector<16x512xf32>
    %600 = vector.extract_strided_slice %478 {offsets = [0, 5], sizes = [16, 1], strides = [1, 1]} : vector<16x9xf32> to vector<16x1xf32>
    %601 = vector.broadcast %600 : vector<16x1xf32> to vector<16x512xf32>
    %602 = arith.mulf %599, %601 : vector<16x512xf32>
    %603 = arith.addf %595, %602 : vector<16x512xf32>
    %c497_i32_172 = arith.constant 497 : i32
    %604 = tpu.dynamic_rotate %560 by %c497_i32_172 dim 1 : vector<16x512xf32>, i32 -> vector<16x512xf32>
    %605 = vector.extract_strided_slice %0 {offsets = [6, 0], sizes = [1, 512], strides = [1, 1]} : vector<9x512xf32> to vector<1x512xf32>
    %606 = vector.broadcast %605 : vector<1x512xf32> to vector<16x512xf32>
    %607 = arith.mulf %604, %606 : vector<16x512xf32>
    %608 = vector.extract_strided_slice %478 {offsets = [0, 6], sizes = [16, 1], strides = [1, 1]} : vector<16x9xf32> to vector<16x1xf32>
    %609 = vector.broadcast %608 : vector<16x1xf32> to vector<16x512xf32>
    %610 = arith.mulf %607, %609 : vector<16x512xf32>
    %611 = arith.addf %603, %610 : vector<16x512xf32>
    %c496_i32_173 = arith.constant 496 : i32
    %612 = tpu.dynamic_rotate %560 by %c496_i32_173 dim 1 : vector<16x512xf32>, i32 -> vector<16x512xf32>
    %613 = vector.extract_strided_slice %0 {offsets = [7, 0], sizes = [1, 512], strides = [1, 1]} : vector<9x512xf32> to vector<1x512xf32>
    %614 = vector.broadcast %613 : vector<1x512xf32> to vector<16x512xf32>
    %615 = arith.mulf %612, %614 : vector<16x512xf32>
    %616 = vector.extract_strided_slice %478 {offsets = [0, 7], sizes = [16, 1], strides = [1, 1]} : vector<16x9xf32> to vector<16x1xf32>
    %617 = vector.broadcast %616 : vector<16x1xf32> to vector<16x512xf32>
    %618 = arith.mulf %615, %617 : vector<16x512xf32>
    %619 = arith.addf %611, %618 : vector<16x512xf32>
    %c495_i32_174 = arith.constant 495 : i32
    %620 = tpu.dynamic_rotate %560 by %c495_i32_174 dim 1 : vector<16x512xf32>, i32 -> vector<16x512xf32>
    %621 = vector.extract_strided_slice %0 {offsets = [8, 0], sizes = [1, 512], strides = [1, 1]} : vector<9x512xf32> to vector<1x512xf32>
    %622 = vector.broadcast %621 : vector<1x512xf32> to vector<16x512xf32>
    %623 = arith.mulf %620, %622 : vector<16x512xf32>
    %624 = vector.extract_strided_slice %478 {offsets = [0, 8], sizes = [16, 1], strides = [1, 1]} : vector<16x9xf32> to vector<16x1xf32>
    %625 = vector.broadcast %624 : vector<16x1xf32> to vector<16x512xf32>
    %626 = arith.mulf %623, %625 : vector<16x512xf32>
    %627 = arith.addf %619, %626 : vector<16x512xf32>
    %cst_175 = arith.constant dense<0.000000e+00> : vector<16x512xf32>
    %628 = tpu.matmul %480, %627, %cst_175 {dimension_numbers = #tpu.dot_dimension_numbers<[1], [0], [0], [1], [0, 0, 1, 1], [], []>} : vector<16x16xf32>, vector<16x512xf32>, vector<16x512xf32> -> vector<16x512xf32>
    %629 = vector.broadcast %482 : vector<16x1xf32> to vector<16x512xf32>
    %630 = arith.mulf %628, %629 : vector<16x512xf32>
    %631 = vector.broadcast %484 : vector<16x1xf32> to vector<16x512xf32>
    %632 = arith.addf %630, %631 : vector<16x512xf32>
    %c17_i32_176 = arith.constant 17 : i32
    %633 = tpu.dynamic_rotate %303 by %c17_i32_176 dim 1 : vector<16x512xf32>, i32 -> vector<16x512xf32>
    %634 = vector.extract_strided_slice %0 {offsets = [0, 0], sizes = [1, 512], strides = [1, 1]} : vector<9x512xf32> to vector<1x512xf32>
    %cst_177 = arith.constant 5.000000e-01 : f32
    %635 = vector.broadcast %cst_177 : f32 to vector<1x512xf32>
    %636 = arith.cmpf ogt, %634, %635 : vector<1x512xf32>
    %cst_178 = arith.constant -3.000000e+38 : f32
    %637 = vector.shape_cast %636 : vector<1x512xi1> to vector<1x512xi1>
    %638 = vector.broadcast %637 : vector<1x512xi1> to vector<16x512xi1>
    %639 = vector.broadcast %cst_178 : f32 to vector<16x512xf32>
    %640 = arith.select %638, %633, %639 : vector<16x512xi1>, vector<16x512xf32>
    %c16_i32_179 = arith.constant 16 : i32
    %641 = tpu.dynamic_rotate %303 by %c16_i32_179 dim 1 : vector<16x512xf32>, i32 -> vector<16x512xf32>
    %642 = vector.extract_strided_slice %0 {offsets = [1, 0], sizes = [1, 512], strides = [1, 1]} : vector<9x512xf32> to vector<1x512xf32>
    %cst_180 = arith.constant 5.000000e-01 : f32
    %643 = vector.broadcast %cst_180 : f32 to vector<1x512xf32>
    %644 = arith.cmpf ogt, %642, %643 : vector<1x512xf32>
    %cst_181 = arith.constant -3.000000e+38 : f32
    %645 = vector.shape_cast %644 : vector<1x512xi1> to vector<1x512xi1>
    %646 = vector.broadcast %645 : vector<1x512xi1> to vector<16x512xi1>
    %647 = vector.broadcast %cst_181 : f32 to vector<16x512xf32>
    %648 = arith.select %646, %641, %647 : vector<16x512xi1>, vector<16x512xf32>
    %649 = arith.maximumf %640, %648 : vector<16x512xf32>
    %c15_i32_182 = arith.constant 15 : i32
    %650 = tpu.dynamic_rotate %303 by %c15_i32_182 dim 1 : vector<16x512xf32>, i32 -> vector<16x512xf32>
    %651 = vector.extract_strided_slice %0 {offsets = [2, 0], sizes = [1, 512], strides = [1, 1]} : vector<9x512xf32> to vector<1x512xf32>
    %cst_183 = arith.constant 5.000000e-01 : f32
    %652 = vector.broadcast %cst_183 : f32 to vector<1x512xf32>
    %653 = arith.cmpf ogt, %651, %652 : vector<1x512xf32>
    %cst_184 = arith.constant -3.000000e+38 : f32
    %654 = vector.shape_cast %653 : vector<1x512xi1> to vector<1x512xi1>
    %655 = vector.broadcast %654 : vector<1x512xi1> to vector<16x512xi1>
    %656 = vector.broadcast %cst_184 : f32 to vector<16x512xf32>
    %657 = arith.select %655, %650, %656 : vector<16x512xi1>, vector<16x512xf32>
    %658 = arith.maximumf %649, %657 : vector<16x512xf32>
    %c1_i32_185 = arith.constant 1 : i32
    %659 = tpu.dynamic_rotate %303 by %c1_i32_185 dim 1 : vector<16x512xf32>, i32 -> vector<16x512xf32>
    %660 = vector.extract_strided_slice %0 {offsets = [3, 0], sizes = [1, 512], strides = [1, 1]} : vector<9x512xf32> to vector<1x512xf32>
    %cst_186 = arith.constant 5.000000e-01 : f32
    %661 = vector.broadcast %cst_186 : f32 to vector<1x512xf32>
    %662 = arith.cmpf ogt, %660, %661 : vector<1x512xf32>
    %cst_187 = arith.constant -3.000000e+38 : f32
    %663 = vector.shape_cast %662 : vector<1x512xi1> to vector<1x512xi1>
    %664 = vector.broadcast %663 : vector<1x512xi1> to vector<16x512xi1>
    %665 = vector.broadcast %cst_187 : f32 to vector<16x512xf32>
    %666 = arith.select %664, %659, %665 : vector<16x512xi1>, vector<16x512xf32>
    %667 = arith.maximumf %658, %666 : vector<16x512xf32>
    %668 = arith.maximumf %667, %303 : vector<16x512xf32>
    %c511_i32_188 = arith.constant 511 : i32
    %669 = tpu.dynamic_rotate %303 by %c511_i32_188 dim 1 : vector<16x512xf32>, i32 -> vector<16x512xf32>
    %670 = vector.extract_strided_slice %0 {offsets = [5, 0], sizes = [1, 512], strides = [1, 1]} : vector<9x512xf32> to vector<1x512xf32>
    %cst_189 = arith.constant 5.000000e-01 : f32
    %671 = vector.broadcast %cst_189 : f32 to vector<1x512xf32>
    %672 = arith.cmpf ogt, %670, %671 : vector<1x512xf32>
    %cst_190 = arith.constant -3.000000e+38 : f32
    %673 = vector.shape_cast %672 : vector<1x512xi1> to vector<1x512xi1>
    %674 = vector.broadcast %673 : vector<1x512xi1> to vector<16x512xi1>
    %675 = vector.broadcast %cst_190 : f32 to vector<16x512xf32>
    %676 = arith.select %674, %669, %675 : vector<16x512xi1>, vector<16x512xf32>
    %677 = arith.maximumf %668, %676 : vector<16x512xf32>
    %c497_i32_191 = arith.constant 497 : i32
    %678 = tpu.dynamic_rotate %303 by %c497_i32_191 dim 1 : vector<16x512xf32>, i32 -> vector<16x512xf32>
    %679 = vector.extract_strided_slice %0 {offsets = [6, 0], sizes = [1, 512], strides = [1, 1]} : vector<9x512xf32> to vector<1x512xf32>
    %cst_192 = arith.constant 5.000000e-01 : f32
    %680 = vector.broadcast %cst_192 : f32 to vector<1x512xf32>
    %681 = arith.cmpf ogt, %679, %680 : vector<1x512xf32>
    %cst_193 = arith.constant -3.000000e+38 : f32
    %682 = vector.shape_cast %681 : vector<1x512xi1> to vector<1x512xi1>
    %683 = vector.broadcast %682 : vector<1x512xi1> to vector<16x512xi1>
    %684 = vector.broadcast %cst_193 : f32 to vector<16x512xf32>
    %685 = arith.select %683, %678, %684 : vector<16x512xi1>, vector<16x512xf32>
    %686 = arith.maximumf %677, %685 : vector<16x512xf32>
    %c496_i32_194 = arith.constant 496 : i32
    %687 = tpu.dynamic_rotate %303 by %c496_i32_194 dim 1 : vector<16x512xf32>, i32 -> vector<16x512xf32>
    %688 = vector.extract_strided_slice %0 {offsets = [7, 0], sizes = [1, 512], strides = [1, 1]} : vector<9x512xf32> to vector<1x512xf32>
    %cst_195 = arith.constant 5.000000e-01 : f32
    %689 = vector.broadcast %cst_195 : f32 to vector<1x512xf32>
    %690 = arith.cmpf ogt, %688, %689 : vector<1x512xf32>
    %cst_196 = arith.constant -3.000000e+38 : f32
    %691 = vector.shape_cast %690 : vector<1x512xi1> to vector<1x512xi1>
    %692 = vector.broadcast %691 : vector<1x512xi1> to vector<16x512xi1>
    %693 = vector.broadcast %cst_196 : f32 to vector<16x512xf32>
    %694 = arith.select %692, %687, %693 : vector<16x512xi1>, vector<16x512xf32>
    %695 = arith.maximumf %686, %694 : vector<16x512xf32>
    %c495_i32_197 = arith.constant 495 : i32
    %696 = tpu.dynamic_rotate %303 by %c495_i32_197 dim 1 : vector<16x512xf32>, i32 -> vector<16x512xf32>
    %697 = vector.extract_strided_slice %0 {offsets = [8, 0], sizes = [1, 512], strides = [1, 1]} : vector<9x512xf32> to vector<1x512xf32>
    %cst_198 = arith.constant 5.000000e-01 : f32
    %698 = vector.broadcast %cst_198 : f32 to vector<1x512xf32>
    %699 = arith.cmpf ogt, %697, %698 : vector<1x512xf32>
    %cst_199 = arith.constant -3.000000e+38 : f32
    %700 = vector.shape_cast %699 : vector<1x512xi1> to vector<1x512xi1>
    %701 = vector.broadcast %700 : vector<1x512xi1> to vector<16x512xi1>
    %702 = vector.broadcast %cst_199 : f32 to vector<16x512xf32>
    %703 = arith.select %701, %696, %702 : vector<16x512xi1>, vector<16x512xf32>
    %704 = arith.maximumf %695, %703 : vector<16x512xf32>
    %705 = arith.addf %632, %704 : vector<16x512xf32>
    %c0_200 = arith.constant 0 : index
    %c0_201 = arith.constant 0 : index
    %706 = vector.load %arg18[%c0_200, %c0_201] : memref<64x512xf32, #tpu.memory_space<vmem>>, vector<16x512xf32>
    tpu.vector_store %arg18[%c0_200, %c0_201], %188 {strides = array<i32>} : memref<64x512xf32, #tpu.memory_space<vmem>>, vector<16x512xf32>,
    %c16 = arith.constant 16 : index
    %c0_202 = arith.constant 0 : index
    %707 = vector.load %arg18[%c16, %c0_202] : memref<64x512xf32, #tpu.memory_space<vmem>>, vector<16x512xf32>
    tpu.vector_store %arg18[%c16, %c0_202], %303 {strides = array<i32>} : memref<64x512xf32, #tpu.memory_space<vmem>>, vector<16x512xf32>,
    %c32 = arith.constant 32 : index
    %c0_203 = arith.constant 0 : index
    %708 = vector.load %arg18[%c32, %c0_203] : memref<64x512xf32, #tpu.memory_space<vmem>>, vector<16x512xf32>
    tpu.vector_store %arg18[%c32, %c0_203], %468 {strides = array<i32>} : memref<64x512xf32, #tpu.memory_space<vmem>>, vector<16x512xf32>,
    %c48 = arith.constant 48 : index
    %c0_204 = arith.constant 0 : index
    %709 = vector.load %arg18[%c48, %c0_204] : memref<64x512xf32, #tpu.memory_space<vmem>>, vector<16x512xf32>
    tpu.vector_store %arg18[%c48, %c0_204], %705 {strides = array<i32>} : memref<64x512xf32, #tpu.memory_space<vmem>>, vector<16x512xf32>,
    return
  }
}

</mosaic_0001>

<llo_original>
// kernel: a_call__.1
$region0: #{a_call__.1}
  #allocation0 [shape = 'u32[]', space=smem, size = 0x4, offset = 0x4, fixed_abs, tag = 'smem constant byte address 0x4 - core index']
  #allocation1 [shape = 'u32[144,128]{1,0:T(1,128)}', space=vmem, size = 0x12000, scoped, tag = 'internal scratch']
  %s0 = inlined_call_operand.vmem [shape: f32[9,512], index: 0, kind: input, shape index: {}]
  %s1 = inlined_call_operand.vmem [shape: f32[1,512], index: 1, kind: input, shape index: {}]
  %s2 = inlined_call_operand.vmem [shape: f32[16,512], index: 2, kind: input, shape index: {}]
  %s3 = inlined_call_operand.vmem [shape: f32[16,512], index: 3, kind: input, shape index: {}]
  %s4 = inlined_call_operand.vmem [shape: f32[16,16], index: 4, kind: input, shape index: {}]
  %s5 = inlined_call_operand.vmem [shape: f32[16,1], index: 5, kind: input, shape index: {}]
  %s6 = inlined_call_operand.vmem [shape: f32[16,1], index: 6, kind: input, shape index: {}]
  %s7 = inlined_call_operand.vmem [shape: f32[16,16], index: 7, kind: input, shape index: {}]
  %s8 = inlined_call_operand.vmem [shape: f32[16,1], index: 8, kind: input, shape index: {}]
  %s9 = inlined_call_operand.vmem [shape: f32[16,1], index: 9, kind: input, shape index: {}]
  %s10 = inlined_call_operand.vmem [shape: f32[3,16,9], index: 10, kind: input, shape index: {}]
  %s11 = inlined_call_operand.vmem [shape: f32[3,16,16], index: 11, kind: input, shape index: {}]
  %s12 = inlined_call_operand.vmem [shape: f32[3,16,1], index: 12, kind: input, shape index: {}]
  %s13 = inlined_call_operand.vmem [shape: f32[3,16,1], index: 13, kind: input, shape index: {}]
  %s14 = inlined_call_operand.vmem [shape: f32[3,16,9], index: 14, kind: input, shape index: {}]
  %s15 = inlined_call_operand.vmem [shape: f32[3,16,16], index: 15, kind: input, shape index: {}]
  %s16 = inlined_call_operand.vmem [shape: f32[3,16,1], index: 16, kind: input, shape index: {}]
  %s17 = inlined_call_operand.vmem [shape: f32[3,16,1], index: 17, kind: input, shape index: {}]
  %s18 = inlined_call_operand.vmem [shape: f32[64,512], index: 18, kind: output, shape index: {}]
  %s19 = sld [smem:[#allocation0]]
  $region82: #{a_call__.1} parent=0
    _
  %s21 = ssub.s32 1, %s19
  %s22 = scalar_select 0, %s21, %s19
  // Predicated region
  $region2: #{a_call__.1} parent=0 // pred_check
    _
  $region3: #{a_call__.1} parent=0 // pred_check_branch
    %24 = sbr.rel (0) target = $region5
  $region4: #{a_call__.1} parent=0 // pred_region
    _
  $region5: #{a_call__.1} parent=0 // pred_fallthru
    _
  // Predicated region
  $region6: #{a_call__.1} parent=0 // pred_check
    _
  $region7: #{a_call__.1} parent=0 // pred_check_branch
    %26 = sbr.rel (0) target = $region9
  $region8: #{a_call__.1} parent=0 // pred_region
    _
  $region9: #{a_call__.1} parent=0 // pred_fallthru
    _
  // Predicated region
  $region10: #{a_call__.1} parent=0 // pred_check
    _
  $region11: #{a_call__.1} parent=0 // pred_check_branch
    %28 = sbr.rel (0) target = $region13
  $region12: #{a_call__.1} parent=0 // pred_region
    _
  $region13: #{a_call__.1} parent=0 // pred_fallthru
    _
  // Predicated region
  $region14: #{a_call__.1} parent=0 // pred_check
    _
  $region15: #{a_call__.1} parent=0 // pred_check_branch
    %30 = sbr.rel (0) target = $region17
  $region16: #{a_call__.1} parent=0 // pred_region
    _
  $region17: #{a_call__.1} parent=0 // pred_fallthru
    _
  // Predicated region
  $region18: #{a_call__.1} parent=0 // pred_check
    _
  $region19: #{a_call__.1} parent=0 // pred_check_branch
    %32 = sbr.rel (0) target = $region21
  $region20: #{a_call__.1} parent=0 // pred_region
    _
  $region21: #{a_call__.1} parent=0 // pred_fallthru
    _
  // Predicated region
  $region22: #{a_call__.1} parent=0 // pred_check
    _
  $region23: #{a_call__.1} parent=0 // pred_check_branch
    %34 = sbr.rel (0) target = $region25
  $region24: #{a_call__.1} parent=0 // pred_region
    _
  $region25: #{a_call__.1} parent=0 // pred_fallthru
    _
  // Predicated region
  $region26: #{a_call__.1} parent=0 // pred_check
    _
  $region27: #{a_call__.1} parent=0 // pred_check_branch
    %36 = sbr.rel (0) target = $region29
  $region28: #{a_call__.1} parent=0 // pred_region
    _
  $region29: #{a_call__.1} parent=0 // pred_fallthru
    _
  // Predicated region
  $region30: #{a_call__.1} parent=0 // pred_check
    _
  $region31: #{a_call__.1} parent=0 // pred_check_branch
    %38 = sbr.rel (0) target = $region33
  $region32: #{a_call__.1} parent=0 // pred_region
    _
  $region33: #{a_call__.1} parent=0 // pred_fallthru
    _
  // Predicated region
  $region34: #{a_call__.1} parent=0 // pred_check
    _
  $region35: #{a_call__.1} parent=0 // pred_check_branch
    %40 = sbr.rel (0) target = $region37
  $region36: #{a_call__.1} parent=0 // pred_region
    _
  $region37: #{a_call__.1} parent=0 // pred_fallthru
    _
  // Predicated region
  $region38: #{a_call__.1} parent=0 // pred_check
    _
  $region39: #{a_call__.1} parent=0 // pred_check_branch
    %42 = sbr.rel (0) target = $region41
  $region40: #{a_call__.1} parent=0 // pred_region
    _
  $region41: #{a_call__.1} parent=0 // pred_fallthru
    _
  // Predicated region
  $region42: #{a_call__.1} parent=0 // pred_check
    _
  $region43: #{a_call__.1} parent=0 // pred_check_branch
    %44 = sbr.rel (0) target = $region45
  $region44: #{a_call__.1} parent=0 // pred_region
    _
  $region45: #{a_call__.1} parent=0 // pred_fallthru
    _
  // Predicated region
  $region46: #{a_call__.1} parent=0 // pred_check
    _
  $region47: #{a_call__.1} parent=0 // pred_check_branch
    %46 = sbr.rel (0) target = $region49
  $region48: #{a_call__.1} parent=0 // pred_region
    _
  $region49: #{a_call__.1} parent=0 // pred_fallthru
    _
  // Predicated region
  $region50: #{a_call__.1} parent=0 // pred_check
    _
  $region51: #{a_call__.1} parent=0 // pred_check_branch
    %48 = sbr.rel (0) target = $region53
  $region52: #{a_call__.1} parent=0 // pred_region
    _
  $region53: #{a_call__.1} parent=0 // pred_fallthru
    _
  // Predicated region
  $region54: #{a_call__.1} parent=0 // pred_check
    _
  $region55: #{a_call__.1} parent=0 // pred_check_branch
    %50 = sbr.rel (0) target = $region57
  $region56: #{a_call__.1} parent=0 // pred_region
    _
  $region57: #{a_call__.1} parent=0 // pred_fallthru
    _
  // Predicated region
  $region58: #{a_call__.1} parent=0 // pred_check
    _
  $region59: #{a_call__.1} parent=0 // pred_check_branch
    %52 = sbr.rel (0) target = $region61
  $region60: #{a_call__.1} parent=0 // pred_region
    _
  $region61: #{a_call__.1} parent=0 // pred_fallthru
    _
  // Predicated region
  $region62: #{a_call__.1} parent=0 // pred_check
    _
  $region63: #{a_call__.1} parent=0 // pred_check_branch
    %54 = sbr.rel (0) target = $region65
  $region64: #{a_call__.1} parent=0 // pred_region
    _
  $region65: #{a_call__.1} parent=0 // pred_fallthru
    _
  // Predicated region
  $region66: #{a_call__.1} parent=0 // pred_check
    _
  $region67: #{a_call__.1} parent=0 // pred_check_branch
    %56 = sbr.rel (0) target = $region69
  $region68: #{a_call__.1} parent=0 // pred_region
    _
  $region69: #{a_call__.1} parent=0 // pred_fallthru
    _
  // Predicated region
  $region70: #{a_call__.1} parent=0 // pred_check
    _
  $region71: #{a_call__.1} parent=0 // pred_check_branch
    %58 = sbr.rel (0) target = $region73
  $region72: #{a_call__.1} parent=0 // pred_region
    _
  $region73: #{a_call__.1} parent=0 // pred_fallthru
    _
  %v59 = vld [vmem:[%s0] sm:$0xff]
  %v60 = vld [vmem:[%s0 + $0x8] sm:$0xff]
  %v61 = vld [vmem:[%s0 + $0x10] sm:$0xff]
  %v62 = vld [vmem:[%s0 + $0x18] sm:$0xff]
  %v63 = vld [vmem:[%s0 + $0x20] sm:$0x1]
  %v64 = vld [vmem:[%s0 + $0x28] sm:$0x1]
  %v65 = vld [vmem:[%s0 + $0x30] sm:$0x1]
  %v66 = vld [vmem:[%s0 + $0x38] sm:$0x1]
  %v67 = vld [vmem:[%s1] sm:$0xf]
  %v68 = vld [vmem:[%s2] sm:$0xff]
  %v69 = vld [vmem:[%s2 + $0x8] sm:$0xff]
  %v70 = vld [vmem:[%s2 + $0x10] sm:$0xff]
  %v71 = vld [vmem:[%s2 + $0x18] sm:$0xff]
  %v72 = vld [vmem:[%s2 + $0x20] sm:$0xff]
  %v73 = vld [vmem:[%s2 + $0x28] sm:$0xff]
  %v74 = vld [vmem:[%s2 + $0x30] sm:$0xff]
  %v75 = vld [vmem:[%s2 + $0x38] sm:$0xff]
  %v76 = vld [vmem:[%s4] sm:$0xff]
  %v77 = vld [vmem:[%s4 + $0x8] sm:$0xff]
  %v78 = vld [vmem:[%s5] sm:$0xff]
  %v79 = vld [vmem:[%s5 + $0x8] sm:$0xff]
  %v80 = vld [vmem:[%s6] sm:$0xff]
  %v81 = vld [vmem:[%s6 + $0x8] sm:$0xff]
  %v82 = vmax.f32 %v68, 0.0
  %v83 = vmax.f32 %v69, 0.0
  %v84 = vmax.f32 %v70, 0.0
  %v85 = vmax.f32 %v71, 0.0
  %v86 = vmax.f32 %v72, 0.0
  %v87 = vmax.f32 %v73, 0.0
  %v88 = vmax.f32 %v74, 0.0
  %v89 = vmax.f32 %v75, 0.0
  %vm90 = vcmask 130048
  %v92 = vsel %vm90, %v76, 0
  %v95 = vsel %vm90, %v77, 0
  %97 = vmatprep.subr.mxu0 %v83
  %98 = vmatpush1.msra.mxu0 %v82
  %99 = vmatprep.subr.mxu0 %v87
  %100 = vmatpush1.msra.mxu0 %v86
  %101 = vmatprep.subr.mxu0 0.0
  %102 = vmatpush1.msra.mxu0 0.0
  %103 = vmatprep.subr.mxu0 0.0
  %104 = vmatpush1.msra.mxu0 0.0
  %105 = vmatprep.subr.mxu0 0.0
  %106 = vmatpush1.msra.mxu0 0.0
  %107 = vmatprep.subr.mxu0 0.0
  %108 = vmatpush1.msra.mxu0 0.0
  %109 = vmatprep.subr.mxu0 0.0
  %110 = vmatpush1.msra.mxu0 0.0
  %111 = vmatprep.subr.mxu0 0.0
  %112 = vmatpush1.msra.mxu0 0.0
  %113 = vmatprep.subr.mxu0 0.0
  %114 = vmatpush1.msra.mxu0 0.0
  %115 = vmatprep.subr.mxu0 0.0
  %116 = vmatpush1.msra.mxu0 0.0
  %117 = vmatprep.subr.mxu0 0.0
  %118 = vmatpush1.msra.mxu0 0.0
  %119 = vmatprep.subr.mxu0 0.0
  %120 = vmatpush1.msra.mxu0 0.0
  %121 = vmatprep.subr.mxu0 0.0
  %122 = vmatpush1.msra.mxu0 0.0
  %123 = vmatprep.subr.mxu0 0.0
  %124 = vmatpush1.msra.mxu0 0.0
  %125 = vmatprep.subr.mxu0 0.0
  %126 = vmatpush1.msra.mxu0 0.0
  %127 = vmatprep.subr.mxu0 0.0
  %128 = vmatpush1.msra.mxu0 0.0
  %129 = vmatprep.subr.mxu0 0.0
  %130 = vmatpush1.msra.mxu0 0.0
  %131 = vmatprep.subr.mxu0 0.0
  %132 = vmatpush1.msra.mxu0 0.0
  %133 = vmatprep.subr.mxu0 0.0
  %134 = vmatpush1.msra.mxu0 0.0
  %135 = vmatprep.subr.mxu0 0.0
  %136 = vmatpush1.msra.mxu0 0.0
  %137 = vmatprep.subr.mxu0 0.0
  %138 = vmatpush1.msra.mxu0 0.0
  %139 = vmatprep.subr.mxu0 0.0
  %140 = vmatpush1.msra.mxu0 0.0
  %141 = vmatprep.subr.mxu0 0.0
  %142 = vmatpush1.msra.mxu0 0.0
  %143 = vmatprep.subr.mxu0 0.0
  %144 = vmatpush1.msra.mxu0 0.0
  %145 = vmatprep.subr.mxu0 0.0
  %146 = vmatpush1.msra.mxu0 0.0
  %147 = vmatprep.subr.mxu0 0.0
  %148 = vmatpush1.msra.mxu0 0.0
  %149 = vmatprep.subr.mxu0 0.0
  %150 = vmatpush1.msra.mxu0 0.0
  %151 = vmatprep.subr.mxu0 0.0
  %152 = vmatpush1.msra.mxu0 0.0
  %153 = vmatprep.subr.mxu0 0.0
  %154 = vmatpush1.msra.mxu0 0.0
  %155 = vmatprep.subr.mxu0 0.0
  %156 = vmatpush1.msra.mxu0 0.0
  %157 = vmatprep.subr.mxu0 0.0
  %158 = vmatpush1.msra.mxu0 0.0
  %159 = vmatprep.subr.mxu0 0.0
  %160 = vmatpush1.msra.mxu0 0.0
  %161 = vmatprep.mubr.f32.mxu0 0.0
  %162 = vmatmul.mubr.f32.gmra.mrb[0].mxu0 %v92
  %v163 = vpop.f32.mrb[0].mxu0
  %v164 = vadd.f32 0.0, %v163
  %v165 = vpop.f32.mrb[0].mxu0
  %v166 = vadd.f32 0.0, %v165
  %167 = vmatprep.mubr.f32.mxu0 0.0
  %168 = vmatmul.mubr.f32.gmra.mrb[0].mxu0 %v95
  %v169 = vpop.f32.mrb[0].mxu0
  %v170 = vadd.f32 0.0, %v169
  %v171 = vpop.f32.mrb[0].mxu0
  %v172 = vadd.f32 0.0, %v171
  %173 = vdwg.mxu0
  %174 = vmatprep.subr.mxu0 %v85
  %175 = vmatpush1.msra.mxu0 %v84
  %176 = vmatprep.subr.mxu0 %v89
  %177 = vmatpush1.msra.mxu0 %v88
  %178 = vmatprep.subr.mxu0 0.0
  %179 = vmatpush1.msra.mxu0 0.0
  %180 = vmatprep.subr.mxu0 0.0
  %181 = vmatpush1.msra.mxu0 0.0
  %182 = vmatprep.subr.mxu0 0.0
  %183 = vmatpush1.msra.mxu0 0.0
  %184 = vmatprep.subr.mxu0 0.0
  %185 = vmatpush1.msra.mxu0 0.0
  %186 = vmatprep.subr.mxu0 0.0
  %187 = vmatpush1.msra.mxu0 0.0
  %188 = vmatprep.subr.mxu0 0.0
  %189 = vmatpush1.msra.mxu0 0.0
  %190 = vmatprep.subr.mxu0 0.0
  %191 = vmatpush1.msra.mxu0 0.0
  %192 = vmatprep.subr.mxu0 0.0
  %193 = vmatpush1.msra.mxu0 0.0
  %194 = vmatprep.subr.mxu0 0.0
  %195 = vmatpush1.msra.mxu0 0.0
  %196 = vmatprep.subr.mxu0 0.0
  %197 = vmatpush1.msra.mxu0 0.0
  %198 = vmatprep.subr.mxu0 0.0
  %199 = vmatpush1.msra.mxu0 0.0
  %200 = vmatprep.subr.mxu0 0.0
  %201 = vmatpush1.msra.mxu0 0.0
  %202 = vmatprep.subr.mxu0 0.0
  %203 = vmatpush1.msra.mxu0 0.0
  %204 = vmatprep.subr.mxu0 0.0
  %205 = vmatpush1.msra.mxu0 0.0
  %206 = vmatprep.subr.mxu0 0.0
  %207 = vmatpush1.msra.mxu0 0.0
  %208 = vmatprep.subr.mxu0 0.0
  %209 = vmatpush1.msra.mxu0 0.0
  %210 = vmatprep.subr.mxu0 0.0
  %211 = vmatpush1.msra.mxu0 0.0
  %212 = vmatprep.subr.mxu0 0.0
  %213 = vmatpush1.msra.mxu0 0.0
  %214 = vmatprep.subr.mxu0 0.0
  %215 = vmatpush1.msra.mxu0 0.0
  %216 = vmatprep.subr.mxu0 0.0
  %217 = vmatpush1.msra.mxu0 0.0
  %218 = vmatprep.subr.mxu0 0.0
  %219 = vmatpush1.msra.mxu0 0.0
  %220 = vmatprep.subr.mxu0 0.0
  %221 = vmatpush1.msra.mxu0 0.0
  %222 = vmatprep.subr.mxu0 0.0
  %223 = vmatpush1.msra.mxu0 0.0
  %224 = vmatprep.subr.mxu0 0.0
  %225 = vmatpush1.msra.mxu0 0.0
  %226 = vmatprep.subr.mxu0 0.0
  %227 = vmatpush1.msra.mxu0 0.0
  %228 = vmatprep.subr.mxu0 0.0
  %229 = vmatpush1.msra.mxu0 0.0
  %230 = vmatprep.subr.mxu0 0.0
  %231 = vmatpush1.msra.mxu0 0.0
  %232 = vmatprep.subr.mxu0 0.0
  %233 = vmatpush1.msra.mxu0 0.0
  %234 = vmatprep.subr.mxu0 0.0
  %235 = vmatpush1.msra.mxu0 0.0
  %236 = vmatprep.subr.mxu0 0.0
  %237 = vmatpush1.msra.mxu0 0.0
  %238 = vmatprep.mubr.f32.mxu0 0.0
  %239 = vmatmul.mubr.f32.gmra.mrb[0].mxu0 %v92
  %v240 = vpop.f32.mrb[0].mxu0
  %v241 = vadd.f32 0.0, %v240
  %v242 = vpop.f32.mrb[0].mxu0
  %v243 = vadd.f32 0.0, %v242
  %244 = vmatprep.mubr.f32.mxu0 0.0
  %245 = vmatmul.mubr.f32.gmra.mrb[0].mxu0 %v95
  %v246 = vpop.f32.mrb[0].mxu0
  %v247 = vadd.f32 0.0, %v246
  %v248 = vpop.f32.mrb[0].mxu0
  %v249 = vadd.f32 0.0, %v248
  %250 = vdwg.mxu0
  %252 = vset.pattern.permute.xlu0 0
  %253 = vperm.xlu0 %252, %v78
  %v254 = vpop.permute.xlu0 %253
  %257 = vset.pattern.permute.xlu0 0
  %258 = vperm.xlu0 %257, %v79
  %v259 = vpop.permute.xlu0 %258
  %v261 = vmul.f32 %v164, %v254
  %v262 = vmul.f32 %v166, %v254
  %v263 = vmul.f32 %v241, %v254
  %v264 = vmul.f32 %v243, %v254
  %v265 = vmul.f32 %v170, %v259
  %v266 = vmul.f32 %v172, %v259
  %v267 = vmul.f32 %v247, %v259
  %v268 = vmul.f32 %v249, %v259
  %270 = vset.pattern.permute.xlu0 0
  %271 = vperm.xlu0 %270, %v80
  %v272 = vpop.permute.xlu0 %271
  %275 = vset.pattern.permute.xlu0 0
  %276 = vperm.xlu0 %275, %v81
  %v277 = vpop.permute.xlu0 %276
  %v279 = vadd.f32 %v261, %v272
  %v280 = vadd.f32 %v262, %v272
  %v281 = vadd.f32 %v263, %v272
  %v282 = vadd.f32 %v264, %v272
  %v283 = vadd.f32 %v265, %v277
  %v284 = vadd.f32 %v266, %v277
  %v285 = vadd.f32 %v267, %v277
  %v286 = vadd.f32 %v268, %v277
  %v287 = vld [vmem:[%s3] sm:$0xff]
  %v288 = vld [vmem:[%s3 + $0x8] sm:$0xff]
  %v289 = vld [vmem:[%s3 + $0x10] sm:$0xff]
  %v290 = vld [vmem:[%s3 + $0x18] sm:$0xff]
  %v291 = vld [vmem:[%s3 + $0x20] sm:$0xff]
  %v292 = vld [vmem:[%s3 + $0x28] sm:$0xff]
  %v293 = vld [vmem:[%s3 + $0x30] sm:$0xff]
  %v294 = vld [vmem:[%s3 + $0x38] sm:$0xff]
  %v295 = vld [vmem:[%s7] sm:$0xff]
  %v296 = vld [vmem:[%s7 + $0x8] sm:$0xff]
  %v297 = vld [vmem:[%s8] sm:$0xff]
  %v298 = vld [vmem:[%s8 + $0x8] sm:$0xff]
  %v299 = vld [vmem:[%s9] sm:$0xff]
  %v300 = vld [vmem:[%s9 + $0x8] sm:$0xff]
  %v301 = vmax.f32 %v287, 0.0
  %v302 = vmax.f32 %v288, 0.0
  %v303 = vmax.f32 %v289, 0.0
  %v304 = vmax.f32 %v290, 0.0
  %v305 = vmax.f32 %v291, 0.0
  %v306 = vmax.f32 %v292, 0.0
  %v307 = vmax.f32 %v293, 0.0
  %v308 = vmax.f32 %v294, 0.0
  %v310 = vsel %vm90, %v295, 0
  %v313 = vsel %vm90, %v296, 0
  %315 = vmatprep.subr.mxu0 %v302
  %316 = vmatpush1.msra.mxu0 %v301
  %317 = vmatprep.subr.mxu0 %v306
  %318 = vmatpush1.msra.mxu0 %v305
  %319 = vmatprep.subr.mxu0 0.0
  %320 = vmatpush1.msra.mxu0 0.0
  %321 = vmatprep.subr.mxu0 0.0
  %322 = vmatpush1.msra.mxu0 0.0
  %323 = vmatprep.subr.mxu0 0.0
  %324 = vmatpush1.msra.mxu0 0.0
  %325 = vmatprep.subr.mxu0 0.0
  %326 = vmatpush1.msra.mxu0 0.0
  %327 = vmatprep.subr.mxu0 0.0
  %328 = vmatpush1.msra.mxu0 0.0
  %329 = vmatprep.subr.mxu0 0.0
  %330 = vmatpush1.msra.mxu0 0.0
  %331 = vmatprep.subr.mxu0 0.0
  %332 = vmatpush1.msra.mxu0 0.0
  %333 = vmatprep.subr.mxu0 0.0
  %334 = vmatpush1.msra.mxu0 0.0
  %335 = vmatprep.subr.mxu0 0.0
  %336 = vmatpush1.msra.mxu0 0.0
  %337 = vmatprep.subr.mxu0 0.0
  %338 = vmatpush1.msra.mxu0 0.0
  %339 = vmatprep.subr.mxu0 0.0
  %340 = vmatpush1.msra.mxu0 0.0
  %341 = vmatprep.subr.mxu0 0.0
  %342 = vmatpush1.msra.mxu0 0.0
  %343 = vmatprep.subr.mxu0 0.0
  %344 = vmatpush1.msra.mxu0 0.0
  %345 = vmatprep.subr.mxu0 0.0
  %346 = vmatpush1.msra.mxu0 0.0
  %347 = vmatprep.subr.mxu0 0.0
  %348 = vmatpush1.msra.mxu0 0.0
  %349 = vmatprep.subr.mxu0 0.0
  %350 = vmatpush1.msra.mxu0 0.0
  %351 = vmatprep.subr.mxu0 0.0
  %352 = vmatpush1.msra.mxu0 0.0
  %353 = vmatprep.subr.mxu0 0.0
  %354 = vmatpush1.msra.mxu0 0.0
  %355 = vmatprep.subr.mxu0 0.0
  %356 = vmatpush1.msra.mxu0 0.0
  %357 = vmatprep.subr.mxu0 0.0
  %358 = vmatpush1.msra.mxu0 0.0
  %359 = vmatprep.subr.mxu0 0.0
  %360 = vmatpush1.msra.mxu0 0.0
  %361 = vmatprep.subr.mxu0 0.0
  %362 = vmatpush1.msra.mxu0 0.0
  %363 = vmatprep.subr.mxu0 0.0
  %364 = vmatpush1.msra.mxu0 0.0
  %365 = vmatprep.subr.mxu0 0.0
  %366 = vmatpush1.msra.mxu0 0.0
  %367 = vmatprep.subr.mxu0 0.0
  %368 = vmatpush1.msra.mxu0 0.0
  %369 = vmatprep.subr.mxu0 0.0
  %370 = vmatpush1.msra.mxu0 0.0
  %371 = vmatprep.subr.mxu0 0.0
  %372 = vmatpush1.msra.mxu0 0.0
  %373 = vmatprep.subr.mxu0 0.0
  %374 = vmatpush1.msra.mxu0 0.0
  %375 = vmatprep.subr.mxu0 0.0
  %376 = vmatpush1.msra.mxu0 0.0
  %377 = vmatprep.subr.mxu0 0.0
  %378 = vmatpush1.msra.mxu0 0.0
  %379 = vmatprep.mubr.f32.mxu0 0.0
  %380 = vmatmul.mubr.f32.gmra.mrb[0].mxu0 %v310
  %v381 = vpop.f32.mrb[0].mxu0
  %v382 = vadd.f32 0.0, %v381
  %v383 = vpop.f32.mrb[0].mxu0
  %v384 = vadd.f32 0.0, %v383
  %385 = vmatprep.mubr.f32.mxu0 0.0
  %386 = vmatmul.mubr.f32.gmra.mrb[0].mxu0 %v313
  %v387 = vpop.f32.mrb[0].mxu0
  %v388 = vadd.f32 0.0, %v387
  %v389 = vpop.f32.mrb[0].mxu0
  %v390 = vadd.f32 0.0, %v389
  %391 = vdwg.mxu0
  %392 = vmatprep.subr.mxu0 %v304
  %393 = vmatpush1.msra.mxu0 %v303
  %394 = vmatprep.subr.mxu0 %v308
  %395 = vmatpush1.msra.mxu0 %v307
  %396 = vmatprep.subr.mxu0 0.0
  %397 = vmatpush1.msra.mxu0 0.0
  %398 = vmatprep.subr.mxu0 0.0
  %399 = vmatpush1.msra.mxu0 0.0
  %400 = vmatprep.subr.mxu0 0.0
  %401 = vmatpush1.msra.mxu0 0.0
  %402 = vmatprep.subr.mxu0 0.0
  %403 = vmatpush1.msra.mxu0 0.0
  %404 = vmatprep.subr.mxu0 0.0
  %405 = vmatpush1.msra.mxu0 0.0
  %406 = vmatprep.subr.mxu0 0.0
  %407 = vmatpush1.msra.mxu0 0.0
  %408 = vmatprep.subr.mxu0 0.0
  %409 = vmatpush1.msra.mxu0 0.0
  %410 = vmatprep.subr.mxu0 0.0
  %411 = vmatpush1.msra.mxu0 0.0
  %412 = vmatprep.subr.mxu0 0.0
  %413 = vmatpush1.msra.mxu0 0.0
  %414 = vmatprep.subr.mxu0 0.0
  %415 = vmatpush1.msra.mxu0 0.0
  %416 = vmatprep.subr.mxu0 0.0
  %417 = vmatpush1.msra.mxu0 0.0
  %418 = vmatprep.subr.mxu0 0.0
  %419 = vmatpush1.msra.mxu0 0.0
  %420 = vmatprep.subr.mxu0 0.0
  %421 = vmatpush1.msra.mxu0 0.0
  %422 = vmatprep.subr.mxu0 0.0
  %423 = vmatpush1.msra.mxu0 0.0
  %424 = vmatprep.subr.mxu0 0.0
  %425 = vmatpush1.msra.mxu0 0.0
  %426 = vmatprep.subr.mxu0 0.0
  %427 = vmatpush1.msra.mxu0 0.0
  %428 = vmatprep.subr.mxu0 0.0
  %429 = vmatpush1.msra.mxu0 0.0
  %430 = vmatprep.subr.mxu0 0.0
  %431 = vmatpush1.msra.mxu0 0.0
  %432 = vmatprep.subr.mxu0 0.0
  %433 = vmatpush1.msra.mxu0 0.0
  %434 = vmatprep.subr.mxu0 0.0
  %435 = vmatpush1.msra.mxu0 0.0
  %436 = vmatprep.subr.mxu0 0.0
  %437 = vmatpush1.msra.mxu0 0.0
  %438 = vmatprep.subr.mxu0 0.0
  %439 = vmatpush1.msra.mxu0 0.0
  %440 = vmatprep.subr.mxu0 0.0
  %441 = vmatpush1.msra.mxu0 0.0
  %442 = vmatprep.subr.mxu0 0.0
  %443 = vmatpush1.msra.mxu0 0.0
  %444 = vmatprep.subr.mxu0 0.0
  %445 = vmatpush1.msra.mxu0 0.0
  %446 = vmatprep.subr.mxu0 0.0
  %447 = vmatpush1.msra.mxu0 0.0
  %448 = vmatprep.subr.mxu0 0.0
  %449 = vmatpush1.msra.mxu0 0.0
  %450 = vmatprep.subr.mxu0 0.0
  %451 = vmatpush1.msra.mxu0 0.0
  %452 = vmatprep.subr.mxu0 0.0
  %453 = vmatpush1.msra.mxu0 0.0
  %454 = vmatprep.subr.mxu0 0.0
  %455 = vmatpush1.msra.mxu0 0.0
  %456 = vmatprep.mubr.f32.mxu0 0.0
  %457 = vmatmul.mubr.f32.gmra.mrb[0].mxu0 %v310
  %v458 = vpop.f32.mrb[0].mxu0
  %v459 = vadd.f32 0.0, %v458
  %v460 = vpop.f32.mrb[0].mxu0
  %v461 = vadd.f32 0.0, %v460
  %462 = vmatprep.mubr.f32.mxu0 0.0
  %463 = vmatmul.mubr.f32.gmra.mrb[0].mxu0 %v313
  %v464 = vpop.f32.mrb[0].mxu0
  %v465 = vadd.f32 0.0, %v464
  %v466 = vpop.f32.mrb[0].mxu0
  %v467 = vadd.f32 0.0, %v466
  %468 = vdwg.mxu0
  %470 = vset.pattern.permute.xlu0 0
  %471 = vperm.xlu0 %470, %v297
  %v472 = vpop.permute.xlu0 %471
  %475 = vset.pattern.permute.xlu0 0
  %476 = vperm.xlu0 %475, %v298
  %v477 = vpop.permute.xlu0 %476
  %v479 = vmul.f32 %v382, %v472
  %v480 = vmul.f32 %v384, %v472
  %v481 = vmul.f32 %v459, %v472
  %v482 = vmul.f32 %v461, %v472
  %v483 = vmul.f32 %v388, %v477
  %v484 = vmul.f32 %v390, %v477
  %v485 = vmul.f32 %v465, %v477
  %v486 = vmul.f32 %v467, %v477
  %488 = vset.pattern.permute.xlu0 0
  %489 = vperm.xlu0 %488, %v299
  %v490 = vpop.permute.xlu0 %489
  %493 = vset.pattern.permute.xlu0 0
  %494 = vperm.xlu0 %493, %v300
  %v495 = vpop.permute.xlu0 %494
  %v497 = vadd.f32 %v479, %v490
  %v498 = vadd.f32 %v480, %v490
  %v499 = vadd.f32 %v481, %v490
  %v500 = vadd.f32 %v482, %v490
  %v501 = vadd.f32 %v483, %v495
  %v502 = vadd.f32 %v484, %v495
  %v503 = vadd.f32 %v485, %v495
  %v504 = vadd.f32 %v486, %v495
  %v505 = vld [vmem:[%s10] sm:$0xff]
  %v506 = vld [vmem:[%s10 + $0x8] sm:$0xff]
  %v507 = vld [vmem:[%s11] sm:$0xff]
  %v508 = vld [vmem:[%s11 + $0x8] sm:$0xff]
  %v509 = vld [vmem:[%s12] sm:$0xff]
  %v510 = vld [vmem:[%s12 + $0x8] sm:$0xff]
  %v511 = vld [vmem:[%s13] sm:$0xff]
  %v512 = vld [vmem:[%s13 + $0x8] sm:$0xff]
  %v513 = vld [vmem:[%s14] sm:$0xff]
  %v514 = vld [vmem:[%s14 + $0x8] sm:$0xff]
  %v515 = vld [vmem:[%s15] sm:$0xff]
  %v516 = vld [vmem:[%s15 + $0x8] sm:$0xff]
  %v517 = vld [vmem:[%s16] sm:$0xff]
  %v518 = vld [vmem:[%s16 + $0x8] sm:$0xff]
  %v519 = vld [vmem:[%s17] sm:$0xff]
  %v520 = vld [vmem:[%s17 + $0x8] sm:$0xff]
  %v521 = vmax.f32 %v279, 0.0
  %v522 = vmax.f32 %v280, 0.0
  %v523 = vmax.f32 %v281, 0.0
  %v524 = vmax.f32 %v282, 0.0
  %v525 = vmax.f32 %v283, 0.0
  %v526 = vmax.f32 %v284, 0.0
  %v527 = vmax.f32 %v285, 0.0
  %v528 = vmax.f32 %v286, 0.0
  %529 = vrot.lane.b32.xlu0 %v521, 17
  %v530 = vpop.permute.xlu0 %529
  %531 = vrot.lane.b32.xlu0 %v525, 17
  %v532 = vpop.permute.xlu0 %531
  %533 = vrot.lane.b32.xlu0 %v522, 17
  %v534 = vpop.permute.xlu0 %533
  %535 = vrot.lane.b32.xlu0 %v526, 17
  %v536 = vpop.permute.xlu0 %535
  %537 = vrot.lane.b32.xlu0 %v523, 17
  %v538 = vpop.permute.xlu0 %537
  %539 = vrot.lane.b32.xlu0 %v527, 17
  %v540 = vpop.permute.xlu0 %539
  %541 = vrot.lane.b32.xlu0 %v524, 17
  %v542 = vpop.permute.xlu0 %541
  %543 = vrot.lane.b32.xlu0 %v528, 17
  %v544 = vpop.permute.xlu0 %543
  %v545 = vlaneseq
  %v546 = vand.u32 %v545, 127
  %vm547 = vcmp.lt.s32.totalorder %v546, 17
  %v548 = vsel %vm547, %v538, %v542
  %v549 = vsel %vm547, %v540, %v544
  %v550 = vsel %vm547, %v534, %v538
  %v551 = vsel %vm547, %v536, %v540
  %v552 = vsel %vm547, %v530, %v534
  %v553 = vsel %vm547, %v532, %v536
  %v554 = vsel %vm547, %v542, %v530
  %v555 = vsel %vm547, %v544, %v532
  %v556 = vlaneseq
  %v557 = vshrl.u32 %v556, 7
  %v558 = vsub.s32 0, %v557
  %v559 = vrot.slane %v59, %v558
  %v560 = vlaneseq
  %v561 = vshrl.u32 %v560, 7
  %v562 = vsub.s32 0, %v561
  %v563 = vrot.slane %v60, %v562
  %v564 = vlaneseq
  %v565 = vshrl.u32 %v564, 7
  %v566 = vsub.s32 0, %v565
  %v567 = vrot.slane %v61, %v566
  %v568 = vlaneseq
  %v569 = vshrl.u32 %v568, 7
  %v570 = vsub.s32 0, %v569
  %v571 = vrot.slane %v62, %v570
  %v572 = vmul.f32 %v554, %v559
  %v573 = vmul.f32 %v552, %v563
  %v574 = vmul.f32 %v550, %v567
  %v575 = vmul.f32 %v548, %v571
  %v576 = vmul.f32 %v555, %v559
  %v577 = vmul.f32 %v553, %v563
  %v578 = vmul.f32 %v551, %v567
  %v579 = vmul.f32 %v549, %v571
  %581 = vset.pattern.permute.xlu0 0
  %582 = vperm.xlu0 %581, %v505
  %v583 = vpop.permute.xlu0 %582
  %586 = vset.pattern.permute.xlu0 0
  %587 = vperm.xlu0 %586, %v506
  %v588 = vpop.permute.xlu0 %587
  %v590 = vmul.f32 %v572, %v583
  %v591 = vmul.f32 %v573, %v583
  %v592 = vmul.f32 %v574, %v583
  %v593 = vmul.f32 %v575, %v583
  %v594 = vmul.f32 %v576, %v588
  %v595 = vmul.f32 %v577, %v588
  %v596 = vmul.f32 %v578, %v588
  %v597 = vmul.f32 %v579, %v588
  %598 = vrot.lane.b32.xlu0 %v521, 16
  %v599 = vpop.permute.xlu0 %598
  %600 = vrot.lane.b32.xlu0 %v525, 16
  %v601 = vpop.permute.xlu0 %600
  %602 = vrot.lane.b32.xlu0 %v522, 16
  %v603 = vpop.permute.xlu0 %602
  %604 = vrot.lane.b32.xlu0 %v526, 16
  %v605 = vpop.permute.xlu0 %604
  %606 = vrot.lane.b32.xlu0 %v523, 16
  %v607 = vpop.permute.xlu0 %606
  %608 = vrot.lane.b32.xlu0 %v527, 16
  %v609 = vpop.permute.xlu0 %608
  %610 = vrot.lane.b32.xlu0 %v524, 16
  %v611 = vpop.permute.xlu0 %610
  %612 = vrot.lane.b32.xlu0 %v528, 16
  %v613 = vpop.permute.xlu0 %612
  %vm614 = vcmp.lt.s32.totalorder %v546, 16
  %v615 = vsel %vm614, %v607, %v611
  %v616 = vsel %vm614, %v609, %v613
  %v617 = vsel %vm614, %v603, %v607
  %v618 = vsel %vm614, %v605, %v609
  %v619 = vsel %vm614, %v599, %v603
  %v620 = vsel %vm614, %v601, %v605
  %v621 = vsel %vm614, %v611, %v599
  %v622 = vsel %vm614, %v613, %v601
  %v623 = vlaneseq
  %v624 = vshrl.u32 %v623, 7
  %v625 = vsub.s32 1, %v624
  %v626 = vrot.slane %v59, %v625
  %v627 = vlaneseq
  %v628 = vshrl.u32 %v627, 7
  %v629 = vsub.s32 1, %v628
  %v630 = vrot.slane %v60, %v629
  %v631 = vlaneseq
  %v632 = vshrl.u32 %v631, 7
  %v633 = vsub.s32 1, %v632
  %v634 = vrot.slane %v61, %v633
  %v635 = vlaneseq
  %v636 = vshrl.u32 %v635, 7
  %v637 = vsub.s32 1, %v636
  %v638 = vrot.slane %v62, %v637
  %v639 = vmul.f32 %v621, %v626
  %v640 = vmul.f32 %v619, %v630
  %v641 = vmul.f32 %v617, %v634
  %v642 = vmul.f32 %v615, %v638
  %v643 = vmul.f32 %v622, %v626
  %v644 = vmul.f32 %v620, %v630
  %v645 = vmul.f32 %v618, %v634
  %v646 = vmul.f32 %v616, %v638
  %647 = vset.pattern.permute.xlu0 1
  %648 = vperm.xlu0 %647, %v505
  %v649 = vpop.permute.xlu0 %648
  %651 = vset.pattern.permute.xlu0 1
  %652 = vperm.xlu0 %651, %v506
  %v653 = vpop.permute.xlu0 %652
  %v655 = vmul.f32 %v639, %v649
  %v656 = vmul.f32 %v640, %v649
  %v657 = vmul.f32 %v641, %v649
  %v658 = vmul.f32 %v642, %v649
  %v659 = vmul.f32 %v643, %v653
  %v660 = vmul.f32 %v644, %v653
  %v661 = vmul.f32 %v645, %v653
  %v662 = vmul.f32 %v646, %v653
  %v663 = vadd.f32 %v590, %v655
  %v664 = vadd.f32 %v591, %v656
  %v665 = vadd.f32 %v592, %v657
  %v666 = vadd.f32 %v593, %v658
  %v667 = vadd.f32 %v594, %v659
  %v668 = vadd.f32 %v595, %v660
  %v669 = vadd.f32 %v596, %v661
  %v670 = vadd.f32 %v597, %v662
  %671 = vrot.lane.b32.xlu0 %v521, 15
  %v672 = vpop.permute.xlu0 %671
  %673 = vrot.lane.b32.xlu0 %v525, 15
  %v674 = vpop.permute.xlu0 %673
  %675 = vrot.lane.b32.xlu0 %v522, 15
  %v676 = vpop.permute.xlu0 %675
  %677 = vrot.lane.b32.xlu0 %v526, 15
  %v678 = vpop.permute.xlu0 %677
  %679 = vrot.lane.b32.xlu0 %v523, 15
  %v680 = vpop.permute.xlu0 %679
  %681 = vrot.lane.b32.xlu0 %v527, 15
  %v682 = vpop.permute.xlu0 %681
  %683 = vrot.lane.b32.xlu0 %v524, 15
  %v684 = vpop.permute.xlu0 %683
  %685 = vrot.lane.b32.xlu0 %v528, 15
  %v686 = vpop.permute.xlu0 %685
  %vm687 = vcmp.lt.s32.totalorder %v546, 15
  %v688 = vsel %vm687, %v680, %v684
  %v689 = vsel %vm687, %v682, %v686
  %v690 = vsel %vm687, %v676, %v680
  %v691 = vsel %vm687, %v678, %v682
  %v692 = vsel %vm687, %v672, %v676
  %v693 = vsel %vm687, %v674, %v678
  %v694 = vsel %vm687, %v684, %v672
  %v695 = vsel %vm687, %v686, %v674
  %v696 = vlaneseq
  %v697 = vshrl.u32 %v696, 7
  %v698 = vsub.s32 2, %v697
  %v699 = vrot.slane %v59, %v698
  %v700 = vlaneseq
  %v701 = vshrl.u32 %v700, 7
  %v702 = vsub.s32 2, %v701
  %v703 = vrot.slane %v60, %v702
  %v704 = vlaneseq
  %v705 = vshrl.u32 %v704, 7
  %v706 = vsub.s32 2, %v705
  %v707 = vrot.slane %v61, %v706
  %v708 = vlaneseq
  %v709 = vshrl.u32 %v708, 7
  %v710 = vsub.s32 2, %v709
  %v711 = vrot.slane %v62, %v710
  %v712 = vmul.f32 %v694, %v699
  %v713 = vmul.f32 %v692, %v703
  %v714 = vmul.f32 %v690, %v707
  %v715 = vmul.f32 %v688, %v711
  %v716 = vmul.f32 %v695, %v699
  %v717 = vmul.f32 %v693, %v703
  %v718 = vmul.f32 %v691, %v707
  %v719 = vmul.f32 %v689, %v711
  %720 = vset.pattern.permute.xlu0 2
  %721 = vperm.xlu0 %720, %v505
  %v722 = vpop.permute.xlu0 %721
  %724 = vset.pattern.permute.xlu0 2
  %725 = vperm.xlu0 %724, %v506
  %v726 = vpop.permute.xlu0 %725
  %v728 = vmul.f32 %v712, %v722
  %v729 = vmul.f32 %v713, %v722
  %v730 = vmul.f32 %v714, %v722
  %v731 = vmul.f32 %v715, %v722
  %v732 = vmul.f32 %v716, %v726
  %v733 = vmul.f32 %v717, %v726
  %v734 = vmul.f32 %v718, %v726
  %v735 = vmul.f32 %v719, %v726
  %v736 = vadd.f32 %v663, %v728
  %v737 = vadd.f32 %v664, %v729
  %v738 = vadd.f32 %v665, %v730
  %v739 = vadd.f32 %v666, %v731
  %v740 = vadd.f32 %v667, %v732
  %v741 = vadd.f32 %v668, %v733
  %v742 = vadd.f32 %v669, %v734
  %v743 = vadd.f32 %v670, %v735
  %744 = vrot.lane.b32.xlu0 %v521, 1
  %v745 = vpop.permute.xlu0 %744
  %746 = vrot.lane.b32.xlu0 %v525, 1
  %v747 = vpop.permute.xlu0 %746
  %748 = vrot.lane.b32.xlu0 %v522, 1
  %v749 = vpop.permute.xlu0 %748
  %750 = vrot.lane.b32.xlu0 %v526, 1
  %v751 = vpop.permute.xlu0 %750
  %752 = vrot.lane.b32.xlu0 %v523, 1
  %v753 = vpop.permute.xlu0 %752
  %754 = vrot.lane.b32.xlu0 %v527, 1
  %v755 = vpop.permute.xlu0 %754
  %756 = vrot.lane.b32.xlu0 %v524, 1
  %v757 = vpop.permute.xlu0 %756
  %758 = vrot.lane.b32.xlu0 %v528, 1
  %v759 = vpop.permute.xlu0 %758
  %vm760 = vcmp.lt.s32.totalorder %v546, 1
  %v761 = vsel %vm760, %v753, %v757
  %v762 = vsel %vm760, %v755, %v759
  %v763 = vsel %vm760, %v749, %v753
  %v764 = vsel %vm760, %v751, %v755
  %v765 = vsel %vm760, %v745, %v749
  %v766 = vsel %vm760, %v747, %v751
  %v767 = vsel %vm760, %v757, %v745
  %v768 = vsel %vm760, %v759, %v747
  %v769 = vlaneseq
  %v770 = vshrl.u32 %v769, 7
  %v771 = vsub.s32 3, %v770
  %v772 = vrot.slane %v59, %v771
  %v773 = vlaneseq
  %v774 = vshrl.u32 %v773, 7
  %v775 = vsub.s32 3, %v774
  %v776 = vrot.slane %v60, %v775
  %v777 = vlaneseq
  %v778 = vshrl.u32 %v777, 7
  %v779 = vsub.s32 3, %v778
  %v780 = vrot.slane %v61, %v779
  %v781 = vlaneseq
  %v782 = vshrl.u32 %v781, 7
  %v783 = vsub.s32 3, %v782
  %v784 = vrot.slane %v62, %v783
  %v785 = vmul.f32 %v767, %v772
  %v786 = vmul.f32 %v765, %v776
  %v787 = vmul.f32 %v763, %v780
  %v788 = vmul.f32 %v761, %v784
  %v789 = vmul.f32 %v768, %v772
  %v790 = vmul.f32 %v766, %v776
  %v791 = vmul.f32 %v764, %v780
  %v792 = vmul.f32 %v762, %v784
  %793 = vset.pattern.permute.xlu0 3
  %794 = vperm.xlu0 %793, %v505
  %v795 = vpop.permute.xlu0 %794
  %797 = vset.pattern.permute.xlu0 3
  %798 = vperm.xlu0 %797, %v506
  %v799 = vpop.permute.xlu0 %798
  %v801 = vmul.f32 %v785, %v795
  %v802 = vmul.f32 %v786, %v795
  %v803 = vmul.f32 %v787, %v795
  %v804 = vmul.f32 %v788, %v795
  %v805 = vmul.f32 %v789, %v799
  %v806 = vmul.f32 %v790, %v799
  %v807 = vmul.f32 %v791, %v799
  %v808 = vmul.f32 %v792, %v799
  %v809 = vadd.f32 %v736, %v801
  %v810 = vadd.f32 %v737, %v802
  %v811 = vadd.f32 %v738, %v803
  %v812 = vadd.f32 %v739, %v804
  %v813 = vadd.f32 %v740, %v805
  %v814 = vadd.f32 %v741, %v806
  %v815 = vadd.f32 %v742, %v807
  %v816 = vadd.f32 %v743, %v808
  %817 = vset.pattern.permute.xlu0 4
  %818 = vperm.xlu0 %817, %v505
  %v819 = vpop.permute.xlu0 %818
  %821 = vset.pattern.permute.xlu0 4
  %822 = vperm.xlu0 %821, %v506
  %v823 = vpop.permute.xlu0 %822
  %v825 = vmul.f32 %v521, %v819
  %v826 = vmul.f32 %v522, %v819
  %v827 = vmul.f32 %v523, %v819
  %v828 = vmul.f32 %v524, %v819
  %v829 = vmul.f32 %v525, %v823
  %v830 = vmul.f32 %v526, %v823
  %v831 = vmul.f32 %v527, %v823
  %v832 = vmul.f32 %v528, %v823
  %v833 = vadd.f32 %v809, %v825
  %v834 = vadd.f32 %v810, %v826
  %v835 = vadd.f32 %v811, %v827
  %v836 = vadd.f32 %v812, %v828
  %v837 = vadd.f32 %v813, %v829
  %v838 = vadd.f32 %v814, %v830
  %v839 = vadd.f32 %v815, %v831
  %v840 = vadd.f32 %v816, %v832
  %841 = vrot.lane.b32.xlu0 %v521, 127
  %v842 = vpop.permute.xlu0 %841
  %843 = vrot.lane.b32.xlu0 %v525, 127
  %v844 = vpop.permute.xlu0 %843
  %845 = vrot.lane.b32.xlu0 %v522, 127
  %v846 = vpop.permute.xlu0 %845
  %847 = vrot.lane.b32.xlu0 %v526, 127
  %v848 = vpop.permute.xlu0 %847
  %849 = vrot.lane.b32.xlu0 %v523, 127
  %v850 = vpop.permute.xlu0 %849
  %851 = vrot.lane.b32.xlu0 %v527, 127
  %v852 = vpop.permute.xlu0 %851
  %853 = vrot.lane.b32.xlu0 %v524, 127
  %v854 = vpop.permute.xlu0 %853
  %855 = vrot.lane.b32.xlu0 %v528, 127
  %v856 = vpop.permute.xlu0 %855
  %vm857 = vcmp.lt.s32.totalorder %v546, 127
  %v858 = vsel %vm857, %v850, %v854
  %v859 = vsel %vm857, %v852, %v856
  %v860 = vsel %vm857, %v846, %v850
  %v861 = vsel %vm857, %v848, %v852
  %v862 = vsel %vm857, %v842, %v846
  %v863 = vsel %vm857, %v844, %v848
  %v864 = vsel %vm857, %v854, %v842
  %v865 = vsel %vm857, %v856, %v844
  %v866 = vlaneseq
  %v867 = vshrl.u32 %v866, 7
  %v868 = vsub.s32 5, %v867
  %v869 = vrot.slane %v59, %v868
  %v870 = vlaneseq
  %v871 = vshrl.u32 %v870, 7
  %v872 = vsub.s32 5, %v871
  %v873 = vrot.slane %v60, %v872
  %v874 = vlaneseq
  %v875 = vshrl.u32 %v874, 7
  %v876 = vsub.s32 5, %v875
  %v877 = vrot.slane %v61, %v876
  %v878 = vlaneseq
  %v879 = vshrl.u32 %v878, 7
  %v880 = vsub.s32 5, %v879
  %v881 = vrot.slane %v62, %v880
  %v882 = vmul.f32 %v862, %v869
  %v883 = vmul.f32 %v860, %v873
  %v884 = vmul.f32 %v858, %v877
  %v885 = vmul.f32 %v864, %v881
  %v886 = vmul.f32 %v863, %v869
  %v887 = vmul.f32 %v861, %v873
  %v888 = vmul.f32 %v859, %v877
  %v889 = vmul.f32 %v865, %v881
  %890 = vset.pattern.permute.xlu0 5
  %891 = vperm.xlu0 %890, %v505
  %v892 = vpop.permute.xlu0 %891
  %894 = vset.pattern.permute.xlu0 5
  %895 = vperm.xlu0 %894, %v506
  %v896 = vpop.permute.xlu0 %895
  %v898 = vmul.f32 %v882, %v892
  %v899 = vmul.f32 %v883, %v892
  %v900 = vmul.f32 %v884, %v892
  %v901 = vmul.f32 %v885, %v892
  %v902 = vmul.f32 %v886, %v896
  %v903 = vmul.f32 %v887, %v896
  %v904 = vmul.f32 %v888, %v896
  %v905 = vmul.f32 %v889, %v896
  %v906 = vadd.f32 %v833, %v898
  %v907 = vadd.f32 %v834, %v899
  %v908 = vadd.f32 %v835, %v900
  %v909 = vadd.f32 %v836, %v901
  %v910 = vadd.f32 %v837, %v902
  %v911 = vadd.f32 %v838, %v903
  %v912 = vadd.f32 %v839, %v904
  %v913 = vadd.f32 %v840, %v905
  %914 = vrot.lane.b32.xlu0 %v521, 113
  %v915 = vpop.permute.xlu0 %914
  %916 = vrot.lane.b32.xlu0 %v525, 113
  %v917 = vpop.permute.xlu0 %916
  %918 = vrot.lane.b32.xlu0 %v522, 113
  %v919 = vpop.permute.xlu0 %918
  %920 = vrot.lane.b32.xlu0 %v526, 113
  %v921 = vpop.permute.xlu0 %920
  %922 = vrot.lane.b32.xlu0 %v523, 113
  %v923 = vpop.permute.xlu0 %922
  %924 = vrot.lane.b32.xlu0 %v527, 113
  %v925 = vpop.permute.xlu0 %924
  %926 = vrot.lane.b32.xlu0 %v524, 113
  %v927 = vpop.permute.xlu0 %926
  %928 = vrot.lane.b32.xlu0 %v528, 113
  %v929 = vpop.permute.xlu0 %928
  %vm930 = vcmp.lt.s32.totalorder %v546, 113
  %v931 = vsel %vm930, %v923, %v927
  %v932 = vsel %vm930, %v925, %v929
  %v933 = vsel %vm930, %v919, %v923
  %v934 = vsel %vm930, %v921, %v925
  %v935 = vsel %vm930, %v915, %v919
  %v936 = vsel %vm930, %v917, %v921
  %v937 = vsel %vm930, %v927, %v915
  %v938 = vsel %vm930, %v929, %v917
  %v939 = vlaneseq
  %v940 = vshrl.u32 %v939, 7
  %v941 = vsub.s32 6, %v940
  %v942 = vrot.slane %v59, %v941
  %v943 = vlaneseq
  %v944 = vshrl.u32 %v943, 7
  %v945 = vsub.s32 6, %v944
  %v946 = vrot.slane %v60, %v945
  %v947 = vlaneseq
  %v948 = vshrl.u32 %v947, 7
  %v949 = vsub.s32 6, %v948
  %v950 = vrot.slane %v61, %v949
  %v951 = vlaneseq
  %v952 = vshrl.u32 %v951, 7
  %v953 = vsub.s32 6, %v952
  %v954 = vrot.slane %v62, %v953
  %v955 = vmul.f32 %v935, %v942
  %v956 = vmul.f32 %v933, %v946
  %v957 = vmul.f32 %v931, %v950
  %v958 = vmul.f32 %v937, %v954
  %v959 = vmul.f32 %v936, %v942
  %v960 = vmul.f32 %v934, %v946
  %v961 = vmul.f32 %v932, %v950
  %v962 = vmul.f32 %v938, %v954
  %963 = vset.pattern.permute.xlu0 6
  %964 = vperm.xlu0 %963, %v505
  %v965 = vpop.permute.xlu0 %964
  %967 = vset.pattern.permute.xlu0 6
  %968 = vperm.xlu0 %967, %v506
  %v969 = vpop.permute.xlu0 %968
  %v971 = vmul.f32 %v955, %v965
  %v972 = vmul.f32 %v956, %v965
  %v973 = vmul.f32 %v957, %v965
  %v974 = vmul.f32 %v958, %v965
  %v975 = vmul.f32 %v959, %v969
  %v976 = vmul.f32 %v960, %v969
  %v977 = vmul.f32 %v961, %v969
  %v978 = vmul.f32 %v962, %v969
  %v979 = vadd.f32 %v906, %v971
  %v980 = vadd.f32 %v907, %v972
  %v981 = vadd.f32 %v908, %v973
  %v982 = vadd.f32 %v909, %v974
  %v983 = vadd.f32 %v910, %v975
  %v984 = vadd.f32 %v911, %v976
  %v985 = vadd.f32 %v912, %v977
  %v986 = vadd.f32 %v913, %v978
  %987 = vrot.lane.b32.xlu0 %v521, 112
  %v988 = vpop.permute.xlu0 %987
  %989 = vrot.lane.b32.xlu0 %v525, 112
  %v990 = vpop.permute.xlu0 %989
  %991 = vrot.lane.b32.xlu0 %v522, 112
  %v992 = vpop.permute.xlu0 %991
  %993 = vrot.lane.b32.xlu0 %v526, 112
  %v994 = vpop.permute.xlu0 %993
  %995 = vrot.lane.b32.xlu0 %v523, 112
  %v996 = vpop.permute.xlu0 %995
  %997 = vrot.lane.b32.xlu0 %v527, 112
  %v998 = vpop.permute.xlu0 %997
  %999 = vrot.lane.b32.xlu0 %v524, 112
  %v1000 = vpop.permute.xlu0 %999
  %1001 = vrot.lane.b32.xlu0 %v528, 112
  %v1002 = vpop.permute.xlu0 %1001
  %vm1003 = vcmp.lt.s32.totalorder %v546, 112
  %v1004 = vsel %vm1003, %v996, %v1000
  %v1005 = vsel %vm1003, %v998, %v1002
  %v1006 = vsel %vm1003, %v992, %v996
  %v1007 = vsel %vm1003, %v994, %v998
  %v1008 = vsel %vm1003, %v988, %v992
  %v1009 = vsel %vm1003, %v990, %v994
  %v1010 = vsel %vm1003, %v1000, %v988
  %v1011 = vsel %vm1003, %v1002, %v990
  %v1012 = vlaneseq
  %v1013 = vshrl.u32 %v1012, 7
  %v1014 = vsub.s32 7, %v1013
  %v1015 = vrot.slane %v59, %v1014
  %v1016 = vlaneseq
  %v1017 = vshrl.u32 %v1016, 7
  %v1018 = vsub.s32 7, %v1017
  %v1019 = vrot.slane %v60, %v1018
  %v1020 = vlaneseq
  %v1021 = vshrl.u32 %v1020, 7
  %v1022 = vsub.s32 7, %v1021
  %v1023 = vrot.slane %v61, %v1022
  %v1024 = vlaneseq
  %v1025 = vshrl.u32 %v1024, 7
  %v1026 = vsub.s32 7, %v1025
  %v1027 = vrot.slane %v62, %v1026
  %v1028 = vmul.f32 %v1008, %v1015
  %v1029 = vmul.f32 %v1006, %v1019
  %v1030 = vmul.f32 %v1004, %v1023
  %v1031 = vmul.f32 %v1010, %v1027
  %v1032 = vmul.f32 %v1009, %v1015
  %v1033 = vmul.f32 %v1007, %v1019
  %v1034 = vmul.f32 %v1005, %v1023
  %v1035 = vmul.f32 %v1011, %v1027
  %1036 = vset.pattern.permute.xlu0 7
  %1037 = vperm.xlu0 %1036, %v505
  %v1038 = vpop.permute.xlu0 %1037
  %1040 = vset.pattern.permute.xlu0 7
  %1041 = vperm.xlu0 %1040, %v506
  %v1042 = vpop.permute.xlu0 %1041
  %v1044 = vmul.f32 %v1028, %v1038
  %v1045 = vmul.f32 %v1029, %v1038
  %v1046 = vmul.f32 %v1030, %v1038
  %v1047 = vmul.f32 %v1031, %v1038
  %v1048 = vmul.f32 %v1032, %v1042
  %v1049 = vmul.f32 %v1033, %v1042
  %v1050 = vmul.f32 %v1034, %v1042
  %v1051 = vmul.f32 %v1035, %v1042
  %v1052 = vadd.f32 %v979, %v1044
  %v1053 = vadd.f32 %v980, %v1045
  %v1054 = vadd.f32 %v981, %v1046
  %v1055 = vadd.f32 %v982, %v1047
  %v1056 = vadd.f32 %v983, %v1048
  %v1057 = vadd.f32 %v984, %v1049
  %v1058 = vadd.f32 %v985, %v1050
  %v1059 = vadd.f32 %v986, %v1051
  %1060 = vrot.lane.b32.xlu0 %v521, 111
  %v1061 = vpop.permute.xlu0 %1060
  %1062 = vrot.lane.b32.xlu0 %v525, 111
  %v1063 = vpop.permute.xlu0 %1062
  %1064 = vrot.lane.b32.xlu0 %v522, 111
  %v1065 = vpop.permute.xlu0 %1064
  %1066 = vrot.lane.b32.xlu0 %v526, 111
  %v1067 = vpop.permute.xlu0 %1066
  %1068 = vrot.lane.b32.xlu0 %v523, 111
  %v1069 = vpop.permute.xlu0 %1068
  %1070 = vrot.lane.b32.xlu0 %v527, 111
  %v1071 = vpop.permute.xlu0 %1070
  %1072 = vrot.lane.b32.xlu0 %v524, 111
  %v1073 = vpop.permute.xlu0 %1072
  %1074 = vrot.lane.b32.xlu0 %v528, 111
  %v1075 = vpop.permute.xlu0 %1074
  %vm1076 = vcmp.lt.s32.totalorder %v546, 111
  %v1077 = vsel %vm1076, %v1069, %v1073
  %v1078 = vsel %vm1076, %v1071, %v1075
  %v1079 = vsel %vm1076, %v1065, %v1069
  %v1080 = vsel %vm1076, %v1067, %v1071
  %v1081 = vsel %vm1076, %v1061, %v1065
  %v1082 = vsel %vm1076, %v1063, %v1067
  %v1083 = vsel %vm1076, %v1073, %v1061
  %v1084 = vsel %vm1076, %v1075, %v1063
  %v1085 = vlaneseq
  %v1086 = vshrl.u32 %v1085, 7
  %v1087 = vsub.s32 0, %v1086
  %v1088 = vrot.slane %v63, %v1087
  %v1089 = vlaneseq
  %v1090 = vshrl.u32 %v1089, 7
  %v1091 = vsub.s32 0, %v1090
  %v1092 = vrot.slane %v64, %v1091
  %v1093 = vlaneseq
  %v1094 = vshrl.u32 %v1093, 7
  %v1095 = vsub.s32 0, %v1094
  %v1096 = vrot.slane %v65, %v1095
  %v1097 = vlaneseq
  %v1098 = vshrl.u32 %v1097, 7
  %v1099 = vsub.s32 0, %v1098
  %v1100 = vrot.slane %v66, %v1099
  %v1101 = vmul.f32 %v1081, %v1088
  %v1102 = vmul.f32 %v1079, %v1092
  %v1103 = vmul.f32 %v1077, %v1096
  %v1104 = vmul.f32 %v1083, %v1100
  %v1105 = vmul.f32 %v1082, %v1088
  %v1106 = vmul.f32 %v1080, %v1092
  %v1107 = vmul.f32 %v1078, %v1096
  %v1108 = vmul.f32 %v1084, %v1100
  %1109 = vset.pattern.permute.xlu0 8
  %1110 = vperm.xlu0 %1109, %v505
  %v1111 = vpop.permute.xlu0 %1110
  %1113 = vset.pattern.permute.xlu0 8
  %1114 = vperm.xlu0 %1113, %v506
  %v1115 = vpop.permute.xlu0 %1114
  %v1117 = vmul.f32 %v1101, %v1111
  %v1118 = vmul.f32 %v1102, %v1111
  %v1119 = vmul.f32 %v1103, %v1111
  %v1120 = vmul.f32 %v1104, %v1111
  %v1121 = vmul.f32 %v1105, %v1115
  %v1122 = vmul.f32 %v1106, %v1115
  %v1123 = vmul.f32 %v1107, %v1115
  %v1124 = vmul.f32 %v1108, %v1115
  %v1125 = vadd.f32 %v1052, %v1117
  %v1126 = vadd.f32 %v1053, %v1118
  %v1127 = vadd.f32 %v1054, %v1119
  %v1128 = vadd.f32 %v1055, %v1120
  %v1129 = vadd.f32 %v1056, %v1121
  %v1130 = vadd.f32 %v1057, %v1122
  %v1131 = vadd.f32 %v1058, %v1123
  %v1132 = vadd.f32 %v1059, %v1124
  %v1134 = vsel %vm90, %v507, 0
  %v1137 = vsel %vm90, %v508, 0
  %1139 = vmatprep.subr.mxu0 %v1126
  %1140 = vmatpush1.msra.mxu0 %v1125
  %1141 = vmatprep.subr.mxu0 %v1130
  %1142 = vmatpush1.msra.mxu0 %v1129
  %1143 = vmatprep.subr.mxu0 0.0
  %1144 = vmatpush1.msra.mxu0 0.0
  %1145 = vmatprep.subr.mxu0 0.0
  %1146 = vmatpush1.msra.mxu0 0.0
  %1147 = vmatprep.subr.mxu0 0.0
  %1148 = vmatpush1.msra.mxu0 0.0
  %1149 = vmatprep.subr.mxu0 0.0
  %1150 = vmatpush1.msra.mxu0 0.0
  %1151 = vmatprep.subr.mxu0 0.0
  %1152 = vmatpush1.msra.mxu0 0.0
  %1153 = vmatprep.subr.mxu0 0.0
  %1154 = vmatpush1.msra.mxu0 0.0
  %1155 = vmatprep.subr.mxu0 0.0
  %1156 = vmatpush1.msra.mxu0 0.0
  %1157 = vmatprep.subr.mxu0 0.0
  %1158 = vmatpush1.msra.mxu0 0.0
  %1159 = vmatprep.subr.mxu0 0.0
  %1160 = vmatpush1.msra.mxu0 0.0
  %1161 = vmatprep.subr.mxu0 0.0
  %1162 = vmatpush1.msra.mxu0 0.0
  %1163 = vmatprep.subr.mxu0 0.0
  %1164 = vmatpush1.msra.mxu0 0.0
  %1165 = vmatprep.subr.mxu0 0.0
  %1166 = vmatpush1.msra.mxu0 0.0
  %1167 = vmatprep.subr.mxu0 0.0
  %1168 = vmatpush1.msra.mxu0 0.0
  %1169 = vmatprep.subr.mxu0 0.0
  %1170 = vmatpush1.msra.mxu0 0.0
  %1171 = vmatprep.subr.mxu0 0.0
  %1172 = vmatpush1.msra.mxu0 0.0
  %1173 = vmatprep.subr.mxu0 0.0
  %1174 = vmatpush1.msra.mxu0 0.0
  %1175 = vmatprep.subr.mxu0 0.0
  %1176 = vmatpush1.msra.mxu0 0.0
  %1177 = vmatprep.subr.mxu0 0.0
  %1178 = vmatpush1.msra.mxu0 0.0
  %1179 = vmatprep.subr.mxu0 0.0
  %1180 = vmatpush1.msra.mxu0 0.0
  %1181 = vmatprep.subr.mxu0 0.0
  %1182 = vmatpush1.msra.mxu0 0.0
  %1183 = vmatprep.subr.mxu0 0.0
  %1184 = vmatpush1.msra.mxu0 0.0
  %1185 = vmatprep.subr.mxu0 0.0
  %1186 = vmatpush1.msra.mxu0 0.0
  %1187 = vmatprep.subr.mxu0 0.0
  %1188 = vmatpush1.msra.mxu0 0.0
  %1189 = vmatprep.subr.mxu0 0.0
  %1190 = vmatpush1.msra.mxu0 0.0
  %1191 = vmatprep.subr.mxu0 0.0
  %1192 = vmatpush1.msra.mxu0 0.0
  %1193 = vmatprep.subr.mxu0 0.0
  %1194 = vmatpush1.msra.mxu0 0.0
  %1195 = vmatprep.subr.mxu0 0.0
  %1196 = vmatpush1.msra.mxu0 0.0
  %1197 = vmatprep.subr.mxu0 0.0
  %1198 = vmatpush1.msra.mxu0 0.0
  %1199 = vmatprep.subr.mxu0 0.0
  %1200 = vmatpush1.msra.mxu0 0.0
  %1201 = vmatprep.subr.mxu0 0.0
  %1202 = vmatpush1.msra.mxu0 0.0
  %1203 = vmatprep.mubr.f32.mxu0 0.0
  %1204 = vmatmul.mubr.f32.gmra.mrb[0].mxu0 %v1134
  %v1205 = vpop.f32.mrb[0].mxu0
  %v1206 = vadd.f32 0.0, %v1205
  %v1207 = vpop.f32.mrb[0].mxu0
  %v1208 = vadd.f32 0.0, %v1207
  %1209 = vmatprep.mubr.f32.mxu0 0.0
  %1210 = vmatmul.mubr.f32.gmra.mrb[0].mxu0 %v1137
  %v1211 = vpop.f32.mrb[0].mxu0
  %v1212 = vadd.f32 0.0, %v1211
  %v1213 = vpop.f32.mrb[0].mxu0
  %v1214 = vadd.f32 0.0, %v1213
  %1215 = vdwg.mxu0
  %1216 = vmatprep.subr.mxu0 %v1128
  %1217 = vmatpush1.msra.mxu0 %v1127
  %1218 = vmatprep.subr.mxu0 %v1132
  %1219 = vmatpush1.msra.mxu0 %v1131
  %1220 = vmatprep.subr.mxu0 0.0
  %1221 = vmatpush1.msra.mxu0 0.0
  %1222 = vmatprep.subr.mxu0 0.0
  %1223 = vmatpush1.msra.mxu0 0.0
  %1224 = vmatprep.subr.mxu0 0.0
  %1225 = vmatpush1.msra.mxu0 0.0
  %1226 = vmatprep.subr.mxu0 0.0
  %1227 = vmatpush1.msra.mxu0 0.0
  %1228 = vmatprep.subr.mxu0 0.0
  %1229 = vmatpush1.msra.mxu0 0.0
  %1230 = vmatprep.subr.mxu0 0.0
  %1231 = vmatpush1.msra.mxu0 0.0
  %1232 = vmatprep.subr.mxu0 0.0
  %1233 = vmatpush1.msra.mxu0 0.0
  %1234 = vmatprep.subr.mxu0 0.0
  %1235 = vmatpush1.msra.mxu0 0.0
  %1236 = vmatprep.subr.mxu0 0.0
  %1237 = vmatpush1.msra.mxu0 0.0
  %1238 = vmatprep.subr.mxu0 0.0
  %1239 = vmatpush1.msra.mxu0 0.0
  %1240 = vmatprep.subr.mxu0 0.0
  %1241 = vmatpush1.msra.mxu0 0.0
  %1242 = vmatprep.subr.mxu0 0.0
  %1243 = vmatpush1.msra.mxu0 0.0
  %1244 = vmatprep.subr.mxu0 0.0
  %1245 = vmatpush1.msra.mxu0 0.0
  %1246 = vmatprep.subr.mxu0 0.0
  %1247 = vmatpush1.msra.mxu0 0.0
  %1248 = vmatprep.subr.mxu0 0.0
  %1249 = vmatpush1.msra.mxu0 0.0
  %1250 = vmatprep.subr.mxu0 0.0
  %1251 = vmatpush1.msra.mxu0 0.0
  %1252 = vmatprep.subr.mxu0 0.0
  %1253 = vmatpush1.msra.mxu0 0.0
  %1254 = vmatprep.subr.mxu0 0.0
  %1255 = vmatpush1.msra.mxu0 0.0
  %1256 = vmatprep.subr.mxu0 0.0
  %1257 = vmatpush1.msra.mxu0 0.0
  %1258 = vmatprep.subr.mxu0 0.0
  %1259 = vmatpush1.msra.mxu0 0.0
  %1260 = vmatprep.subr.mxu0 0.0
  %1261 = vmatpush1.msra.mxu0 0.0
  %1262 = vmatprep.subr.mxu0 0.0
  %1263 = vmatpush1.msra.mxu0 0.0
  %1264 = vmatprep.subr.mxu0 0.0
  %1265 = vmatpush1.msra.mxu0 0.0
  %1266 = vmatprep.subr.mxu0 0.0
  %1267 = vmatpush1.msra.mxu0 0.0
  %1268 = vmatprep.subr.mxu0 0.0
  %1269 = vmatpush1.msra.mxu0 0.0
  %1270 = vmatprep.subr.mxu0 0.0
  %1271 = vmatpush1.msra.mxu0 0.0
  %1272 = vmatprep.subr.mxu0 0.0
  %1273 = vmatpush1.msra.mxu0 0.0
  %1274 = vmatprep.subr.mxu0 0.0
  %1275 = vmatpush1.msra.mxu0 0.0
  %1276 = vmatprep.subr.mxu0 0.0
  %1277 = vmatpush1.msra.mxu0 0.0
  %1278 = vmatprep.subr.mxu0 0.0
  %1279 = vmatpush1.msra.mxu0 0.0
  %1280 = vmatprep.mubr.f32.mxu0 0.0
  %1281 = vmatmul.mubr.f32.gmra.mrb[0].mxu0 %v1134
  %v1282 = vpop.f32.mrb[0].mxu0
  %v1283 = vadd.f32 0.0, %v1282
  %v1284 = vpop.f32.mrb[0].mxu0
  %v1285 = vadd.f32 0.0, %v1284
  %1286 = vmatprep.mubr.f32.mxu0 0.0
  %1287 = vmatmul.mubr.f32.gmra.mrb[0].mxu0 %v1137
  %v1288 = vpop.f32.mrb[0].mxu0
  %v1289 = vadd.f32 0.0, %v1288
  %v1290 = vpop.f32.mrb[0].mxu0
  %v1291 = vadd.f32 0.0, %v1290
  %1292 = vdwg.mxu0
  %1294 = vset.pattern.permute.xlu0 0
  %1295 = vperm.xlu0 %1294, %v509
  %v1296 = vpop.permute.xlu0 %1295
  %1299 = vset.pattern.permute.xlu0 0
  %1300 = vperm.xlu0 %1299, %v510
  %v1301 = vpop.permute.xlu0 %1300
  %v1303 = vmul.f32 %v1206, %v1296
  %v1304 = vmul.f32 %v1208, %v1296
  %v1305 = vmul.f32 %v1283, %v1296
  %v1306 = vmul.f32 %v1285, %v1296
  %v1307 = vmul.f32 %v1212, %v1301
  %v1308 = vmul.f32 %v1214, %v1301
  %v1309 = vmul.f32 %v1289, %v1301
  %v1310 = vmul.f32 %v1291, %v1301
  %1312 = vset.pattern.permute.xlu0 0
  %1313 = vperm.xlu0 %1312, %v511
  %v1314 = vpop.permute.xlu0 %1313
  %1317 = vset.pattern.permute.xlu0 0
  %1318 = vperm.xlu0 %1317, %v512
  %v1319 = vpop.permute.xlu0 %1318
  %v1321 = vadd.f32 %v1303, %v1314
  %v1322 = vadd.f32 %v1304, %v1314
  %v1323 = vadd.f32 %v1305, %v1314
  %v1324 = vadd.f32 %v1306, %v1314
  %v1325 = vadd.f32 %v1307, %v1319
  %v1326 = vadd.f32 %v1308, %v1319
  %v1327 = vadd.f32 %v1309, %v1319
  %v1328 = vadd.f32 %v1310, %v1319
  %v1329 = vmax.f32 %v1321, 0.0
  %v1330 = vmax.f32 %v1322, 0.0
  %v1331 = vmax.f32 %v1323, 0.0
  %v1332 = vmax.f32 %v1324, 0.0
  %v1333 = vmax.f32 %v1325, 0.0
  %v1334 = vmax.f32 %v1326, 0.0
  %v1335 = vmax.f32 %v1327, 0.0
  %v1336 = vmax.f32 %v1328, 0.0
  %1337 = vrot.lane.b32.xlu0 %v1329, 17
  %v1338 = vpop.permute.xlu0 %1337
  %1339 = vrot.lane.b32.xlu0 %v1333, 17
  %v1340 = vpop.permute.xlu0 %1339
  %1341 = vrot.lane.b32.xlu0 %v1330, 17
  %v1342 = vpop.permute.xlu0 %1341
  %1343 = vrot.lane.b32.xlu0 %v1334, 17
  %v1344 = vpop.permute.xlu0 %1343
  %1345 = vrot.lane.b32.xlu0 %v1331, 17
  %v1346 = vpop.permute.xlu0 %1345
  %1347 = vrot.lane.b32.xlu0 %v1335, 17
  %v1348 = vpop.permute.xlu0 %1347
  %1349 = vrot.lane.b32.xlu0 %v1332, 17
  %v1350 = vpop.permute.xlu0 %1349
  %1351 = vrot.lane.b32.xlu0 %v1336, 17
  %v1352 = vpop.permute.xlu0 %1351
  %v1353 = vsel %vm547, %v1346, %v1350
  %v1354 = vsel %vm547, %v1348, %v1352
  %v1355 = vsel %vm547, %v1342, %v1346
  %v1356 = vsel %vm547, %v1344, %v1348
  %v1357 = vsel %vm547, %v1338, %v1342
  %v1358 = vsel %vm547, %v1340, %v1344
  %v1359 = vsel %vm547, %v1350, %v1338
  %v1360 = vsel %vm547, %v1352, %v1340
  %v1361 = vmul.f32 %v1359, %v559
  %v1362 = vmul.f32 %v1357, %v563
  %v1363 = vmul.f32 %v1355, %v567
  %v1364 = vmul.f32 %v1353, %v571
  %v1365 = vmul.f32 %v1360, %v559
  %v1366 = vmul.f32 %v1358, %v563
  %v1367 = vmul.f32 %v1356, %v567
  %v1368 = vmul.f32 %v1354, %v571
  %1370 = vset.pattern.permute.xlu0 0
  %1371 = vperm.xlu0 %1370, %v513
  %v1372 = vpop.permute.xlu0 %1371
  %1375 = vset.pattern.permute.xlu0 0
  %1376 = vperm.xlu0 %1375, %v514
  %v1377 = vpop.permute.xlu0 %1376
  %v1379 = vmul.f32 %v1361, %v1372
  %v1380 = vmul.f32 %v1362, %v1372
  %v1381 = vmul.f32 %v1363, %v1372
  %v1382 = vmul.f32 %v1364, %v1372
  %v1383 = vmul.f32 %v1365, %v1377
  %v1384 = vmul.f32 %v1366, %v1377
  %v1385 = vmul.f32 %v1367, %v1377
  %v1386 = vmul.f32 %v1368, %v1377
  %1387 = vrot.lane.b32.xlu0 %v1329, 16
  %v1388 = vpop.permute.xlu0 %1387
  %1389 = vrot.lane.b32.xlu0 %v1333, 16
  %v1390 = vpop.permute.xlu0 %1389
  %1391 = vrot.lane.b32.xlu0 %v1330, 16
  %v1392 = vpop.permute.xlu0 %1391
  %1393 = vrot.lane.b32.xlu0 %v1334, 16
  %v1394 = vpop.permute.xlu0 %1393
  %1395 = vrot.lane.b32.xlu0 %v1331, 16
  %v1396 = vpop.permute.xlu0 %1395
  %1397 = vrot.lane.b32.xlu0 %v1335, 16
  %v1398 = vpop.permute.xlu0 %1397
  %1399 = vrot.lane.b32.xlu0 %v1332, 16
  %v1400 = vpop.permute.xlu0 %1399
  %1401 = vrot.lane.b32.xlu0 %v1336, 16
  %v1402 = vpop.permute.xlu0 %1401
  %v1403 = vsel %vm614, %v1396, %v1400
  %v1404 = vsel %vm614, %v1398, %v1402
  %v1405 = vsel %vm614, %v1392, %v1396
  %v1406 = vsel %vm614, %v1394, %v1398
  %v1407 = vsel %vm614, %v1388, %v1392
  %v1408 = vsel %vm614, %v1390, %v1394
  %v1409 = vsel %vm614, %v1400, %v1388
  %v1410 = vsel %vm614, %v1402, %v1390
  %v1411 = vmul.f32 %v1409, %v626
  %v1412 = vmul.f32 %v1407, %v630
  %v1413 = vmul.f32 %v1405, %v634
  %v1414 = vmul.f32 %v1403, %v638
  %v1415 = vmul.f32 %v1410, %v626
  %v1416 = vmul.f32 %v1408, %v630
  %v1417 = vmul.f32 %v1406, %v634
  %v1418 = vmul.f32 %v1404, %v638
  %1419 = vset.pattern.permute.xlu0 1
  %1420 = vperm.xlu0 %1419, %v513
  %v1421 = vpop.permute.xlu0 %1420
  %1423 = vset.pattern.permute.xlu0 1
  %1424 = vperm.xlu0 %1423, %v514
  %v1425 = vpop.permute.xlu0 %1424
  %v1427 = vmul.f32 %v1411, %v1421
  %v1428 = vmul.f32 %v1412, %v1421
  %v1429 = vmul.f32 %v1413, %v1421
  %v1430 = vmul.f32 %v1414, %v1421
  %v1431 = vmul.f32 %v1415, %v1425
  %v1432 = vmul.f32 %v1416, %v1425
  %v1433 = vmul.f32 %v1417, %v1425
  %v1434 = vmul.f32 %v1418, %v1425
  %v1435 = vadd.f32 %v1379, %v1427
  %v1436 = vadd.f32 %v1380, %v1428
  %v1437 = vadd.f32 %v1381, %v1429
  %v1438 = vadd.f32 %v1382, %v1430
  %v1439 = vadd.f32 %v1383, %v1431
  %v1440 = vadd.f32 %v1384, %v1432
  %v1441 = vadd.f32 %v1385, %v1433
  %v1442 = vadd.f32 %v1386, %v1434
  %1443 = vrot.lane.b32.xlu0 %v1329, 15
  %v1444 = vpop.permute.xlu0 %1443
  %1445 = vrot.lane.b32.xlu0 %v1333, 15
  %v1446 = vpop.permute.xlu0 %1445
  %1447 = vrot.lane.b32.xlu0 %v1330, 15
  %v1448 = vpop.permute.xlu0 %1447
  %1449 = vrot.lane.b32.xlu0 %v1334, 15
  %v1450 = vpop.permute.xlu0 %1449
  %1451 = vrot.lane.b32.xlu0 %v1331, 15
  %v1452 = vpop.permute.xlu0 %1451
  %1453 = vrot.lane.b32.xlu0 %v1335, 15
  %v1454 = vpop.permute.xlu0 %1453
  %1455 = vrot.lane.b32.xlu0 %v1332, 15
  %v1456 = vpop.permute.xlu0 %1455
  %1457 = vrot.lane.b32.xlu0 %v1336, 15
  %v1458 = vpop.permute.xlu0 %1457
  %v1459 = vsel %vm687, %v1452, %v1456
  %v1460 = vsel %vm687, %v1454, %v1458
  %v1461 = vsel %vm687, %v1448, %v1452
  %v1462 = vsel %vm687, %v1450, %v1454
  %v1463 = vsel %vm687, %v1444, %v1448
  %v1464 = vsel %vm687, %v1446, %v1450
  %v1465 = vsel %vm687, %v1456, %v1444
  %v1466 = vsel %vm687, %v1458, %v1446
  %v1467 = vmul.f32 %v1465, %v699
  %v1468 = vmul.f32 %v1463, %v703
  %v1469 = vmul.f32 %v1461, %v707
  %v1470 = vmul.f32 %v1459, %v711
  %v1471 = vmul.f32 %v1466, %v699
  %v1472 = vmul.f32 %v1464, %v703
  %v1473 = vmul.f32 %v1462, %v707
  %v1474 = vmul.f32 %v1460, %v711
  %1475 = vset.pattern.permute.xlu0 2
  %1476 = vperm.xlu0 %1475, %v513
  %v1477 = vpop.permute.xlu0 %1476
  %1479 = vset.pattern.permute.xlu0 2
  %1480 = vperm.xlu0 %1479, %v514
  %v1481 = vpop.permute.xlu0 %1480
  %v1483 = vmul.f32 %v1467, %v1477
  %v1484 = vmul.f32 %v1468, %v1477
  %v1485 = vmul.f32 %v1469, %v1477
  %v1486 = vmul.f32 %v1470, %v1477
  %v1487 = vmul.f32 %v1471, %v1481
  %v1488 = vmul.f32 %v1472, %v1481
  %v1489 = vmul.f32 %v1473, %v1481
  %v1490 = vmul.f32 %v1474, %v1481
  %v1491 = vadd.f32 %v1435, %v1483
  %v1492 = vadd.f32 %v1436, %v1484
  %v1493 = vadd.f32 %v1437, %v1485
  %v1494 = vadd.f32 %v1438, %v1486
  %v1495 = vadd.f32 %v1439, %v1487
  %v1496 = vadd.f32 %v1440, %v1488
  %v1497 = vadd.f32 %v1441, %v1489
  %v1498 = vadd.f32 %v1442, %v1490
  %1499 = vrot.lane.b32.xlu0 %v1329, 1
  %v1500 = vpop.permute.xlu0 %1499
  %1501 = vrot.lane.b32.xlu0 %v1333, 1
  %v1502 = vpop.permute.xlu0 %1501
  %1503 = vrot.lane.b32.xlu0 %v1330, 1
  %v1504 = vpop.permute.xlu0 %1503
  %1505 = vrot.lane.b32.xlu0 %v1334, 1
  %v1506 = vpop.permute.xlu0 %1505
  %1507 = vrot.lane.b32.xlu0 %v1331, 1
  %v1508 = vpop.permute.xlu0 %1507
  %1509 = vrot.lane.b32.xlu0 %v1335, 1
  %v1510 = vpop.permute.xlu0 %1509
  %1511 = vrot.lane.b32.xlu0 %v1332, 1
  %v1512 = vpop.permute.xlu0 %1511
  %1513 = vrot.lane.b32.xlu0 %v1336, 1
  %v1514 = vpop.permute.xlu0 %1513
  %v1515 = vsel %vm760, %v1508, %v1512
  %v1516 = vsel %vm760, %v1510, %v1514
  %v1517 = vsel %vm760, %v1504, %v1508
  %v1518 = vsel %vm760, %v1506, %v1510
  %v1519 = vsel %vm760, %v1500, %v1504
  %v1520 = vsel %vm760, %v1502, %v1506
  %v1521 = vsel %vm760, %v1512, %v1500
  %v1522 = vsel %vm760, %v1514, %v1502
  %v1523 = vmul.f32 %v1521, %v772
  %v1524 = vmul.f32 %v1519, %v776
  %v1525 = vmul.f32 %v1517, %v780
  %v1526 = vmul.f32 %v1515, %v784
  %v1527 = vmul.f32 %v1522, %v772
  %v1528 = vmul.f32 %v1520, %v776
  %v1529 = vmul.f32 %v1518, %v780
  %v1530 = vmul.f32 %v1516, %v784
  %1531 = vset.pattern.permute.xlu0 3
  %1532 = vperm.xlu0 %1531, %v513
  %v1533 = vpop.permute.xlu0 %1532
  %1535 = vset.pattern.permute.xlu0 3
  %1536 = vperm.xlu0 %1535, %v514
  %v1537 = vpop.permute.xlu0 %1536
  %v1539 = vmul.f32 %v1523, %v1533
  %v1540 = vmul.f32 %v1524, %v1533
  %v1541 = vmul.f32 %v1525, %v1533
  %v1542 = vmul.f32 %v1526, %v1533
  %v1543 = vmul.f32 %v1527, %v1537
  %v1544 = vmul.f32 %v1528, %v1537
  %v1545 = vmul.f32 %v1529, %v1537
  %v1546 = vmul.f32 %v1530, %v1537
  %v1547 = vadd.f32 %v1491, %v1539
  %v1548 = vadd.f32 %v1492, %v1540
  %v1549 = vadd.f32 %v1493, %v1541
  %v1550 = vadd.f32 %v1494, %v1542
  %v1551 = vadd.f32 %v1495, %v1543
  %v1552 = vadd.f32 %v1496, %v1544
  %v1553 = vadd.f32 %v1497, %v1545
  %v1554 = vadd.f32 %v1498, %v1546
  %1555 = vset.pattern.permute.xlu0 4
  %1556 = vperm.xlu0 %1555, %v513
  %v1557 = vpop.permute.xlu0 %1556
  %1559 = vset.pattern.permute.xlu0 4
  %1560 = vperm.xlu0 %1559, %v514
  %v1561 = vpop.permute.xlu0 %1560
  %v1563 = vmul.f32 %v1329, %v1557
  %v1564 = vmul.f32 %v1330, %v1557
  %v1565 = vmul.f32 %v1331, %v1557
  %v1566 = vmul.f32 %v1332, %v1557
  %v1567 = vmul.f32 %v1333, %v1561
  %v1568 = vmul.f32 %v1334, %v1561
  %v1569 = vmul.f32 %v1335, %v1561
  %v1570 = vmul.f32 %v1336, %v1561
  %v1571 = vadd.f32 %v1547, %v1563
  %v1572 = vadd.f32 %v1548, %v1564
  %v1573 = vadd.f32 %v1549, %v1565
  %v1574 = vadd.f32 %v1550, %v1566
  %v1575 = vadd.f32 %v1551, %v1567
  %v1576 = vadd.f32 %v1552, %v1568
  %v1577 = vadd.f32 %v1553, %v1569
  %v1578 = vadd.f32 %v1554, %v1570
  %1579 = vrot.lane.b32.xlu0 %v1329, 127
  %v1580 = vpop.permute.xlu0 %1579
  %1581 = vrot.lane.b32.xlu0 %v1333, 127
  %v1582 = vpop.permute.xlu0 %1581
  %1583 = vrot.lane.b32.xlu0 %v1330, 127
  %v1584 = vpop.permute.xlu0 %1583
  %1585 = vrot.lane.b32.xlu0 %v1334, 127
  %v1586 = vpop.permute.xlu0 %1585
  %1587 = vrot.lane.b32.xlu0 %v1331, 127
  %v1588 = vpop.permute.xlu0 %1587
  %1589 = vrot.lane.b32.xlu0 %v1335, 127
  %v1590 = vpop.permute.xlu0 %1589
  %1591 = vrot.lane.b32.xlu0 %v1332, 127
  %v1592 = vpop.permute.xlu0 %1591
  %1593 = vrot.lane.b32.xlu0 %v1336, 127
  %v1594 = vpop.permute.xlu0 %1593
  %v1595 = vsel %vm857, %v1588, %v1592
  %v1596 = vsel %vm857, %v1590, %v1594
  %v1597 = vsel %vm857, %v1584, %v1588
  %v1598 = vsel %vm857, %v1586, %v1590
  %v1599 = vsel %vm857, %v1580, %v1584
  %v1600 = vsel %vm857, %v1582, %v1586
  %v1601 = vsel %vm857, %v1592, %v1580
  %v1602 = vsel %vm857, %v1594, %v1582
  %v1603 = vmul.f32 %v1599, %v869
  %v1604 = vmul.f32 %v1597, %v873
  %v1605 = vmul.f32 %v1595, %v877
  %v1606 = vmul.f32 %v1601, %v881
  %v1607 = vmul.f32 %v1600, %v869
  %v1608 = vmul.f32 %v1598, %v873
  %v1609 = vmul.f32 %v1596, %v877
  %v1610 = vmul.f32 %v1602, %v881
  %1611 = vset.pattern.permute.xlu0 5
  %1612 = vperm.xlu0 %1611, %v513
  %v1613 = vpop.permute.xlu0 %1612
  %1615 = vset.pattern.permute.xlu0 5
  %1616 = vperm.xlu0 %1615, %v514
  %v1617 = vpop.permute.xlu0 %1616
  %v1619 = vmul.f32 %v1603, %v1613
  %v1620 = vmul.f32 %v1604, %v1613
  %v1621 = vmul.f32 %v1605, %v1613
  %v1622 = vmul.f32 %v1606, %v1613
  %v1623 = vmul.f32 %v1607, %v1617
  %v1624 = vmul.f32 %v1608, %v1617
  %v1625 = vmul.f32 %v1609, %v1617
  %v1626 = vmul.f32 %v1610, %v1617
  %v1627 = vadd.f32 %v1571, %v1619
  %v1628 = vadd.f32 %v1572, %v1620
  %v1629 = vadd.f32 %v1573, %v1621
  %v1630 = vadd.f32 %v1574, %v1622
  %v1631 = vadd.f32 %v1575, %v1623
  %v1632 = vadd.f32 %v1576, %v1624
  %v1633 = vadd.f32 %v1577, %v1625
  %v1634 = vadd.f32 %v1578, %v1626
  %1635 = vrot.lane.b32.xlu0 %v1329, 113
  %v1636 = vpop.permute.xlu0 %1635
  %1637 = vrot.lane.b32.xlu0 %v1333, 113
  %v1638 = vpop.permute.xlu0 %1637
  %1639 = vrot.lane.b32.xlu0 %v1330, 113
  %v1640 = vpop.permute.xlu0 %1639
  %1641 = vrot.lane.b32.xlu0 %v1334, 113
  %v1642 = vpop.permute.xlu0 %1641
  %1643 = vrot.lane.b32.xlu0 %v1331, 113
  %v1644 = vpop.permute.xlu0 %1643
  %1645 = vrot.lane.b32.xlu0 %v1335, 113
  %v1646 = vpop.permute.xlu0 %1645
  %1647 = vrot.lane.b32.xlu0 %v1332, 113
  %v1648 = vpop.permute.xlu0 %1647
  %1649 = vrot.lane.b32.xlu0 %v1336, 113
  %v1650 = vpop.permute.xlu0 %1649
  %v1651 = vsel %vm930, %v1644, %v1648
  %v1652 = vsel %vm930, %v1646, %v1650
  %v1653 = vsel %vm930, %v1640, %v1644
  %v1654 = vsel %vm930, %v1642, %v1646
  %v1655 = vsel %vm930, %v1636, %v1640
  %v1656 = vsel %vm930, %v1638, %v1642
  %v1657 = vsel %vm930, %v1648, %v1636
  %v1658 = vsel %vm930, %v1650, %v1638
  %v1659 = vmul.f32 %v1655, %v942
  %v1660 = vmul.f32 %v1653, %v946
  %v1661 = vmul.f32 %v1651, %v950
  %v1662 = vmul.f32 %v1657, %v954
  %v1663 = vmul.f32 %v1656, %v942
  %v1664 = vmul.f32 %v1654, %v946
  %v1665 = vmul.f32 %v1652, %v950
  %v1666 = vmul.f32 %v1658, %v954
  %1667 = vset.pattern.permute.xlu0 6
  %1668 = vperm.xlu0 %1667, %v513
  %v1669 = vpop.permute.xlu0 %1668
  %1671 = vset.pattern.permute.xlu0 6
  %1672 = vperm.xlu0 %1671, %v514
  %v1673 = vpop.permute.xlu0 %1672
  %v1675 = vmul.f32 %v1659, %v1669
  %v1676 = vmul.f32 %v1660, %v1669
  %v1677 = vmul.f32 %v1661, %v1669
  %v1678 = vmul.f32 %v1662, %v1669
  %v1679 = vmul.f32 %v1663, %v1673
  %v1680 = vmul.f32 %v1664, %v1673
  %v1681 = vmul.f32 %v1665, %v1673
  %v1682 = vmul.f32 %v1666, %v1673
  %v1683 = vadd.f32 %v1627, %v1675
  %v1684 = vadd.f32 %v1628, %v1676
  %v1685 = vadd.f32 %v1629, %v1677
  %v1686 = vadd.f32 %v1630, %v1678
  %v1687 = vadd.f32 %v1631, %v1679
  %v1688 = vadd.f32 %v1632, %v1680
  %v1689 = vadd.f32 %v1633, %v1681
  %v1690 = vadd.f32 %v1634, %v1682
  %1691 = vrot.lane.b32.xlu0 %v1329, 112
  %v1692 = vpop.permute.xlu0 %1691
  %1693 = vrot.lane.b32.xlu0 %v1333, 112
  %v1694 = vpop.permute.xlu0 %1693
  %1695 = vrot.lane.b32.xlu0 %v1330, 112
  %v1696 = vpop.permute.xlu0 %1695
  %1697 = vrot.lane.b32.xlu0 %v1334, 112
  %v1698 = vpop.permute.xlu0 %1697
  %1699 = vrot.lane.b32.xlu0 %v1331, 112
  %v1700 = vpop.permute.xlu0 %1699
  %1701 = vrot.lane.b32.xlu0 %v1335, 112
  %v1702 = vpop.permute.xlu0 %1701
  %1703 = vrot.lane.b32.xlu0 %v1332, 112
  %v1704 = vpop.permute.xlu0 %1703
  %1705 = vrot.lane.b32.xlu0 %v1336, 112
  %v1706 = vpop.permute.xlu0 %1705
  %v1707 = vsel %vm1003, %v1700, %v1704
  %v1708 = vsel %vm1003, %v1702, %v1706
  %v1709 = vsel %vm1003, %v1696, %v1700
  %v1710 = vsel %vm1003, %v1698, %v1702
  %v1711 = vsel %vm1003, %v1692, %v1696
  %v1712 = vsel %vm1003, %v1694, %v1698
  %v1713 = vsel %vm1003, %v1704, %v1692
  %v1714 = vsel %vm1003, %v1706, %v1694
  %v1715 = vmul.f32 %v1711, %v1015
  %v1716 = vmul.f32 %v1709, %v1019
  %v1717 = vmul.f32 %v1707, %v1023
  %v1718 = vmul.f32 %v1713, %v1027
  %v1719 = vmul.f32 %v1712, %v1015
  %v1720 = vmul.f32 %v1710, %v1019
  %v1721 = vmul.f32 %v1708, %v1023
  %v1722 = vmul.f32 %v1714, %v1027
  %1723 = vset.pattern.permute.xlu0 7
  %1724 = vperm.xlu0 %1723, %v513
  %v1725 = vpop.permute.xlu0 %1724
  %1727 = vset.pattern.permute.xlu0 7
  %1728 = vperm.xlu0 %1727, %v514
  %v1729 = vpop.permute.xlu0 %1728
  %v1731 = vmul.f32 %v1715, %v1725
  %v1732 = vmul.f32 %v1716, %v1725
  %v1733 = vmul.f32 %v1717, %v1725
  %v1734 = vmul.f32 %v1718, %v1725
  %v1735 = vmul.f32 %v1719, %v1729
  %v1736 = vmul.f32 %v1720, %v1729
  %v1737 = vmul.f32 %v1721, %v1729
  %v1738 = vmul.f32 %v1722, %v1729
  %v1739 = vadd.f32 %v1683, %v1731
  %v1740 = vadd.f32 %v1684, %v1732
  %v1741 = vadd.f32 %v1685, %v1733
  %v1742 = vadd.f32 %v1686, %v1734
  %v1743 = vadd.f32 %v1687, %v1735
  %v1744 = vadd.f32 %v1688, %v1736
  %v1745 = vadd.f32 %v1689, %v1737
  %v1746 = vadd.f32 %v1690, %v1738
  %1747 = vrot.lane.b32.xlu0 %v1329, 111
  %v1748 = vpop.permute.xlu0 %1747
  %1749 = vrot.lane.b32.xlu0 %v1333, 111
  %v1750 = vpop.permute.xlu0 %1749
  %1751 = vrot.lane.b32.xlu0 %v1330, 111
  %v1752 = vpop.permute.xlu0 %1751
  %1753 = vrot.lane.b32.xlu0 %v1334, 111
  %v1754 = vpop.permute.xlu0 %1753
  %1755 = vrot.lane.b32.xlu0 %v1331, 111
  %v1756 = vpop.permute.xlu0 %1755
  %1757 = vrot.lane.b32.xlu0 %v1335, 111
  %v1758 = vpop.permute.xlu0 %1757
  %1759 = vrot.lane.b32.xlu0 %v1332, 111
  %v1760 = vpop.permute.xlu0 %1759
  %1761 = vrot.lane.b32.xlu0 %v1336, 111
  %v1762 = vpop.permute.xlu0 %1761
  %v1763 = vsel %vm1076, %v1756, %v1760
  %v1764 = vsel %vm1076, %v1758, %v1762
  %v1765 = vsel %vm1076, %v1752, %v1756
  %v1766 = vsel %vm1076, %v1754, %v1758
  %v1767 = vsel %vm1076, %v1748, %v1752
  %v1768 = vsel %vm1076, %v1750, %v1754
  %v1769 = vsel %vm1076, %v1760, %v1748
  %v1770 = vsel %vm1076, %v1762, %v1750
  %v1771 = vmul.f32 %v1767, %v1088
  %v1772 = vmul.f32 %v1765, %v1092
  %v1773 = vmul.f32 %v1763, %v1096
  %v1774 = vmul.f32 %v1769, %v1100
  %v1775 = vmul.f32 %v1768, %v1088
  %v1776 = vmul.f32 %v1766, %v1092
  %v1777 = vmul.f32 %v1764, %v1096
  %v1778 = vmul.f32 %v1770, %v1100
  %1779 = vset.pattern.permute.xlu0 8
  %1780 = vperm.xlu0 %1779, %v513
  %v1781 = vpop.permute.xlu0 %1780
  %1783 = vset.pattern.permute.xlu0 8
  %1784 = vperm.xlu0 %1783, %v514
  %v1785 = vpop.permute.xlu0 %1784
  %v1787 = vmul.f32 %v1771, %v1781
  %v1788 = vmul.f32 %v1772, %v1781
  %v1789 = vmul.f32 %v1773, %v1781
  %v1790 = vmul.f32 %v1774, %v1781
  %v1791 = vmul.f32 %v1775, %v1785
  %v1792 = vmul.f32 %v1776, %v1785
  %v1793 = vmul.f32 %v1777, %v1785
  %v1794 = vmul.f32 %v1778, %v1785
  %v1795 = vadd.f32 %v1739, %v1787
  %v1796 = vadd.f32 %v1740, %v1788
  %v1797 = vadd.f32 %v1741, %v1789
  %v1798 = vadd.f32 %v1742, %v1790
  %v1799 = vadd.f32 %v1743, %v1791
  %v1800 = vadd.f32 %v1744, %v1792
  %v1801 = vadd.f32 %v1745, %v1793
  %v1802 = vadd.f32 %v1746, %v1794
  %v1804 = vsel %vm90, %v515, 0
  %v1807 = vsel %vm90, %v516, 0
  %1809 = vmatprep.subr.mxu0 %v1796
  %1810 = vmatpush1.msra.mxu0 %v1795
  %1811 = vmatprep.subr.mxu0 %v1800
  %1812 = vmatpush1.msra.mxu0 %v1799
  %1813 = vmatprep.subr.mxu0 0.0
  %1814 = vmatpush1.msra.mxu0 0.0
  %1815 = vmatprep.subr.mxu0 0.0
  %1816 = vmatpush1.msra.mxu0 0.0
  %1817 = vmatprep.subr.mxu0 0.0
  %1818 = vmatpush1.msra.mxu0 0.0
  %1819 = vmatprep.subr.mxu0 0.0
  %1820 = vmatpush1.msra.mxu0 0.0
  %1821 = vmatprep.subr.mxu0 0.0
  %1822 = vmatpush1.msra.mxu0 0.0
  %1823 = vmatprep.subr.mxu0 0.0
  %1824 = vmatpush1.msra.mxu0 0.0
  %1825 = vmatprep.subr.mxu0 0.0
  %1826 = vmatpush1.msra.mxu0 0.0
  %1827 = vmatprep.subr.mxu0 0.0
  %1828 = vmatpush1.msra.mxu0 0.0
  %1829 = vmatprep.subr.mxu0 0.0
  %1830 = vmatpush1.msra.mxu0 0.0
  %1831 = vmatprep.subr.mxu0 0.0
  %1832 = vmatpush1.msra.mxu0 0.0
  %1833 = vmatprep.subr.mxu0 0.0
  %1834 = vmatpush1.msra.mxu0 0.0
  %1835 = vmatprep.subr.mxu0 0.0
  %1836 = vmatpush1.msra.mxu0 0.0
  %1837 = vmatprep.subr.mxu0 0.0
  %1838 = vmatpush1.msra.mxu0 0.0
  %1839 = vmatprep.subr.mxu0 0.0
  %1840 = vmatpush1.msra.mxu0 0.0
  %1841 = vmatprep.subr.mxu0 0.0
  %1842 = vmatpush1.msra.mxu0 0.0
  %1843 = vmatprep.subr.mxu0 0.0
  %1844 = vmatpush1.msra.mxu0 0.0
  %1845 = vmatprep.subr.mxu0 0.0
  %1846 = vmatpush1.msra.mxu0 0.0
  %1847 = vmatprep.subr.mxu0 0.0
  %1848 = vmatpush1.msra.mxu0 0.0
  %1849 = vmatprep.subr.mxu0 0.0
  %1850 = vmatpush1.msra.mxu0 0.0
  %1851 = vmatprep.subr.mxu0 0.0
  %1852 = vmatpush1.msra.mxu0 0.0
  %1853 = vmatprep.subr.mxu0 0.0
  %1854 = vmatpush1.msra.mxu0 0.0
  %1855 = vmatprep.subr.mxu0 0.0
  %1856 = vmatpush1.msra.mxu0 0.0
  %1857 = vmatprep.subr.mxu0 0.0
  %1858 = vmatpush1.msra.mxu0 0.0
  %1859 = vmatprep.subr.mxu0 0.0
  %1860 = vmatpush1.msra.mxu0 0.0
  %1861 = vmatprep.subr.mxu0 0.0
  %1862 = vmatpush1.msra.mxu0 0.0
  %1863 = vmatprep.subr.mxu0 0.0
  %1864 = vmatpush1.msra.mxu0 0.0
  %1865 = vmatprep.subr.mxu0 0.0
  %1866 = vmatpush1.msra.mxu0 0.0
  %1867 = vmatprep.subr.mxu0 0.0
  %1868 = vmatpush1.msra.mxu0 0.0
  %1869 = vmatprep.subr.mxu0 0.0
  %1870 = vmatpush1.msra.mxu0 0.0
  %1871 = vmatprep.subr.mxu0 0.0
  %1872 = vmatpush1.msra.mxu0 0.0
  %1873 = vmatprep.mubr.f32.mxu0 0.0
  %1874 = vmatmul.mubr.f32.gmra.mrb[0].mxu0 %v1804
  %v1875 = vpop.f32.mrb[0].mxu0
  %v1876 = vadd.f32 0.0, %v1875
  %v1877 = vpop.f32.mrb[0].mxu0
  %v1878 = vadd.f32 0.0, %v1877
  %1879 = vmatprep.mubr.f32.mxu0 0.0
  %1880 = vmatmul.mubr.f32.gmra.mrb[0].mxu0 %v1807
  %v1881 = vpop.f32.mrb[0].mxu0
  %v1882 = vadd.f32 0.0, %v1881
  %v1883 = vpop.f32.mrb[0].mxu0
  %v1884 = vadd.f32 0.0, %v1883
  %1885 = vdwg.mxu0
  %1886 = vmatprep.subr.mxu0 %v1798
  %1887 = vmatpush1.msra.mxu0 %v1797
  %1888 = vmatprep.subr.mxu0 %v1802
  %1889 = vmatpush1.msra.mxu0 %v1801
  %1890 = vmatprep.subr.mxu0 0.0
  %1891 = vmatpush1.msra.mxu0 0.0
  %1892 = vmatprep.subr.mxu0 0.0
  %1893 = vmatpush1.msra.mxu0 0.0
  %1894 = vmatprep.subr.mxu0 0.0
  %1895 = vmatpush1.msra.mxu0 0.0
  %1896 = vmatprep.subr.mxu0 0.0
  %1897 = vmatpush1.msra.mxu0 0.0
  %1898 = vmatprep.subr.mxu0 0.0
  %1899 = vmatpush1.msra.mxu0 0.0
  %1900 = vmatprep.subr.mxu0 0.0
  %1901 = vmatpush1.msra.mxu0 0.0
  %1902 = vmatprep.subr.mxu0 0.0
  %1903 = vmatpush1.msra.mxu0 0.0
  %1904 = vmatprep.subr.mxu0 0.0
  %1905 = vmatpush1.msra.mxu0 0.0
  %1906 = vmatprep.subr.mxu0 0.0
  %1907 = vmatpush1.msra.mxu0 0.0
  %1908 = vmatprep.subr.mxu0 0.0
  %1909 = vmatpush1.msra.mxu0 0.0
  %1910 = vmatprep.subr.mxu0 0.0
  %1911 = vmatpush1.msra.mxu0 0.0
  %1912 = vmatprep.subr.mxu0 0.0
  %1913 = vmatpush1.msra.mxu0 0.0
  %1914 = vmatprep.subr.mxu0 0.0
  %1915 = vmatpush1.msra.mxu0 0.0
  %1916 = vmatprep.subr.mxu0 0.0
  %1917 = vmatpush1.msra.mxu0 0.0
  %1918 = vmatprep.subr.mxu0 0.0
  %1919 = vmatpush1.msra.mxu0 0.0
  %1920 = vmatprep.subr.mxu0 0.0
  %1921 = vmatpush1.msra.mxu0 0.0
  %1922 = vmatprep.subr.mxu0 0.0
  %1923 = vmatpush1.msra.mxu0 0.0
  %1924 = vmatprep.subr.mxu0 0.0
  %1925 = vmatpush1.msra.mxu0 0.0
  %1926 = vmatprep.subr.mxu0 0.0
  %1927 = vmatpush1.msra.mxu0 0.0
  %1928 = vmatprep.subr.mxu0 0.0
  %1929 = vmatpush1.msra.mxu0 0.0
  %1930 = vmatprep.subr.mxu0 0.0
  %1931 = vmatpush1.msra.mxu0 0.0
  %1932 = vmatprep.subr.mxu0 0.0
  %1933 = vmatpush1.msra.mxu0 0.0
  %1934 = vmatprep.subr.mxu0 0.0
  %1935 = vmatpush1.msra.mxu0 0.0
  %1936 = vmatprep.subr.mxu0 0.0
  %1937 = vmatpush1.msra.mxu0 0.0
  %1938 = vmatprep.subr.mxu0 0.0
  %1939 = vmatpush1.msra.mxu0 0.0
  %1940 = vmatprep.subr.mxu0 0.0
  %1941 = vmatpush1.msra.mxu0 0.0
  %1942 = vmatprep.subr.mxu0 0.0
  %1943 = vmatpush1.msra.mxu0 0.0
  %1944 = vmatprep.subr.mxu0 0.0
  %1945 = vmatpush1.msra.mxu0 0.0
  %1946 = vmatprep.subr.mxu0 0.0
  %1947 = vmatpush1.msra.mxu0 0.0
  %1948 = vmatprep.subr.mxu0 0.0
  %1949 = vmatpush1.msra.mxu0 0.0
  %1950 = vmatprep.mubr.f32.mxu0 0.0
  %1951 = vmatmul.mubr.f32.gmra.mrb[0].mxu0 %v1804
  %v1952 = vpop.f32.mrb[0].mxu0
  %v1953 = vadd.f32 0.0, %v1952
  %v1954 = vpop.f32.mrb[0].mxu0
  %v1955 = vadd.f32 0.0, %v1954
  %1956 = vmatprep.mubr.f32.mxu0 0.0
  %1957 = vmatmul.mubr.f32.gmra.mrb[0].mxu0 %v1807
  %v1958 = vpop.f32.mrb[0].mxu0
  %v1959 = vadd.f32 0.0, %v1958
  %v1960 = vpop.f32.mrb[0].mxu0
  %v1961 = vadd.f32 0.0, %v1960
  %1962 = vdwg.mxu0
  %1964 = vset.pattern.permute.xlu0 0
  %1965 = vperm.xlu0 %1964, %v517
  %v1966 = vpop.permute.xlu0 %1965
  %1969 = vset.pattern.permute.xlu0 0
  %1970 = vperm.xlu0 %1969, %v518
  %v1971 = vpop.permute.xlu0 %1970
  %v1973 = vmul.f32 %v1876, %v1966
  %v1974 = vmul.f32 %v1878, %v1966
  %v1975 = vmul.f32 %v1953, %v1966
  %v1976 = vmul.f32 %v1955, %v1966
  %v1977 = vmul.f32 %v1882, %v1971
  %v1978 = vmul.f32 %v1884, %v1971
  %v1979 = vmul.f32 %v1959, %v1971
  %v1980 = vmul.f32 %v1961, %v1971
  %1982 = vset.pattern.permute.xlu0 0
  %1983 = vperm.xlu0 %1982, %v519
  %v1984 = vpop.permute.xlu0 %1983
  %1987 = vset.pattern.permute.xlu0 0
  %1988 = vperm.xlu0 %1987, %v520
  %v1989 = vpop.permute.xlu0 %1988
  %v1991 = vadd.f32 %v1973, %v1984
  %v1992 = vadd.f32 %v1974, %v1984
  %v1993 = vadd.f32 %v1975, %v1984
  %v1994 = vadd.f32 %v1976, %v1984
  %v1995 = vadd.f32 %v1977, %v1989
  %v1996 = vadd.f32 %v1978, %v1989
  %v1997 = vadd.f32 %v1979, %v1989
  %v1998 = vadd.f32 %v1980, %v1989
  %v1999 = vadd.f32 %v1991, %v497
  %v2000 = vadd.f32 %v1992, %v498
  %v2001 = vadd.f32 %v1993, %v499
  %v2002 = vadd.f32 %v1994, %v500
  %v2003 = vadd.f32 %v1995, %v501
  %v2004 = vadd.f32 %v1996, %v502
  %v2005 = vadd.f32 %v1997, %v503
  %v2006 = vadd.f32 %v1998, %v504
  %2007 = vrot.lane.b32.xlu0 %v279, 17
  %v2008 = vpop.permute.xlu0 %2007
  %2009 = vrot.lane.b32.xlu0 %v283, 17
  %v2010 = vpop.permute.xlu0 %2009
  %2011 = vrot.lane.b32.xlu0 %v280, 17
  %v2012 = vpop.permute.xlu0 %2011
  %2013 = vrot.lane.b32.xlu0 %v284, 17
  %v2014 = vpop.permute.xlu0 %2013
  %2015 = vrot.lane.b32.xlu0 %v281, 17
  %v2016 = vpop.permute.xlu0 %2015
  %2017 = vrot.lane.b32.xlu0 %v285, 17
  %v2018 = vpop.permute.xlu0 %2017
  %2019 = vrot.lane.b32.xlu0 %v282, 17
  %v2020 = vpop.permute.xlu0 %2019
  %2021 = vrot.lane.b32.xlu0 %v286, 17
  %v2022 = vpop.permute.xlu0 %2021
  %v2023 = vsel %vm547, %v2016, %v2020
  %v2024 = vsel %vm547, %v2018, %v2022
  %v2025 = vsel %vm547, %v2012, %v2016
  %v2026 = vsel %vm547, %v2014, %v2018
  %v2027 = vsel %vm547, %v2008, %v2012
  %v2028 = vsel %vm547, %v2010, %v2014
  %v2029 = vsel %vm547, %v2020, %v2008
  %v2030 = vsel %vm547, %v2022, %v2010
  %vm2031 = vcmp.gt.f32.partialorder %v59, 0.5
  %vm2032 = vcmp.gt.f32.partialorder %v60, 0.5
  %vm2033 = vcmp.gt.f32.partialorder %v61, 0.5
  %vm2034 = vcmp.gt.f32.partialorder %v62, 0.5
  %v2035 = vsel %vm2031, 1, 0
  %v2036 = vsel %vm2032, 1, 0
  %v2037 = vsel %vm2033, 1, 0
  %v2038 = vsel %vm2034, 1, 0
  %v2039 = vlaneseq
  %v2040 = vshrl.u32 %v2039, 7
  %v2041 = vsub.s32 0, %v2040
  %v2042 = vrot.slane %v2035, %v2041
  %v2043 = vlaneseq
  %v2044 = vshrl.u32 %v2043, 7
  %v2045 = vsub.s32 0, %v2044
  %v2046 = vrot.slane %v2036, %v2045
  %v2047 = vlaneseq
  %v2048 = vshrl.u32 %v2047, 7
  %v2049 = vsub.s32 0, %v2048
  %v2050 = vrot.slane %v2037, %v2049
  %v2051 = vlaneseq
  %v2052 = vshrl.u32 %v2051, 7
  %v2053 = vsub.s32 0, %v2052
  %v2054 = vrot.slane %v2038, %v2053
  %vm2055 = vcmp.eq.s32.totalorder %v2042, 1
  %vm2056 = vcmp.eq.s32.totalorder %v2046, 1
  %vm2057 = vcmp.eq.s32.totalorder %v2050, 1
  %vm2058 = vcmp.eq.s32.totalorder %v2054, 1
  %v2059 = vsel %vm2055, %v2029, -3e+38
  %v2060 = vsel %vm2056, %v2027, -3e+38
  %v2061 = vsel %vm2057, %v2025, -3e+38
  %v2062 = vsel %vm2058, %v2023, -3e+38
  %v2063 = vsel %vm2055, %v2030, -3e+38
  %v2064 = vsel %vm2056, %v2028, -3e+38
  %v2065 = vsel %vm2057, %v2026, -3e+38
  %v2066 = vsel %vm2058, %v2024, -3e+38
  %2067 = vrot.lane.b32.xlu0 %v279, 16
  %v2068 = vpop.permute.xlu0 %2067
  %2069 = vrot.lane.b32.xlu0 %v283, 16
  %v2070 = vpop.permute.xlu0 %2069
  %2071 = vrot.lane.b32.xlu0 %v280, 16
  %v2072 = vpop.permute.xlu0 %2071
  %2073 = vrot.lane.b32.xlu0 %v284, 16
  %v2074 = vpop.permute.xlu0 %2073
  %2075 = vrot.lane.b32.xlu0 %v281, 16
  %v2076 = vpop.permute.xlu0 %2075
  %2077 = vrot.lane.b32.xlu0 %v285, 16
  %v2078 = vpop.permute.xlu0 %2077
  %2079 = vrot.lane.b32.xlu0 %v282, 16
  %v2080 = vpop.permute.xlu0 %2079
  %2081 = vrot.lane.b32.xlu0 %v286, 16
  %v2082 = vpop.permute.xlu0 %2081
  %v2083 = vsel %vm614, %v2076, %v2080
  %v2084 = vsel %vm614, %v2078, %v2082
  %v2085 = vsel %vm614, %v2072, %v2076
  %v2086 = vsel %vm614, %v2074, %v2078
  %v2087 = vsel %vm614, %v2068, %v2072
  %v2088 = vsel %vm614, %v2070, %v2074
  %v2089 = vsel %vm614, %v2080, %v2068
  %v2090 = vsel %vm614, %v2082, %v2070
  %v2091 = vlaneseq
  %v2092 = vshrl.u32 %v2091, 7
  %v2093 = vsub.s32 1, %v2092
  %v2094 = vrot.slane %v2035, %v2093
  %v2095 = vlaneseq
  %v2096 = vshrl.u32 %v2095, 7
  %v2097 = vsub.s32 1, %v2096
  %v2098 = vrot.slane %v2036, %v2097
  %v2099 = vlaneseq
  %v2100 = vshrl.u32 %v2099, 7
  %v2101 = vsub.s32 1, %v2100
  %v2102 = vrot.slane %v2037, %v2101
  %v2103 = vlaneseq
  %v2104 = vshrl.u32 %v2103, 7
  %v2105 = vsub.s32 1, %v2104
  %v2106 = vrot.slane %v2038, %v2105
  %vm2107 = vcmp.eq.s32.totalorder %v2094, 1
  %vm2108 = vcmp.eq.s32.totalorder %v2098, 1
  %vm2109 = vcmp.eq.s32.totalorder %v2102, 1
  %vm2110 = vcmp.eq.s32.totalorder %v2106, 1
  %v2111 = vsel %vm2107, %v2089, -3e+38
  %v2112 = vsel %vm2108, %v2087, -3e+38
  %v2113 = vsel %vm2109, %v2085, -3e+38
  %v2114 = vsel %vm2110, %v2083, -3e+38
  %v2115 = vsel %vm2107, %v2090, -3e+38
  %v2116 = vsel %vm2108, %v2088, -3e+38
  %v2117 = vsel %vm2109, %v2086, -3e+38
  %v2118 = vsel %vm2110, %v2084, -3e+38
  %v2119 = vmax.f32 %v2059, %v2111
  %v2120 = vmax.f32 %v2060, %v2112
  %v2121 = vmax.f32 %v2061, %v2113
  %v2122 = vmax.f32 %v2062, %v2114
  %v2123 = vmax.f32 %v2063, %v2115
  %v2124 = vmax.f32 %v2064, %v2116
  %v2125 = vmax.f32 %v2065, %v2117
  %v2126 = vmax.f32 %v2066, %v2118
  %2127 = vrot.lane.b32.xlu0 %v279, 15
  %v2128 = vpop.permute.xlu0 %2127
  %2129 = vrot.lane.b32.xlu0 %v283, 15
  %v2130 = vpop.permute.xlu0 %2129
  %2131 = vrot.lane.b32.xlu0 %v280, 15
  %v2132 = vpop.permute.xlu0 %2131
  %2133 = vrot.lane.b32.xlu0 %v284, 15
  %v2134 = vpop.permute.xlu0 %2133
  %2135 = vrot.lane.b32.xlu0 %v281, 15
  %v2136 = vpop.permute.xlu0 %2135
  %2137 = vrot.lane.b32.xlu0 %v285, 15
  %v2138 = vpop.permute.xlu0 %2137
  %2139 = vrot.lane.b32.xlu0 %v282, 15
  %v2140 = vpop.permute.xlu0 %2139
  %2141 = vrot.lane.b32.xlu0 %v286, 15
  %v2142 = vpop.permute.xlu0 %2141
  %v2143 = vsel %vm687, %v2136, %v2140
  %v2144 = vsel %vm687, %v2138, %v2142
  %v2145 = vsel %vm687, %v2132, %v2136
  %v2146 = vsel %vm687, %v2134, %v2138
  %v2147 = vsel %vm687, %v2128, %v2132
  %v2148 = vsel %vm687, %v2130, %v2134
  %v2149 = vsel %vm687, %v2140, %v2128
  %v2150 = vsel %vm687, %v2142, %v2130
  %v2151 = vlaneseq
  %v2152 = vshrl.u32 %v2151, 7
  %v2153 = vsub.s32 2, %v2152
  %v2154 = vrot.slane %v2035, %v2153
  %v2155 = vlaneseq
  %v2156 = vshrl.u32 %v2155, 7
  %v2157 = vsub.s32 2, %v2156
  %v2158 = vrot.slane %v2036, %v2157
  %v2159 = vlaneseq
  %v2160 = vshrl.u32 %v2159, 7
  %v2161 = vsub.s32 2, %v2160
  %v2162 = vrot.slane %v2037, %v2161
  %v2163 = vlaneseq
  %v2164 = vshrl.u32 %v2163, 7
  %v2165 = vsub.s32 2, %v2164
  %v2166 = vrot.slane %v2038, %v2165
  %vm2167 = vcmp.eq.s32.totalorder %v2154, 1
  %vm2168 = vcmp.eq.s32.totalorder %v2158, 1
  %vm2169 = vcmp.eq.s32.totalorder %v2162, 1
  %vm2170 = vcmp.eq.s32.totalorder %v2166, 1
  %v2171 = vsel %vm2167, %v2149, -3e+38
  %v2172 = vsel %vm2168, %v2147, -3e+38
  %v2173 = vsel %vm2169, %v2145, -3e+38
  %v2174 = vsel %vm2170, %v2143, -3e+38
  %v2175 = vsel %vm2167, %v2150, -3e+38
  %v2176 = vsel %vm2168, %v2148, -3e+38
  %v2177 = vsel %vm2169, %v2146, -3e+38
  %v2178 = vsel %vm2170, %v2144, -3e+38
  %v2179 = vmax.f32 %v2119, %v2171
  %v2180 = vmax.f32 %v2120, %v2172
  %v2181 = vmax.f32 %v2121, %v2173
  %v2182 = vmax.f32 %v2122, %v2174
  %v2183 = vmax.f32 %v2123, %v2175
  %v2184 = vmax.f32 %v2124, %v2176
  %v2185 = vmax.f32 %v2125, %v2177
  %v2186 = vmax.f32 %v2126, %v2178
  %2187 = vrot.lane.b32.xlu0 %v279, 1
  %v2188 = vpop.permute.xlu0 %2187
  %2189 = vrot.lane.b32.xlu0 %v283, 1
  %v2190 = vpop.permute.xlu0 %2189
  %2191 = vrot.lane.b32.xlu0 %v280, 1
  %v2192 = vpop.permute.xlu0 %2191
  %2193 = vrot.lane.b32.xlu0 %v284, 1
  %v2194 = vpop.permute.xlu0 %2193
  %2195 = vrot.lane.b32.xlu0 %v281, 1
  %v2196 = vpop.permute.xlu0 %2195
  %2197 = vrot.lane.b32.xlu0 %v285, 1
  %v2198 = vpop.permute.xlu0 %2197
  %2199 = vrot.lane.b32.xlu0 %v282, 1
  %v2200 = vpop.permute.xlu0 %2199
  %2201 = vrot.lane.b32.xlu0 %v286, 1
  %v2202 = vpop.permute.xlu0 %2201
  %v2203 = vsel %vm760, %v2196, %v2200
  %v2204 = vsel %vm760, %v2198, %v2202
  %v2205 = vsel %vm760, %v2192, %v2196
  %v2206 = vsel %vm760, %v2194, %v2198
  %v2207 = vsel %vm760, %v2188, %v2192
  %v2208 = vsel %vm760, %v2190, %v2194
  %v2209 = vsel %vm760, %v2200, %v2188
  %v2210 = vsel %vm760, %v2202, %v2190
  %v2211 = vlaneseq
  %v2212 = vshrl.u32 %v2211, 7
  %v2213 = vsub.s32 3, %v2212
  %v2214 = vrot.slane %v2035, %v2213
  %v2215 = vlaneseq
  %v2216 = vshrl.u32 %v2215, 7
  %v2217 = vsub.s32 3, %v2216
  %v2218 = vrot.slane %v2036, %v2217
  %v2219 = vlaneseq
  %v2220 = vshrl.u32 %v2219, 7
  %v2221 = vsub.s32 3, %v2220
  %v2222 = vrot.slane %v2037, %v2221
  %v2223 = vlaneseq
  %v2224 = vshrl.u32 %v2223, 7
  %v2225 = vsub.s32 3, %v2224
  %v2226 = vrot.slane %v2038, %v2225
  %vm2227 = vcmp.eq.s32.totalorder %v2214, 1
  %vm2228 = vcmp.eq.s32.totalorder %v2218, 1
  %vm2229 = vcmp.eq.s32.totalorder %v2222, 1
  %vm2230 = vcmp.eq.s32.totalorder %v2226, 1
  %v2231 = vsel %vm2227, %v2209, -3e+38
  %v2232 = vsel %vm2228, %v2207, -3e+38
  %v2233 = vsel %vm2229, %v2205, -3e+38
  %v2234 = vsel %vm2230, %v2203, -3e+38
  %v2235 = vsel %vm2227, %v2210, -3e+38
  %v2236 = vsel %vm2228, %v2208, -3e+38
  %v2237 = vsel %vm2229, %v2206, -3e+38
  %v2238 = vsel %vm2230, %v2204, -3e+38
  %v2239 = vmax.f32 %v2179, %v2231
  %v2240 = vmax.f32 %v2180, %v2232
  %v2241 = vmax.f32 %v2181, %v2233
  %v2242 = vmax.f32 %v2182, %v2234
  %v2243 = vmax.f32 %v2183, %v2235
  %v2244 = vmax.f32 %v2184, %v2236
  %v2245 = vmax.f32 %v2185, %v2237
  %v2246 = vmax.f32 %v2186, %v2238
  %v2247 = vmax.f32 %v2239, %v279
  %v2248 = vmax.f32 %v2240, %v280
  %v2249 = vmax.f32 %v2241, %v281
  %v2250 = vmax.f32 %v2242, %v282
  %v2251 = vmax.f32 %v2243, %v283
  %v2252 = vmax.f32 %v2244, %v284
  %v2253 = vmax.f32 %v2245, %v285
  %v2254 = vmax.f32 %v2246, %v286
  %2255 = vrot.lane.b32.xlu0 %v279, 127
  %v2256 = vpop.permute.xlu0 %2255
  %2257 = vrot.lane.b32.xlu0 %v283, 127
  %v2258 = vpop.permute.xlu0 %2257
  %2259 = vrot.lane.b32.xlu0 %v280, 127
  %v2260 = vpop.permute.xlu0 %2259
  %2261 = vrot.lane.b32.xlu0 %v284, 127
  %v2262 = vpop.permute.xlu0 %2261
  %2263 = vrot.lane.b32.xlu0 %v281, 127
  %v2264 = vpop.permute.xlu0 %2263
  %2265 = vrot.lane.b32.xlu0 %v285, 127
  %v2266 = vpop.permute.xlu0 %2265
  %2267 = vrot.lane.b32.xlu0 %v282, 127
  %v2268 = vpop.permute.xlu0 %2267
  %2269 = vrot.lane.b32.xlu0 %v286, 127
  %v2270 = vpop.permute.xlu0 %2269
  %v2271 = vsel %vm857, %v2264, %v2268
  %v2272 = vsel %vm857, %v2266, %v2270
  %v2273 = vsel %vm857, %v2260, %v2264
  %v2274 = vsel %vm857, %v2262, %v2266
  %v2275 = vsel %vm857, %v2256, %v2260
  %v2276 = vsel %vm857, %v2258, %v2262
  %v2277 = vsel %vm857, %v2268, %v2256
  %v2278 = vsel %vm857, %v2270, %v2258
  %v2279 = vlaneseq
  %v2280 = vshrl.u32 %v2279, 7
  %v2281 = vsub.s32 5, %v2280
  %v2282 = vrot.slane %v2035, %v2281
  %v2283 = vlaneseq
  %v2284 = vshrl.u32 %v2283, 7
  %v2285 = vsub.s32 5, %v2284
  %v2286 = vrot.slane %v2036, %v2285
  %v2287 = vlaneseq
  %v2288 = vshrl.u32 %v2287, 7
  %v2289 = vsub.s32 5, %v2288
  %v2290 = vrot.slane %v2037, %v2289
  %v2291 = vlaneseq
  %v2292 = vshrl.u32 %v2291, 7
  %v2293 = vsub.s32 5, %v2292
  %v2294 = vrot.slane %v2038, %v2293
  %vm2295 = vcmp.eq.s32.totalorder %v2282, 1
  %vm2296 = vcmp.eq.s32.totalorder %v2286, 1
  %vm2297 = vcmp.eq.s32.totalorder %v2290, 1
  %vm2298 = vcmp.eq.s32.totalorder %v2294, 1
  %v2299 = vsel %vm2295, %v2275, -3e+38
  %v2300 = vsel %vm2296, %v2273, -3e+38
  %v2301 = vsel %vm2297, %v2271, -3e+38
  %v2302 = vsel %vm2298, %v2277, -3e+38
  %v2303 = vsel %vm2295, %v2276, -3e+38
  %v2304 = vsel %vm2296, %v2274, -3e+38
  %v2305 = vsel %vm2297, %v2272, -3e+38
  %v2306 = vsel %vm2298, %v2278, -3e+38
  %v2307 = vmax.f32 %v2247, %v2299
  %v2308 = vmax.f32 %v2248, %v2300
  %v2309 = vmax.f32 %v2249, %v2301
  %v2310 = vmax.f32 %v2250, %v2302
  %v2311 = vmax.f32 %v2251, %v2303
  %v2312 = vmax.f32 %v2252, %v2304
  %v2313 = vmax.f32 %v2253, %v2305
  %v2314 = vmax.f32 %v2254, %v2306
  %2315 = vrot.lane.b32.xlu0 %v279, 113
  %v2316 = vpop.permute.xlu0 %2315
  %2317 = vrot.lane.b32.xlu0 %v283, 113
  %v2318 = vpop.permute.xlu0 %2317
  %2319 = vrot.lane.b32.xlu0 %v280, 113
  %v2320 = vpop.permute.xlu0 %2319
  %2321 = vrot.lane.b32.xlu0 %v284, 113
  %v2322 = vpop.permute.xlu0 %2321
  %2323 = vrot.lane.b32.xlu0 %v281, 113
  %v2324 = vpop.permute.xlu0 %2323
  %2325 = vrot.lane.b32.xlu0 %v285, 113
  %v2326 = vpop.permute.xlu0 %2325
  %2327 = vrot.lane.b32.xlu0 %v282, 113
  %v2328 = vpop.permute.xlu0 %2327
  %2329 = vrot.lane.b32.xlu0 %v286, 113
  %v2330 = vpop.permute.xlu0 %2329
  %v2331 = vsel %vm930, %v2324, %v2328
  %v2332 = vsel %vm930, %v2326, %v2330
  %v2333 = vsel %vm930, %v2320, %v2324
  %v2334 = vsel %vm930, %v2322, %v2326
  %v2335 = vsel %vm930, %v2316, %v2320
  %v2336 = vsel %vm930, %v2318, %v2322
  %v2337 = vsel %vm930, %v2328, %v2316
  %v2338 = vsel %vm930, %v2330, %v2318
  %v2339 = vlaneseq
  %v2340 = vshrl.u32 %v2339, 7
  %v2341 = vsub.s32 6, %v2340
  %v2342 = vrot.slane %v2035, %v2341
  %v2343 = vlaneseq
  %v2344 = vshrl.u32 %v2343, 7
  %v2345 = vsub.s32 6, %v2344
  %v2346 = vrot.slane %v2036, %v2345
  %v2347 = vlaneseq
  %v2348 = vshrl.u32 %v2347, 7
  %v2349 = vsub.s32 6, %v2348
  %v2350 = vrot.slane %v2037, %v2349
  %v2351 = vlaneseq
  %v2352 = vshrl.u32 %v2351, 7
  %v2353 = vsub.s32 6, %v2352
  %v2354 = vrot.slane %v2038, %v2353
  %vm2355 = vcmp.eq.s32.totalorder %v2342, 1
  %vm2356 = vcmp.eq.s32.totalorder %v2346, 1
  %vm2357 = vcmp.eq.s32.totalorder %v2350, 1
  %vm2358 = vcmp.eq.s32.totalorder %v2354, 1
  %v2359 = vsel %vm2355, %v2335, -3e+38
  %v2360 = vsel %vm2356, %v2333, -3e+38
  %v2361 = vsel %vm2357, %v2331, -3e+38
  %v2362 = vsel %vm2358, %v2337, -3e+38
  %v2363 = vsel %vm2355, %v2336, -3e+38
  %v2364 = vsel %vm2356, %v2334, -3e+38
  %v2365 = vsel %vm2357, %v2332, -3e+38
  %v2366 = vsel %vm2358, %v2338, -3e+38
  %v2367 = vmax.f32 %v2307, %v2359
  %v2368 = vmax.f32 %v2308, %v2360
  %v2369 = vmax.f32 %v2309, %v2361
  %v2370 = vmax.f32 %v2310, %v2362
  %v2371 = vmax.f32 %v2311, %v2363
  %v2372 = vmax.f32 %v2312, %v2364
  %v2373 = vmax.f32 %v2313, %v2365
  %v2374 = vmax.f32 %v2314, %v2366
  %2375 = vrot.lane.b32.xlu0 %v279, 112
  %v2376 = vpop.permute.xlu0 %2375
  %2377 = vrot.lane.b32.xlu0 %v283, 112
  %v2378 = vpop.permute.xlu0 %2377
  %2379 = vrot.lane.b32.xlu0 %v280, 112
  %v2380 = vpop.permute.xlu0 %2379
  %2381 = vrot.lane.b32.xlu0 %v284, 112
  %v2382 = vpop.permute.xlu0 %2381
  %2383 = vrot.lane.b32.xlu0 %v281, 112
  %v2384 = vpop.permute.xlu0 %2383
  %2385 = vrot.lane.b32.xlu0 %v285, 112
  %v2386 = vpop.permute.xlu0 %2385
  %2387 = vrot.lane.b32.xlu0 %v282, 112
  %v2388 = vpop.permute.xlu0 %2387
  %2389 = vrot.lane.b32.xlu0 %v286, 112
  %v2390 = vpop.permute.xlu0 %2389
  %v2391 = vsel %vm1003, %v2384, %v2388
  %v2392 = vsel %vm1003, %v2386, %v2390
  %v2393 = vsel %vm1003, %v2380, %v2384
  %v2394 = vsel %vm1003, %v2382, %v2386
  %v2395 = vsel %vm1003, %v2376, %v2380
  %v2396 = vsel %vm1003, %v2378, %v2382
  %v2397 = vsel %vm1003, %v2388, %v2376
  %v2398 = vsel %vm1003, %v2390, %v2378
  %v2399 = vlaneseq
  %v2400 = vshrl.u32 %v2399, 7
  %v2401 = vsub.s32 7, %v2400
  %v2402 = vrot.slane %v2035, %v2401
  %v2403 = vlaneseq
  %v2404 = vshrl.u32 %v2403, 7
  %v2405 = vsub.s32 7, %v2404
  %v2406 = vrot.slane %v2036, %v2405
  %v2407 = vlaneseq
  %v2408 = vshrl.u32 %v2407, 7
  %v2409 = vsub.s32 7, %v2408
  %v2410 = vrot.slane %v2037, %v2409
  %v2411 = vlaneseq
  %v2412 = vshrl.u32 %v2411, 7
  %v2413 = vsub.s32 7, %v2412
  %v2414 = vrot.slane %v2038, %v2413
  %vm2415 = vcmp.eq.s32.totalorder %v2402, 1
  %vm2416 = vcmp.eq.s32.totalorder %v2406, 1
  %vm2417 = vcmp.eq.s32.totalorder %v2410, 1
  %vm2418 = vcmp.eq.s32.totalorder %v2414, 1
  %v2419 = vsel %vm2415, %v2395, -3e+38
  %v2420 = vsel %vm2416, %v2393, -3e+38
  %v2421 = vsel %vm2417, %v2391, -3e+38
  %v2422 = vsel %vm2418, %v2397, -3e+38
  %v2423 = vsel %vm2415, %v2396, -3e+38
  %v2424 = vsel %vm2416, %v2394, -3e+38
  %v2425 = vsel %vm2417, %v2392, -3e+38
  %v2426 = vsel %vm2418, %v2398, -3e+38
  %v2427 = vmax.f32 %v2367, %v2419
  %v2428 = vmax.f32 %v2368, %v2420
  %v2429 = vmax.f32 %v2369, %v2421
  %v2430 = vmax.f32 %v2370, %v2422
  %v2431 = vmax.f32 %v2371, %v2423
  %v2432 = vmax.f32 %v2372, %v2424
  %v2433 = vmax.f32 %v2373, %v2425
  %v2434 = vmax.f32 %v2374, %v2426
  %2435 = vrot.lane.b32.xlu0 %v279, 111
  %v2436 = vpop.permute.xlu0 %2435
  %2437 = vrot.lane.b32.xlu0 %v283, 111
  %v2438 = vpop.permute.xlu0 %2437
  %2439 = vrot.lane.b32.xlu0 %v280, 111
  %v2440 = vpop.permute.xlu0 %2439
  %2441 = vrot.lane.b32.xlu0 %v284, 111
  %v2442 = vpop.permute.xlu0 %2441
  %2443 = vrot.lane.b32.xlu0 %v281, 111
  %v2444 = vpop.permute.xlu0 %2443
  %2445 = vrot.lane.b32.xlu0 %v285, 111
  %v2446 = vpop.permute.xlu0 %2445
  %2447 = vrot.lane.b32.xlu0 %v282, 111
  %v2448 = vpop.permute.xlu0 %2447
  %2449 = vrot.lane.b32.xlu0 %v286, 111
  %v2450 = vpop.permute.xlu0 %2449
  %v2451 = vsel %vm1076, %v2444, %v2448
  %v2452 = vsel %vm1076, %v2446, %v2450
  %v2453 = vsel %vm1076, %v2440, %v2444
  %v2454 = vsel %vm1076, %v2442, %v2446
  %v2455 = vsel %vm1076, %v2436, %v2440
  %v2456 = vsel %vm1076, %v2438, %v2442
  %v2457 = vsel %vm1076, %v2448, %v2436
  %v2458 = vsel %vm1076, %v2450, %v2438
  %vm2459 = vcmp.gt.f32.partialorder %v63, 0.5
  %vm2460 = vcmp.gt.f32.partialorder %v64, 0.5
  %vm2461 = vcmp.gt.f32.partialorder %v65, 0.5
  %vm2462 = vcmp.gt.f32.partialorder %v66, 0.5
  %v2463 = vsel %vm2459, 1, 0
  %v2464 = vsel %vm2460, 1, 0
  %v2465 = vsel %vm2461, 1, 0
  %v2466 = vsel %vm2462, 1, 0
  %v2467 = vlaneseq
  %v2468 = vshrl.u32 %v2467, 7
  %v2469 = vsub.s32 0, %v2468
  %v2470 = vrot.slane %v2463, %v2469
  %v2471 = vlaneseq
  %v2472 = vshrl.u32 %v2471, 7
  %v2473 = vsub.s32 0, %v2472
  %v2474 = vrot.slane %v2464, %v2473
  %v2475 = vlaneseq
  %v2476 = vshrl.u32 %v2475, 7
  %v2477 = vsub.s32 0, %v2476
  %v2478 = vrot.slane %v2465, %v2477
  %v2479 = vlaneseq
  %v2480 = vshrl.u32 %v2479, 7
  %v2481 = vsub.s32 0, %v2480
  %v2482 = vrot.slane %v2466, %v2481
  %vm2483 = vcmp.eq.s32.totalorder %v2470, 1
  %vm2484 = vcmp.eq.s32.totalorder %v2474, 1
  %vm2485 = vcmp.eq.s32.totalorder %v2478, 1
  %vm2486 = vcmp.eq.s32.totalorder %v2482, 1
  %v2487 = vsel %vm2483, %v2455, -3e+38
  %v2488 = vsel %vm2484, %v2453, -3e+38
  %v2489 = vsel %vm2485, %v2451, -3e+38
  %v2490 = vsel %vm2486, %v2457, -3e+38
  %v2491 = vsel %vm2483, %v2456, -3e+38
  %v2492 = vsel %vm2484, %v2454, -3e+38
  %v2493 = vsel %vm2485, %v2452, -3e+38
  %v2494 = vsel %vm2486, %v2458, -3e+38
  %v2495 = vmax.f32 %v2427, %v2487
  %v2496 = vmax.f32 %v2428, %v2488
  %v2497 = vmax.f32 %v2429, %v2489
  %v2498 = vmax.f32 %v2430, %v2490
  %v2499 = vmax.f32 %v2431, %v2491
  %v2500 = vmax.f32 %v2432, %v2492
  %v2501 = vmax.f32 %v2433, %v2493
  %v2502 = vmax.f32 %v2434, %v2494
  %2503 = vrot.lane.b32.xlu0 %v497, 17
  %v2504 = vpop.permute.xlu0 %2503
  %2505 = vrot.lane.b32.xlu0 %v501, 17
  %v2506 = vpop.permute.xlu0 %2505
  %2507 = vrot.lane.b32.xlu0 %v498, 17
  %v2508 = vpop.permute.xlu0 %2507
  %2509 = vrot.lane.b32.xlu0 %v502, 17
  %v2510 = vpop.permute.xlu0 %2509
  %2511 = vrot.lane.b32.xlu0 %v499, 17
  %v2512 = vpop.permute.xlu0 %2511
  %2513 = vrot.lane.b32.xlu0 %v503, 17
  %v2514 = vpop.permute.xlu0 %2513
  %2515 = vrot.lane.b32.xlu0 %v500, 17
  %v2516 = vpop.permute.xlu0 %2515
  %2517 = vrot.lane.b32.xlu0 %v504, 17
  %v2518 = vpop.permute.xlu0 %2517
  %v2519 = vsel %vm547, %v2512, %v2516
  %v2520 = vsel %vm547, %v2514, %v2518
  %v2521 = vsel %vm547, %v2508, %v2512
  %v2522 = vsel %vm547, %v2510, %v2514
  %v2523 = vsel %vm547, %v2504, %v2508
  %v2524 = vsel %vm547, %v2506, %v2510
  %v2525 = vsel %vm547, %v2516, %v2504
  %v2526 = vsel %vm547, %v2518, %v2506
  %v2527 = vmul.f32 %v2525, %v559
  %v2528 = vmul.f32 %v2523, %v563
  %v2529 = vmul.f32 %v2521, %v567
  %v2530 = vmul.f32 %v2519, %v571
  %v2531 = vmul.f32 %v2526, %v559
  %v2532 = vmul.f32 %v2524, %v563
  %v2533 = vmul.f32 %v2522, %v567
  %v2534 = vmul.f32 %v2520, %v571
  %2535 = vrot.lane.b32.xlu0 %v497, 16
  %v2536 = vpop.permute.xlu0 %2535
  %2537 = vrot.lane.b32.xlu0 %v501, 16
  %v2538 = vpop.permute.xlu0 %2537
  %2539 = vrot.lane.b32.xlu0 %v498, 16
  %v2540 = vpop.permute.xlu0 %2539
  %2541 = vrot.lane.b32.xlu0 %v502, 16
  %v2542 = vpop.permute.xlu0 %2541
  %2543 = vrot.lane.b32.xlu0 %v499, 16
  %v2544 = vpop.permute.xlu0 %2543
  %2545 = vrot.lane.b32.xlu0 %v503, 16
  %v2546 = vpop.permute.xlu0 %2545
  %2547 = vrot.lane.b32.xlu0 %v500, 16
  %v2548 = vpop.permute.xlu0 %2547
  %2549 = vrot.lane.b32.xlu0 %v504, 16
  %v2550 = vpop.permute.xlu0 %2549
  %v2551 = vsel %vm614, %v2544, %v2548
  %v2552 = vsel %vm614, %v2546, %v2550
  %v2553 = vsel %vm614, %v2540, %v2544
  %v2554 = vsel %vm614, %v2542, %v2546
  %v2555 = vsel %vm614, %v2536, %v2540
  %v2556 = vsel %vm614, %v2538, %v2542
  %v2557 = vsel %vm614, %v2548, %v2536
  %v2558 = vsel %vm614, %v2550, %v2538
  %v2559 = vmul.f32 %v2557, %v626
  %v2560 = vmul.f32 %v2555, %v630
  %v2561 = vmul.f32 %v2553, %v634
  %v2562 = vmul.f32 %v2551, %v638
  %v2563 = vmul.f32 %v2558, %v626
  %v2564 = vmul.f32 %v2556, %v630
  %v2565 = vmul.f32 %v2554, %v634
  %v2566 = vmul.f32 %v2552, %v638
  %v2567 = vadd.f32 %v2527, %v2559
  %v2568 = vadd.f32 %v2528, %v2560
  %v2569 = vadd.f32 %v2529, %v2561
  %v2570 = vadd.f32 %v2530, %v2562
  %v2571 = vadd.f32 %v2531, %v2563
  %v2572 = vadd.f32 %v2532, %v2564
  %v2573 = vadd.f32 %v2533, %v2565
  %v2574 = vadd.f32 %v2534, %v2566
  %2575 = vrot.lane.b32.xlu0 %v497, 15
  %v2576 = vpop.permute.xlu0 %2575
  %2577 = vrot.lane.b32.xlu0 %v501, 15
  %v2578 = vpop.permute.xlu0 %2577
  %2579 = vrot.lane.b32.xlu0 %v498, 15
  %v2580 = vpop.permute.xlu0 %2579
  %2581 = vrot.lane.b32.xlu0 %v502, 15
  %v2582 = vpop.permute.xlu0 %2581
  %2583 = vrot.lane.b32.xlu0 %v499, 15
  %v2584 = vpop.permute.xlu0 %2583
  %2585 = vrot.lane.b32.xlu0 %v503, 15
  %v2586 = vpop.permute.xlu0 %2585
  %2587 = vrot.lane.b32.xlu0 %v500, 15
  %v2588 = vpop.permute.xlu0 %2587
  %2589 = vrot.lane.b32.xlu0 %v504, 15
  %v2590 = vpop.permute.xlu0 %2589
  %v2591 = vsel %vm687, %v2584, %v2588
  %v2592 = vsel %vm687, %v2586, %v2590
  %v2593 = vsel %vm687, %v2580, %v2584
  %v2594 = vsel %vm687, %v2582, %v2586
  %v2595 = vsel %vm687, %v2576, %v2580
  %v2596 = vsel %vm687, %v2578, %v2582
  %v2597 = vsel %vm687, %v2588, %v2576
  %v2598 = vsel %vm687, %v2590, %v2578
  %v2599 = vmul.f32 %v2597, %v699
  %v2600 = vmul.f32 %v2595, %v703
  %v2601 = vmul.f32 %v2593, %v707
  %v2602 = vmul.f32 %v2591, %v711
  %v2603 = vmul.f32 %v2598, %v699
  %v2604 = vmul.f32 %v2596, %v703
  %v2605 = vmul.f32 %v2594, %v707
  %v2606 = vmul.f32 %v2592, %v711
  %v2607 = vadd.f32 %v2567, %v2599
  %v2608 = vadd.f32 %v2568, %v2600
  %v2609 = vadd.f32 %v2569, %v2601
  %v2610 = vadd.f32 %v2570, %v2602
  %v2611 = vadd.f32 %v2571, %v2603
  %v2612 = vadd.f32 %v2572, %v2604
  %v2613 = vadd.f32 %v2573, %v2605
  %v2614 = vadd.f32 %v2574, %v2606
  %2615 = vrot.lane.b32.xlu0 %v497, 1
  %v2616 = vpop.permute.xlu0 %2615
  %2617 = vrot.lane.b32.xlu0 %v501, 1
  %v2618 = vpop.permute.xlu0 %2617
  %2619 = vrot.lane.b32.xlu0 %v498, 1
  %v2620 = vpop.permute.xlu0 %2619
  %2621 = vrot.lane.b32.xlu0 %v502, 1
  %v2622 = vpop.permute.xlu0 %2621
  %2623 = vrot.lane.b32.xlu0 %v499, 1
  %v2624 = vpop.permute.xlu0 %2623
  %2625 = vrot.lane.b32.xlu0 %v503, 1
  %v2626 = vpop.permute.xlu0 %2625
  %2627 = vrot.lane.b32.xlu0 %v500, 1
  %v2628 = vpop.permute.xlu0 %2627
  %2629 = vrot.lane.b32.xlu0 %v504, 1
  %v2630 = vpop.permute.xlu0 %2629
  %v2631 = vsel %vm760, %v2624, %v2628
  %v2632 = vsel %vm760, %v2626, %v2630
  %v2633 = vsel %vm760, %v2620, %v2624
  %v2634 = vsel %vm760, %v2622, %v2626
  %v2635 = vsel %vm760, %v2616, %v2620
  %v2636 = vsel %vm760, %v2618, %v2622
  %v2637 = vsel %vm760, %v2628, %v2616
  %v2638 = vsel %vm760, %v2630, %v2618
  %v2639 = vmul.f32 %v2637, %v772
  %v2640 = vmul.f32 %v2635, %v776
  %v2641 = vmul.f32 %v2633, %v780
  %v2642 = vmul.f32 %v2631, %v784
  %v2643 = vmul.f32 %v2638, %v772
  %v2644 = vmul.f32 %v2636, %v776
  %v2645 = vmul.f32 %v2634, %v780
  %v2646 = vmul.f32 %v2632, %v784
  %v2647 = vadd.f32 %v2607, %v2639
  %v2648 = vadd.f32 %v2608, %v2640
  %v2649 = vadd.f32 %v2609, %v2641
  %v2650 = vadd.f32 %v2610, %v2642
  %v2651 = vadd.f32 %v2611, %v2643
  %v2652 = vadd.f32 %v2612, %v2644
  %v2653 = vadd.f32 %v2613, %v2645
  %v2654 = vadd.f32 %v2614, %v2646
  %v2655 = vadd.f32 %v2647, %v497
  %v2656 = vadd.f32 %v2648, %v498
  %v2657 = vadd.f32 %v2649, %v499
  %v2658 = vadd.f32 %v2650, %v500
  %v2659 = vadd.f32 %v2651, %v501
  %v2660 = vadd.f32 %v2652, %v502
  %v2661 = vadd.f32 %v2653, %v503
  %v2662 = vadd.f32 %v2654, %v504
  %2663 = vrot.lane.b32.xlu0 %v497, 127
  %v2664 = vpop.permute.xlu0 %2663
  %2665 = vrot.lane.b32.xlu0 %v501, 127
  %v2666 = vpop.permute.xlu0 %2665
  %2667 = vrot.lane.b32.xlu0 %v498, 127
  %v2668 = vpop.permute.xlu0 %2667
  %2669 = vrot.lane.b32.xlu0 %v502, 127
  %v2670 = vpop.permute.xlu0 %2669
  %2671 = vrot.lane.b32.xlu0 %v499, 127
  %v2672 = vpop.permute.xlu0 %2671
  %2673 = vrot.lane.b32.xlu0 %v503, 127
  %v2674 = vpop.permute.xlu0 %2673
  %2675 = vrot.lane.b32.xlu0 %v500, 127
  %v2676 = vpop.permute.xlu0 %2675
  %2677 = vrot.lane.b32.xlu0 %v504, 127
  %v2678 = vpop.permute.xlu0 %2677
  %v2679 = vsel %vm857, %v2672, %v2676
  %v2680 = vsel %vm857, %v2674, %v2678
  %v2681 = vsel %vm857, %v2668, %v2672
  %v2682 = vsel %vm857, %v2670, %v2674
  %v2683 = vsel %vm857, %v2664, %v2668
  %v2684 = vsel %vm857, %v2666, %v2670
  %v2685 = vsel %vm857, %v2676, %v2664
  %v2686 = vsel %vm857, %v2678, %v2666
  %v2687 = vmul.f32 %v2683, %v869
  %v2688 = vmul.f32 %v2681, %v873
  %v2689 = vmul.f32 %v2679, %v877
  %v2690 = vmul.f32 %v2685, %v881
  %v2691 = vmul.f32 %v2684, %v869
  %v2692 = vmul.f32 %v2682, %v873
  %v2693 = vmul.f32 %v2680, %v877
  %v2694 = vmul.f32 %v2686, %v881
  %v2695 = vadd.f32 %v2655, %v2687
  %v2696 = vadd.f32 %v2656, %v2688
  %v2697 = vadd.f32 %v2657, %v2689
  %v2698 = vadd.f32 %v2658, %v2690
  %v2699 = vadd.f32 %v2659, %v2691
  %v2700 = vadd.f32 %v2660, %v2692
  %v2701 = vadd.f32 %v2661, %v2693
  %v2702 = vadd.f32 %v2662, %v2694
  %2703 = vrot.lane.b32.xlu0 %v497, 113
  %v2704 = vpop.permute.xlu0 %2703
  %2705 = vrot.lane.b32.xlu0 %v501, 113
  %v2706 = vpop.permute.xlu0 %2705
  %2707 = vrot.lane.b32.xlu0 %v498, 113
  %v2708 = vpop.permute.xlu0 %2707
  %2709 = vrot.lane.b32.xlu0 %v502, 113
  %v2710 = vpop.permute.xlu0 %2709
  %2711 = vrot.lane.b32.xlu0 %v499, 113
  %v2712 = vpop.permute.xlu0 %2711
  %2713 = vrot.lane.b32.xlu0 %v503, 113
  %v2714 = vpop.permute.xlu0 %2713
  %2715 = vrot.lane.b32.xlu0 %v500, 113
  %v2716 = vpop.permute.xlu0 %2715
  %2717 = vrot.lane.b32.xlu0 %v504, 113
  %v2718 = vpop.permute.xlu0 %2717
  %v2719 = vsel %vm930, %v2712, %v2716
  %v2720 = vsel %vm930, %v2714, %v2718
  %v2721 = vsel %vm930, %v2708, %v2712
  %v2722 = vsel %vm930, %v2710, %v2714
  %v2723 = vsel %vm930, %v2704, %v2708
  %v2724 = vsel %vm930, %v2706, %v2710
  %v2725 = vsel %vm930, %v2716, %v2704
  %v2726 = vsel %vm930, %v2718, %v2706
  %v2727 = vmul.f32 %v2723, %v942
  %v2728 = vmul.f32 %v2721, %v946
  %v2729 = vmul.f32 %v2719, %v950
  %v2730 = vmul.f32 %v2725, %v954
  %v2731 = vmul.f32 %v2724, %v942
  %v2732 = vmul.f32 %v2722, %v946
  %v2733 = vmul.f32 %v2720, %v950
  %v2734 = vmul.f32 %v2726, %v954
  %v2735 = vadd.f32 %v2695, %v2727
  %v2736 = vadd.f32 %v2696, %v2728
  %v2737 = vadd.f32 %v2697, %v2729
  %v2738 = vadd.f32 %v2698, %v2730
  %v2739 = vadd.f32 %v2699, %v2731
  %v2740 = vadd.f32 %v2700, %v2732
  %v2741 = vadd.f32 %v2701, %v2733
  %v2742 = vadd.f32 %v2702, %v2734
  %2743 = vrot.lane.b32.xlu0 %v497, 112
  %v2744 = vpop.permute.xlu0 %2743
  %2745 = vrot.lane.b32.xlu0 %v501, 112
  %v2746 = vpop.permute.xlu0 %2745
  %2747 = vrot.lane.b32.xlu0 %v498, 112
  %v2748 = vpop.permute.xlu0 %2747
  %2749 = vrot.lane.b32.xlu0 %v502, 112
  %v2750 = vpop.permute.xlu0 %2749
  %2751 = vrot.lane.b32.xlu0 %v499, 112
  %v2752 = vpop.permute.xlu0 %2751
  %2753 = vrot.lane.b32.xlu0 %v503, 112
  %v2754 = vpop.permute.xlu0 %2753
  %2755 = vrot.lane.b32.xlu0 %v500, 112
  %v2756 = vpop.permute.xlu0 %2755
  %2757 = vrot.lane.b32.xlu0 %v504, 112
  %v2758 = vpop.permute.xlu0 %2757
  %v2759 = vsel %vm1003, %v2752, %v2756
  %v2760 = vsel %vm1003, %v2754, %v2758
  %v2761 = vsel %vm1003, %v2748, %v2752
  %v2762 = vsel %vm1003, %v2750, %v2754
  %v2763 = vsel %vm1003, %v2744, %v2748
  %v2764 = vsel %vm1003, %v2746, %v2750
  %v2765 = vsel %vm1003, %v2756, %v2744
  %v2766 = vsel %vm1003, %v2758, %v2746
  %v2767 = vmul.f32 %v2763, %v1015
  %v2768 = vmul.f32 %v2761, %v1019
  %v2769 = vmul.f32 %v2759, %v1023
  %v2770 = vmul.f32 %v2765, %v1027
  %v2771 = vmul.f32 %v2764, %v1015
  %v2772 = vmul.f32 %v2762, %v1019
  %v2773 = vmul.f32 %v2760, %v1023
  %v2774 = vmul.f32 %v2766, %v1027
  %v2775 = vadd.f32 %v2735, %v2767
  %v2776 = vadd.f32 %v2736, %v2768
  %v2777 = vadd.f32 %v2737, %v2769
  %v2778 = vadd.f32 %v2738, %v2770
  %v2779 = vadd.f32 %v2739, %v2771
  %v2780 = vadd.f32 %v2740, %v2772
  %v2781 = vadd.f32 %v2741, %v2773
  %v2782 = vadd.f32 %v2742, %v2774
  %2783 = vrot.lane.b32.xlu0 %v497, 111
  %v2784 = vpop.permute.xlu0 %2783
  %2785 = vrot.lane.b32.xlu0 %v501, 111
  %v2786 = vpop.permute.xlu0 %2785
  %2787 = vrot.lane.b32.xlu0 %v498, 111
  %v2788 = vpop.permute.xlu0 %2787
  %2789 = vrot.lane.b32.xlu0 %v502, 111
  %v2790 = vpop.permute.xlu0 %2789
  %2791 = vrot.lane.b32.xlu0 %v499, 111
  %v2792 = vpop.permute.xlu0 %2791
  %2793 = vrot.lane.b32.xlu0 %v503, 111
  %v2794 = vpop.permute.xlu0 %2793
  %2795 = vrot.lane.b32.xlu0 %v500, 111
  %v2796 = vpop.permute.xlu0 %2795
  %2797 = vrot.lane.b32.xlu0 %v504, 111
  %v2798 = vpop.permute.xlu0 %2797
  %v2799 = vsel %vm1076, %v2792, %v2796
  %v2800 = vsel %vm1076, %v2794, %v2798
  %v2801 = vsel %vm1076, %v2788, %v2792
  %v2802 = vsel %vm1076, %v2790, %v2794
  %v2803 = vsel %vm1076, %v2784, %v2788
  %v2804 = vsel %vm1076, %v2786, %v2790
  %v2805 = vsel %vm1076, %v2796, %v2784
  %v2806 = vsel %vm1076, %v2798, %v2786
  %v2807 = vmul.f32 %v2803, %v1088
  %v2808 = vmul.f32 %v2801, %v1092
  %v2809 = vmul.f32 %v2799, %v1096
  %v2810 = vmul.f32 %v2805, %v1100
  %v2811 = vmul.f32 %v2804, %v1088
  %v2812 = vmul.f32 %v2802, %v1092
  %v2813 = vmul.f32 %v2800, %v1096
  %v2814 = vmul.f32 %v2806, %v1100
  %v2815 = vadd.f32 %v2775, %v2807
  %v2816 = vadd.f32 %v2776, %v2808
  %v2817 = vadd.f32 %v2777, %v2809
  %v2818 = vadd.f32 %v2778, %v2810
  %v2819 = vadd.f32 %v2779, %v2811
  %v2820 = vadd.f32 %v2780, %v2812
  %v2821 = vadd.f32 %v2781, %v2813
  %v2822 = vadd.f32 %v2782, %v2814
  %v2824 = vlaneseq
  %v2825 = vshrl.u32 %v2824, 7
  %v2826 = vsub.s32 0, %v2825
  %v2827 = vrot.slane %v67, %v2826
  %v2828 = vlaneseq
  %v2829 = vshrl.u32 %v2828, 7
  %v2830 = vsub.s32 1, %v2829
  %v2831 = vrot.slane %v67, %v2830
  %v2832 = vlaneseq
  %v2833 = vshrl.u32 %v2832, 7
  %v2834 = vsub.s32 2, %v2833
  %v2835 = vrot.slane %v67, %v2834
  %v2836 = vlaneseq
  %v2837 = vshrl.u32 %v2836, 7
  %v2838 = vsub.s32 3, %v2837
  %v2839 = vrot.slane %v67, %v2838
  %v2844 = vmul.f32 %v2815, %v2827
  %v2845 = vmul.f32 %v2816, %v2831
  %v2846 = vmul.f32 %v2817, %v2835
  %v2847 = vmul.f32 %v2818, %v2839
  %v2848 = vmul.f32 %v2819, %v2827
  %v2849 = vmul.f32 %v2820, %v2831
  %v2850 = vmul.f32 %v2821, %v2835
  %v2851 = vmul.f32 %v2822, %v2839
  %v2852 = vadd.f32 %v2495, %v2844
  %v2853 = vadd.f32 %v2496, %v2845
  %v2854 = vadd.f32 %v2497, %v2846
  %v2855 = vadd.f32 %v2498, %v2847
  %v2856 = vadd.f32 %v2499, %v2848
  %v2857 = vadd.f32 %v2500, %v2849
  %v2858 = vadd.f32 %v2501, %v2850
  %v2859 = vadd.f32 %v2502, %v2851
  %s2860 = scalar_lea.vmem %s10, 16
  %v2861 = vld [vmem:[%s2860] sm:$0xff]
  %v2862 = vld [vmem:[%s2860 + $0x8] sm:$0xff]
  %s2863 = scalar_lea.vmem %s11, 16
  %v2864 = vld [vmem:[%s2863] sm:$0xff]
  %v2865 = vld [vmem:[%s2863 + $0x8] sm:$0xff]
  %s2866 = scalar_lea.vmem %s12, 16
  %v2867 = vld [vmem:[%s2866] sm:$0xff]
  %v2868 = vld [vmem:[%s2866 + $0x8] sm:$0xff]
  %s2869 = scalar_lea.vmem %s13, 16
  %v2870 = vld [vmem:[%s2869] sm:$0xff]
  %v2871 = vld [vmem:[%s2869 + $0x8] sm:$0xff]
  %s2872 = scalar_lea.vmem %s14, 16
  %v2873 = vld [vmem:[%s2872] sm:$0xff]
  %v2874 = vld [vmem:[%s2872 + $0x8] sm:$0xff]
  %s2875 = scalar_lea.vmem %s15, 16
  %v2876 = vld [vmem:[%s2875] sm:$0xff]
  %v2877 = vld [vmem:[%s2875 + $0x8] sm:$0xff]
  %s2878 = scalar_lea.vmem %s16, 16
  %v2879 = vld [vmem:[%s2878] sm:$0xff]
  %v2880 = vld [vmem:[%s2878 + $0x8] sm:$0xff]
  %s2881 = scalar_lea.vmem %s17, 16
  %v2882 = vld [vmem:[%s2881] sm:$0xff]
  %v2883 = vld [vmem:[%s2881 + $0x8] sm:$0xff]
  %v2884 = vmax.f32 %v497, 0.0
  %v2885 = vmax.f32 %v498, 0.0
  %v2886 = vmax.f32 %v499, 0.0
  %v2887 = vmax.f32 %v500, 0.0
  %v2888 = vmax.f32 %v501, 0.0
  %v2889 = vmax.f32 %v502, 0.0
  %v2890 = vmax.f32 %v503, 0.0
  %v2891 = vmax.f32 %v504, 0.0
  %2892 = vrot.lane.b32.xlu0 %v2884, 17
  %v2893 = vpop.permute.xlu0 %2892
  %2894 = vrot.lane.b32.xlu0 %v2888, 17
  %v2895 = vpop.permute.xlu0 %2894
  %2896 = vrot.lane.b32.xlu0 %v2885, 17
  %v2897 = vpop.permute.xlu0 %2896
  %2898 = vrot.lane.b32.xlu0 %v2889, 17
  %v2899 = vpop.permute.xlu0 %2898
  %2900 = vrot.lane.b32.xlu0 %v2886, 17
  %v2901 = vpop.permute.xlu0 %2900
  %2902 = vrot.lane.b32.xlu0 %v2890, 17
  %v2903 = vpop.permute.xlu0 %2902
  %2904 = vrot.lane.b32.xlu0 %v2887, 17
  %v2905 = vpop.permute.xlu0 %2904
  %2906 = vrot.lane.b32.xlu0 %v2891, 17
  %v2907 = vpop.permute.xlu0 %2906
  %v2908 = vsel %vm547, %v2901, %v2905
  %v2909 = vsel %vm547, %v2903, %v2907
  %v2910 = vsel %vm547, %v2897, %v2901
  %v2911 = vsel %vm547, %v2899, %v2903
  %v2912 = vsel %vm547, %v2893, %v2897
  %v2913 = vsel %vm547, %v2895, %v2899
  %v2914 = vsel %vm547, %v2905, %v2893
  %v2915 = vsel %vm547, %v2907, %v2895
  %v2916 = vmul.f32 %v2914, %v559
  %v2917 = vmul.f32 %v2912, %v563
  %v2918 = vmul.f32 %v2910, %v567
  %v2919 = vmul.f32 %v2908, %v571
  %v2920 = vmul.f32 %v2915, %v559
  %v2921 = vmul.f32 %v2913, %v563
  %v2922 = vmul.f32 %v2911, %v567
  %v2923 = vmul.f32 %v2909, %v571
  %2925 = vset.pattern.permute.xlu0 0
  %2926 = vperm.xlu0 %2925, %v2861
  %v2927 = vpop.permute.xlu0 %2926
  %2930 = vset.pattern.permute.xlu0 0
  %2931 = vperm.xlu0 %2930, %v2862
  %v2932 = vpop.permute.xlu0 %2931
  %v2934 = vmul.f32 %v2916, %v2927
  %v2935 = vmul.f32 %v2917, %v2927
  %v2936 = vmul.f32 %v2918, %v2927
  %v2937 = vmul.f32 %v2919, %v2927
  %v2938 = vmul.f32 %v2920, %v2932
  %v2939 = vmul.f32 %v2921, %v2932
  %v2940 = vmul.f32 %v2922, %v2932
  %v2941 = vmul.f32 %v2923, %v2932
  %2942 = vrot.lane.b32.xlu0 %v2884, 16
  %v2943 = vpop.permute.xlu0 %2942
  %2944 = vrot.lane.b32.xlu0 %v2888, 16
  %v2945 = vpop.permute.xlu0 %2944
  %2946 = vrot.lane.b32.xlu0 %v2885, 16
  %v2947 = vpop.permute.xlu0 %2946
  %2948 = vrot.lane.b32.xlu0 %v2889, 16
  %v2949 = vpop.permute.xlu0 %2948
  %2950 = vrot.lane.b32.xlu0 %v2886, 16
  %v2951 = vpop.permute.xlu0 %2950
  %2952 = vrot.lane.b32.xlu0 %v2890, 16
  %v2953 = vpop.permute.xlu0 %2952
  %2954 = vrot.lane.b32.xlu0 %v2887, 16
  %v2955 = vpop.permute.xlu0 %2954
  %2956 = vrot.lane.b32.xlu0 %v2891, 16
  %v2957 = vpop.permute.xlu0 %2956
  %v2958 = vsel %vm614, %v2951, %v2955
  %v2959 = vsel %vm614, %v2953, %v2957
  %v2960 = vsel %vm614, %v2947, %v2951
  %v2961 = vsel %vm614, %v2949, %v2953
  %v2962 = vsel %vm614, %v2943, %v2947
  %v2963 = vsel %vm614, %v2945, %v2949
  %v2964 = vsel %vm614, %v2955, %v2943
  %v2965 = vsel %vm614, %v2957, %v2945
  %v2966 = vmul.f32 %v2964, %v626
  %v2967 = vmul.f32 %v2962, %v630
  %v2968 = vmul.f32 %v2960, %v634
  %v2969 = vmul.f32 %v2958, %v638
  %v2970 = vmul.f32 %v2965, %v626
  %v2971 = vmul.f32 %v2963, %v630
  %v2972 = vmul.f32 %v2961, %v634
  %v2973 = vmul.f32 %v2959, %v638
  %2974 = vset.pattern.permute.xlu0 1
  %2975 = vperm.xlu0 %2974, %v2861
  %v2976 = vpop.permute.xlu0 %2975
  %2978 = vset.pattern.permute.xlu0 1
  %2979 = vperm.xlu0 %2978, %v2862
  %v2980 = vpop.permute.xlu0 %2979
  %v2982 = vmul.f32 %v2966, %v2976
  %v2983 = vmul.f32 %v2967, %v2976
  %v2984 = vmul.f32 %v2968, %v2976
  %v2985 = vmul.f32 %v2969, %v2976
  %v2986 = vmul.f32 %v2970, %v2980
  %v2987 = vmul.f32 %v2971, %v2980
  %v2988 = vmul.f32 %v2972, %v2980
  %v2989 = vmul.f32 %v2973, %v2980
  %v2990 = vadd.f32 %v2934, %v2982
  %v2991 = vadd.f32 %v2935, %v2983
  %v2992 = vadd.f32 %v2936, %v2984
  %v2993 = vadd.f32 %v2937, %v2985
  %v2994 = vadd.f32 %v2938, %v2986
  %v2995 = vadd.f32 %v2939, %v2987
  %v2996 = vadd.f32 %v2940, %v2988
  %v2997 = vadd.f32 %v2941, %v2989
  %2998 = vrot.lane.b32.xlu0 %v2884, 15
  %v2999 = vpop.permute.xlu0 %2998
  %3000 = vrot.lane.b32.xlu0 %v2888, 15
  %v3001 = vpop.permute.xlu0 %3000
  %3002 = vrot.lane.b32.xlu0 %v2885, 15
  %v3003 = vpop.permute.xlu0 %3002
  %3004 = vrot.lane.b32.xlu0 %v2889, 15
  %v3005 = vpop.permute.xlu0 %3004
  %3006 = vrot.lane.b32.xlu0 %v2886, 15
  %v3007 = vpop.permute.xlu0 %3006
  %3008 = vrot.lane.b32.xlu0 %v2890, 15
  %v3009 = vpop.permute.xlu0 %3008
  %3010 = vrot.lane.b32.xlu0 %v2887, 15
  %v3011 = vpop.permute.xlu0 %3010
  %3012 = vrot.lane.b32.xlu0 %v2891, 15
  %v3013 = vpop.permute.xlu0 %3012
  %v3014 = vsel %vm687, %v3007, %v3011
  %v3015 = vsel %vm687, %v3009, %v3013
  %v3016 = vsel %vm687, %v3003, %v3007
  %v3017 = vsel %vm687, %v3005, %v3009
  %v3018 = vsel %vm687, %v2999, %v3003
  %v3019 = vsel %vm687, %v3001, %v3005
  %v3020 = vsel %vm687, %v3011, %v2999
  %v3021 = vsel %vm687, %v3013, %v3001
  %v3022 = vmul.f32 %v3020, %v699
  %v3023 = vmul.f32 %v3018, %v703
  %v3024 = vmul.f32 %v3016, %v707
  %v3025 = vmul.f32 %v3014, %v711
  %v3026 = vmul.f32 %v3021, %v699
  %v3027 = vmul.f32 %v3019, %v703
  %v3028 = vmul.f32 %v3017, %v707
  %v3029 = vmul.f32 %v3015, %v711
  %3030 = vset.pattern.permute.xlu0 2
  %3031 = vperm.xlu0 %3030, %v2861
  %v3032 = vpop.permute.xlu0 %3031
  %3034 = vset.pattern.permute.xlu0 2
  %3035 = vperm.xlu0 %3034, %v2862
  %v3036 = vpop.permute.xlu0 %3035
  %v3038 = vmul.f32 %v3022, %v3032
  %v3039 = vmul.f32 %v3023, %v3032
  %v3040 = vmul.f32 %v3024, %v3032
  %v3041 = vmul.f32 %v3025, %v3032
  %v3042 = vmul.f32 %v3026, %v3036
  %v3043 = vmul.f32 %v3027, %v3036
  %v3044 = vmul.f32 %v3028, %v3036
  %v3045 = vmul.f32 %v3029, %v3036
  %v3046 = vadd.f32 %v2990, %v3038
  %v3047 = vadd.f32 %v2991, %v3039
  %v3048 = vadd.f32 %v2992, %v3040
  %v3049 = vadd.f32 %v2993, %v3041
  %v3050 = vadd.f32 %v2994, %v3042
  %v3051 = vadd.f32 %v2995, %v3043
  %v3052 = vadd.f32 %v2996, %v3044
  %v3053 = vadd.f32 %v2997, %v3045
  %3054 = vrot.lane.b32.xlu0 %v2884, 1
  %v3055 = vpop.permute.xlu0 %3054
  %3056 = vrot.lane.b32.xlu0 %v2888, 1
  %v3057 = vpop.permute.xlu0 %3056
  %3058 = vrot.lane.b32.xlu0 %v2885, 1
  %v3059 = vpop.permute.xlu0 %3058
  %3060 = vrot.lane.b32.xlu0 %v2889, 1
  %v3061 = vpop.permute.xlu0 %3060
  %3062 = vrot.lane.b32.xlu0 %v2886, 1
  %v3063 = vpop.permute.xlu0 %3062
  %3064 = vrot.lane.b32.xlu0 %v2890, 1
  %v3065 = vpop.permute.xlu0 %3064
  %3066 = vrot.lane.b32.xlu0 %v2887, 1
  %v3067 = vpop.permute.xlu0 %3066
  %3068 = vrot.lane.b32.xlu0 %v2891, 1
  %v3069 = vpop.permute.xlu0 %3068
  %v3070 = vsel %vm760, %v3063, %v3067
  %v3071 = vsel %vm760, %v3065, %v3069
  %v3072 = vsel %vm760, %v3059, %v3063
  %v3073 = vsel %vm760, %v3061, %v3065
  %v3074 = vsel %vm760, %v3055, %v3059
  %v3075 = vsel %vm760, %v3057, %v3061
  %v3076 = vsel %vm760, %v3067, %v3055
  %v3077 = vsel %vm760, %v3069, %v3057
  %v3078 = vmul.f32 %v3076, %v772
  %v3079 = vmul.f32 %v3074, %v776
  %v3080 = vmul.f32 %v3072, %v780
  %v3081 = vmul.f32 %v3070, %v784
  %v3082 = vmul.f32 %v3077, %v772
  %v3083 = vmul.f32 %v3075, %v776
  %v3084 = vmul.f32 %v3073, %v780
  %v3085 = vmul.f32 %v3071, %v784
  %3086 = vset.pattern.permute.xlu0 3
  %3087 = vperm.xlu0 %3086, %v2861
  %v3088 = vpop.permute.xlu0 %3087
  %3090 = vset.pattern.permute.xlu0 3
  %3091 = vperm.xlu0 %3090, %v2862
  %v3092 = vpop.permute.xlu0 %3091
  %v3094 = vmul.f32 %v3078, %v3088
  %v3095 = vmul.f32 %v3079, %v3088
  %v3096 = vmul.f32 %v3080, %v3088
  %v3097 = vmul.f32 %v3081, %v3088
  %v3098 = vmul.f32 %v3082, %v3092
  %v3099 = vmul.f32 %v3083, %v3092
  %v3100 = vmul.f32 %v3084, %v3092
  %v3101 = vmul.f32 %v3085, %v3092
  %v3102 = vadd.f32 %v3046, %v3094
  %v3103 = vadd.f32 %v3047, %v3095
  %v3104 = vadd.f32 %v3048, %v3096
  %v3105 = vadd.f32 %v3049, %v3097
  %v3106 = vadd.f32 %v3050, %v3098
  %v3107 = vadd.f32 %v3051, %v3099
  %v3108 = vadd.f32 %v3052, %v3100
  %v3109 = vadd.f32 %v3053, %v3101
  %3110 = vset.pattern.permute.xlu0 4
  %3111 = vperm.xlu0 %3110, %v2861
  %v3112 = vpop.permute.xlu0 %3111
  %3114 = vset.pattern.permute.xlu0 4
  %3115 = vperm.xlu0 %3114, %v2862
  %v3116 = vpop.permute.xlu0 %3115
  %v3118 = vmul.f32 %v2884, %v3112
  %v3119 = vmul.f32 %v2885, %v3112
  %v3120 = vmul.f32 %v2886, %v3112
  %v3121 = vmul.f32 %v2887, %v3112
  %v3122 = vmul.f32 %v2888, %v3116
  %v3123 = vmul.f32 %v2889, %v3116
  %v3124 = vmul.f32 %v2890, %v3116
  %v3125 = vmul.f32 %v2891, %v3116
  %v3126 = vadd.f32 %v3102, %v3118
  %v3127 = vadd.f32 %v3103, %v3119
  %v3128 = vadd.f32 %v3104, %v3120
  %v3129 = vadd.f32 %v3105, %v3121
  %v3130 = vadd.f32 %v3106, %v3122
  %v3131 = vadd.f32 %v3107, %v3123
  %v3132 = vadd.f32 %v3108, %v3124
  %v3133 = vadd.f32 %v3109, %v3125
  %3134 = vrot.lane.b32.xlu0 %v2884, 127
  %v3135 = vpop.permute.xlu0 %3134
  %3136 = vrot.lane.b32.xlu0 %v2888, 127
  %v3137 = vpop.permute.xlu0 %3136
  %3138 = vrot.lane.b32.xlu0 %v2885, 127
  %v3139 = vpop.permute.xlu0 %3138
  %3140 = vrot.lane.b32.xlu0 %v2889, 127
  %v3141 = vpop.permute.xlu0 %3140
  %3142 = vrot.lane.b32.xlu0 %v2886, 127
  %v3143 = vpop.permute.xlu0 %3142
  %3144 = vrot.lane.b32.xlu0 %v2890, 127
  %v3145 = vpop.permute.xlu0 %3144
  %3146 = vrot.lane.b32.xlu0 %v2887, 127
  %v3147 = vpop.permute.xlu0 %3146
  %3148 = vrot.lane.b32.xlu0 %v2891, 127
  %v3149 = vpop.permute.xlu0 %3148
  %v3150 = vsel %vm857, %v3143, %v3147
  %v3151 = vsel %vm857, %v3145, %v3149
  %v3152 = vsel %vm857, %v3139, %v3143
  %v3153 = vsel %vm857, %v3141, %v3145
  %v3154 = vsel %vm857, %v3135, %v3139
  %v3155 = vsel %vm857, %v3137, %v3141
  %v3156 = vsel %vm857, %v3147, %v3135
  %v3157 = vsel %vm857, %v3149, %v3137
  %v3158 = vmul.f32 %v3154, %v869
  %v3159 = vmul.f32 %v3152, %v873
  %v3160 = vmul.f32 %v3150, %v877
  %v3161 = vmul.f32 %v3156, %v881
  %v3162 = vmul.f32 %v3155, %v869
  %v3163 = vmul.f32 %v3153, %v873
  %v3164 = vmul.f32 %v3151, %v877
  %v3165 = vmul.f32 %v3157, %v881
  %3166 = vset.pattern.permute.xlu0 5
  %3167 = vperm.xlu0 %3166, %v2861
  %v3168 = vpop.permute.xlu0 %3167
  %3170 = vset.pattern.permute.xlu0 5
  %3171 = vperm.xlu0 %3170, %v2862
  %v3172 = vpop.permute.xlu0 %3171
  %v3174 = vmul.f32 %v3158, %v3168
  %v3175 = vmul.f32 %v3159, %v3168
  %v3176 = vmul.f32 %v3160, %v3168
  %v3177 = vmul.f32 %v3161, %v3168
  %v3178 = vmul.f32 %v3162, %v3172
  %v3179 = vmul.f32 %v3163, %v3172
  %v3180 = vmul.f32 %v3164, %v3172
  %v3181 = vmul.f32 %v3165, %v3172
  %v3182 = vadd.f32 %v3126, %v3174
  %v3183 = vadd.f32 %v3127, %v3175
  %v3184 = vadd.f32 %v3128, %v3176
  %v3185 = vadd.f32 %v3129, %v3177
  %v3186 = vadd.f32 %v3130, %v3178
  %v3187 = vadd.f32 %v3131, %v3179
  %v3188 = vadd.f32 %v3132, %v3180
  %v3189 = vadd.f32 %v3133, %v3181
  %3190 = vrot.lane.b32.xlu0 %v2884, 113
  %v3191 = vpop.permute.xlu0 %3190
  %3192 = vrot.lane.b32.xlu0 %v2888, 113
  %v3193 = vpop.permute.xlu0 %3192
  %3194 = vrot.lane.b32.xlu0 %v2885, 113
  %v3195 = vpop.permute.xlu0 %3194
  %3196 = vrot.lane.b32.xlu0 %v2889, 113
  %v3197 = vpop.permute.xlu0 %3196
  %3198 = vrot.lane.b32.xlu0 %v2886, 113
  %v3199 = vpop.permute.xlu0 %3198
  %3200 = vrot.lane.b32.xlu0 %v2890, 113
  %v3201 = vpop.permute.xlu0 %3200
  %3202 = vrot.lane.b32.xlu0 %v2887, 113
  %v3203 = vpop.permute.xlu0 %3202
  %3204 = vrot.lane.b32.xlu0 %v2891, 113
  %v3205 = vpop.permute.xlu0 %3204
  %v3206 = vsel %vm930, %v3199, %v3203
  %v3207 = vsel %vm930, %v3201, %v3205
  %v3208 = vsel %vm930, %v3195, %v3199
  %v3209 = vsel %vm930, %v3197, %v3201
  %v3210 = vsel %vm930, %v3191, %v3195
  %v3211 = vsel %vm930, %v3193, %v3197
  %v3212 = vsel %vm930, %v3203, %v3191
  %v3213 = vsel %vm930, %v3205, %v3193
  %v3214 = vmul.f32 %v3210, %v942
  %v3215 = vmul.f32 %v3208, %v946
  %v3216 = vmul.f32 %v3206, %v950
  %v3217 = vmul.f32 %v3212, %v954
  %v3218 = vmul.f32 %v3211, %v942
  %v3219 = vmul.f32 %v3209, %v946
  %v3220 = vmul.f32 %v3207, %v950
  %v3221 = vmul.f32 %v3213, %v954
  %3222 = vset.pattern.permute.xlu0 6
  %3223 = vperm.xlu0 %3222, %v2861
  %v3224 = vpop.permute.xlu0 %3223
  %3226 = vset.pattern.permute.xlu0 6
  %3227 = vperm.xlu0 %3226, %v2862
  %v3228 = vpop.permute.xlu0 %3227
  %v3230 = vmul.f32 %v3214, %v3224
  %v3231 = vmul.f32 %v3215, %v3224
  %v3232 = vmul.f32 %v3216, %v3224
  %v3233 = vmul.f32 %v3217, %v3224
  %v3234 = vmul.f32 %v3218, %v3228
  %v3235 = vmul.f32 %v3219, %v3228
  %v3236 = vmul.f32 %v3220, %v3228
  %v3237 = vmul.f32 %v3221, %v3228
  %v3238 = vadd.f32 %v3182, %v3230
  %v3239 = vadd.f32 %v3183, %v3231
  %v3240 = vadd.f32 %v3184, %v3232
  %v3241 = vadd.f32 %v3185, %v3233
  %v3242 = vadd.f32 %v3186, %v3234
  %v3243 = vadd.f32 %v3187, %v3235
  %v3244 = vadd.f32 %v3188, %v3236
  %v3245 = vadd.f32 %v3189, %v3237
  %3246 = vrot.lane.b32.xlu0 %v2884, 112
  %v3247 = vpop.permute.xlu0 %3246
  %3248 = vrot.lane.b32.xlu0 %v2888, 112
  %v3249 = vpop.permute.xlu0 %3248
  %3250 = vrot.lane.b32.xlu0 %v2885, 112
  %v3251 = vpop.permute.xlu0 %3250
  %3252 = vrot.lane.b32.xlu0 %v2889, 112
  %v3253 = vpop.permute.xlu0 %3252
  %3254 = vrot.lane.b32.xlu0 %v2886, 112
  %v3255 = vpop.permute.xlu0 %3254
  %3256 = vrot.lane.b32.xlu0 %v2890, 112
  %v3257 = vpop.permute.xlu0 %3256
  %3258 = vrot.lane.b32.xlu0 %v2887, 112
  %v3259 = vpop.permute.xlu0 %3258
  %3260 = vrot.lane.b32.xlu0 %v2891, 112
  %v3261 = vpop.permute.xlu0 %3260
  %v3262 = vsel %vm1003, %v3255, %v3259
  %v3263 = vsel %vm1003, %v3257, %v3261
  %v3264 = vsel %vm1003, %v3251, %v3255
  %v3265 = vsel %vm1003, %v3253, %v3257
  %v3266 = vsel %vm1003, %v3247, %v3251
  %v3267 = vsel %vm1003, %v3249, %v3253
  %v3268 = vsel %vm1003, %v3259, %v3247
  %v3269 = vsel %vm1003, %v3261, %v3249
  %v3270 = vmul.f32 %v3266, %v1015
  %v3271 = vmul.f32 %v3264, %v1019
  %v3272 = vmul.f32 %v3262, %v1023
  %v3273 = vmul.f32 %v3268, %v1027
  %v3274 = vmul.f32 %v3267, %v1015
  %v3275 = vmul.f32 %v3265, %v1019
  %v3276 = vmul.f32 %v3263, %v1023
  %v3277 = vmul.f32 %v3269, %v1027
  %3278 = vset.pattern.permute.xlu0 7
  %3279 = vperm.xlu0 %3278, %v2861
  %v3280 = vpop.permute.xlu0 %3279
  %3282 = vset.pattern.permute.xlu0 7
  %3283 = vperm.xlu0 %3282, %v2862
  %v3284 = vpop.permute.xlu0 %3283
  %v3286 = vmul.f32 %v3270, %v3280
  %v3287 = vmul.f32 %v3271, %v3280
  %v3288 = vmul.f32 %v3272, %v3280
  %v3289 = vmul.f32 %v3273, %v3280
  %v3290 = vmul.f32 %v3274, %v3284
  %v3291 = vmul.f32 %v3275, %v3284
  %v3292 = vmul.f32 %v3276, %v3284
  %v3293 = vmul.f32 %v3277, %v3284
  %v3294 = vadd.f32 %v3238, %v3286
  %v3295 = vadd.f32 %v3239, %v3287
  %v3296 = vadd.f32 %v3240, %v3288
  %v3297 = vadd.f32 %v3241, %v3289
  %v3298 = vadd.f32 %v3242, %v3290
  %v3299 = vadd.f32 %v3243, %v3291
  %v3300 = vadd.f32 %v3244, %v3292
  %v3301 = vadd.f32 %v3245, %v3293
  %3302 = vrot.lane.b32.xlu0 %v2884, 111
  %v3303 = vpop.permute.xlu0 %3302
  %3304 = vrot.lane.b32.xlu0 %v2888, 111
  %v3305 = vpop.permute.xlu0 %3304
  %3306 = vrot.lane.b32.xlu0 %v2885, 111
  %v3307 = vpop.permute.xlu0 %3306
  %3308 = vrot.lane.b32.xlu0 %v2889, 111
  %v3309 = vpop.permute.xlu0 %3308
  %3310 = vrot.lane.b32.xlu0 %v2886, 111
  %v3311 = vpop.permute.xlu0 %3310
  %3312 = vrot.lane.b32.xlu0 %v2890, 111
  %v3313 = vpop.permute.xlu0 %3312
  %3314 = vrot.lane.b32.xlu0 %v2887, 111
  %v3315 = vpop.permute.xlu0 %3314
  %3316 = vrot.lane.b32.xlu0 %v2891, 111
  %v3317 = vpop.permute.xlu0 %3316
  %v3318 = vsel %vm1076, %v3311, %v3315
  %v3319 = vsel %vm1076, %v3313, %v3317
  %v3320 = vsel %vm1076, %v3307, %v3311
  %v3321 = vsel %vm1076, %v3309, %v3313
  %v3322 = vsel %vm1076, %v3303, %v3307
  %v3323 = vsel %vm1076, %v3305, %v3309
  %v3324 = vsel %vm1076, %v3315, %v3303
  %v3325 = vsel %vm1076, %v3317, %v3305
  %v3326 = vmul.f32 %v3322, %v1088
  %v3327 = vmul.f32 %v3320, %v1092
  %v3328 = vmul.f32 %v3318, %v1096
  %v3329 = vmul.f32 %v3324, %v1100
  %v3330 = vmul.f32 %v3323, %v1088
  %v3331 = vmul.f32 %v3321, %v1092
  %v3332 = vmul.f32 %v3319, %v1096
  %v3333 = vmul.f32 %v3325, %v1100
  %3334 = vset.pattern.permute.xlu0 8
  %3335 = vperm.xlu0 %3334, %v2861
  %v3336 = vpop.permute.xlu0 %3335
  %3338 = vset.pattern.permute.xlu0 8
  %3339 = vperm.xlu0 %3338, %v2862
  %v3340 = vpop.permute.xlu0 %3339
  %v3342 = vmul.f32 %v3326, %v3336
  %v3343 = vmul.f32 %v3327, %v3336
  %v3344 = vmul.f32 %v3328, %v3336
  %v3345 = vmul.f32 %v3329, %v3336
  %v3346 = vmul.f32 %v3330, %v3340
  %v3347 = vmul.f32 %v3331, %v3340
  %v3348 = vmul.f32 %v3332, %v3340
  %v3349 = vmul.f32 %v3333, %v3340
  %v3350 = vadd.f32 %v3294, %v3342
  %v3351 = vadd.f32 %v3295, %v3343
  %v3352 = vadd.f32 %v3296, %v3344
  %v3353 = vadd.f32 %v3297, %v3345
  %v3354 = vadd.f32 %v3298, %v3346
  %v3355 = vadd.f32 %v3299, %v3347
  %v3356 = vadd.f32 %v3300, %v3348
  %v3357 = vadd.f32 %v3301, %v3349
  %v3359 = vsel %vm90, %v2864, 0
  %v3362 = vsel %vm90, %v2865, 0
  %3364 = vmatprep.subr.mxu0 %v3351
  %3365 = vmatpush1.msra.mxu0 %v3350
  %3366 = vmatprep.subr.mxu0 %v3355
  %3367 = vmatpush1.msra.mxu0 %v3354
  %3368 = vmatprep.subr.mxu0 0.0
  %3369 = vmatpush1.msra.mxu0 0.0
  %3370 = vmatprep.subr.mxu0 0.0
  %3371 = vmatpush1.msra.mxu0 0.0
  %3372 = vmatprep.subr.mxu0 0.0
  %3373 = vmatpush1.msra.mxu0 0.0
  %3374 = vmatprep.subr.mxu0 0.0
  %3375 = vmatpush1.msra.mxu0 0.0
  %3376 = vmatprep.subr.mxu0 0.0
  %3377 = vmatpush1.msra.mxu0 0.0
  %3378 = vmatprep.subr.mxu0 0.0
  %3379 = vmatpush1.msra.mxu0 0.0
  %3380 = vmatprep.subr.mxu0 0.0
  %3381 = vmatpush1.msra.mxu0 0.0
  %3382 = vmatprep.subr.mxu0 0.0
  %3383 = vmatpush1.msra.mxu0 0.0
  %3384 = vmatprep.subr.mxu0 0.0
  %3385 = vmatpush1.msra.mxu0 0.0
  %3386 = vmatprep.subr.mxu0 0.0
  %3387 = vmatpush1.msra.mxu0 0.0
  %3388 = vmatprep.subr.mxu0 0.0
  %3389 = vmatpush1.msra.mxu0 0.0
  %3390 = vmatprep.subr.mxu0 0.0
  %3391 = vmatpush1.msra.mxu0 0.0
  %3392 = vmatprep.subr.mxu0 0.0
  %3393 = vmatpush1.msra.mxu0 0.0
  %3394 = vmatprep.subr.mxu0 0.0
  %3395 = vmatpush1.msra.mxu0 0.0
  %3396 = vmatprep.subr.mxu0 0.0
  %3397 = vmatpush1.msra.mxu0 0.0
  %3398 = vmatprep.subr.mxu0 0.0
  %3399 = vmatpush1.msra.mxu0 0.0
  %3400 = vmatprep.subr.mxu0 0.0
  %3401 = vmatpush1.msra.mxu0 0.0
  %3402 = vmatprep.subr.mxu0 0.0
  %3403 = vmatpush1.msra.mxu0 0.0
  %3404 = vmatprep.subr.mxu0 0.0
  %3405 = vmatpush1.msra.mxu0 0.0
  %3406 = vmatprep.subr.mxu0 0.0
  %3407 = vmatpush1.msra.mxu0 0.0
  %3408 = vmatprep.subr.mxu0 0.0
  %3409 = vmatpush1.msra.mxu0 0.0
  %3410 = vmatprep.subr.mxu0 0.0
  %3411 = vmatpush1.msra.mxu0 0.0
  %3412 = vmatprep.subr.mxu0 0.0
  %3413 = vmatpush1.msra.mxu0 0.0
  %3414 = vmatprep.subr.mxu0 0.0
  %3415 = vmatpush1.msra.mxu0 0.0
  %3416 = vmatprep.subr.mxu0 0.0
  %3417 = vmatpush1.msra.mxu0 0.0
  %3418 = vmatprep.subr.mxu0 0.0
  %3419 = vmatpush1.msra.mxu0 0.0
  %3420 = vmatprep.subr.mxu0 0.0
  %3421 = vmatpush1.msra.mxu0 0.0
  %3422 = vmatprep.subr.mxu0 0.0
  %3423 = vmatpush1.msra.mxu0 0.0
  %3424 = vmatprep.subr.mxu0 0.0
  %3425 = vmatpush1.msra.mxu0 0.0
  %3426 = vmatprep.subr.mxu0 0.0
  %3427 = vmatpush1.msra.mxu0 0.0
  %3428 = vmatprep.mubr.f32.mxu0 0.0
  %3429 = vmatmul.mubr.f32.gmra.mrb[0].mxu0 %v3359
  %v3430 = vpop.f32.mrb[0].mxu0
  %v3431 = vadd.f32 0.0, %v3430
  %v3432 = vpop.f32.mrb[0].mxu0
  %v3433 = vadd.f32 0.0, %v3432
  %3434 = vmatprep.mubr.f32.mxu0 0.0
  %3435 = vmatmul.mubr.f32.gmra.mrb[0].mxu0 %v3362
  %v3436 = vpop.f32.mrb[0].mxu0
  %v3437 = vadd.f32 0.0, %v3436
  %v3438 = vpop.f32.mrb[0].mxu0
  %v3439 = vadd.f32 0.0, %v3438
  %3440 = vdwg.mxu0
  %3441 = vmatprep.subr.mxu0 %v3353
  %3442 = vmatpush1.msra.mxu0 %v3352
  %3443 = vmatprep.subr.mxu0 %v3357
  %3444 = vmatpush1.msra.mxu0 %v3356
  %3445 = vmatprep.subr.mxu0 0.0
  %3446 = vmatpush1.msra.mxu0 0.0
  %3447 = vmatprep.subr.mxu0 0.0
  %3448 = vmatpush1.msra.mxu0 0.0
  %3449 = vmatprep.subr.mxu0 0.0
  %3450 = vmatpush1.msra.mxu0 0.0
  %3451 = vmatprep.subr.mxu0 0.0
  %3452 = vmatpush1.msra.mxu0 0.0
  %3453 = vmatprep.subr.mxu0 0.0
  %3454 = vmatpush1.msra.mxu0 0.0
  %3455 = vmatprep.subr.mxu0 0.0
  %3456 = vmatpush1.msra.mxu0 0.0
  %3457 = vmatprep.subr.mxu0 0.0
  %3458 = vmatpush1.msra.mxu0 0.0
  %3459 = vmatprep.subr.mxu0 0.0
  %3460 = vmatpush1.msra.mxu0 0.0
  %3461 = vmatprep.subr.mxu0 0.0
  %3462 = vmatpush1.msra.mxu0 0.0
  %3463 = vmatprep.subr.mxu0 0.0
  %3464 = vmatpush1.msra.mxu0 0.0
  %3465 = vmatprep.subr.mxu0 0.0
  %3466 = vmatpush1.msra.mxu0 0.0
  %3467 = vmatprep.subr.mxu0 0.0
  %3468 = vmatpush1.msra.mxu0 0.0
  %3469 = vmatprep.subr.mxu0 0.0
  %3470 = vmatpush1.msra.mxu0 0.0
  %3471 = vmatprep.subr.mxu0 0.0
  %3472 = vmatpush1.msra.mxu0 0.0
  %3473 = vmatprep.subr.mxu0 0.0
  %3474 = vmatpush1.msra.mxu0 0.0
  %3475 = vmatprep.subr.mxu0 0.0
  %3476 = vmatpush1.msra.mxu0 0.0
  %3477 = vmatprep.subr.mxu0 0.0
  %3478 = vmatpush1.msra.mxu0 0.0
  %3479 = vmatprep.subr.mxu0 0.0
  %3480 = vmatpush1.msra.mxu0 0.0
  %3481 = vmatprep.subr.mxu0 0.0
  %3482 = vmatpush1.msra.mxu0 0.0
  %3483 = vmatprep.subr.mxu0 0.0
  %3484 = vmatpush1.msra.mxu0 0.0
  %3485 = vmatprep.subr.mxu0 0.0
  %3486 = vmatpush1.msra.mxu0 0.0
  %3487 = vmatprep.subr.mxu0 0.0
  %3488 = vmatpush1.msra.mxu0 0.0
  %3489 = vmatprep.subr.mxu0 0.0
  %3490 = vmatpush1.msra.mxu0 0.0
  %3491 = vmatprep.subr.mxu0 0.0
  %3492 = vmatpush1.msra.mxu0 0.0
  %3493 = vmatprep.subr.mxu0 0.0
  %3494 = vmatpush1.msra.mxu0 0.0
  %3495 = vmatprep.subr.mxu0 0.0
  %3496 = vmatpush1.msra.mxu0 0.0
  %3497 = vmatprep.subr.mxu0 0.0
  %3498 = vmatpush1.msra.mxu0 0.0
  %3499 = vmatprep.subr.mxu0 0.0
  %3500 = vmatpush1.msra.mxu0 0.0
  %3501 = vmatprep.subr.mxu0 0.0
  %3502 = vmatpush1.msra.mxu0 0.0
  %3503 = vmatprep.subr.mxu0 0.0
  %3504 = vmatpush1.msra.mxu0 0.0
  %3505 = vmatprep.mubr.f32.mxu0 0.0
  %3506 = vmatmul.mubr.f32.gmra.mrb[0].mxu0 %v3359
  %v3507 = vpop.f32.mrb[0].mxu0
  %v3508 = vadd.f32 0.0, %v3507
  %v3509 = vpop.f32.mrb[0].mxu0
  %v3510 = vadd.f32 0.0, %v3509
  %3511 = vmatprep.mubr.f32.mxu0 0.0
  %3512 = vmatmul.mubr.f32.gmra.mrb[0].mxu0 %v3362
  %v3513 = vpop.f32.mrb[0].mxu0
  %v3514 = vadd.f32 0.0, %v3513
  %v3515 = vpop.f32.mrb[0].mxu0
  %v3516 = vadd.f32 0.0, %v3515
  %3517 = vdwg.mxu0
  %3519 = vset.pattern.permute.xlu0 0
  %3520 = vperm.xlu0 %3519, %v2867
  %v3521 = vpop.permute.xlu0 %3520
  %3524 = vset.pattern.permute.xlu0 0
  %3525 = vperm.xlu0 %3524, %v2868
  %v3526 = vpop.permute.xlu0 %3525
  %v3528 = vmul.f32 %v3431, %v3521
  %v3529 = vmul.f32 %v3433, %v3521
  %v3530 = vmul.f32 %v3508, %v3521
  %v3531 = vmul.f32 %v3510, %v3521
  %v3532 = vmul.f32 %v3437, %v3526
  %v3533 = vmul.f32 %v3439, %v3526
  %v3534 = vmul.f32 %v3514, %v3526
  %v3535 = vmul.f32 %v3516, %v3526
  %3537 = vset.pattern.permute.xlu0 0
  %3538 = vperm.xlu0 %3537, %v2870
  %v3539 = vpop.permute.xlu0 %3538
  %3542 = vset.pattern.permute.xlu0 0
  %3543 = vperm.xlu0 %3542, %v2871
  %v3544 = vpop.permute.xlu0 %3543
  %v3546 = vadd.f32 %v3528, %v3539
  %v3547 = vadd.f32 %v3529, %v3539
  %v3548 = vadd.f32 %v3530, %v3539
  %v3549 = vadd.f32 %v3531, %v3539
  %v3550 = vadd.f32 %v3532, %v3544
  %v3551 = vadd.f32 %v3533, %v3544
  %v3552 = vadd.f32 %v3534, %v3544
  %v3553 = vadd.f32 %v3535, %v3544
  %v3554 = vmax.f32 %v3546, 0.0
  %v3555 = vmax.f32 %v3547, 0.0
  %v3556 = vmax.f32 %v3548, 0.0
  %v3557 = vmax.f32 %v3549, 0.0
  %v3558 = vmax.f32 %v3550, 0.0
  %v3559 = vmax.f32 %v3551, 0.0
  %v3560 = vmax.f32 %v3552, 0.0
  %v3561 = vmax.f32 %v3553, 0.0
  %3562 = vrot.lane.b32.xlu0 %v3554, 17
  %v3563 = vpop.permute.xlu0 %3562
  %3564 = vrot.lane.b32.xlu0 %v3558, 17
  %v3565 = vpop.permute.xlu0 %3564
  %3566 = vrot.lane.b32.xlu0 %v3555, 17
  %v3567 = vpop.permute.xlu0 %3566
  %3568 = vrot.lane.b32.xlu0 %v3559, 17
  %v3569 = vpop.permute.xlu0 %3568
  %3570 = vrot.lane.b32.xlu0 %v3556, 17
  %v3571 = vpop.permute.xlu0 %3570
  %3572 = vrot.lane.b32.xlu0 %v3560, 17
  %v3573 = vpop.permute.xlu0 %3572
  %3574 = vrot.lane.b32.xlu0 %v3557, 17
  %v3575 = vpop.permute.xlu0 %3574
  %3576 = vrot.lane.b32.xlu0 %v3561, 17
  %v3577 = vpop.permute.xlu0 %3576
  %v3578 = vsel %vm547, %v3571, %v3575
  %v3579 = vsel %vm547, %v3573, %v3577
  %v3580 = vsel %vm547, %v3567, %v3571
  %v3581 = vsel %vm547, %v3569, %v3573
  %v3582 = vsel %vm547, %v3563, %v3567
  %v3583 = vsel %vm547, %v3565, %v3569
  %v3584 = vsel %vm547, %v3575, %v3563
  %v3585 = vsel %vm547, %v3577, %v3565
  %v3586 = vmul.f32 %v3584, %v559
  %v3587 = vmul.f32 %v3582, %v563
  %v3588 = vmul.f32 %v3580, %v567
  %v3589 = vmul.f32 %v3578, %v571
  %v3590 = vmul.f32 %v3585, %v559
  %v3591 = vmul.f32 %v3583, %v563
  %v3592 = vmul.f32 %v3581, %v567
  %v3593 = vmul.f32 %v3579, %v571
  %3595 = vset.pattern.permute.xlu0 0
  %3596 = vperm.xlu0 %3595, %v2873
  %v3597 = vpop.permute.xlu0 %3596
  %3600 = vset.pattern.permute.xlu0 0
  %3601 = vperm.xlu0 %3600, %v2874
  %v3602 = vpop.permute.xlu0 %3601
  %v3604 = vmul.f32 %v3586, %v3597
  %v3605 = vmul.f32 %v3587, %v3597
  %v3606 = vmul.f32 %v3588, %v3597
  %v3607 = vmul.f32 %v3589, %v3597
  %v3608 = vmul.f32 %v3590, %v3602
  %v3609 = vmul.f32 %v3591, %v3602
  %v3610 = vmul.f32 %v3592, %v3602
  %v3611 = vmul.f32 %v3593, %v3602
  %3612 = vrot.lane.b32.xlu0 %v3554, 16
  %v3613 = vpop.permute.xlu0 %3612
  %3614 = vrot.lane.b32.xlu0 %v3558, 16
  %v3615 = vpop.permute.xlu0 %3614
  %3616 = vrot.lane.b32.xlu0 %v3555, 16
  %v3617 = vpop.permute.xlu0 %3616
  %3618 = vrot.lane.b32.xlu0 %v3559, 16
  %v3619 = vpop.permute.xlu0 %3618
  %3620 = vrot.lane.b32.xlu0 %v3556, 16
  %v3621 = vpop.permute.xlu0 %3620
  %3622 = vrot.lane.b32.xlu0 %v3560, 16
  %v3623 = vpop.permute.xlu0 %3622
  %3624 = vrot.lane.b32.xlu0 %v3557, 16
  %v3625 = vpop.permute.xlu0 %3624
  %3626 = vrot.lane.b32.xlu0 %v3561, 16
  %v3627 = vpop.permute.xlu0 %3626
  %v3628 = vsel %vm614, %v3621, %v3625
  %v3629 = vsel %vm614, %v3623, %v3627
  %v3630 = vsel %vm614, %v3617, %v3621
  %v3631 = vsel %vm614, %v3619, %v3623
  %v3632 = vsel %vm614, %v3613, %v3617
  %v3633 = vsel %vm614, %v3615, %v3619
  %v3634 = vsel %vm614, %v3625, %v3613
  %v3635 = vsel %vm614, %v3627, %v3615
  %v3636 = vmul.f32 %v3634, %v626
  %v3637 = vmul.f32 %v3632, %v630
  %v3638 = vmul.f32 %v3630, %v634
  %v3639 = vmul.f32 %v3628, %v638
  %v3640 = vmul.f32 %v3635, %v626
  %v3641 = vmul.f32 %v3633, %v630
  %v3642 = vmul.f32 %v3631, %v634
  %v3643 = vmul.f32 %v3629, %v638
  %3644 = vset.pattern.permute.xlu0 1
  %3645 = vperm.xlu0 %3644, %v2873
  %v3646 = vpop.permute.xlu0 %3645
  %3648 = vset.pattern.permute.xlu0 1
  %3649 = vperm.xlu0 %3648, %v2874
  %v3650 = vpop.permute.xlu0 %3649
  %v3652 = vmul.f32 %v3636, %v3646
  %v3653 = vmul.f32 %v3637, %v3646
  %v3654 = vmul.f32 %v3638, %v3646
  %v3655 = vmul.f32 %v3639, %v3646
  %v3656 = vmul.f32 %v3640, %v3650
  %v3657 = vmul.f32 %v3641, %v3650
  %v3658 = vmul.f32 %v3642, %v3650
  %v3659 = vmul.f32 %v3643, %v3650
  %v3660 = vadd.f32 %v3604, %v3652
  %v3661 = vadd.f32 %v3605, %v3653
  %v3662 = vadd.f32 %v3606, %v3654
  %v3663 = vadd.f32 %v3607, %v3655
  %v3664 = vadd.f32 %v3608, %v3656
  %v3665 = vadd.f32 %v3609, %v3657
  %v3666 = vadd.f32 %v3610, %v3658
  %v3667 = vadd.f32 %v3611, %v3659
  %3668 = vrot.lane.b32.xlu0 %v3554, 15
  %v3669 = vpop.permute.xlu0 %3668
  %3670 = vrot.lane.b32.xlu0 %v3558, 15
  %v3671 = vpop.permute.xlu0 %3670
  %3672 = vrot.lane.b32.xlu0 %v3555, 15
  %v3673 = vpop.permute.xlu0 %3672
  %3674 = vrot.lane.b32.xlu0 %v3559, 15
  %v3675 = vpop.permute.xlu0 %3674
  %3676 = vrot.lane.b32.xlu0 %v3556, 15
  %v3677 = vpop.permute.xlu0 %3676
  %3678 = vrot.lane.b32.xlu0 %v3560, 15
  %v3679 = vpop.permute.xlu0 %3678
  %3680 = vrot.lane.b32.xlu0 %v3557, 15
  %v3681 = vpop.permute.xlu0 %3680
  %3682 = vrot.lane.b32.xlu0 %v3561, 15
  %v3683 = vpop.permute.xlu0 %3682
  %v3684 = vsel %vm687, %v3677, %v3681
  %v3685 = vsel %vm687, %v3679, %v3683
  %v3686 = vsel %vm687, %v3673, %v3677
  %v3687 = vsel %vm687, %v3675, %v3679
  %v3688 = vsel %vm687, %v3669, %v3673
  %v3689 = vsel %vm687, %v3671, %v3675
  %v3690 = vsel %vm687, %v3681, %v3669
  %v3691 = vsel %vm687, %v3683, %v3671
  %v3692 = vmul.f32 %v3690, %v699
  %v3693 = vmul.f32 %v3688, %v703
  %v3694 = vmul.f32 %v3686, %v707
  %v3695 = vmul.f32 %v3684, %v711
  %v3696 = vmul.f32 %v3691, %v699
  %v3697 = vmul.f32 %v3689, %v703
  %v3698 = vmul.f32 %v3687, %v707
  %v3699 = vmul.f32 %v3685, %v711
  %3700 = vset.pattern.permute.xlu0 2
  %3701 = vperm.xlu0 %3700, %v2873
  %v3702 = vpop.permute.xlu0 %3701
  %3704 = vset.pattern.permute.xlu0 2
  %3705 = vperm.xlu0 %3704, %v2874
  %v3706 = vpop.permute.xlu0 %3705
  %v3708 = vmul.f32 %v3692, %v3702
  %v3709 = vmul.f32 %v3693, %v3702
  %v3710 = vmul.f32 %v3694, %v3702
  %v3711 = vmul.f32 %v3695, %v3702
  %v3712 = vmul.f32 %v3696, %v3706
  %v3713 = vmul.f32 %v3697, %v3706
  %v3714 = vmul.f32 %v3698, %v3706
  %v3715 = vmul.f32 %v3699, %v3706
  %v3716 = vadd.f32 %v3660, %v3708
  %v3717 = vadd.f32 %v3661, %v3709
  %v3718 = vadd.f32 %v3662, %v3710
  %v3719 = vadd.f32 %v3663, %v3711
  %v3720 = vadd.f32 %v3664, %v3712
  %v3721 = vadd.f32 %v3665, %v3713
  %v3722 = vadd.f32 %v3666, %v3714
  %v3723 = vadd.f32 %v3667, %v3715
  %3724 = vrot.lane.b32.xlu0 %v3554, 1
  %v3725 = vpop.permute.xlu0 %3724
  %3726 = vrot.lane.b32.xlu0 %v3558, 1
  %v3727 = vpop.permute.xlu0 %3726
  %3728 = vrot.lane.b32.xlu0 %v3555, 1
  %v3729 = vpop.permute.xlu0 %3728
  %3730 = vrot.lane.b32.xlu0 %v3559, 1
  %v3731 = vpop.permute.xlu0 %3730
  %3732 = vrot.lane.b32.xlu0 %v3556, 1
  %v3733 = vpop.permute.xlu0 %3732
  %3734 = vrot.lane.b32.xlu0 %v3560, 1
  %v3735 = vpop.permute.xlu0 %3734
  %3736 = vrot.lane.b32.xlu0 %v3557, 1
  %v3737 = vpop.permute.xlu0 %3736
  %3738 = vrot.lane.b32.xlu0 %v3561, 1
  %v3739 = vpop.permute.xlu0 %3738
  %v3740 = vsel %vm760, %v3733, %v3737
  %v3741 = vsel %vm760, %v3735, %v3739
  %v3742 = vsel %vm760, %v3729, %v3733
  %v3743 = vsel %vm760, %v3731, %v3735
  %v3744 = vsel %vm760, %v3725, %v3729
  %v3745 = vsel %vm760, %v3727, %v3731
  %v3746 = vsel %vm760, %v3737, %v3725
  %v3747 = vsel %vm760, %v3739, %v3727
  %v3748 = vmul.f32 %v3746, %v772
  %v3749 = vmul.f32 %v3744, %v776
  %v3750 = vmul.f32 %v3742, %v780
  %v3751 = vmul.f32 %v3740, %v784
  %v3752 = vmul.f32 %v3747, %v772
  %v3753 = vmul.f32 %v3745, %v776
  %v3754 = vmul.f32 %v3743, %v780
  %v3755 = vmul.f32 %v3741, %v784
  %3756 = vset.pattern.permute.xlu0 3
  %3757 = vperm.xlu0 %3756, %v2873
  %v3758 = vpop.permute.xlu0 %3757
  %3760 = vset.pattern.permute.xlu0 3
  %3761 = vperm.xlu0 %3760, %v2874
  %v3762 = vpop.permute.xlu0 %3761
  %v3764 = vmul.f32 %v3748, %v3758
  %v3765 = vmul.f32 %v3749, %v3758
  %v3766 = vmul.f32 %v3750, %v3758
  %v3767 = vmul.f32 %v3751, %v3758
  %v3768 = vmul.f32 %v3752, %v3762
  %v3769 = vmul.f32 %v3753, %v3762
  %v3770 = vmul.f32 %v3754, %v3762
  %v3771 = vmul.f32 %v3755, %v3762
  %v3772 = vadd.f32 %v3716, %v3764
  %v3773 = vadd.f32 %v3717, %v3765
  %v3774 = vadd.f32 %v3718, %v3766
  %v3775 = vadd.f32 %v3719, %v3767
  %v3776 = vadd.f32 %v3720, %v3768
  %v3777 = vadd.f32 %v3721, %v3769
  %v3778 = vadd.f32 %v3722, %v3770
  %v3779 = vadd.f32 %v3723, %v3771
  %3780 = vset.pattern.permute.xlu0 4
  %3781 = vperm.xlu0 %3780, %v2873
  %v3782 = vpop.permute.xlu0 %3781
  %3784 = vset.pattern.permute.xlu0 4
  %3785 = vperm.xlu0 %3784, %v2874
  %v3786 = vpop.permute.xlu0 %3785
  %v3788 = vmul.f32 %v3554, %v3782
  %v3789 = vmul.f32 %v3555, %v3782
  %v3790 = vmul.f32 %v3556, %v3782
  %v3791 = vmul.f32 %v3557, %v3782
  %v3792 = vmul.f32 %v3558, %v3786
  %v3793 = vmul.f32 %v3559, %v3786
  %v3794 = vmul.f32 %v3560, %v3786
  %v3795 = vmul.f32 %v3561, %v3786
  %v3796 = vadd.f32 %v3772, %v3788
  %v3797 = vadd.f32 %v3773, %v3789
  %v3798 = vadd.f32 %v3774, %v3790
  %v3799 = vadd.f32 %v3775, %v3791
  %v3800 = vadd.f32 %v3776, %v3792
  %v3801 = vadd.f32 %v3777, %v3793
  %v3802 = vadd.f32 %v3778, %v3794
  %v3803 = vadd.f32 %v3779, %v3795
  %3804 = vrot.lane.b32.xlu0 %v3554, 127
  %v3805 = vpop.permute.xlu0 %3804
  %3806 = vrot.lane.b32.xlu0 %v3558, 127
  %v3807 = vpop.permute.xlu0 %3806
  %3808 = vrot.lane.b32.xlu0 %v3555, 127
  %v3809 = vpop.permute.xlu0 %3808
  %3810 = vrot.lane.b32.xlu0 %v3559, 127
  %v3811 = vpop.permute.xlu0 %3810
  %3812 = vrot.lane.b32.xlu0 %v3556, 127
  %v3813 = vpop.permute.xlu0 %3812
  %3814 = vrot.lane.b32.xlu0 %v3560, 127
  %v3815 = vpop.permute.xlu0 %3814
  %3816 = vrot.lane.b32.xlu0 %v3557, 127
  %v3817 = vpop.permute.xlu0 %3816
  %3818 = vrot.lane.b32.xlu0 %v3561, 127
  %v3819 = vpop.permute.xlu0 %3818
  %v3820 = vsel %vm857, %v3813, %v3817
  %v3821 = vsel %vm857, %v3815, %v3819
  %v3822 = vsel %vm857, %v3809, %v3813
  %v3823 = vsel %vm857, %v3811, %v3815
  %v3824 = vsel %vm857, %v3805, %v3809
  %v3825 = vsel %vm857, %v3807, %v3811
  %v3826 = vsel %vm857, %v3817, %v3805
  %v3827 = vsel %vm857, %v3819, %v3807
  %v3828 = vmul.f32 %v3824, %v869
  %v3829 = vmul.f32 %v3822, %v873
  %v3830 = vmul.f32 %v3820, %v877
  %v3831 = vmul.f32 %v3826, %v881
  %v3832 = vmul.f32 %v3825, %v869
  %v3833 = vmul.f32 %v3823, %v873
  %v3834 = vmul.f32 %v3821, %v877
  %v3835 = vmul.f32 %v3827, %v881
  %3836 = vset.pattern.permute.xlu0 5
  %3837 = vperm.xlu0 %3836, %v2873
  %v3838 = vpop.permute.xlu0 %3837
  %3840 = vset.pattern.permute.xlu0 5
  %3841 = vperm.xlu0 %3840, %v2874
  %v3842 = vpop.permute.xlu0 %3841
  %v3844 = vmul.f32 %v3828, %v3838
  %v3845 = vmul.f32 %v3829, %v3838
  %v3846 = vmul.f32 %v3830, %v3838
  %v3847 = vmul.f32 %v3831, %v3838
  %v3848 = vmul.f32 %v3832, %v3842
  %v3849 = vmul.f32 %v3833, %v3842
  %v3850 = vmul.f32 %v3834, %v3842
  %v3851 = vmul.f32 %v3835, %v3842
  %v3852 = vadd.f32 %v3796, %v3844
  %v3853 = vadd.f32 %v3797, %v3845
  %v3854 = vadd.f32 %v3798, %v3846
  %v3855 = vadd.f32 %v3799, %v3847
  %v3856 = vadd.f32 %v3800, %v3848
  %v3857 = vadd.f32 %v3801, %v3849
  %v3858 = vadd.f32 %v3802, %v3850
  %v3859 = vadd.f32 %v3803, %v3851
  %3860 = vrot.lane.b32.xlu0 %v3554, 113
  %v3861 = vpop.permute.xlu0 %3860
  %3862 = vrot.lane.b32.xlu0 %v3558, 113
  %v3863 = vpop.permute.xlu0 %3862
  %3864 = vrot.lane.b32.xlu0 %v3555, 113
  %v3865 = vpop.permute.xlu0 %3864
  %3866 = vrot.lane.b32.xlu0 %v3559, 113
  %v3867 = vpop.permute.xlu0 %3866
  %3868 = vrot.lane.b32.xlu0 %v3556, 113
  %v3869 = vpop.permute.xlu0 %3868
  %3870 = vrot.lane.b32.xlu0 %v3560, 113
  %v3871 = vpop.permute.xlu0 %3870
  %3872 = vrot.lane.b32.xlu0 %v3557, 113
  %v3873 = vpop.permute.xlu0 %3872
  %3874 = vrot.lane.b32.xlu0 %v3561, 113
  %v3875 = vpop.permute.xlu0 %3874
  %v3876 = vsel %vm930, %v3869, %v3873
  %v3877 = vsel %vm930, %v3871, %v3875
  %v3878 = vsel %vm930, %v3865, %v3869
  %v3879 = vsel %vm930, %v3867, %v3871
  %v3880 = vsel %vm930, %v3861, %v3865
  %v3881 = vsel %vm930, %v3863, %v3867
  %v3882 = vsel %vm930, %v3873, %v3861
  %v3883 = vsel %vm930, %v3875, %v3863
  %v3884 = vmul.f32 %v3880, %v942
  %v3885 = vmul.f32 %v3878, %v946
  %v3886 = vmul.f32 %v3876, %v950
  %v3887 = vmul.f32 %v3882, %v954
  %v3888 = vmul.f32 %v3881, %v942
  %v3889 = vmul.f32 %v3879, %v946
  %v3890 = vmul.f32 %v3877, %v950
  %v3891 = vmul.f32 %v3883, %v954
  %3892 = vset.pattern.permute.xlu0 6
  %3893 = vperm.xlu0 %3892, %v2873
  %v3894 = vpop.permute.xlu0 %3893
  %3896 = vset.pattern.permute.xlu0 6
  %3897 = vperm.xlu0 %3896, %v2874
  %v3898 = vpop.permute.xlu0 %3897
  %v3900 = vmul.f32 %v3884, %v3894
  %v3901 = vmul.f32 %v3885, %v3894
  %v3902 = vmul.f32 %v3886, %v3894
  %v3903 = vmul.f32 %v3887, %v3894
  %v3904 = vmul.f32 %v3888, %v3898
  %v3905 = vmul.f32 %v3889, %v3898
  %v3906 = vmul.f32 %v3890, %v3898
  %v3907 = vmul.f32 %v3891, %v3898
  %v3908 = vadd.f32 %v3852, %v3900
  %v3909 = vadd.f32 %v3853, %v3901
  %v3910 = vadd.f32 %v3854, %v3902
  %v3911 = vadd.f32 %v3855, %v3903
  %v3912 = vadd.f32 %v3856, %v3904
  %v3913 = vadd.f32 %v3857, %v3905
  %v3914 = vadd.f32 %v3858, %v3906
  %v3915 = vadd.f32 %v3859, %v3907
  %3916 = vrot.lane.b32.xlu0 %v3554, 112
  %v3917 = vpop.permute.xlu0 %3916
  %3918 = vrot.lane.b32.xlu0 %v3558, 112
  %v3919 = vpop.permute.xlu0 %3918
  %3920 = vrot.lane.b32.xlu0 %v3555, 112
  %v3921 = vpop.permute.xlu0 %3920
  %3922 = vrot.lane.b32.xlu0 %v3559, 112
  %v3923 = vpop.permute.xlu0 %3922
  %3924 = vrot.lane.b32.xlu0 %v3556, 112
  %v3925 = vpop.permute.xlu0 %3924
  %3926 = vrot.lane.b32.xlu0 %v3560, 112
  %v3927 = vpop.permute.xlu0 %3926
  %3928 = vrot.lane.b32.xlu0 %v3557, 112
  %v3929 = vpop.permute.xlu0 %3928
  %3930 = vrot.lane.b32.xlu0 %v3561, 112
  %v3931 = vpop.permute.xlu0 %3930
  %v3932 = vsel %vm1003, %v3925, %v3929
  %v3933 = vsel %vm1003, %v3927, %v3931
  %v3934 = vsel %vm1003, %v3921, %v3925
  %v3935 = vsel %vm1003, %v3923, %v3927
  %v3936 = vsel %vm1003, %v3917, %v3921
  %v3937 = vsel %vm1003, %v3919, %v3923
  %v3938 = vsel %vm1003, %v3929, %v3917
  %v3939 = vsel %vm1003, %v3931, %v3919
  %v3940 = vmul.f32 %v3936, %v1015
  %v3941 = vmul.f32 %v3934, %v1019
  %v3942 = vmul.f32 %v3932, %v1023
  %v3943 = vmul.f32 %v3938, %v1027
  %v3944 = vmul.f32 %v3937, %v1015
  %v3945 = vmul.f32 %v3935, %v1019
  %v3946 = vmul.f32 %v3933, %v1023
  %v3947 = vmul.f32 %v3939, %v1027
  %3948 = vset.pattern.permute.xlu0 7
  %3949 = vperm.xlu0 %3948, %v2873
  %v3950 = vpop.permute.xlu0 %3949
  %3952 = vset.pattern.permute.xlu0 7
  %3953 = vperm.xlu0 %3952, %v2874
  %v3954 = vpop.permute.xlu0 %3953
  %v3956 = vmul.f32 %v3940, %v3950
  %v3957 = vmul.f32 %v3941, %v3950
  %v3958 = vmul.f32 %v3942, %v3950
  %v3959 = vmul.f32 %v3943, %v3950
  %v3960 = vmul.f32 %v3944, %v3954
  %v3961 = vmul.f32 %v3945, %v3954
  %v3962 = vmul.f32 %v3946, %v3954
  %v3963 = vmul.f32 %v3947, %v3954
  %v3964 = vadd.f32 %v3908, %v3956
  %v3965 = vadd.f32 %v3909, %v3957
  %v3966 = vadd.f32 %v3910, %v3958
  %v3967 = vadd.f32 %v3911, %v3959
  %v3968 = vadd.f32 %v3912, %v3960
  %v3969 = vadd.f32 %v3913, %v3961
  %v3970 = vadd.f32 %v3914, %v3962
  %v3971 = vadd.f32 %v3915, %v3963
  %3972 = vrot.lane.b32.xlu0 %v3554, 111
  %v3973 = vpop.permute.xlu0 %3972
  %3974 = vrot.lane.b32.xlu0 %v3558, 111
  %v3975 = vpop.permute.xlu0 %3974
  %3976 = vrot.lane.b32.xlu0 %v3555, 111
  %v3977 = vpop.permute.xlu0 %3976
  %3978 = vrot.lane.b32.xlu0 %v3559, 111
  %v3979 = vpop.permute.xlu0 %3978
  %3980 = vrot.lane.b32.xlu0 %v3556, 111
  %v3981 = vpop.permute.xlu0 %3980
  %3982 = vrot.lane.b32.xlu0 %v3560, 111
  %v3983 = vpop.permute.xlu0 %3982
  %3984 = vrot.lane.b32.xlu0 %v3557, 111
  %v3985 = vpop.permute.xlu0 %3984
  %3986 = vrot.lane.b32.xlu0 %v3561, 111
  %v3987 = vpop.permute.xlu0 %3986
  %v3988 = vsel %vm1076, %v3981, %v3985
  %v3989 = vsel %vm1076, %v3983, %v3987
  %v3990 = vsel %vm1076, %v3977, %v3981
  %v3991 = vsel %vm1076, %v3979, %v3983
  %v3992 = vsel %vm1076, %v3973, %v3977
  %v3993 = vsel %vm1076, %v3975, %v3979
  %v3994 = vsel %vm1076, %v3985, %v3973
  %v3995 = vsel %vm1076, %v3987, %v3975
  %v3996 = vmul.f32 %v3992, %v1088
  %v3997 = vmul.f32 %v3990, %v1092
  %v3998 = vmul.f32 %v3988, %v1096
  %v3999 = vmul.f32 %v3994, %v1100
  %v4000 = vmul.f32 %v3993, %v1088
  %v4001 = vmul.f32 %v3991, %v1092
  %v4002 = vmul.f32 %v3989, %v1096
  %v4003 = vmul.f32 %v3995, %v1100
  %4004 = vset.pattern.permute.xlu0 8
  %4005 = vperm.xlu0 %4004, %v2873
  %v4006 = vpop.permute.xlu0 %4005
  %4008 = vset.pattern.permute.xlu0 8
  %4009 = vperm.xlu0 %4008, %v2874
  %v4010 = vpop.permute.xlu0 %4009
  %v4012 = vmul.f32 %v3996, %v4006
  %v4013 = vmul.f32 %v3997, %v4006
  %v4014 = vmul.f32 %v3998, %v4006
  %v4015 = vmul.f32 %v3999, %v4006
  %v4016 = vmul.f32 %v4000, %v4010
  %v4017 = vmul.f32 %v4001, %v4010
  %v4018 = vmul.f32 %v4002, %v4010
  %v4019 = vmul.f32 %v4003, %v4010
  %v4020 = vadd.f32 %v3964, %v4012
  %v4021 = vadd.f32 %v3965, %v4013
  %v4022 = vadd.f32 %v3966, %v4014
  %v4023 = vadd.f32 %v3967, %v4015
  %v4024 = vadd.f32 %v3968, %v4016
  %v4025 = vadd.f32 %v3969, %v4017
  %v4026 = vadd.f32 %v3970, %v4018
  %v4027 = vadd.f32 %v3971, %v4019
  %v4029 = vsel %vm90, %v2876, 0
  %v4032 = vsel %vm90, %v2877, 0
  %4034 = vmatprep.subr.mxu0 %v4021
  %4035 = vmatpush1.msra.mxu0 %v4020
  %4036 = vmatprep.subr.mxu0 %v4025
  %4037 = vmatpush1.msra.mxu0 %v4024
  %4038 = vmatprep.subr.mxu0 0.0
  %4039 = vmatpush1.msra.mxu0 0.0
  %4040 = vmatprep.subr.mxu0 0.0
  %4041 = vmatpush1.msra.mxu0 0.0
  %4042 = vmatprep.subr.mxu0 0.0
  %4043 = vmatpush1.msra.mxu0 0.0
  %4044 = vmatprep.subr.mxu0 0.0
  %4045 = vmatpush1.msra.mxu0 0.0
  %4046 = vmatprep.subr.mxu0 0.0
  %4047 = vmatpush1.msra.mxu0 0.0
  %4048 = vmatprep.subr.mxu0 0.0
  %4049 = vmatpush1.msra.mxu0 0.0
  %4050 = vmatprep.subr.mxu0 0.0
  %4051 = vmatpush1.msra.mxu0 0.0
  %4052 = vmatprep.subr.mxu0 0.0
  %4053 = vmatpush1.msra.mxu0 0.0
  %4054 = vmatprep.subr.mxu0 0.0
  %4055 = vmatpush1.msra.mxu0 0.0
  %4056 = vmatprep.subr.mxu0 0.0
  %4057 = vmatpush1.msra.mxu0 0.0
  %4058 = vmatprep.subr.mxu0 0.0
  %4059 = vmatpush1.msra.mxu0 0.0
  %4060 = vmatprep.subr.mxu0 0.0
  %4061 = vmatpush1.msra.mxu0 0.0
  %4062 = vmatprep.subr.mxu0 0.0
  %4063 = vmatpush1.msra.mxu0 0.0
  %4064 = vmatprep.subr.mxu0 0.0
  %4065 = vmatpush1.msra.mxu0 0.0
  %4066 = vmatprep.subr.mxu0 0.0
  %4067 = vmatpush1.msra.mxu0 0.0
  %4068 = vmatprep.subr.mxu0 0.0
  %4069 = vmatpush1.msra.mxu0 0.0
  %4070 = vmatprep.subr.mxu0 0.0
  %4071 = vmatpush1.msra.mxu0 0.0
  %4072 = vmatprep.subr.mxu0 0.0
  %4073 = vmatpush1.msra.mxu0 0.0
  %4074 = vmatprep.subr.mxu0 0.0
  %4075 = vmatpush1.msra.mxu0 0.0
  %4076 = vmatprep.subr.mxu0 0.0
  %4077 = vmatpush1.msra.mxu0 0.0
  %4078 = vmatprep.subr.mxu0 0.0
  %4079 = vmatpush1.msra.mxu0 0.0
  %4080 = vmatprep.subr.mxu0 0.0
  %4081 = vmatpush1.msra.mxu0 0.0
  %4082 = vmatprep.subr.mxu0 0.0
  %4083 = vmatpush1.msra.mxu0 0.0
  %4084 = vmatprep.subr.mxu0 0.0
  %4085 = vmatpush1.msra.mxu0 0.0
  %4086 = vmatprep.subr.mxu0 0.0
  %4087 = vmatpush1.msra.mxu0 0.0
  %4088 = vmatprep.subr.mxu0 0.0
  %4089 = vmatpush1.msra.mxu0 0.0
  %4090 = vmatprep.subr.mxu0 0.0
  %4091 = vmatpush1.msra.mxu0 0.0
  %4092 = vmatprep.subr.mxu0 0.0
  %4093 = vmatpush1.msra.mxu0 0.0
  %4094 = vmatprep.subr.mxu0 0.0
  %4095 = vmatpush1.msra.mxu0 0.0
  %4096 = vmatprep.subr.mxu0 0.0
  %4097 = vmatpush1.msra.mxu0 0.0
  %4098 = vmatprep.mubr.f32.mxu0 0.0
  %4099 = vmatmul.mubr.f32.gmra.mrb[0].mxu0 %v4029
  %v4100 = vpop.f32.mrb[0].mxu0
  %v4101 = vadd.f32 0.0, %v4100
  %v4102 = vpop.f32.mrb[0].mxu0
  %v4103 = vadd.f32 0.0, %v4102
  %4104 = vmatprep.mubr.f32.mxu0 0.0
  %4105 = vmatmul.mubr.f32.gmra.mrb[0].mxu0 %v4032
  %v4106 = vpop.f32.mrb[0].mxu0
  %v4107 = vadd.f32 0.0, %v4106
  %v4108 = vpop.f32.mrb[0].mxu0
  %v4109 = vadd.f32 0.0, %v4108
  %4110 = vdwg.mxu0
  %4111 = vmatprep.subr.mxu0 %v4023
  %4112 = vmatpush1.msra.mxu0 %v4022
  %4113 = vmatprep.subr.mxu0 %v4027
  %4114 = vmatpush1.msra.mxu0 %v4026
  %4115 = vmatprep.subr.mxu0 0.0
  %4116 = vmatpush1.msra.mxu0 0.0
  %4117 = vmatprep.subr.mxu0 0.0
  %4118 = vmatpush1.msra.mxu0 0.0
  %4119 = vmatprep.subr.mxu0 0.0
  %4120 = vmatpush1.msra.mxu0 0.0
  %4121 = vmatprep.subr.mxu0 0.0
  %4122 = vmatpush1.msra.mxu0 0.0
  %4123 = vmatprep.subr.mxu0 0.0
  %4124 = vmatpush1.msra.mxu0 0.0
  %4125 = vmatprep.subr.mxu0 0.0
  %4126 = vmatpush1.msra.mxu0 0.0
  %4127 = vmatprep.subr.mxu0 0.0
  %4128 = vmatpush1.msra.mxu0 0.0
  %4129 = vmatprep.subr.mxu0 0.0
  %4130 = vmatpush1.msra.mxu0 0.0
  %4131 = vmatprep.subr.mxu0 0.0
  %4132 = vmatpush1.msra.mxu0 0.0
  %4133 = vmatprep.subr.mxu0 0.0
  %4134 = vmatpush1.msra.mxu0 0.0
  %4135 = vmatprep.subr.mxu0 0.0
  %4136 = vmatpush1.msra.mxu0 0.0
  %4137 = vmatprep.subr.mxu0 0.0
  %4138 = vmatpush1.msra.mxu0 0.0
  %4139 = vmatprep.subr.mxu0 0.0
  %4140 = vmatpush1.msra.mxu0 0.0
  %4141 = vmatprep.subr.mxu0 0.0
  %4142 = vmatpush1.msra.mxu0 0.0
  %4143 = vmatprep.subr.mxu0 0.0
  %4144 = vmatpush1.msra.mxu0 0.0
  %4145 = vmatprep.subr.mxu0 0.0
  %4146 = vmatpush1.msra.mxu0 0.0
  %4147 = vmatprep.subr.mxu0 0.0
  %4148 = vmatpush1.msra.mxu0 0.0
  %4149 = vmatprep.subr.mxu0 0.0
  %4150 = vmatpush1.msra.mxu0 0.0
  %4151 = vmatprep.subr.mxu0 0.0
  %4152 = vmatpush1.msra.mxu0 0.0
  %4153 = vmatprep.subr.mxu0 0.0
  %4154 = vmatpush1.msra.mxu0 0.0
  %4155 = vmatprep.subr.mxu0 0.0
  %4156 = vmatpush1.msra.mxu0 0.0
  %4157 = vmatprep.subr.mxu0 0.0
  %4158 = vmatpush1.msra.mxu0 0.0
  %4159 = vmatprep.subr.mxu0 0.0
  %4160 = vmatpush1.msra.mxu0 0.0
  %4161 = vmatprep.subr.mxu0 0.0
  %4162 = vmatpush1.msra.mxu0 0.0
  %4163 = vmatprep.subr.mxu0 0.0
  %4164 = vmatpush1.msra.mxu0 0.0
  %4165 = vmatprep.subr.mxu0 0.0
  %4166 = vmatpush1.msra.mxu0 0.0
  %4167 = vmatprep.subr.mxu0 0.0
  %4168 = vmatpush1.msra.mxu0 0.0
  %4169 = vmatprep.subr.mxu0 0.0
  %4170 = vmatpush1.msra.mxu0 0.0
  %4171 = vmatprep.subr.mxu0 0.0
  %4172 = vmatpush1.msra.mxu0 0.0
  %4173 = vmatprep.subr.mxu0 0.0
  %4174 = vmatpush1.msra.mxu0 0.0
  %4175 = vmatprep.mubr.f32.mxu0 0.0
  %4176 = vmatmul.mubr.f32.gmra.mrb[0].mxu0 %v4029
  %v4177 = vpop.f32.mrb[0].mxu0
  %v4178 = vadd.f32 0.0, %v4177
  %v4179 = vpop.f32.mrb[0].mxu0
  %v4180 = vadd.f32 0.0, %v4179
  %4181 = vmatprep.mubr.f32.mxu0 0.0
  %4182 = vmatmul.mubr.f32.gmra.mrb[0].mxu0 %v4032
  %v4183 = vpop.f32.mrb[0].mxu0
  %v4184 = vadd.f32 0.0, %v4183
  %v4185 = vpop.f32.mrb[0].mxu0
  %v4186 = vadd.f32 0.0, %v4185
  %4187 = vdwg.mxu0
  %4189 = vset.pattern.permute.xlu0 0
  %4190 = vperm.xlu0 %4189, %v2879
  %v4191 = vpop.permute.xlu0 %4190
  %4194 = vset.pattern.permute.xlu0 0
  %4195 = vperm.xlu0 %4194, %v2880
  %v4196 = vpop.permute.xlu0 %4195
  %v4198 = vmul.f32 %v4101, %v4191
  %v4199 = vmul.f32 %v4103, %v4191
  %v4200 = vmul.f32 %v4178, %v4191
  %v4201 = vmul.f32 %v4180, %v4191
  %v4202 = vmul.f32 %v4107, %v4196
  %v4203 = vmul.f32 %v4109, %v4196
  %v4204 = vmul.f32 %v4184, %v4196
  %v4205 = vmul.f32 %v4186, %v4196
  %4207 = vset.pattern.permute.xlu0 0
  %4208 = vperm.xlu0 %4207, %v2882
  %v4209 = vpop.permute.xlu0 %4208
  %4212 = vset.pattern.permute.xlu0 0
  %4213 = vperm.xlu0 %4212, %v2883
  %v4214 = vpop.permute.xlu0 %4213
  %v4216 = vadd.f32 %v4198, %v4209
  %v4217 = vadd.f32 %v4199, %v4209
  %v4218 = vadd.f32 %v4200, %v4209
  %v4219 = vadd.f32 %v4201, %v4209
  %v4220 = vadd.f32 %v4202, %v4214
  %v4221 = vadd.f32 %v4203, %v4214
  %v4222 = vadd.f32 %v4204, %v4214
  %v4223 = vadd.f32 %v4205, %v4214
  %v4224 = vadd.f32 %v4216, %v1999
  %v4225 = vadd.f32 %v4217, %v2000
  %v4226 = vadd.f32 %v4218, %v2001
  %v4227 = vadd.f32 %v4219, %v2002
  %v4228 = vadd.f32 %v4220, %v2003
  %v4229 = vadd.f32 %v4221, %v2004
  %v4230 = vadd.f32 %v4222, %v2005
  %v4231 = vadd.f32 %v4223, %v2006
  %s4232 = scalar_lea.vmem %s10, 32
  %v4233 = vld [vmem:[%s4232] sm:$0xff]
  %v4234 = vld [vmem:[%s4232 + $0x8] sm:$0xff]
  %s4235 = scalar_lea.vmem %s11, 32
  %v4236 = vld [vmem:[%s4235] sm:$0xff]
  %v4237 = vld [vmem:[%s4235 + $0x8] sm:$0xff]
  %s4238 = scalar_lea.vmem %s12, 32
  %v4239 = vld [vmem:[%s4238] sm:$0xff]
  %v4240 = vld [vmem:[%s4238 + $0x8] sm:$0xff]
  %s4241 = scalar_lea.vmem %s13, 32
  %v4242 = vld [vmem:[%s4241] sm:$0xff]
  %v4243 = vld [vmem:[%s4241 + $0x8] sm:$0xff]
  %s4244 = scalar_lea.vmem %s14, 32
  %v4245 = vld [vmem:[%s4244] sm:$0xff]
  %v4246 = vld [vmem:[%s4244 + $0x8] sm:$0xff]
  %s4247 = scalar_lea.vmem %s15, 32
  %v4248 = vld [vmem:[%s4247] sm:$0xff]
  %v4249 = vld [vmem:[%s4247 + $0x8] sm:$0xff]
  %s4250 = scalar_lea.vmem %s16, 32
  %v4251 = vld [vmem:[%s4250] sm:$0xff]
  %v4252 = vld [vmem:[%s4250 + $0x8] sm:$0xff]
  %s4253 = scalar_lea.vmem %s17, 32
  %v4254 = vld [vmem:[%s4253] sm:$0xff]
  %v4255 = vld [vmem:[%s4253 + $0x8] sm:$0xff]
  %v4256 = vmax.f32 %v1999, 0.0
  %v4257 = vmax.f32 %v2000, 0.0
  %v4258 = vmax.f32 %v2001, 0.0
  %v4259 = vmax.f32 %v2002, 0.0
  %v4260 = vmax.f32 %v2003, 0.0
  %v4261 = vmax.f32 %v2004, 0.0
  %v4262 = vmax.f32 %v2005, 0.0
  %v4263 = vmax.f32 %v2006, 0.0
  %4264 = vrot.lane.b32.xlu0 %v4256, 17
  %v4265 = vpop.permute.xlu0 %4264
  %4266 = vrot.lane.b32.xlu0 %v4260, 17
  %v4267 = vpop.permute.xlu0 %4266
  %4268 = vrot.lane.b32.xlu0 %v4257, 17
  %v4269 = vpop.permute.xlu0 %4268
  %4270 = vrot.lane.b32.xlu0 %v4261, 17
  %v4271 = vpop.permute.xlu0 %4270
  %4272 = vrot.lane.b32.xlu0 %v4258, 17
  %v4273 = vpop.permute.xlu0 %4272
  %4274 = vrot.lane.b32.xlu0 %v4262, 17
  %v4275 = vpop.permute.xlu0 %4274
  %4276 = vrot.lane.b32.xlu0 %v4259, 17
  %v4277 = vpop.permute.xlu0 %4276
  %4278 = vrot.lane.b32.xlu0 %v4263, 17
  %v4279 = vpop.permute.xlu0 %4278
  %v4280 = vsel %vm547, %v4273, %v4277
  %v4281 = vsel %vm547, %v4275, %v4279
  %v4282 = vsel %vm547, %v4269, %v4273
  %v4283 = vsel %vm547, %v4271, %v4275
  %v4284 = vsel %vm547, %v4265, %v4269
  %v4285 = vsel %vm547, %v4267, %v4271
  %v4286 = vsel %vm547, %v4277, %v4265
  %v4287 = vsel %vm547, %v4279, %v4267
  %v4288 = vmul.f32 %v4286, %v559
  %v4289 = vmul.f32 %v4284, %v563
  %v4290 = vmul.f32 %v4282, %v567
  %v4291 = vmul.f32 %v4280, %v571
  %v4292 = vmul.f32 %v4287, %v559
  %v4293 = vmul.f32 %v4285, %v563
  %v4294 = vmul.f32 %v4283, %v567
  %v4295 = vmul.f32 %v4281, %v571
  %4297 = vset.pattern.permute.xlu0 0
  %4298 = vperm.xlu0 %4297, %v4233
  %v4299 = vpop.permute.xlu0 %4298
  %4302 = vset.pattern.permute.xlu0 0
  %4303 = vperm.xlu0 %4302, %v4234
  %v4304 = vpop.permute.xlu0 %4303
  %v4306 = vmul.f32 %v4288, %v4299
  %v4307 = vmul.f32 %v4289, %v4299
  %v4308 = vmul.f32 %v4290, %v4299
  %v4309 = vmul.f32 %v4291, %v4299
  %v4310 = vmul.f32 %v4292, %v4304
  %v4311 = vmul.f32 %v4293, %v4304
  %v4312 = vmul.f32 %v4294, %v4304
  %v4313 = vmul.f32 %v4295, %v4304
  %4314 = vrot.lane.b32.xlu0 %v4256, 16
  %v4315 = vpop.permute.xlu0 %4314
  %4316 = vrot.lane.b32.xlu0 %v4260, 16
  %v4317 = vpop.permute.xlu0 %4316
  %4318 = vrot.lane.b32.xlu0 %v4257, 16
  %v4319 = vpop.permute.xlu0 %4318
  %4320 = vrot.lane.b32.xlu0 %v4261, 16
  %v4321 = vpop.permute.xlu0 %4320
  %4322 = vrot.lane.b32.xlu0 %v4258, 16
  %v4323 = vpop.permute.xlu0 %4322
  %4324 = vrot.lane.b32.xlu0 %v4262, 16
  %v4325 = vpop.permute.xlu0 %4324
  %4326 = vrot.lane.b32.xlu0 %v4259, 16
  %v4327 = vpop.permute.xlu0 %4326
  %4328 = vrot.lane.b32.xlu0 %v4263, 16
  %v4329 = vpop.permute.xlu0 %4328
  %v4330 = vsel %vm614, %v4323, %v4327
  %v4331 = vsel %vm614, %v4325, %v4329
  %v4332 = vsel %vm614, %v4319, %v4323
  %v4333 = vsel %vm614, %v4321, %v4325
  %v4334 = vsel %vm614, %v4315, %v4319
  %v4335 = vsel %vm614, %v4317, %v4321
  %v4336 = vsel %vm614, %v4327, %v4315
  %v4337 = vsel %vm614, %v4329, %v4317
  %v4338 = vmul.f32 %v4336, %v626
  %v4339 = vmul.f32 %v4334, %v630
  %v4340 = vmul.f32 %v4332, %v634
  %v4341 = vmul.f32 %v4330, %v638
  %v4342 = vmul.f32 %v4337, %v626
  %v4343 = vmul.f32 %v4335, %v630
  %v4344 = vmul.f32 %v4333, %v634
  %v4345 = vmul.f32 %v4331, %v638
  %4346 = vset.pattern.permute.xlu0 1
  %4347 = vperm.xlu0 %4346, %v4233
  %v4348 = vpop.permute.xlu0 %4347
  %4350 = vset.pattern.permute.xlu0 1
  %4351 = vperm.xlu0 %4350, %v4234
  %v4352 = vpop.permute.xlu0 %4351
  %v4354 = vmul.f32 %v4338, %v4348
  %v4355 = vmul.f32 %v4339, %v4348
  %v4356 = vmul.f32 %v4340, %v4348
  %v4357 = vmul.f32 %v4341, %v4348
  %v4358 = vmul.f32 %v4342, %v4352
  %v4359 = vmul.f32 %v4343, %v4352
  %v4360 = vmul.f32 %v4344, %v4352
  %v4361 = vmul.f32 %v4345, %v4352
  %v4362 = vadd.f32 %v4306, %v4354
  %v4363 = vadd.f32 %v4307, %v4355
  %v4364 = vadd.f32 %v4308, %v4356
  %v4365 = vadd.f32 %v4309, %v4357
  %v4366 = vadd.f32 %v4310, %v4358
  %v4367 = vadd.f32 %v4311, %v4359
  %v4368 = vadd.f32 %v4312, %v4360
  %v4369 = vadd.f32 %v4313, %v4361
  %4370 = vrot.lane.b32.xlu0 %v4256, 15
  %v4371 = vpop.permute.xlu0 %4370
  %4372 = vrot.lane.b32.xlu0 %v4260, 15
  %v4373 = vpop.permute.xlu0 %4372
  %4374 = vrot.lane.b32.xlu0 %v4257, 15
  %v4375 = vpop.permute.xlu0 %4374
  %4376 = vrot.lane.b32.xlu0 %v4261, 15
  %v4377 = vpop.permute.xlu0 %4376
  %4378 = vrot.lane.b32.xlu0 %v4258, 15
  %v4379 = vpop.permute.xlu0 %4378
  %4380 = vrot.lane.b32.xlu0 %v4262, 15
  %v4381 = vpop.permute.xlu0 %4380
  %4382 = vrot.lane.b32.xlu0 %v4259, 15
  %v4383 = vpop.permute.xlu0 %4382
  %4384 = vrot.lane.b32.xlu0 %v4263, 15
  %v4385 = vpop.permute.xlu0 %4384
  %v4386 = vsel %vm687, %v4379, %v4383
  %v4387 = vsel %vm687, %v4381, %v4385
  %v4388 = vsel %vm687, %v4375, %v4379
  %v4389 = vsel %vm687, %v4377, %v4381
  %v4390 = vsel %vm687, %v4371, %v4375
  %v4391 = vsel %vm687, %v4373, %v4377
  %v4392 = vsel %vm687, %v4383, %v4371
  %v4393 = vsel %vm687, %v4385, %v4373
  %v4394 = vmul.f32 %v4392, %v699
  %v4395 = vmul.f32 %v4390, %v703
  %v4396 = vmul.f32 %v4388, %v707
  %v4397 = vmul.f32 %v4386, %v711
  %v4398 = vmul.f32 %v4393, %v699
  %v4399 = vmul.f32 %v4391, %v703
  %v4400 = vmul.f32 %v4389, %v707
  %v4401 = vmul.f32 %v4387, %v711
  %4402 = vset.pattern.permute.xlu0 2
  %4403 = vperm.xlu0 %4402, %v4233
  %v4404 = vpop.permute.xlu0 %4403
  %4406 = vset.pattern.permute.xlu0 2
  %4407 = vperm.xlu0 %4406, %v4234
  %v4408 = vpop.permute.xlu0 %4407
  %v4410 = vmul.f32 %v4394, %v4404
  %v4411 = vmul.f32 %v4395, %v4404
  %v4412 = vmul.f32 %v4396, %v4404
  %v4413 = vmul.f32 %v4397, %v4404
  %v4414 = vmul.f32 %v4398, %v4408
  %v4415 = vmul.f32 %v4399, %v4408
  %v4416 = vmul.f32 %v4400, %v4408
  %v4417 = vmul.f32 %v4401, %v4408
  %v4418 = vadd.f32 %v4362, %v4410
  %v4419 = vadd.f32 %v4363, %v4411
  %v4420 = vadd.f32 %v4364, %v4412
  %v4421 = vadd.f32 %v4365, %v4413
  %v4422 = vadd.f32 %v4366, %v4414
  %v4423 = vadd.f32 %v4367, %v4415
  %v4424 = vadd.f32 %v4368, %v4416
  %v4425 = vadd.f32 %v4369, %v4417
  %4426 = vrot.lane.b32.xlu0 %v4256, 1
  %v4427 = vpop.permute.xlu0 %4426
  %4428 = vrot.lane.b32.xlu0 %v4260, 1
  %v4429 = vpop.permute.xlu0 %4428
  %4430 = vrot.lane.b32.xlu0 %v4257, 1
  %v4431 = vpop.permute.xlu0 %4430
  %4432 = vrot.lane.b32.xlu0 %v4261, 1
  %v4433 = vpop.permute.xlu0 %4432
  %4434 = vrot.lane.b32.xlu0 %v4258, 1
  %v4435 = vpop.permute.xlu0 %4434
  %4436 = vrot.lane.b32.xlu0 %v4262, 1
  %v4437 = vpop.permute.xlu0 %4436
  %4438 = vrot.lane.b32.xlu0 %v4259, 1
  %v4439 = vpop.permute.xlu0 %4438
  %4440 = vrot.lane.b32.xlu0 %v4263, 1
  %v4441 = vpop.permute.xlu0 %4440
  %v4442 = vsel %vm760, %v4435, %v4439
  %v4443 = vsel %vm760, %v4437, %v4441
  %v4444 = vsel %vm760, %v4431, %v4435
  %v4445 = vsel %vm760, %v4433, %v4437
  %v4446 = vsel %vm760, %v4427, %v4431
  %v4447 = vsel %vm760, %v4429, %v4433
  %v4448 = vsel %vm760, %v4439, %v4427
  %v4449 = vsel %vm760, %v4441, %v4429
  %v4450 = vmul.f32 %v4448, %v772
  %v4451 = vmul.f32 %v4446, %v776
  %v4452 = vmul.f32 %v4444, %v780
  %v4453 = vmul.f32 %v4442, %v784
  %v4454 = vmul.f32 %v4449, %v772
  %v4455 = vmul.f32 %v4447, %v776
  %v4456 = vmul.f32 %v4445, %v780
  %v4457 = vmul.f32 %v4443, %v784
  %4458 = vset.pattern.permute.xlu0 3
  %4459 = vperm.xlu0 %4458, %v4233
  %v4460 = vpop.permute.xlu0 %4459
  %4462 = vset.pattern.permute.xlu0 3
  %4463 = vperm.xlu0 %4462, %v4234
  %v4464 = vpop.permute.xlu0 %4463
  %v4466 = vmul.f32 %v4450, %v4460
  %v4467 = vmul.f32 %v4451, %v4460
  %v4468 = vmul.f32 %v4452, %v4460
  %v4469 = vmul.f32 %v4453, %v4460
  %v4470 = vmul.f32 %v4454, %v4464
  %v4471 = vmul.f32 %v4455, %v4464
  %v4472 = vmul.f32 %v4456, %v4464
  %v4473 = vmul.f32 %v4457, %v4464
  %v4474 = vadd.f32 %v4418, %v4466
  %v4475 = vadd.f32 %v4419, %v4467
  %v4476 = vadd.f32 %v4420, %v4468
  %v4477 = vadd.f32 %v4421, %v4469
  %v4478 = vadd.f32 %v4422, %v4470
  %v4479 = vadd.f32 %v4423, %v4471
  %v4480 = vadd.f32 %v4424, %v4472
  %v4481 = vadd.f32 %v4425, %v4473
  %4482 = vset.pattern.permute.xlu0 4
  %4483 = vperm.xlu0 %4482, %v4233
  %v4484 = vpop.permute.xlu0 %4483
  %4486 = vset.pattern.permute.xlu0 4
  %4487 = vperm.xlu0 %4486, %v4234
  %v4488 = vpop.permute.xlu0 %4487
  %v4490 = vmul.f32 %v4256, %v4484
  %v4491 = vmul.f32 %v4257, %v4484
  %v4492 = vmul.f32 %v4258, %v4484
  %v4493 = vmul.f32 %v4259, %v4484
  %v4494 = vmul.f32 %v4260, %v4488
  %v4495 = vmul.f32 %v4261, %v4488
  %v4496 = vmul.f32 %v4262, %v4488
  %v4497 = vmul.f32 %v4263, %v4488
  %v4498 = vadd.f32 %v4474, %v4490
  %v4499 = vadd.f32 %v4475, %v4491
  %v4500 = vadd.f32 %v4476, %v4492
  %v4501 = vadd.f32 %v4477, %v4493
  %v4502 = vadd.f32 %v4478, %v4494
  %v4503 = vadd.f32 %v4479, %v4495
  %v4504 = vadd.f32 %v4480, %v4496
  %v4505 = vadd.f32 %v4481, %v4497
  %4506 = vrot.lane.b32.xlu0 %v4256, 127
  %v4507 = vpop.permute.xlu0 %4506
  %4508 = vrot.lane.b32.xlu0 %v4260, 127
  %v4509 = vpop.permute.xlu0 %4508
  %4510 = vrot.lane.b32.xlu0 %v4257, 127
  %v4511 = vpop.permute.xlu0 %4510
  %4512 = vrot.lane.b32.xlu0 %v4261, 127
  %v4513 = vpop.permute.xlu0 %4512
  %4514 = vrot.lane.b32.xlu0 %v4258, 127
  %v4515 = vpop.permute.xlu0 %4514
  %4516 = vrot.lane.b32.xlu0 %v4262, 127
  %v4517 = vpop.permute.xlu0 %4516
  %4518 = vrot.lane.b32.xlu0 %v4259, 127
  %v4519 = vpop.permute.xlu0 %4518
  %4520 = vrot.lane.b32.xlu0 %v4263, 127
  %v4521 = vpop.permute.xlu0 %4520
  %v4522 = vsel %vm857, %v4515, %v4519
  %v4523 = vsel %vm857, %v4517, %v4521
  %v4524 = vsel %vm857, %v4511, %v4515
  %v4525 = vsel %vm857, %v4513, %v4517
  %v4526 = vsel %vm857, %v4507, %v4511
  %v4527 = vsel %vm857, %v4509, %v4513
  %v4528 = vsel %vm857, %v4519, %v4507
  %v4529 = vsel %vm857, %v4521, %v4509
  %v4530 = vmul.f32 %v4526, %v869
  %v4531 = vmul.f32 %v4524, %v873
  %v4532 = vmul.f32 %v4522, %v877
  %v4533 = vmul.f32 %v4528, %v881
  %v4534 = vmul.f32 %v4527, %v869
  %v4535 = vmul.f32 %v4525, %v873
  %v4536 = vmul.f32 %v4523, %v877
  %v4537 = vmul.f32 %v4529, %v881
  %4538 = vset.pattern.permute.xlu0 5
  %4539 = vperm.xlu0 %4538, %v4233
  %v4540 = vpop.permute.xlu0 %4539
  %4542 = vset.pattern.permute.xlu0 5
  %4543 = vperm.xlu0 %4542, %v4234
  %v4544 = vpop.permute.xlu0 %4543
  %v4546 = vmul.f32 %v4530, %v4540
  %v4547 = vmul.f32 %v4531, %v4540
  %v4548 = vmul.f32 %v4532, %v4540
  %v4549 = vmul.f32 %v4533, %v4540
  %v4550 = vmul.f32 %v4534, %v4544
  %v4551 = vmul.f32 %v4535, %v4544
  %v4552 = vmul.f32 %v4536, %v4544
  %v4553 = vmul.f32 %v4537, %v4544
  %v4554 = vadd.f32 %v4498, %v4546
  %v4555 = vadd.f32 %v4499, %v4547
  %v4556 = vadd.f32 %v4500, %v4548
  %v4557 = vadd.f32 %v4501, %v4549
  %v4558 = vadd.f32 %v4502, %v4550
  %v4559 = vadd.f32 %v4503, %v4551
  %v4560 = vadd.f32 %v4504, %v4552
  %v4561 = vadd.f32 %v4505, %v4553
  %4562 = vrot.lane.b32.xlu0 %v4256, 113
  %v4563 = vpop.permute.xlu0 %4562
  %4564 = vrot.lane.b32.xlu0 %v4260, 113
  %v4565 = vpop.permute.xlu0 %4564
  %4566 = vrot.lane.b32.xlu0 %v4257, 113
  %v4567 = vpop.permute.xlu0 %4566
  %4568 = vrot.lane.b32.xlu0 %v4261, 113
  %v4569 = vpop.permute.xlu0 %4568
  %4570 = vrot.lane.b32.xlu0 %v4258, 113
  %v4571 = vpop.permute.xlu0 %4570
  %4572 = vrot.lane.b32.xlu0 %v4262, 113
  %v4573 = vpop.permute.xlu0 %4572
  %4574 = vrot.lane.b32.xlu0 %v4259, 113
  %v4575 = vpop.permute.xlu0 %4574
  %4576 = vrot.lane.b32.xlu0 %v4263, 113
  %v4577 = vpop.permute.xlu0 %4576
  %v4578 = vsel %vm930, %v4571, %v4575
  %v4579 = vsel %vm930, %v4573, %v4577
  %v4580 = vsel %vm930, %v4567, %v4571
  %v4581 = vsel %vm930, %v4569, %v4573
  %v4582 = vsel %vm930, %v4563, %v4567
  %v4583 = vsel %vm930, %v4565, %v4569
  %v4584 = vsel %vm930, %v4575, %v4563
  %v4585 = vsel %vm930, %v4577, %v4565
  %v4586 = vmul.f32 %v4582, %v942
  %v4587 = vmul.f32 %v4580, %v946
  %v4588 = vmul.f32 %v4578, %v950
  %v4589 = vmul.f32 %v4584, %v954
  %v4590 = vmul.f32 %v4583, %v942
  %v4591 = vmul.f32 %v4581, %v946
  %v4592 = vmul.f32 %v4579, %v950
  %v4593 = vmul.f32 %v4585, %v954
  %4594 = vset.pattern.permute.xlu0 6
  %4595 = vperm.xlu0 %4594, %v4233
  %v4596 = vpop.permute.xlu0 %4595
  %4598 = vset.pattern.permute.xlu0 6
  %4599 = vperm.xlu0 %4598, %v4234
  %v4600 = vpop.permute.xlu0 %4599
  %v4602 = vmul.f32 %v4586, %v4596
  %v4603 = vmul.f32 %v4587, %v4596
  %v4604 = vmul.f32 %v4588, %v4596
  %v4605 = vmul.f32 %v4589, %v4596
  %v4606 = vmul.f32 %v4590, %v4600
  %v4607 = vmul.f32 %v4591, %v4600
  %v4608 = vmul.f32 %v4592, %v4600
  %v4609 = vmul.f32 %v4593, %v4600
  %v4610 = vadd.f32 %v4554, %v4602
  %v4611 = vadd.f32 %v4555, %v4603
  %v4612 = vadd.f32 %v4556, %v4604
  %v4613 = vadd.f32 %v4557, %v4605
  %v4614 = vadd.f32 %v4558, %v4606
  %v4615 = vadd.f32 %v4559, %v4607
  %v4616 = vadd.f32 %v4560, %v4608
  %v4617 = vadd.f32 %v4561, %v4609
  %4618 = vrot.lane.b32.xlu0 %v4256, 112
  %v4619 = vpop.permute.xlu0 %4618
  %4620 = vrot.lane.b32.xlu0 %v4260, 112
  %v4621 = vpop.permute.xlu0 %4620
  %4622 = vrot.lane.b32.xlu0 %v4257, 112
  %v4623 = vpop.permute.xlu0 %4622
  %4624 = vrot.lane.b32.xlu0 %v4261, 112
  %v4625 = vpop.permute.xlu0 %4624
  %4626 = vrot.lane.b32.xlu0 %v4258, 112
  %v4627 = vpop.permute.xlu0 %4626
  %4628 = vrot.lane.b32.xlu0 %v4262, 112
  %v4629 = vpop.permute.xlu0 %4628
  %4630 = vrot.lane.b32.xlu0 %v4259, 112
  %v4631 = vpop.permute.xlu0 %4630
  %4632 = vrot.lane.b32.xlu0 %v4263, 112
  %v4633 = vpop.permute.xlu0 %4632
  %v4634 = vsel %vm1003, %v4627, %v4631
  %v4635 = vsel %vm1003, %v4629, %v4633
  %v4636 = vsel %vm1003, %v4623, %v4627
  %v4637 = vsel %vm1003, %v4625, %v4629
  %v4638 = vsel %vm1003, %v4619, %v4623
  %v4639 = vsel %vm1003, %v4621, %v4625
  %v4640 = vsel %vm1003, %v4631, %v4619
  %v4641 = vsel %vm1003, %v4633, %v4621
  %v4642 = vmul.f32 %v4638, %v1015
  %v4643 = vmul.f32 %v4636, %v1019
  %v4644 = vmul.f32 %v4634, %v1023
  %v4645 = vmul.f32 %v4640, %v1027
  %v4646 = vmul.f32 %v4639, %v1015
  %v4647 = vmul.f32 %v4637, %v1019
  %v4648 = vmul.f32 %v4635, %v1023
  %v4649 = vmul.f32 %v4641, %v1027
  %4650 = vset.pattern.permute.xlu0 7
  %4651 = vperm.xlu0 %4650, %v4233
  %v4652 = vpop.permute.xlu0 %4651
  %4654 = vset.pattern.permute.xlu0 7
  %4655 = vperm.xlu0 %4654, %v4234
  %v4656 = vpop.permute.xlu0 %4655
  %v4658 = vmul.f32 %v4642, %v4652
  %v4659 = vmul.f32 %v4643, %v4652
  %v4660 = vmul.f32 %v4644, %v4652
  %v4661 = vmul.f32 %v4645, %v4652
  %v4662 = vmul.f32 %v4646, %v4656
  %v4663 = vmul.f32 %v4647, %v4656
  %v4664 = vmul.f32 %v4648, %v4656
  %v4665 = vmul.f32 %v4649, %v4656
  %v4666 = vadd.f32 %v4610, %v4658
  %v4667 = vadd.f32 %v4611, %v4659
  %v4668 = vadd.f32 %v4612, %v4660
  %v4669 = vadd.f32 %v4613, %v4661
  %v4670 = vadd.f32 %v4614, %v4662
  %v4671 = vadd.f32 %v4615, %v4663
  %v4672 = vadd.f32 %v4616, %v4664
  %v4673 = vadd.f32 %v4617, %v4665
  %4674 = vrot.lane.b32.xlu0 %v4256, 111
  %v4675 = vpop.permute.xlu0 %4674
  %4676 = vrot.lane.b32.xlu0 %v4260, 111
  %v4677 = vpop.permute.xlu0 %4676
  %4678 = vrot.lane.b32.xlu0 %v4257, 111
  %v4679 = vpop.permute.xlu0 %4678
  %4680 = vrot.lane.b32.xlu0 %v4261, 111
  %v4681 = vpop.permute.xlu0 %4680
  %4682 = vrot.lane.b32.xlu0 %v4258, 111
  %v4683 = vpop.permute.xlu0 %4682
  %4684 = vrot.lane.b32.xlu0 %v4262, 111
  %v4685 = vpop.permute.xlu0 %4684
  %4686 = vrot.lane.b32.xlu0 %v4259, 111
  %v4687 = vpop.permute.xlu0 %4686
  %4688 = vrot.lane.b32.xlu0 %v4263, 111
  %v4689 = vpop.permute.xlu0 %4688
  %v4690 = vsel %vm1076, %v4683, %v4687
  %v4691 = vsel %vm1076, %v4685, %v4689
  %v4692 = vsel %vm1076, %v4679, %v4683
  %v4693 = vsel %vm1076, %v4681, %v4685
  %v4694 = vsel %vm1076, %v4675, %v4679
  %v4695 = vsel %vm1076, %v4677, %v4681
  %v4696 = vsel %vm1076, %v4687, %v4675
  %v4697 = vsel %vm1076, %v4689, %v4677
  %v4698 = vmul.f32 %v4694, %v1088
  %v4699 = vmul.f32 %v4692, %v1092
  %v4700 = vmul.f32 %v4690, %v1096
  %v4701 = vmul.f32 %v4696, %v1100
  %v4702 = vmul.f32 %v4695, %v1088
  %v4703 = vmul.f32 %v4693, %v1092
  %v4704 = vmul.f32 %v4691, %v1096
  %v4705 = vmul.f32 %v4697, %v1100
  %4706 = vset.pattern.permute.xlu0 8
  %4707 = vperm.xlu0 %4706, %v4233
  %v4708 = vpop.permute.xlu0 %4707
  %4710 = vset.pattern.permute.xlu0 8
  %4711 = vperm.xlu0 %4710, %v4234
  %v4712 = vpop.permute.xlu0 %4711
  %v4714 = vmul.f32 %v4698, %v4708
  %v4715 = vmul.f32 %v4699, %v4708
  %v4716 = vmul.f32 %v4700, %v4708
  %v4717 = vmul.f32 %v4701, %v4708
  %v4718 = vmul.f32 %v4702, %v4712
  %v4719 = vmul.f32 %v4703, %v4712
  %v4720 = vmul.f32 %v4704, %v4712
  %v4721 = vmul.f32 %v4705, %v4712
  %v4722 = vadd.f32 %v4666, %v4714
  %v4723 = vadd.f32 %v4667, %v4715
  %v4724 = vadd.f32 %v4668, %v4716
  %v4725 = vadd.f32 %v4669, %v4717
  %v4726 = vadd.f32 %v4670, %v4718
  %v4727 = vadd.f32 %v4671, %v4719
  %v4728 = vadd.f32 %v4672, %v4720
  %v4729 = vadd.f32 %v4673, %v4721
  %v4731 = vsel %vm90, %v4236, 0
  %v4734 = vsel %vm90, %v4237, 0
  %4736 = vmatprep.subr.mxu0 %v4723
  %4737 = vmatpush1.msra.mxu0 %v4722
  %4738 = vmatprep.subr.mxu0 %v4727
  %4739 = vmatpush1.msra.mxu0 %v4726
  %4740 = vmatprep.subr.mxu0 0.0
  %4741 = vmatpush1.msra.mxu0 0.0
  %4742 = vmatprep.subr.mxu0 0.0
  %4743 = vmatpush1.msra.mxu0 0.0
  %4744 = vmatprep.subr.mxu0 0.0
  %4745 = vmatpush1.msra.mxu0 0.0
  %4746 = vmatprep.subr.mxu0 0.0
  %4747 = vmatpush1.msra.mxu0 0.0
  %4748 = vmatprep.subr.mxu0 0.0
  %4749 = vmatpush1.msra.mxu0 0.0
  %4750 = vmatprep.subr.mxu0 0.0
  %4751 = vmatpush1.msra.mxu0 0.0
  %4752 = vmatprep.subr.mxu0 0.0
  %4753 = vmatpush1.msra.mxu0 0.0
  %4754 = vmatprep.subr.mxu0 0.0
  %4755 = vmatpush1.msra.mxu0 0.0
  %4756 = vmatprep.subr.mxu0 0.0
  %4757 = vmatpush1.msra.mxu0 0.0
  %4758 = vmatprep.subr.mxu0 0.0
  %4759 = vmatpush1.msra.mxu0 0.0
  %4760 = vmatprep.subr.mxu0 0.0
  %4761 = vmatpush1.msra.mxu0 0.0
  %4762 = vmatprep.subr.mxu0 0.0
  %4763 = vmatpush1.msra.mxu0 0.0
  %4764 = vmatprep.subr.mxu0 0.0
  %4765 = vmatpush1.msra.mxu0 0.0
  %4766 = vmatprep.subr.mxu0 0.0
  %4767 = vmatpush1.msra.mxu0 0.0
  %4768 = vmatprep.subr.mxu0 0.0
  %4769 = vmatpush1.msra.mxu0 0.0
  %4770 = vmatprep.subr.mxu0 0.0
  %4771 = vmatpush1.msra.mxu0 0.0
  %4772 = vmatprep.subr.mxu0 0.0
  %4773 = vmatpush1.msra.mxu0 0.0
  %4774 = vmatprep.subr.mxu0 0.0
  %4775 = vmatpush1.msra.mxu0 0.0
  %4776 = vmatprep.subr.mxu0 0.0
  %4777 = vmatpush1.msra.mxu0 0.0
  %4778 = vmatprep.subr.mxu0 0.0
  %4779 = vmatpush1.msra.mxu0 0.0
  %4780 = vmatprep.subr.mxu0 0.0
  %4781 = vmatpush1.msra.mxu0 0.0
  %4782 = vmatprep.subr.mxu0 0.0
  %4783 = vmatpush1.msra.mxu0 0.0
  %4784 = vmatprep.subr.mxu0 0.0
  %4785 = vmatpush1.msra.mxu0 0.0
  %4786 = vmatprep.subr.mxu0 0.0
  %4787 = vmatpush1.msra.mxu0 0.0
  %4788 = vmatprep.subr.mxu0 0.0
  %4789 = vmatpush1.msra.mxu0 0.0
  %4790 = vmatprep.subr.mxu0 0.0
  %4791 = vmatpush1.msra.mxu0 0.0
  %4792 = vmatprep.subr.mxu0 0.0
  %4793 = vmatpush1.msra.mxu0 0.0
  %4794 = vmatprep.subr.mxu0 0.0
  %4795 = vmatpush1.msra.mxu0 0.0
  %4796 = vmatprep.subr.mxu0 0.0
  %4797 = vmatpush1.msra.mxu0 0.0
  %4798 = vmatprep.subr.mxu0 0.0
  %4799 = vmatpush1.msra.mxu0 0.0
  %4800 = vmatprep.mubr.f32.mxu0 0.0
  %4801 = vmatmul.mubr.f32.gmra.mrb[0].mxu0 %v4731
  %v4802 = vpop.f32.mrb[0].mxu0
  %v4803 = vadd.f32 0.0, %v4802
  %v4804 = vpop.f32.mrb[0].mxu0
  %v4805 = vadd.f32 0.0, %v4804
  %4806 = vmatprep.mubr.f32.mxu0 0.0
  %4807 = vmatmul.mubr.f32.gmra.mrb[0].mxu0 %v4734
  %v4808 = vpop.f32.mrb[0].mxu0
  %v4809 = vadd.f32 0.0, %v4808
  %v4810 = vpop.f32.mrb[0].mxu0
  %v4811 = vadd.f32 0.0, %v4810
  %4812 = vdwg.mxu0
  %4813 = vmatprep.subr.mxu0 %v4725
  %4814 = vmatpush1.msra.mxu0 %v4724
  %4815 = vmatprep.subr.mxu0 %v4729
  %4816 = vmatpush1.msra.mxu0 %v4728
  %4817 = vmatprep.subr.mxu0 0.0
  %4818 = vmatpush1.msra.mxu0 0.0
  %4819 = vmatprep.subr.mxu0 0.0
  %4820 = vmatpush1.msra.mxu0 0.0
  %4821 = vmatprep.subr.mxu0 0.0
  %4822 = vmatpush1.msra.mxu0 0.0
  %4823 = vmatprep.subr.mxu0 0.0
  %4824 = vmatpush1.msra.mxu0 0.0
  %4825 = vmatprep.subr.mxu0 0.0
  %4826 = vmatpush1.msra.mxu0 0.0
  %4827 = vmatprep.subr.mxu0 0.0
  %4828 = vmatpush1.msra.mxu0 0.0
  %4829 = vmatprep.subr.mxu0 0.0
  %4830 = vmatpush1.msra.mxu0 0.0
  %4831 = vmatprep.subr.mxu0 0.0
  %4832 = vmatpush1.msra.mxu0 0.0
  %4833 = vmatprep.subr.mxu0 0.0
  %4834 = vmatpush1.msra.mxu0 0.0
  %4835 = vmatprep.subr.mxu0 0.0
  %4836 = vmatpush1.msra.mxu0 0.0
  %4837 = vmatprep.subr.mxu0 0.0
  %4838 = vmatpush1.msra.mxu0 0.0
  %4839 = vmatprep.subr.mxu0 0.0
  %4840 = vmatpush1.msra.mxu0 0.0
  %4841 = vmatprep.subr.mxu0 0.0
  %4842 = vmatpush1.msra.mxu0 0.0
  %4843 = vmatprep.subr.mxu0 0.0
  %4844 = vmatpush1.msra.mxu0 0.0
  %4845 = vmatprep.subr.mxu0 0.0
  %4846 = vmatpush1.msra.mxu0 0.0
  %4847 = vmatprep.subr.mxu0 0.0
  %4848 = vmatpush1.msra.mxu0 0.0
  %4849 = vmatprep.subr.mxu0 0.0
  %4850 = vmatpush1.msra.mxu0 0.0
  %4851 = vmatprep.subr.mxu0 0.0
  %4852 = vmatpush1.msra.mxu0 0.0
  %4853 = vmatprep.subr.mxu0 0.0
  %4854 = vmatpush1.msra.mxu0 0.0
  %4855 = vmatprep.subr.mxu0 0.0
  %4856 = vmatpush1.msra.mxu0 0.0
  %4857 = vmatprep.subr.mxu0 0.0
  %4858 = vmatpush1.msra.mxu0 0.0
  %4859 = vmatprep.subr.mxu0 0.0
  %4860 = vmatpush1.msra.mxu0 0.0
  %4861 = vmatprep.subr.mxu0 0.0
  %4862 = vmatpush1.msra.mxu0 0.0
  %4863 = vmatprep.subr.mxu0 0.0
  %4864 = vmatpush1.msra.mxu0 0.0
  %4865 = vmatprep.subr.mxu0 0.0
  %4866 = vmatpush1.msra.mxu0 0.0
  %4867 = vmatprep.subr.mxu0 0.0
  %4868 = vmatpush1.msra.mxu0 0.0
  %4869 = vmatprep.subr.mxu0 0.0
  %4870 = vmatpush1.msra.mxu0 0.0
  %4871 = vmatprep.subr.mxu0 0.0
  %4872 = vmatpush1.msra.mxu0 0.0
  %4873 = vmatprep.subr.mxu0 0.0
  %4874 = vmatpush1.msra.mxu0 0.0
  %4875 = vmatprep.subr.mxu0 0.0
  %4876 = vmatpush1.msra.mxu0 0.0
  %4877 = vmatprep.mubr.f32.mxu0 0.0
  %4878 = vmatmul.mubr.f32.gmra.mrb[0].mxu0 %v4731
  %v4879 = vpop.f32.mrb[0].mxu0
  %v4880 = vadd.f32 0.0, %v4879
  %v4881 = vpop.f32.mrb[0].mxu0
  %v4882 = vadd.f32 0.0, %v4881
  %4883 = vmatprep.mubr.f32.mxu0 0.0
  %4884 = vmatmul.mubr.f32.gmra.mrb[0].mxu0 %v4734
  %v4885 = vpop.f32.mrb[0].mxu0
  %v4886 = vadd.f32 0.0, %v4885
  %v4887 = vpop.f32.mrb[0].mxu0
  %v4888 = vadd.f32 0.0, %v4887
  %4889 = vdwg.mxu0
  %4891 = vset.pattern.permute.xlu0 0
  %4892 = vperm.xlu0 %4891, %v4239
  %v4893 = vpop.permute.xlu0 %4892
  %4896 = vset.pattern.permute.xlu0 0
  %4897 = vperm.xlu0 %4896, %v4240
  %v4898 = vpop.permute.xlu0 %4897
  %v4900 = vmul.f32 %v4803, %v4893
  %v4901 = vmul.f32 %v4805, %v4893
  %v4902 = vmul.f32 %v4880, %v4893
  %v4903 = vmul.f32 %v4882, %v4893
  %v4904 = vmul.f32 %v4809, %v4898
  %v4905 = vmul.f32 %v4811, %v4898
  %v4906 = vmul.f32 %v4886, %v4898
  %v4907 = vmul.f32 %v4888, %v4898
  %4909 = vset.pattern.permute.xlu0 0
  %4910 = vperm.xlu0 %4909, %v4242
  %v4911 = vpop.permute.xlu0 %4910
  %4914 = vset.pattern.permute.xlu0 0
  %4915 = vperm.xlu0 %4914, %v4243
  %v4916 = vpop.permute.xlu0 %4915
  %v4918 = vadd.f32 %v4900, %v4911
  %v4919 = vadd.f32 %v4901, %v4911
  %v4920 = vadd.f32 %v4902, %v4911
  %v4921 = vadd.f32 %v4903, %v4911
  %v4922 = vadd.f32 %v4904, %v4916
  %v4923 = vadd.f32 %v4905, %v4916
  %v4924 = vadd.f32 %v4906, %v4916
  %v4925 = vadd.f32 %v4907, %v4916
  %v4926 = vmax.f32 %v4918, 0.0
  %v4927 = vmax.f32 %v4919, 0.0
  %v4928 = vmax.f32 %v4920, 0.0
  %v4929 = vmax.f32 %v4921, 0.0
  %v4930 = vmax.f32 %v4922, 0.0
  %v4931 = vmax.f32 %v4923, 0.0
  %v4932 = vmax.f32 %v4924, 0.0
  %v4933 = vmax.f32 %v4925, 0.0
  %4934 = vrot.lane.b32.xlu0 %v4926, 17
  %v4935 = vpop.permute.xlu0 %4934
  %4936 = vrot.lane.b32.xlu0 %v4930, 17
  %v4937 = vpop.permute.xlu0 %4936
  %4938 = vrot.lane.b32.xlu0 %v4927, 17
  %v4939 = vpop.permute.xlu0 %4938
  %4940 = vrot.lane.b32.xlu0 %v4931, 17
  %v4941 = vpop.permute.xlu0 %4940
  %4942 = vrot.lane.b32.xlu0 %v4928, 17
  %v4943 = vpop.permute.xlu0 %4942
  %4944 = vrot.lane.b32.xlu0 %v4932, 17
  %v4945 = vpop.permute.xlu0 %4944
  %4946 = vrot.lane.b32.xlu0 %v4929, 17
  %v4947 = vpop.permute.xlu0 %4946
  %4948 = vrot.lane.b32.xlu0 %v4933, 17
  %v4949 = vpop.permute.xlu0 %4948
  %v4950 = vsel %vm547, %v4943, %v4947
  %v4951 = vsel %vm547, %v4945, %v4949
  %v4952 = vsel %vm547, %v4939, %v4943
  %v4953 = vsel %vm547, %v4941, %v4945
  %v4954 = vsel %vm547, %v4935, %v4939
  %v4955 = vsel %vm547, %v4937, %v4941
  %v4956 = vsel %vm547, %v4947, %v4935
  %v4957 = vsel %vm547, %v4949, %v4937
  %v4958 = vmul.f32 %v4956, %v559
  %v4959 = vmul.f32 %v4954, %v563
  %v4960 = vmul.f32 %v4952, %v567
  %v4961 = vmul.f32 %v4950, %v571
  %v4962 = vmul.f32 %v4957, %v559
  %v4963 = vmul.f32 %v4955, %v563
  %v4964 = vmul.f32 %v4953, %v567
  %v4965 = vmul.f32 %v4951, %v571
  %4967 = vset.pattern.permute.xlu0 0
  %4968 = vperm.xlu0 %4967, %v4245
  %v4969 = vpop.permute.xlu0 %4968
  %4972 = vset.pattern.permute.xlu0 0
  %4973 = vperm.xlu0 %4972, %v4246
  %v4974 = vpop.permute.xlu0 %4973
  %v4976 = vmul.f32 %v4958, %v4969
  %v4977 = vmul.f32 %v4959, %v4969
  %v4978 = vmul.f32 %v4960, %v4969
  %v4979 = vmul.f32 %v4961, %v4969
  %v4980 = vmul.f32 %v4962, %v4974
  %v4981 = vmul.f32 %v4963, %v4974
  %v4982 = vmul.f32 %v4964, %v4974
  %v4983 = vmul.f32 %v4965, %v4974
  %4984 = vrot.lane.b32.xlu0 %v4926, 16
  %v4985 = vpop.permute.xlu0 %4984
  %4986 = vrot.lane.b32.xlu0 %v4930, 16
  %v4987 = vpop.permute.xlu0 %4986
  %4988 = vrot.lane.b32.xlu0 %v4927, 16
  %v4989 = vpop.permute.xlu0 %4988
  %4990 = vrot.lane.b32.xlu0 %v4931, 16
  %v4991 = vpop.permute.xlu0 %4990
  %4992 = vrot.lane.b32.xlu0 %v4928, 16
  %v4993 = vpop.permute.xlu0 %4992
  %4994 = vrot.lane.b32.xlu0 %v4932, 16
  %v4995 = vpop.permute.xlu0 %4994
  %4996 = vrot.lane.b32.xlu0 %v4929, 16
  %v4997 = vpop.permute.xlu0 %4996
  %4998 = vrot.lane.b32.xlu0 %v4933, 16
  %v4999 = vpop.permute.xlu0 %4998
  %v5000 = vsel %vm614, %v4993, %v4997
  %v5001 = vsel %vm614, %v4995, %v4999
  %v5002 = vsel %vm614, %v4989, %v4993
  %v5003 = vsel %vm614, %v4991, %v4995
  %v5004 = vsel %vm614, %v4985, %v4989
  %v5005 = vsel %vm614, %v4987, %v4991
  %v5006 = vsel %vm614, %v4997, %v4985
  %v5007 = vsel %vm614, %v4999, %v4987
  %v5008 = vmul.f32 %v5006, %v626
  %v5009 = vmul.f32 %v5004, %v630
  %v5010 = vmul.f32 %v5002, %v634
  %v5011 = vmul.f32 %v5000, %v638
  %v5012 = vmul.f32 %v5007, %v626
  %v5013 = vmul.f32 %v5005, %v630
  %v5014 = vmul.f32 %v5003, %v634
  %v5015 = vmul.f32 %v5001, %v638
  %5016 = vset.pattern.permute.xlu0 1
  %5017 = vperm.xlu0 %5016, %v4245
  %v5018 = vpop.permute.xlu0 %5017
  %5020 = vset.pattern.permute.xlu0 1
  %5021 = vperm.xlu0 %5020, %v4246
  %v5022 = vpop.permute.xlu0 %5021
  %v5024 = vmul.f32 %v5008, %v5018
  %v5025 = vmul.f32 %v5009, %v5018
  %v5026 = vmul.f32 %v5010, %v5018
  %v5027 = vmul.f32 %v5011, %v5018
  %v5028 = vmul.f32 %v5012, %v5022
  %v5029 = vmul.f32 %v5013, %v5022
  %v5030 = vmul.f32 %v5014, %v5022
  %v5031 = vmul.f32 %v5015, %v5022
  %v5032 = vadd.f32 %v4976, %v5024
  %v5033 = vadd.f32 %v4977, %v5025
  %v5034 = vadd.f32 %v4978, %v5026
  %v5035 = vadd.f32 %v4979, %v5027
  %v5036 = vadd.f32 %v4980, %v5028
  %v5037 = vadd.f32 %v4981, %v5029
  %v5038 = vadd.f32 %v4982, %v5030
  %v5039 = vadd.f32 %v4983, %v5031
  %5040 = vrot.lane.b32.xlu0 %v4926, 15
  %v5041 = vpop.permute.xlu0 %5040
  %5042 = vrot.lane.b32.xlu0 %v4930, 15
  %v5043 = vpop.permute.xlu0 %5042
  %5044 = vrot.lane.b32.xlu0 %v4927, 15
  %v5045 = vpop.permute.xlu0 %5044
  %5046 = vrot.lane.b32.xlu0 %v4931, 15
  %v5047 = vpop.permute.xlu0 %5046
  %5048 = vrot.lane.b32.xlu0 %v4928, 15
  %v5049 = vpop.permute.xlu0 %5048
  %5050 = vrot.lane.b32.xlu0 %v4932, 15
  %v5051 = vpop.permute.xlu0 %5050
  %5052 = vrot.lane.b32.xlu0 %v4929, 15
  %v5053 = vpop.permute.xlu0 %5052
  %5054 = vrot.lane.b32.xlu0 %v4933, 15
  %v5055 = vpop.permute.xlu0 %5054
  %v5056 = vsel %vm687, %v5049, %v5053
  %v5057 = vsel %vm687, %v5051, %v5055
  %v5058 = vsel %vm687, %v5045, %v5049
  %v5059 = vsel %vm687, %v5047, %v5051
  %v5060 = vsel %vm687, %v5041, %v5045
  %v5061 = vsel %vm687, %v5043, %v5047
  %v5062 = vsel %vm687, %v5053, %v5041
  %v5063 = vsel %vm687, %v5055, %v5043
  %v5064 = vmul.f32 %v5062, %v699
  %v5065 = vmul.f32 %v5060, %v703
  %v5066 = vmul.f32 %v5058, %v707
  %v5067 = vmul.f32 %v5056, %v711
  %v5068 = vmul.f32 %v5063, %v699
  %v5069 = vmul.f32 %v5061, %v703
  %v5070 = vmul.f32 %v5059, %v707
  %v5071 = vmul.f32 %v5057, %v711
  %5072 = vset.pattern.permute.xlu0 2
  %5073 = vperm.xlu0 %5072, %v4245
  %v5074 = vpop.permute.xlu0 %5073
  %5076 = vset.pattern.permute.xlu0 2
  %5077 = vperm.xlu0 %5076, %v4246
  %v5078 = vpop.permute.xlu0 %5077
  %v5080 = vmul.f32 %v5064, %v5074
  %v5081 = vmul.f32 %v5065, %v5074
  %v5082 = vmul.f32 %v5066, %v5074
  %v5083 = vmul.f32 %v5067, %v5074
  %v5084 = vmul.f32 %v5068, %v5078
  %v5085 = vmul.f32 %v5069, %v5078
  %v5086 = vmul.f32 %v5070, %v5078
  %v5087 = vmul.f32 %v5071, %v5078
  %v5088 = vadd.f32 %v5032, %v5080
  %v5089 = vadd.f32 %v5033, %v5081
  %v5090 = vadd.f32 %v5034, %v5082
  %v5091 = vadd.f32 %v5035, %v5083
  %v5092 = vadd.f32 %v5036, %v5084
  %v5093 = vadd.f32 %v5037, %v5085
  %v5094 = vadd.f32 %v5038, %v5086
  %v5095 = vadd.f32 %v5039, %v5087
  %5096 = vrot.lane.b32.xlu0 %v4926, 1
  %v5097 = vpop.permute.xlu0 %5096
  %5098 = vrot.lane.b32.xlu0 %v4930, 1
  %v5099 = vpop.permute.xlu0 %5098
  %5100 = vrot.lane.b32.xlu0 %v4927, 1
  %v5101 = vpop.permute.xlu0 %5100
  %5102 = vrot.lane.b32.xlu0 %v4931, 1
  %v5103 = vpop.permute.xlu0 %5102
  %5104 = vrot.lane.b32.xlu0 %v4928, 1
  %v5105 = vpop.permute.xlu0 %5104
  %5106 = vrot.lane.b32.xlu0 %v4932, 1
  %v5107 = vpop.permute.xlu0 %5106
  %5108 = vrot.lane.b32.xlu0 %v4929, 1
  %v5109 = vpop.permute.xlu0 %5108
  %5110 = vrot.lane.b32.xlu0 %v4933, 1
  %v5111 = vpop.permute.xlu0 %5110
  %v5112 = vsel %vm760, %v5105, %v5109
  %v5113 = vsel %vm760, %v5107, %v5111
  %v5114 = vsel %vm760, %v5101, %v5105
  %v5115 = vsel %vm760, %v5103, %v5107
  %v5116 = vsel %vm760, %v5097, %v5101
  %v5117 = vsel %vm760, %v5099, %v5103
  %v5118 = vsel %vm760, %v5109, %v5097
  %v5119 = vsel %vm760, %v5111, %v5099
  %v5120 = vmul.f32 %v5118, %v772
  %v5121 = vmul.f32 %v5116, %v776
  %v5122 = vmul.f32 %v5114, %v780
  %v5123 = vmul.f32 %v5112, %v784
  %v5124 = vmul.f32 %v5119, %v772
  %v5125 = vmul.f32 %v5117, %v776
  %v5126 = vmul.f32 %v5115, %v780
  %v5127 = vmul.f32 %v5113, %v784
  %5128 = vset.pattern.permute.xlu0 3
  %5129 = vperm.xlu0 %5128, %v4245
  %v5130 = vpop.permute.xlu0 %5129
  %5132 = vset.pattern.permute.xlu0 3
  %5133 = vperm.xlu0 %5132, %v4246
  %v5134 = vpop.permute.xlu0 %5133
  %v5136 = vmul.f32 %v5120, %v5130
  %v5137 = vmul.f32 %v5121, %v5130
  %v5138 = vmul.f32 %v5122, %v5130
  %v5139 = vmul.f32 %v5123, %v5130
  %v5140 = vmul.f32 %v5124, %v5134
  %v5141 = vmul.f32 %v5125, %v5134
  %v5142 = vmul.f32 %v5126, %v5134
  %v5143 = vmul.f32 %v5127, %v5134
  %v5144 = vadd.f32 %v5088, %v5136
  %v5145 = vadd.f32 %v5089, %v5137
  %v5146 = vadd.f32 %v5090, %v5138
  %v5147 = vadd.f32 %v5091, %v5139
  %v5148 = vadd.f32 %v5092, %v5140
  %v5149 = vadd.f32 %v5093, %v5141
  %v5150 = vadd.f32 %v5094, %v5142
  %v5151 = vadd.f32 %v5095, %v5143
  %5152 = vset.pattern.permute.xlu0 4
  %5153 = vperm.xlu0 %5152, %v4245
  %v5154 = vpop.permute.xlu0 %5153
  %5156 = vset.pattern.permute.xlu0 4
  %5157 = vperm.xlu0 %5156, %v4246
  %v5158 = vpop.permute.xlu0 %5157
  %v5160 = vmul.f32 %v4926, %v5154
  %v5161 = vmul.f32 %v4927, %v5154
  %v5162 = vmul.f32 %v4928, %v5154
  %v5163 = vmul.f32 %v4929, %v5154
  %v5164 = vmul.f32 %v4930, %v5158
  %v5165 = vmul.f32 %v4931, %v5158
  %v5166 = vmul.f32 %v4932, %v5158
  %v5167 = vmul.f32 %v4933, %v5158
  %v5168 = vadd.f32 %v5144, %v5160
  %v5169 = vadd.f32 %v5145, %v5161
  %v5170 = vadd.f32 %v5146, %v5162
  %v5171 = vadd.f32 %v5147, %v5163
  %v5172 = vadd.f32 %v5148, %v5164
  %v5173 = vadd.f32 %v5149, %v5165
  %v5174 = vadd.f32 %v5150, %v5166
  %v5175 = vadd.f32 %v5151, %v5167
  %5176 = vrot.lane.b32.xlu0 %v4926, 127
  %v5177 = vpop.permute.xlu0 %5176
  %5178 = vrot.lane.b32.xlu0 %v4930, 127
  %v5179 = vpop.permute.xlu0 %5178
  %5180 = vrot.lane.b32.xlu0 %v4927, 127
  %v5181 = vpop.permute.xlu0 %5180
  %5182 = vrot.lane.b32.xlu0 %v4931, 127
  %v5183 = vpop.permute.xlu0 %5182
  %5184 = vrot.lane.b32.xlu0 %v4928, 127
  %v5185 = vpop.permute.xlu0 %5184
  %5186 = vrot.lane.b32.xlu0 %v4932, 127
  %v5187 = vpop.permute.xlu0 %5186
  %5188 = vrot.lane.b32.xlu0 %v4929, 127
  %v5189 = vpop.permute.xlu0 %5188
  %5190 = vrot.lane.b32.xlu0 %v4933, 127
  %v5191 = vpop.permute.xlu0 %5190
  %v5192 = vsel %vm857, %v5185, %v5189
  %v5193 = vsel %vm857, %v5187, %v5191
  %v5194 = vsel %vm857, %v5181, %v5185
  %v5195 = vsel %vm857, %v5183, %v5187
  %v5196 = vsel %vm857, %v5177, %v5181
  %v5197 = vsel %vm857, %v5179, %v5183
  %v5198 = vsel %vm857, %v5189, %v5177
  %v5199 = vsel %vm857, %v5191, %v5179
  %v5200 = vmul.f32 %v5196, %v869
  %v5201 = vmul.f32 %v5194, %v873
  %v5202 = vmul.f32 %v5192, %v877
  %v5203 = vmul.f32 %v5198, %v881
  %v5204 = vmul.f32 %v5197, %v869
  %v5205 = vmul.f32 %v5195, %v873
  %v5206 = vmul.f32 %v5193, %v877
  %v5207 = vmul.f32 %v5199, %v881
  %5208 = vset.pattern.permute.xlu0 5
  %5209 = vperm.xlu0 %5208, %v4245
  %v5210 = vpop.permute.xlu0 %5209
  %5212 = vset.pattern.permute.xlu0 5
  %5213 = vperm.xlu0 %5212, %v4246
  %v5214 = vpop.permute.xlu0 %5213
  %v5216 = vmul.f32 %v5200, %v5210
  %v5217 = vmul.f32 %v5201, %v5210
  %v5218 = vmul.f32 %v5202, %v5210
  %v5219 = vmul.f32 %v5203, %v5210
  %v5220 = vmul.f32 %v5204, %v5214
  %v5221 = vmul.f32 %v5205, %v5214
  %v5222 = vmul.f32 %v5206, %v5214
  %v5223 = vmul.f32 %v5207, %v5214
  %v5224 = vadd.f32 %v5168, %v5216
  %v5225 = vadd.f32 %v5169, %v5217
  %v5226 = vadd.f32 %v5170, %v5218
  %v5227 = vadd.f32 %v5171, %v5219
  %v5228 = vadd.f32 %v5172, %v5220
  %v5229 = vadd.f32 %v5173, %v5221
  %v5230 = vadd.f32 %v5174, %v5222
  %v5231 = vadd.f32 %v5175, %v5223
  %5232 = vrot.lane.b32.xlu0 %v4926, 113
  %v5233 = vpop.permute.xlu0 %5232
  %5234 = vrot.lane.b32.xlu0 %v4930, 113
  %v5235 = vpop.permute.xlu0 %5234
  %5236 = vrot.lane.b32.xlu0 %v4927, 113
  %v5237 = vpop.permute.xlu0 %5236
  %5238 = vrot.lane.b32.xlu0 %v4931, 113
  %v5239 = vpop.permute.xlu0 %5238
  %5240 = vrot.lane.b32.xlu0 %v4928, 113
  %v5241 = vpop.permute.xlu0 %5240
  %5242 = vrot.lane.b32.xlu0 %v4932, 113
  %v5243 = vpop.permute.xlu0 %5242
  %5244 = vrot.lane.b32.xlu0 %v4929, 113
  %v5245 = vpop.permute.xlu0 %5244
  %5246 = vrot.lane.b32.xlu0 %v4933, 113
  %v5247 = vpop.permute.xlu0 %5246
  %v5248 = vsel %vm930, %v5241, %v5245
  %v5249 = vsel %vm930, %v5243, %v5247
  %v5250 = vsel %vm930, %v5237, %v5241
  %v5251 = vsel %vm930, %v5239, %v5243
  %v5252 = vsel %vm930, %v5233, %v5237
  %v5253 = vsel %vm930, %v5235, %v5239
  %v5254 = vsel %vm930, %v5245, %v5233
  %v5255 = vsel %vm930, %v5247, %v5235
  %v5256 = vmul.f32 %v5252, %v942
  %v5257 = vmul.f32 %v5250, %v946
  %v5258 = vmul.f32 %v5248, %v950
  %v5259 = vmul.f32 %v5254, %v954
  %v5260 = vmul.f32 %v5253, %v942
  %v5261 = vmul.f32 %v5251, %v946
  %v5262 = vmul.f32 %v5249, %v950
  %v5263 = vmul.f32 %v5255, %v954
  %5264 = vset.pattern.permute.xlu0 6
  %5265 = vperm.xlu0 %5264, %v4245
  %v5266 = vpop.permute.xlu0 %5265
  %5268 = vset.pattern.permute.xlu0 6
  %5269 = vperm.xlu0 %5268, %v4246
  %v5270 = vpop.permute.xlu0 %5269
  %v5272 = vmul.f32 %v5256, %v5266
  %v5273 = vmul.f32 %v5257, %v5266
  %v5274 = vmul.f32 %v5258, %v5266
  %v5275 = vmul.f32 %v5259, %v5266
  %v5276 = vmul.f32 %v5260, %v5270
  %v5277 = vmul.f32 %v5261, %v5270
  %v5278 = vmul.f32 %v5262, %v5270
  %v5279 = vmul.f32 %v5263, %v5270
  %v5280 = vadd.f32 %v5224, %v5272
  %v5281 = vadd.f32 %v5225, %v5273
  %v5282 = vadd.f32 %v5226, %v5274
  %v5283 = vadd.f32 %v5227, %v5275
  %v5284 = vadd.f32 %v5228, %v5276
  %v5285 = vadd.f32 %v5229, %v5277
  %v5286 = vadd.f32 %v5230, %v5278
  %v5287 = vadd.f32 %v5231, %v5279
  %5288 = vrot.lane.b32.xlu0 %v4926, 112
  %v5289 = vpop.permute.xlu0 %5288
  %5290 = vrot.lane.b32.xlu0 %v4930, 112
  %v5291 = vpop.permute.xlu0 %5290
  %5292 = vrot.lane.b32.xlu0 %v4927, 112
  %v5293 = vpop.permute.xlu0 %5292
  %5294 = vrot.lane.b32.xlu0 %v4931, 112
  %v5295 = vpop.permute.xlu0 %5294
  %5296 = vrot.lane.b32.xlu0 %v4928, 112
  %v5297 = vpop.permute.xlu0 %5296
  %5298 = vrot.lane.b32.xlu0 %v4932, 112
  %v5299 = vpop.permute.xlu0 %5298
  %5300 = vrot.lane.b32.xlu0 %v4929, 112
  %v5301 = vpop.permute.xlu0 %5300
  %5302 = vrot.lane.b32.xlu0 %v4933, 112
  %v5303 = vpop.permute.xlu0 %5302
  %v5304 = vsel %vm1003, %v5297, %v5301
  %v5305 = vsel %vm1003, %v5299, %v5303
  %v5306 = vsel %vm1003, %v5293, %v5297
  %v5307 = vsel %vm1003, %v5295, %v5299
  %v5308 = vsel %vm1003, %v5289, %v5293
  %v5309 = vsel %vm1003, %v5291, %v5295
  %v5310 = vsel %vm1003, %v5301, %v5289
  %v5311 = vsel %vm1003, %v5303, %v5291
  %v5312 = vmul.f32 %v5308, %v1015
  %v5313 = vmul.f32 %v5306, %v1019
  %v5314 = vmul.f32 %v5304, %v1023
  %v5315 = vmul.f32 %v5310, %v1027
  %v5316 = vmul.f32 %v5309, %v1015
  %v5317 = vmul.f32 %v5307, %v1019
  %v5318 = vmul.f32 %v5305, %v1023
  %v5319 = vmul.f32 %v5311, %v1027
  %5320 = vset.pattern.permute.xlu0 7
  %5321 = vperm.xlu0 %5320, %v4245
  %v5322 = vpop.permute.xlu0 %5321
  %5324 = vset.pattern.permute.xlu0 7
  %5325 = vperm.xlu0 %5324, %v4246
  %v5326 = vpop.permute.xlu0 %5325
  %v5328 = vmul.f32 %v5312, %v5322
  %v5329 = vmul.f32 %v5313, %v5322
  %v5330 = vmul.f32 %v5314, %v5322
  %v5331 = vmul.f32 %v5315, %v5322
  %v5332 = vmul.f32 %v5316, %v5326
  %v5333 = vmul.f32 %v5317, %v5326
  %v5334 = vmul.f32 %v5318, %v5326
  %v5335 = vmul.f32 %v5319, %v5326
  %v5336 = vadd.f32 %v5280, %v5328
  %v5337 = vadd.f32 %v5281, %v5329
  %v5338 = vadd.f32 %v5282, %v5330
  %v5339 = vadd.f32 %v5283, %v5331
  %v5340 = vadd.f32 %v5284, %v5332
  %v5341 = vadd.f32 %v5285, %v5333
  %v5342 = vadd.f32 %v5286, %v5334
  %v5343 = vadd.f32 %v5287, %v5335
  %5344 = vrot.lane.b32.xlu0 %v4926, 111
  %v5345 = vpop.permute.xlu0 %5344
  %5346 = vrot.lane.b32.xlu0 %v4930, 111
  %v5347 = vpop.permute.xlu0 %5346
  %5348 = vrot.lane.b32.xlu0 %v4927, 111
  %v5349 = vpop.permute.xlu0 %5348
  %5350 = vrot.lane.b32.xlu0 %v4931, 111
  %v5351 = vpop.permute.xlu0 %5350
  %5352 = vrot.lane.b32.xlu0 %v4928, 111
  %v5353 = vpop.permute.xlu0 %5352
  %5354 = vrot.lane.b32.xlu0 %v4932, 111
  %v5355 = vpop.permute.xlu0 %5354
  %5356 = vrot.lane.b32.xlu0 %v4929, 111
  %v5357 = vpop.permute.xlu0 %5356
  %5358 = vrot.lane.b32.xlu0 %v4933, 111
  %v5359 = vpop.permute.xlu0 %5358
  %v5360 = vsel %vm1076, %v5353, %v5357
  %v5361 = vsel %vm1076, %v5355, %v5359
  %v5362 = vsel %vm1076, %v5349, %v5353
  %v5363 = vsel %vm1076, %v5351, %v5355
  %v5364 = vsel %vm1076, %v5345, %v5349
  %v5365 = vsel %vm1076, %v5347, %v5351
  %v5366 = vsel %vm1076, %v5357, %v5345
  %v5367 = vsel %vm1076, %v5359, %v5347
  %v5368 = vmul.f32 %v5364, %v1088
  %v5369 = vmul.f32 %v5362, %v1092
  %v5370 = vmul.f32 %v5360, %v1096
  %v5371 = vmul.f32 %v5366, %v1100
  %v5372 = vmul.f32 %v5365, %v1088
  %v5373 = vmul.f32 %v5363, %v1092
  %v5374 = vmul.f32 %v5361, %v1096
  %v5375 = vmul.f32 %v5367, %v1100
  %5376 = vset.pattern.permute.xlu0 8
  %5377 = vperm.xlu0 %5376, %v4245
  %v5378 = vpop.permute.xlu0 %5377
  %5380 = vset.pattern.permute.xlu0 8
  %5381 = vperm.xlu0 %5380, %v4246
  %v5382 = vpop.permute.xlu0 %5381
  %v5384 = vmul.f32 %v5368, %v5378
  %v5385 = vmul.f32 %v5369, %v5378
  %v5386 = vmul.f32 %v5370, %v5378
  %v5387 = vmul.f32 %v5371, %v5378
  %v5388 = vmul.f32 %v5372, %v5382
  %v5389 = vmul.f32 %v5373, %v5382
  %v5390 = vmul.f32 %v5374, %v5382
  %v5391 = vmul.f32 %v5375, %v5382
  %v5392 = vadd.f32 %v5336, %v5384
  %v5393 = vadd.f32 %v5337, %v5385
  %v5394 = vadd.f32 %v5338, %v5386
  %v5395 = vadd.f32 %v5339, %v5387
  %v5396 = vadd.f32 %v5340, %v5388
  %v5397 = vadd.f32 %v5341, %v5389
  %v5398 = vadd.f32 %v5342, %v5390
  %v5399 = vadd.f32 %v5343, %v5391
  %v5401 = vsel %vm90, %v4248, 0
  %v5404 = vsel %vm90, %v4249, 0
  %5406 = vmatprep.subr.mxu0 %v5393
  %5407 = vmatpush1.msra.mxu0 %v5392
  %5408 = vmatprep.subr.mxu0 %v5397
  %5409 = vmatpush1.msra.mxu0 %v5396
  %5410 = vmatprep.subr.mxu0 0.0
  %5411 = vmatpush1.msra.mxu0 0.0
  %5412 = vmatprep.subr.mxu0 0.0
  %5413 = vmatpush1.msra.mxu0 0.0
  %5414 = vmatprep.subr.mxu0 0.0
  %5415 = vmatpush1.msra.mxu0 0.0
  %5416 = vmatprep.subr.mxu0 0.0
  %5417 = vmatpush1.msra.mxu0 0.0
  %5418 = vmatprep.subr.mxu0 0.0
  %5419 = vmatpush1.msra.mxu0 0.0
  %5420 = vmatprep.subr.mxu0 0.0
  %5421 = vmatpush1.msra.mxu0 0.0
  %5422 = vmatprep.subr.mxu0 0.0
  %5423 = vmatpush1.msra.mxu0 0.0
  %5424 = vmatprep.subr.mxu0 0.0
  %5425 = vmatpush1.msra.mxu0 0.0
  %5426 = vmatprep.subr.mxu0 0.0
  %5427 = vmatpush1.msra.mxu0 0.0
  %5428 = vmatprep.subr.mxu0 0.0
  %5429 = vmatpush1.msra.mxu0 0.0
  %5430 = vmatprep.subr.mxu0 0.0
  %5431 = vmatpush1.msra.mxu0 0.0
  %5432 = vmatprep.subr.mxu0 0.0
  %5433 = vmatpush1.msra.mxu0 0.0
  %5434 = vmatprep.subr.mxu0 0.0
  %5435 = vmatpush1.msra.mxu0 0.0
  %5436 = vmatprep.subr.mxu0 0.0
  %5437 = vmatpush1.msra.mxu0 0.0
  %5438 = vmatprep.subr.mxu0 0.0
  %5439 = vmatpush1.msra.mxu0 0.0
  %5440 = vmatprep.subr.mxu0 0.0
  %5441 = vmatpush1.msra.mxu0 0.0
  %5442 = vmatprep.subr.mxu0 0.0
  %5443 = vmatpush1.msra.mxu0 0.0
  %5444 = vmatprep.subr.mxu0 0.0
  %5445 = vmatpush1.msra.mxu0 0.0
  %5446 = vmatprep.subr.mxu0 0.0
  %5447 = vmatpush1.msra.mxu0 0.0
  %5448 = vmatprep.subr.mxu0 0.0
  %5449 = vmatpush1.msra.mxu0 0.0
  %5450 = vmatprep.subr.mxu0 0.0
  %5451 = vmatpush1.msra.mxu0 0.0
  %5452 = vmatprep.subr.mxu0 0.0
  %5453 = vmatpush1.msra.mxu0 0.0
  %5454 = vmatprep.subr.mxu0 0.0
  %5455 = vmatpush1.msra.mxu0 0.0
  %5456 = vmatprep.subr.mxu0 0.0
  %5457 = vmatpush1.msra.mxu0 0.0
  %5458 = vmatprep.subr.mxu0 0.0
  %5459 = vmatpush1.msra.mxu0 0.0
  %5460 = vmatprep.subr.mxu0 0.0
  %5461 = vmatpush1.msra.mxu0 0.0
  %5462 = vmatprep.subr.mxu0 0.0
  %5463 = vmatpush1.msra.mxu0 0.0
  %5464 = vmatprep.subr.mxu0 0.0
  %5465 = vmatpush1.msra.mxu0 0.0
  %5466 = vmatprep.subr.mxu0 0.0
  %5467 = vmatpush1.msra.mxu0 0.0
  %5468 = vmatprep.subr.mxu0 0.0
  %5469 = vmatpush1.msra.mxu0 0.0
  %5470 = vmatprep.mubr.f32.mxu0 0.0
  %5471 = vmatmul.mubr.f32.gmra.mrb[0].mxu0 %v5401
  %v5472 = vpop.f32.mrb[0].mxu0
  %v5473 = vadd.f32 0.0, %v5472
  %v5474 = vpop.f32.mrb[0].mxu0
  %v5475 = vadd.f32 0.0, %v5474
  %5476 = vmatprep.mubr.f32.mxu0 0.0
  %5477 = vmatmul.mubr.f32.gmra.mrb[0].mxu0 %v5404
  %v5478 = vpop.f32.mrb[0].mxu0
  %v5479 = vadd.f32 0.0, %v5478
  %v5480 = vpop.f32.mrb[0].mxu0
  %v5481 = vadd.f32 0.0, %v5480
  %5482 = vdwg.mxu0
  %5483 = vmatprep.subr.mxu0 %v5395
  %5484 = vmatpush1.msra.mxu0 %v5394
  %5485 = vmatprep.subr.mxu0 %v5399
  %5486 = vmatpush1.msra.mxu0 %v5398
  %5487 = vmatprep.subr.mxu0 0.0
  %5488 = vmatpush1.msra.mxu0 0.0
  %5489 = vmatprep.subr.mxu0 0.0
  %5490 = vmatpush1.msra.mxu0 0.0
  %5491 = vmatprep.subr.mxu0 0.0
  %5492 = vmatpush1.msra.mxu0 0.0
  %5493 = vmatprep.subr.mxu0 0.0
  %5494 = vmatpush1.msra.mxu0 0.0
  %5495 = vmatprep.subr.mxu0 0.0
  %5496 = vmatpush1.msra.mxu0 0.0
  %5497 = vmatprep.subr.mxu0 0.0
  %5498 = vmatpush1.msra.mxu0 0.0
  %5499 = vmatprep.subr.mxu0 0.0
  %5500 = vmatpush1.msra.mxu0 0.0
  %5501 = vmatprep.subr.mxu0 0.0
  %5502 = vmatpush1.msra.mxu0 0.0
  %5503 = vmatprep.subr.mxu0 0.0
  %5504 = vmatpush1.msra.mxu0 0.0
  %5505 = vmatprep.subr.mxu0 0.0
  %5506 = vmatpush1.msra.mxu0 0.0
  %5507 = vmatprep.subr.mxu0 0.0
  %5508 = vmatpush1.msra.mxu0 0.0
  %5509 = vmatprep.subr.mxu0 0.0
  %5510 = vmatpush1.msra.mxu0 0.0
  %5511 = vmatprep.subr.mxu0 0.0
  %5512 = vmatpush1.msra.mxu0 0.0
  %5513 = vmatprep.subr.mxu0 0.0
  %5514 = vmatpush1.msra.mxu0 0.0
  %5515 = vmatprep.subr.mxu0 0.0
  %5516 = vmatpush1.msra.mxu0 0.0
  %5517 = vmatprep.subr.mxu0 0.0
  %5518 = vmatpush1.msra.mxu0 0.0
  %5519 = vmatprep.subr.mxu0 0.0
  %5520 = vmatpush1.msra.mxu0 0.0
  %5521 = vmatprep.subr.mxu0 0.0
  %5522 = vmatpush1.msra.mxu0 0.0
  %5523 = vmatprep.subr.mxu0 0.0
  %5524 = vmatpush1.msra.mxu0 0.0
  %5525 = vmatprep.subr.mxu0 0.0
  %5526 = vmatpush1.msra.mxu0 0.0
  %5527 = vmatprep.subr.mxu0 0.0
  %5528 = vmatpush1.msra.mxu0 0.0
  %5529 = vmatprep.subr.mxu0 0.0
  %5530 = vmatpush1.msra.mxu0 0.0
  %5531 = vmatprep.subr.mxu0 0.0
  %5532 = vmatpush1.msra.mxu0 0.0
  %5533 = vmatprep.subr.mxu0 0.0
  %5534 = vmatpush1.msra.mxu0 0.0
  %5535 = vmatprep.subr.mxu0 0.0
  %5536 = vmatpush1.msra.mxu0 0.0
  %5537 = vmatprep.subr.mxu0 0.0
  %5538 = vmatpush1.msra.mxu0 0.0
  %5539 = vmatprep.subr.mxu0 0.0
  %5540 = vmatpush1.msra.mxu0 0.0
  %5541 = vmatprep.subr.mxu0 0.0
  %5542 = vmatpush1.msra.mxu0 0.0
  %5543 = vmatprep.subr.mxu0 0.0
  %5544 = vmatpush1.msra.mxu0 0.0
  %5545 = vmatprep.subr.mxu0 0.0
  %5546 = vmatpush1.msra.mxu0 0.0
  %5547 = vmatprep.mubr.f32.mxu0 0.0
  %5548 = vmatmul.mubr.f32.gmra.mrb[0].mxu0 %v5401
  %v5549 = vpop.f32.mrb[0].mxu0
  %v5550 = vadd.f32 0.0, %v5549
  %v5551 = vpop.f32.mrb[0].mxu0
  %v5552 = vadd.f32 0.0, %v5551
  %5553 = vmatprep.mubr.f32.mxu0 0.0
  %5554 = vmatmul.mubr.f32.gmra.mrb[0].mxu0 %v5404
  %v5555 = vpop.f32.mrb[0].mxu0
  %v5556 = vadd.f32 0.0, %v5555
  %v5557 = vpop.f32.mrb[0].mxu0
  %v5558 = vadd.f32 0.0, %v5557
  %5559 = vdwg.mxu0
  %5561 = vset.pattern.permute.xlu0 0
  %5562 = vperm.xlu0 %5561, %v4251
  %v5563 = vpop.permute.xlu0 %5562
  %5566 = vset.pattern.permute.xlu0 0
  %5567 = vperm.xlu0 %5566, %v4252
  %v5568 = vpop.permute.xlu0 %5567
  %v5570 = vmul.f32 %v5473, %v5563
  %v5571 = vmul.f32 %v5475, %v5563
  %v5572 = vmul.f32 %v5550, %v5563
  %v5573 = vmul.f32 %v5552, %v5563
  %v5574 = vmul.f32 %v5479, %v5568
  %v5575 = vmul.f32 %v5481, %v5568
  %v5576 = vmul.f32 %v5556, %v5568
  %v5577 = vmul.f32 %v5558, %v5568
  %5579 = vset.pattern.permute.xlu0 0
  %5580 = vperm.xlu0 %5579, %v4254
  %v5581 = vpop.permute.xlu0 %5580
  %5584 = vset.pattern.permute.xlu0 0
  %5585 = vperm.xlu0 %5584, %v4255
  %v5586 = vpop.permute.xlu0 %5585
  %v5588 = vadd.f32 %v5570, %v5581
  %v5589 = vadd.f32 %v5571, %v5581
  %v5590 = vadd.f32 %v5572, %v5581
  %v5591 = vadd.f32 %v5573, %v5581
  %v5592 = vadd.f32 %v5574, %v5586
  %v5593 = vadd.f32 %v5575, %v5586
  %v5594 = vadd.f32 %v5576, %v5586
  %v5595 = vadd.f32 %v5577, %v5586
  %5596 = vrot.lane.b32.xlu0 %v2852, 17
  %v5597 = vpop.permute.xlu0 %5596
  %5598 = vrot.lane.b32.xlu0 %v2856, 17
  %v5599 = vpop.permute.xlu0 %5598
  %5600 = vrot.lane.b32.xlu0 %v2853, 17
  %v5601 = vpop.permute.xlu0 %5600
  %5602 = vrot.lane.b32.xlu0 %v2857, 17
  %v5603 = vpop.permute.xlu0 %5602
  %5604 = vrot.lane.b32.xlu0 %v2854, 17
  %v5605 = vpop.permute.xlu0 %5604
  %5606 = vrot.lane.b32.xlu0 %v2858, 17
  %v5607 = vpop.permute.xlu0 %5606
  %5608 = vrot.lane.b32.xlu0 %v2855, 17
  %v5609 = vpop.permute.xlu0 %5608
  %5610 = vrot.lane.b32.xlu0 %v2859, 17
  %v5611 = vpop.permute.xlu0 %5610
  %v5612 = vsel %vm547, %v5605, %v5609
  %v5613 = vsel %vm547, %v5607, %v5611
  %v5614 = vsel %vm547, %v5601, %v5605
  %v5615 = vsel %vm547, %v5603, %v5607
  %v5616 = vsel %vm547, %v5597, %v5601
  %v5617 = vsel %vm547, %v5599, %v5603
  %v5618 = vsel %vm547, %v5609, %v5597
  %v5619 = vsel %vm547, %v5611, %v5599
  %v5620 = vsel %vm2055, %v5618, -3e+38
  %v5621 = vsel %vm2056, %v5616, -3e+38
  %v5622 = vsel %vm2057, %v5614, -3e+38
  %v5623 = vsel %vm2058, %v5612, -3e+38
  %v5624 = vsel %vm2055, %v5619, -3e+38
  %v5625 = vsel %vm2056, %v5617, -3e+38
  %v5626 = vsel %vm2057, %v5615, -3e+38
  %v5627 = vsel %vm2058, %v5613, -3e+38
  %5628 = vrot.lane.b32.xlu0 %v2852, 16
  %v5629 = vpop.permute.xlu0 %5628
  %5630 = vrot.lane.b32.xlu0 %v2856, 16
  %v5631 = vpop.permute.xlu0 %5630
  %5632 = vrot.lane.b32.xlu0 %v2853, 16
  %v5633 = vpop.permute.xlu0 %5632
  %5634 = vrot.lane.b32.xlu0 %v2857, 16
  %v5635 = vpop.permute.xlu0 %5634
  %5636 = vrot.lane.b32.xlu0 %v2854, 16
  %v5637 = vpop.permute.xlu0 %5636
  %5638 = vrot.lane.b32.xlu0 %v2858, 16
  %v5639 = vpop.permute.xlu0 %5638
  %5640 = vrot.lane.b32.xlu0 %v2855, 16
  %v5641 = vpop.permute.xlu0 %5640
  %5642 = vrot.lane.b32.xlu0 %v2859, 16
  %v5643 = vpop.permute.xlu0 %5642
  %v5644 = vsel %vm614, %v5637, %v5641
  %v5645 = vsel %vm614, %v5639, %v5643
  %v5646 = vsel %vm614, %v5633, %v5637
  %v5647 = vsel %vm614, %v5635, %v5639
  %v5648 = vsel %vm614, %v5629, %v5633
  %v5649 = vsel %vm614, %v5631, %v5635
  %v5650 = vsel %vm614, %v5641, %v5629
  %v5651 = vsel %vm614, %v5643, %v5631
  %v5652 = vsel %vm2107, %v5650, -3e+38
  %v5653 = vsel %vm2108, %v5648, -3e+38
  %v5654 = vsel %vm2109, %v5646, -3e+38
  %v5655 = vsel %vm2110, %v5644, -3e+38
  %v5656 = vsel %vm2107, %v5651, -3e+38
  %v5657 = vsel %vm2108, %v5649, -3e+38
  %v5658 = vsel %vm2109, %v5647, -3e+38
  %v5659 = vsel %vm2110, %v5645, -3e+38
  %v5660 = vmax.f32 %v5620, %v5652
  %v5661 = vmax.f32 %v5621, %v5653
  %v5662 = vmax.f32 %v5622, %v5654
  %v5663 = vmax.f32 %v5623, %v5655
  %v5664 = vmax.f32 %v5624, %v5656
  %v5665 = vmax.f32 %v5625, %v5657
  %v5666 = vmax.f32 %v5626, %v5658
  %v5667 = vmax.f32 %v5627, %v5659
  %5668 = vrot.lane.b32.xlu0 %v2852, 15
  %v5669 = vpop.permute.xlu0 %5668
  %5670 = vrot.lane.b32.xlu0 %v2856, 15
  %v5671 = vpop.permute.xlu0 %5670
  %5672 = vrot.lane.b32.xlu0 %v2853, 15
  %v5673 = vpop.permute.xlu0 %5672
  %5674 = vrot.lane.b32.xlu0 %v2857, 15
  %v5675 = vpop.permute.xlu0 %5674
  %5676 = vrot.lane.b32.xlu0 %v2854, 15
  %v5677 = vpop.permute.xlu0 %5676
  %5678 = vrot.lane.b32.xlu0 %v2858, 15
  %v5679 = vpop.permute.xlu0 %5678
  %5680 = vrot.lane.b32.xlu0 %v2855, 15
  %v5681 = vpop.permute.xlu0 %5680
  %5682 = vrot.lane.b32.xlu0 %v2859, 15
  %v5683 = vpop.permute.xlu0 %5682
  %v5684 = vsel %vm687, %v5677, %v5681
  %v5685 = vsel %vm687, %v5679, %v5683
  %v5686 = vsel %vm687, %v5673, %v5677
  %v5687 = vsel %vm687, %v5675, %v5679
  %v5688 = vsel %vm687, %v5669, %v5673
  %v5689 = vsel %vm687, %v5671, %v5675
  %v5690 = vsel %vm687, %v5681, %v5669
  %v5691 = vsel %vm687, %v5683, %v5671
  %v5692 = vsel %vm2167, %v5690, -3e+38
  %v5693 = vsel %vm2168, %v5688, -3e+38
  %v5694 = vsel %vm2169, %v5686, -3e+38
  %v5695 = vsel %vm2170, %v5684, -3e+38
  %v5696 = vsel %vm2167, %v5691, -3e+38
  %v5697 = vsel %vm2168, %v5689, -3e+38
  %v5698 = vsel %vm2169, %v5687, -3e+38
  %v5699 = vsel %vm2170, %v5685, -3e+38
  %v5700 = vmax.f32 %v5660, %v5692
  %v5701 = vmax.f32 %v5661, %v5693
  %v5702 = vmax.f32 %v5662, %v5694
  %v5703 = vmax.f32 %v5663, %v5695
  %v5704 = vmax.f32 %v5664, %v5696
  %v5705 = vmax.f32 %v5665, %v5697
  %v5706 = vmax.f32 %v5666, %v5698
  %v5707 = vmax.f32 %v5667, %v5699
  %5708 = vrot.lane.b32.xlu0 %v2852, 1
  %v5709 = vpop.permute.xlu0 %5708
  %5710 = vrot.lane.b32.xlu0 %v2856, 1
  %v5711 = vpop.permute.xlu0 %5710
  %5712 = vrot.lane.b32.xlu0 %v2853, 1
  %v5713 = vpop.permute.xlu0 %5712
  %5714 = vrot.lane.b32.xlu0 %v2857, 1
  %v5715 = vpop.permute.xlu0 %5714
  %5716 = vrot.lane.b32.xlu0 %v2854, 1
  %v5717 = vpop.permute.xlu0 %5716
  %5718 = vrot.lane.b32.xlu0 %v2858, 1
  %v5719 = vpop.permute.xlu0 %5718
  %5720 = vrot.lane.b32.xlu0 %v2855, 1
  %v5721 = vpop.permute.xlu0 %5720
  %5722 = vrot.lane.b32.xlu0 %v2859, 1
  %v5723 = vpop.permute.xlu0 %5722
  %v5724 = vsel %vm760, %v5717, %v5721
  %v5725 = vsel %vm760, %v5719, %v5723
  %v5726 = vsel %vm760, %v5713, %v5717
  %v5727 = vsel %vm760, %v5715, %v5719
  %v5728 = vsel %vm760, %v5709, %v5713
  %v5729 = vsel %vm760, %v5711, %v5715
  %v5730 = vsel %vm760, %v5721, %v5709
  %v5731 = vsel %vm760, %v5723, %v5711
  %v5732 = vsel %vm2227, %v5730, -3e+38
  %v5733 = vsel %vm2228, %v5728, -3e+38
  %v5734 = vsel %vm2229, %v5726, -3e+38
  %v5735 = vsel %vm2230, %v5724, -3e+38
  %v5736 = vsel %vm2227, %v5731, -3e+38
  %v5737 = vsel %vm2228, %v5729, -3e+38
  %v5738 = vsel %vm2229, %v5727, -3e+38
  %v5739 = vsel %vm2230, %v5725, -3e+38
  %v5740 = vmax.f32 %v5700, %v5732
  %v5741 = vmax.f32 %v5701, %v5733
  %v5742 = vmax.f32 %v5702, %v5734
  %v5743 = vmax.f32 %v5703, %v5735
  %v5744 = vmax.f32 %v5704, %v5736
  %v5745 = vmax.f32 %v5705, %v5737
  %v5746 = vmax.f32 %v5706, %v5738
  %v5747 = vmax.f32 %v5707, %v5739
  %v5748 = vmax.f32 %v5740, %v2852
  %v5749 = vmax.f32 %v5741, %v2853
  %v5750 = vmax.f32 %v5742, %v2854
  %v5751 = vmax.f32 %v5743, %v2855
  %v5752 = vmax.f32 %v5744, %v2856
  %v5753 = vmax.f32 %v5745, %v2857
  %v5754 = vmax.f32 %v5746, %v2858
  %v5755 = vmax.f32 %v5747, %v2859
  %5756 = vrot.lane.b32.xlu0 %v2852, 127
  %v5757 = vpop.permute.xlu0 %5756
  %5758 = vrot.lane.b32.xlu0 %v2856, 127
  %v5759 = vpop.permute.xlu0 %5758
  %5760 = vrot.lane.b32.xlu0 %v2853, 127
  %v5761 = vpop.permute.xlu0 %5760
  %5762 = vrot.lane.b32.xlu0 %v2857, 127
  %v5763 = vpop.permute.xlu0 %5762
  %5764 = vrot.lane.b32.xlu0 %v2854, 127
  %v5765 = vpop.permute.xlu0 %5764
  %5766 = vrot.lane.b32.xlu0 %v2858, 127
  %v5767 = vpop.permute.xlu0 %5766
  %5768 = vrot.lane.b32.xlu0 %v2855, 127
  %v5769 = vpop.permute.xlu0 %5768
  %5770 = vrot.lane.b32.xlu0 %v2859, 127
  %v5771 = vpop.permute.xlu0 %5770
  %v5772 = vsel %vm857, %v5765, %v5769
  %v5773 = vsel %vm857, %v5767, %v5771
  %v5774 = vsel %vm857, %v5761, %v5765
  %v5775 = vsel %vm857, %v5763, %v5767
  %v5776 = vsel %vm857, %v5757, %v5761
  %v5777 = vsel %vm857, %v5759, %v5763
  %v5778 = vsel %vm857, %v5769, %v5757
  %v5779 = vsel %vm857, %v5771, %v5759
  %v5780 = vsel %vm2295, %v5776, -3e+38
  %v5781 = vsel %vm2296, %v5774, -3e+38
  %v5782 = vsel %vm2297, %v5772, -3e+38
  %v5783 = vsel %vm2298, %v5778, -3e+38
  %v5784 = vsel %vm2295, %v5777, -3e+38
  %v5785 = vsel %vm2296, %v5775, -3e+38
  %v5786 = vsel %vm2297, %v5773, -3e+38
  %v5787 = vsel %vm2298, %v5779, -3e+38
  %v5788 = vmax.f32 %v5748, %v5780
  %v5789 = vmax.f32 %v5749, %v5781
  %v5790 = vmax.f32 %v5750, %v5782
  %v5791 = vmax.f32 %v5751, %v5783
  %v5792 = vmax.f32 %v5752, %v5784
  %v5793 = vmax.f32 %v5753, %v5785
  %v5794 = vmax.f32 %v5754, %v5786
  %v5795 = vmax.f32 %v5755, %v5787
  %5796 = vrot.lane.b32.xlu0 %v2852, 113
  %v5797 = vpop.permute.xlu0 %5796
  %5798 = vrot.lane.b32.xlu0 %v2856, 113
  %v5799 = vpop.permute.xlu0 %5798
  %5800 = vrot.lane.b32.xlu0 %v2853, 113
  %v5801 = vpop.permute.xlu0 %5800
  %5802 = vrot.lane.b32.xlu0 %v2857, 113
  %v5803 = vpop.permute.xlu0 %5802
  %5804 = vrot.lane.b32.xlu0 %v2854, 113
  %v5805 = vpop.permute.xlu0 %5804
  %5806 = vrot.lane.b32.xlu0 %v2858, 113
  %v5807 = vpop.permute.xlu0 %5806
  %5808 = vrot.lane.b32.xlu0 %v2855, 113
  %v5809 = vpop.permute.xlu0 %5808
  %5810 = vrot.lane.b32.xlu0 %v2859, 113
  %v5811 = vpop.permute.xlu0 %5810
  %v5812 = vsel %vm930, %v5805, %v5809
  %v5813 = vsel %vm930, %v5807, %v5811
  %v5814 = vsel %vm930, %v5801, %v5805
  %v5815 = vsel %vm930, %v5803, %v5807
  %v5816 = vsel %vm930, %v5797, %v5801
  %v5817 = vsel %vm930, %v5799, %v5803
  %v5818 = vsel %vm930, %v5809, %v5797
  %v5819 = vsel %vm930, %v5811, %v5799
  %v5820 = vsel %vm2355, %v5816, -3e+38
  %v5821 = vsel %vm2356, %v5814, -3e+38
  %v5822 = vsel %vm2357, %v5812, -3e+38
  %v5823 = vsel %vm2358, %v5818, -3e+38
  %v5824 = vsel %vm2355, %v5817, -3e+38
  %v5825 = vsel %vm2356, %v5815, -3e+38
  %v5826 = vsel %vm2357, %v5813, -3e+38
  %v5827 = vsel %vm2358, %v5819, -3e+38
  %v5828 = vmax.f32 %v5788, %v5820
  %v5829 = vmax.f32 %v5789, %v5821
  %v5830 = vmax.f32 %v5790, %v5822
  %v5831 = vmax.f32 %v5791, %v5823
  %v5832 = vmax.f32 %v5792, %v5824
  %v5833 = vmax.f32 %v5793, %v5825
  %v5834 = vmax.f32 %v5794, %v5826
  %v5835 = vmax.f32 %v5795, %v5827
  %5836 = vrot.lane.b32.xlu0 %v2852, 112
  %v5837 = vpop.permute.xlu0 %5836
  %5838 = vrot.lane.b32.xlu0 %v2856, 112
  %v5839 = vpop.permute.xlu0 %5838
  %5840 = vrot.lane.b32.xlu0 %v2853, 112
  %v5841 = vpop.permute.xlu0 %5840
  %5842 = vrot.lane.b32.xlu0 %v2857, 112
  %v5843 = vpop.permute.xlu0 %5842
  %5844 = vrot.lane.b32.xlu0 %v2854, 112
  %v5845 = vpop.permute.xlu0 %5844
  %5846 = vrot.lane.b32.xlu0 %v2858, 112
  %v5847 = vpop.permute.xlu0 %5846
  %5848 = vrot.lane.b32.xlu0 %v2855, 112
  %v5849 = vpop.permute.xlu0 %5848
  %5850 = vrot.lane.b32.xlu0 %v2859, 112
  %v5851 = vpop.permute.xlu0 %5850
  %v5852 = vsel %vm1003, %v5845, %v5849
  %v5853 = vsel %vm1003, %v5847, %v5851
  %v5854 = vsel %vm1003, %v5841, %v5845
  %v5855 = vsel %vm1003, %v5843, %v5847
  %v5856 = vsel %vm1003, %v5837, %v5841
  %v5857 = vsel %vm1003, %v5839, %v5843
  %v5858 = vsel %vm1003, %v5849, %v5837
  %v5859 = vsel %vm1003, %v5851, %v5839
  %v5860 = vsel %vm2415, %v5856, -3e+38
  %v5861 = vsel %vm2416, %v5854, -3e+38
  %v5862 = vsel %vm2417, %v5852, -3e+38
  %v5863 = vsel %vm2418, %v5858, -3e+38
  %v5864 = vsel %vm2415, %v5857, -3e+38
  %v5865 = vsel %vm2416, %v5855, -3e+38
  %v5866 = vsel %vm2417, %v5853, -3e+38
  %v5867 = vsel %vm2418, %v5859, -3e+38
  %v5868 = vmax.f32 %v5828, %v5860
  %v5869 = vmax.f32 %v5829, %v5861
  %v5870 = vmax.f32 %v5830, %v5862
  %v5871 = vmax.f32 %v5831, %v5863
  %v5872 = vmax.f32 %v5832, %v5864
  %v5873 = vmax.f32 %v5833, %v5865
  %v5874 = vmax.f32 %v5834, %v5866
  %v5875 = vmax.f32 %v5835, %v5867
  %5876 = vrot.lane.b32.xlu0 %v2852, 111
  %v5877 = vpop.permute.xlu0 %5876
  %5878 = vrot.lane.b32.xlu0 %v2856, 111
  %v5879 = vpop.permute.xlu0 %5878
  %5880 = vrot.lane.b32.xlu0 %v2853, 111
  %v5881 = vpop.permute.xlu0 %5880
  %5882 = vrot.lane.b32.xlu0 %v2857, 111
  %v5883 = vpop.permute.xlu0 %5882
  %5884 = vrot.lane.b32.xlu0 %v2854, 111
  %v5885 = vpop.permute.xlu0 %5884
  %5886 = vrot.lane.b32.xlu0 %v2858, 111
  %v5887 = vpop.permute.xlu0 %5886
  %5888 = vrot.lane.b32.xlu0 %v2855, 111
  %v5889 = vpop.permute.xlu0 %5888
  %5890 = vrot.lane.b32.xlu0 %v2859, 111
  %v5891 = vpop.permute.xlu0 %5890
  %v5892 = vsel %vm1076, %v5885, %v5889
  %v5893 = vsel %vm1076, %v5887, %v5891
  %v5894 = vsel %vm1076, %v5881, %v5885
  %v5895 = vsel %vm1076, %v5883, %v5887
  %v5896 = vsel %vm1076, %v5877, %v5881
  %v5897 = vsel %vm1076, %v5879, %v5883
  %v5898 = vsel %vm1076, %v5889, %v5877
  %v5899 = vsel %vm1076, %v5891, %v5879
  %v5900 = vsel %vm2483, %v5896, -3e+38
  %v5901 = vsel %vm2484, %v5894, -3e+38
  %v5902 = vsel %vm2485, %v5892, -3e+38
  %v5903 = vsel %vm2486, %v5898, -3e+38
  %v5904 = vsel %vm2483, %v5897, -3e+38
  %v5905 = vsel %vm2484, %v5895, -3e+38
  %v5906 = vsel %vm2485, %v5893, -3e+38
  %v5907 = vsel %vm2486, %v5899, -3e+38
  %v5908 = vmax.f32 %v5868, %v5900
  %v5909 = vmax.f32 %v5869, %v5901
  %v5910 = vmax.f32 %v5870, %v5902
  %v5911 = vmax.f32 %v5871, %v5903
  %v5912 = vmax.f32 %v5872, %v5904
  %v5913 = vmax.f32 %v5873, %v5905
  %v5914 = vmax.f32 %v5874, %v5906
  %v5915 = vmax.f32 %v5875, %v5907
  %v5916 = vadd.f32 %v5588, %v5908
  %v5917 = vadd.f32 %v5589, %v5909
  %v5918 = vadd.f32 %v5590, %v5910
  %v5919 = vadd.f32 %v5591, %v5911
  %v5920 = vadd.f32 %v5592, %v5912
  %v5921 = vadd.f32 %v5593, %v5913
  %v5922 = vadd.f32 %v5594, %v5914
  %v5923 = vadd.f32 %v5595, %v5915
  %5924 = vst [vmem:[%s18] sm:$0xff] %v1999
  %5925 = vst [vmem:[%s18 + $0x8] sm:$0xff] %v2000
  %5926 = vst [vmem:[%s18 + $0x10] sm:$0xff] %v2001
  %5927 = vst [vmem:[%s18 + $0x18] sm:$0xff] %v2002
  %5928 = vst [vmem:[%s18 + $0x20] sm:$0xff] %v2003
  %5929 = vst [vmem:[%s18 + $0x28] sm:$0xff] %v2004
  %5930 = vst [vmem:[%s18 + $0x30] sm:$0xff] %v2005
  %5931 = vst [vmem:[%s18 + $0x38] sm:$0xff] %v2006
  %5932 = vst [vmem:[%s18 + $0x40] sm:$0xff] %v2852
  %5933 = vst [vmem:[%s18 + $0x48] sm:$0xff] %v2853
  %5934 = vst [vmem:[%s18 + $0x50] sm:$0xff] %v2854
  %5935 = vst [vmem:[%s18 + $0x58] sm:$0xff] %v2855
  %5936 = vst [vmem:[%s18 + $0x60] sm:$0xff] %v2856
  %5937 = vst [vmem:[%s18 + $0x68] sm:$0xff] %v2857
  %5938 = vst [vmem:[%s18 + $0x70] sm:$0xff] %v2858
  %5939 = vst [vmem:[%s18 + $0x78] sm:$0xff] %v2859
  %5940 = vst [vmem:[%s18 + $0x80] sm:$0xff] %v4224
  %5941 = vst [vmem:[%s18 + $0x88] sm:$0xff] %v4225
  %5942 = vst [vmem:[%s18 + $0x90] sm:$0xff] %v4226
  %5943 = vst [vmem:[%s18 + $0x98] sm:$0xff] %v4227
  %5944 = vst [vmem:[%s18 + $0xa0] sm:$0xff] %v4228
  %5945 = vst [vmem:[%s18 + $0xa8] sm:$0xff] %v4229
  %5946 = vst [vmem:[%s18 + $0xb0] sm:$0xff] %v4230
  %5947 = vst [vmem:[%s18 + $0xb8] sm:$0xff] %v4231
  %5948 = vst [vmem:[%s18 + $0xc0] sm:$0xff] %v5916
  %5949 = vst [vmem:[%s18 + $0xc8] sm:$0xff] %v5917
  %5950 = vst [vmem:[%s18 + $0xd0] sm:$0xff] %v5918
  %5951 = vst [vmem:[%s18 + $0xd8] sm:$0xff] %v5919
  %5952 = vst [vmem:[%s18 + $0xe0] sm:$0xff] %v5920
  %5953 = vst [vmem:[%s18 + $0xe8] sm:$0xff] %v5921
  %5954 = vst [vmem:[%s18 + $0xf0] sm:$0xff] %v5922
  %5955 = vst [vmem:[%s18 + $0xf8] sm:$0xff] %v5923
  // Predicated region
  $region74: #{a_call__.1} parent=0 // pred_check
    _
  $region75: #{a_call__.1} parent=0 // pred_check_branch
    %5957 = sbr.rel (0) target = $region77
  $region76: #{a_call__.1} parent=0 // pred_region
    _
  $region77: #{a_call__.1} parent=0 // pred_fallthru
    _
  // Predicated region
  $region78: #{a_call__.1} parent=0 // pred_check
    _
  $region79: #{a_call__.1} parent=0 // pred_check_branch
    %5959 = sbr.rel (0) target = $region81
  $region80: #{a_call__.1} parent=0 // pred_region
    _
  $region81: #{a_call__.1} parent=0 // pred_fallthru
    _

</llo_original>
